<compile_context>
chip_gen: v7x
topology: tpu7x:2x2x1
jax: 0.10.0
libtpu: 0.0.40
codegen_flags: <defaults>
</compile_context>

<pallas_src>
import jax
import jax.numpy as jnp
from jax import lax
from jax.experimental import pallas as pl
from jax.experimental.pallas import tpu as pltpu

IN_FEATURES = 64 * 64 * 3   # 12288
HIDDEN = 10
OUT = 6


def mlp_kernel(x_ref, w1_ref, b1_ref, w2_ref, b2_ref, o_ref):
    # Layer 1: (TB, K) @ (K, HIDDEN) on the MXU; bf16 operands, f32 accumulation.
    # The f32 -> bf16 cast of the x tile is done here instead of as a separate
    # HBM pass in the wrapper.
    x_bf16 = x_ref[...].astype(jnp.bfloat16)
    h = jnp.dot(x_bf16, w1_ref[...], preferred_element_type=jnp.float32)
    h = jnp.maximum(h + b1_ref[...], 0.0)                      # bias + ReLU

    # Layer 2 (tiny 10x6) + bias + ReLU, fused into the same kernel invocation.
    o = jnp.dot(h, w2_ref[...], preferred_element_type=jnp.float32) + b2_ref[...]
    o_ref[...] = jnp.maximum(o, 0.0).astype(o_ref.dtype)


def _round_down8(n):
    return max(8, (n // 8) * 8)


def _pick_batch_tile(B, max_tb):
    if B <= 32:
        # Single block == full array dims (also covers B not a multiple of 8).
        return B
    # Aim for >= 4 grid steps (both v7x TCs + DMA/compute overlap) while
    # capping the f32 x tile at max_tb rows (tb=256 f32 => ~25 MiB double-buffered).
    return min(max_tb, _round_down8(pl.cdiv(B, 4)))


def mlp_classifier_forward(x, w1, b1, w2, b2, *, max_tb=256, tb=None):
    """x: (B, 3, 64, 64) f32; w1: (12288, 10); b1: (10,); w2: (10, 6); b2: (6,)."""
    B = x.shape[0]
    x_flat = x.reshape(B, -1)          # free view; stays f32 (no wrapper cast pass)
    K = x_flat.shape[1]
    assert K == IN_FEATURES

    # Weight in natural MXU orientation (K, HIDDEN); one-time bf16 cast of 123K
    # elements is negligible.  Biases / w2 stay f32.
    w1_bf16 = jnp.asarray(w1).astype(jnp.bfloat16)             # (12288, 10)
    b1_2d = jnp.asarray(b1).reshape(1, HIDDEN).astype(jnp.float32)
    w2_f = jnp.asarray(w2).astype(jnp.float32)                 # (10, 6)
    b2_2d = jnp.asarray(b2).reshape(1, OUT).astype(jnp.float32)

    if tb is None:
        tb = _pick_batch_tile(B, max_tb)
    # No jnp.pad: Pallas handles the ragged last batch block.  Tail rows of the
    # partial input block are undefined VMEM, but the matmul is row-independent
    # and the output writeback is clipped to the valid rows.
    grid = (pl.cdiv(B, tb),)

    bytes_accessed = (
        x_flat.size * 4                                        # x read as f32
        + w1_bf16.size * 2
        + b1_2d.size * 4 + w2_f.size * 4 + b2_2d.size * 4
        + B * OUT * 4                                          # output
    )
    cost = pl.CostEstimate(
        flops=2 * B * K * HIDDEN + 2 * B * HIDDEN * OUT,
        transcendentals=0,
        bytes_accessed=int(bytes_accessed),
    )

    out = pl.pallas_call(
        mlp_kernel,
        out_shape=jax.ShapeDtypeStruct((B, OUT), jnp.float32),
        grid_spec=pltpu.PrefetchScalarGridSpec(
            num_scalar_prefetch=0,
            grid=grid,
            in_specs=[
                pl.BlockSpec((tb, K), lambda i: (i, 0)),        # x tile (f32)
                pl.BlockSpec((K, HIDDEN), lambda i: (0, 0)),    # w1 (bf16), resident
                pl.BlockSpec((1, HIDDEN), lambda i: (0, 0)),    # b1, resident
                pl.BlockSpec((HIDDEN, OUT), lambda i: (0, 0)),  # w2, resident
                pl.BlockSpec((1, OUT), lambda i: (0, 0)),       # b2, resident
            ],
            out_specs=pl.BlockSpec((tb, OUT), lambda i: (i, 0)),
        ),
        compiler_params=pltpu.CompilerParams(
            dimension_semantics=("parallel",),                  # batch axis
            # Default scoped VMEM (16 MiB v5e / 32 MiB v6e, v7x) is too small
            # for the f32 x tile + resident weight; 56 MiB leaves headroom
            # even under v7x's 64 MiB physical VMEM.
            vmem_limit_bytes=56 * 1024 * 1024,
        ),
        cost_estimate=cost,
    )(x_flat, w1_bf16, b1_2d, w2_f, b2_2d)
    return out


def init_params(key):
    """Deterministic init mimicking torch.nn.Linear (uniform +/- 1/sqrt(fan_in))."""
    k1, k2, k3, k4 = jax.random.split(key, 4)
    bound1 = 1.0 / jnp.sqrt(jnp.float32(IN_FEATURES))
    bound2 = 1.0 / jnp.sqrt(jnp.float32(HIDDEN))
    # Stored in natural (in_features, out_features) MXU orientation so the
    # forward is x @ W with no runtime transpose.
    w1 = jax.random.uniform(k1, (IN_FEATURES, HIDDEN), jnp.float32, -bound1, bound1)
    b1 = jax.random.uniform(k2, (HIDDEN,), jnp.float32, -bound1, bound1)
    w2 = jax.random.uniform(k3, (HIDDEN, OUT), jnp.float32, -bound2, bound2)
    b2 = jax.random.uniform(k4, (OUT,), jnp.float32, -bound2, bound2)
    return w1, b1, w2, b2


def reference_forward(x, w1, b1, w2, b2):
    # Apples-to-apples reference: same bf16 rounding of x/w1 as the kernel's
    # in-kernel cast, exact f32 matmuls.  (Deliberate precision divergence from
    # the pure-f32 torch model; expect ~1e-3-level differences vs. f32.)
    xf = x.reshape(x.shape[0], -1).astype(jnp.bfloat16).astype(jnp.float32)
    w1f = w1.astype(jnp.bfloat16).astype(jnp.float32)
    h = jnp.maximum(jnp.dot(xf, w1f, precision=lax.Precision.HIGHEST) + b1, 0.0)
    o = jnp.dot(h, w2, precision=lax.Precision.HIGHEST) + b2
    return jnp.maximum(o, 0.0)


if __name__ == "__main__":
    key = jax.random.PRNGKey(0)
    kx, kp, kx2 = jax.random.split(key, 3)

    w1, b1, w2, b2 = init_params(kp)

    # Case 1: small batch, single block (block == full array dims).
    B = 2
    x = jax.random.normal(kx, (B, 3, 64, 64), dtype=jnp.float32)
    out = jax.block_until_ready(mlp_classifier_forward(x, w1, b1, w2, b2))
    ref = reference_forward(x, w1, b1, w2, b2)
    assert out.shape == (B, OUT)
    assert jnp.allclose(out, ref, atol=2e-3, rtol=2e-3), float(jnp.max(jnp.abs(out - ref)))

    # Case 2: multi-tile + ragged last block (B=20, tb=8 -> grid of 3, last block partial).
    B2 = 20
    x2 = jax.random.normal(kx2, (B2, 3, 64, 64), dtype=jnp.float32)
    out2 = jax.block_until_ready(mlp_classifier_forward(x2, w1, b1, w2, b2, tb=8))
    ref2 = reference_forward(x2, w1, b1, w2, b2)
    assert out2.shape == (B2, OUT)
    assert jnp.allclose(out2, ref2, atol=2e-3, rtol=2e-3), float(jnp.max(jnp.abs(out2 - ref2)))

    print("KERNEL_OK")
</pallas_src>

<mosaic_0001>
module attributes {stable_mosaic.version = 11 : i64} {
  func.func @mlp_kernel(%arg0: i32, %arg1: memref<2x12288xf32, #tpu.memory_space<vmem>>, %arg2: memref<12288x10xbf16, #tpu.memory_space<vmem>>, %arg3: memref<1x10xf32, #tpu.memory_space<vmem>>, %arg4: memref<10x6xf32, #tpu.memory_space<vmem>>, %arg5: memref<1x6xf32, #tpu.memory_space<vmem>>, %arg6: memref<2x6xf32, #tpu.memory_space<vmem>>) attributes {dimension_semantics = [#tpu.dimension_semantics<parallel>], iteration_bounds = array<i64: 1>, scalar_prefetch = 0 : i64, scratch_operands = 0 : i64, tpu.core_type = #tpu.core_type<tc>, window_params = [{transform_indices = @transform_0, window_bounds = array<i64: 2, 12288>}, {pipeline_mode = #tpu.pipeline_mode<synchronous>, transform_indices = @transform_1, window_bounds = array<i64: 12288, 10>}, {pipeline_mode = #tpu.pipeline_mode<synchronous>, transform_indices = @transform_2, window_bounds = array<i64: 1, 10>}, {pipeline_mode = #tpu.pipeline_mode<synchronous>, transform_indices = @transform_3, window_bounds = array<i64: 10, 6>}, {pipeline_mode = #tpu.pipeline_mode<synchronous>, transform_indices = @transform_4, window_bounds = array<i64: 1, 6>}, {transform_indices = @transform_5, window_bounds = array<i64: 2, 6>}]} {
    %c0 = arith.constant 0 : index
    %c0_0 = arith.constant 0 : index
    %0 = vector.load %arg1[%c0, %c0_0] : memref<2x12288xf32, #tpu.memory_space<vmem>>, vector<2x12288xf32>
    %1 = arith.truncf %0 : vector<2x12288xf32> to vector<2x12288xbf16>
    %c0_1 = arith.constant 0 : index
    %c0_2 = arith.constant 0 : index
    %2 = vector.load %arg2[%c0_1, %c0_2] : memref<12288x10xbf16, #tpu.memory_space<vmem>>, vector<12288x10xbf16>
    %cst = arith.constant dense<0.000000e+00> : vector<2x10xf32>
    %3 = tpu.matmul %1, %2, %cst {dimension_numbers = #tpu.dot_dimension_numbers<[1], [0], [0], [1], [0, 0, 1, 1], [], []>} : vector<2x12288xbf16>, vector<12288x10xbf16>, vector<2x10xf32> -> vector<2x10xf32>
    %c0_3 = arith.constant 0 : index
    %c0_4 = arith.constant 0 : index
    %4 = vector.load %arg3[%c0_3, %c0_4] : memref<1x10xf32, #tpu.memory_space<vmem>>, vector<1x10xf32>
    %5 = vector.broadcast %4 : vector<1x10xf32> to vector<2x10xf32>
    %6 = arith.addf %3, %5 : vector<2x10xf32>
    %cst_5 = arith.constant 0.000000e+00 : f32
    %7 = vector.broadcast %cst_5 : f32 to vector<2x10xf32>
    %8 = arith.maximumf %6, %7 : vector<2x10xf32>
    %c0_6 = arith.constant 0 : index
    %c0_7 = arith.constant 0 : index
    %9 = vector.load %arg4[%c0_6, %c0_7] : memref<10x6xf32, #tpu.memory_space<vmem>>, vector<10x6xf32>
    %cst_8 = arith.constant dense<0.000000e+00> : vector<2x6xf32>
    %10 = tpu.matmul %8, %9, %cst_8 {dimension_numbers = #tpu.dot_dimension_numbers<[1], [0], [0], [1], [0, 0, 1, 1], [], []>} : vector<2x10xf32>, vector<10x6xf32>, vector<2x6xf32> -> vector<2x6xf32>
    %c0_9 = arith.constant 0 : index
    %c0_10 = arith.constant 0 : index
    %11 = vector.load %arg5[%c0_9, %c0_10] : memref<1x6xf32, #tpu.memory_space<vmem>>, vector<1x6xf32>
    %12 = vector.broadcast %11 : vector<1x6xf32> to vector<2x6xf32>
    %13 = arith.addf %10, %12 : vector<2x6xf32>
    %cst_11 = arith.constant 0.000000e+00 : f32
    %14 = vector.broadcast %cst_11 : f32 to vector<2x6xf32>
    %15 = arith.maximumf %13, %14 : vector<2x6xf32>
    %c0_12 = arith.constant 0 : index
    %c0_13 = arith.constant 0 : index
    %16 = vector.load %arg6[%c0_12, %c0_13] : memref<2x6xf32, #tpu.memory_space<vmem>>, vector<2x6xf32>
    tpu.vector_store %arg6[%c0_12, %c0_13], %15 {strides = array<i32>} : memref<2x6xf32, #tpu.memory_space<vmem>>, vector<2x6xf32>,
    return
  }
  func.func @transform_0(%arg0: i32) -> (i32, i32) {
    %c0_i32 = arith.constant 0 : i32
    %c0_i32_0 = arith.constant 0 : i32
    return %arg0, %c0_i32 : i32, i32
  }
  func.func @transform_1(%arg0: i32) -> (i32, i32) {
    %c0_i32 = arith.constant 0 : i32
    %c0_i32_0 = arith.constant 0 : i32
    %c0_i32_1 = arith.constant 0 : i32
    return %c0_i32, %c0_i32_0 : i32, i32
  }
  func.func @transform_2(%arg0: i32) -> (i32, i32) {
    %c0_i32 = arith.constant 0 : i32
    %c0_i32_0 = arith.constant 0 : i32
    %c0_i32_1 = arith.constant 0 : i32
    return %c0_i32, %c0_i32_0 : i32, i32
  }
  func.func @transform_3(%arg0: i32) -> (i32, i32) {
    %c0_i32 = arith.constant 0 : i32
    %c0_i32_0 = arith.constant 0 : i32
    %c0_i32_1 = arith.constant 0 : i32
    return %c0_i32, %c0_i32_0 : i32, i32
  }
  func.func @transform_4(%arg0: i32) -> (i32, i32) {
    %c0_i32 = arith.constant 0 : i32
    %c0_i32_0 = arith.constant 0 : i32
    %c0_i32_1 = arith.constant 0 : i32
    return %c0_i32, %c0_i32_0 : i32, i32
  }
  func.func @transform_5(%arg0: i32) -> (i32, i32) {
    %c0_i32 = arith.constant 0 : i32
    %c0_i32_0 = arith.constant 0 : i32
    return %arg0, %c0_i32 : i32, i32
  }
}

</mosaic_0001>

<llo_original>
// kernel: tpu_custom_call.1
$region0: #{tpu_custom_call.1}
  #allocation0 [shape = 'u32[]', space=smem, size = 0x4, offset = 0x4, fixed_abs, tag = 'smem constant byte address 0x4 - core index']
  #allocation1 [shape = 'u32[144,128]{1,0:T(1,128)}', space=vmem, size = 0x12000, scoped, tag = 'internal scratch']
  %s0 = inlined_call_operand.vmem [shape: f32[2,12288], index: 0, kind: input, shape index: {}]
  %s1 = inlined_call_operand.vmem [shape: bf16[12288,10], index: 1, kind: input, shape index: {}]
  %s2 = inlined_call_operand.vmem [shape: f32[1,10], index: 2, kind: input, shape index: {}]
  %s3 = inlined_call_operand.vmem [shape: f32[10,6], index: 3, kind: input, shape index: {}]
  %s4 = inlined_call_operand.vmem [shape: f32[1,6], index: 4, kind: input, shape index: {}]
  %s5 = inlined_call_operand.hbm [shape: f32[2,6], index: 5, kind: output, shape index: {}]
  %s6 = sld [smem:[#allocation0]]
  $region30: #{tpu_custom_call.1} parent=0
    _
  %s8 = ssub.s32 1, %s6
  %s9 = scalar_select 0, %s8, %s6
  $region1: #{tpu_custom_call.1} parent=0
    #allocation2 [shape = 'u8[1024]{0}', space=vmem, size = 0x400, scoped, tag = 'output window, operand 0, single buffered']
    #allocation3 [shape = 's32[1]{0}', space=sflag, size = 0x4, scoped, tag = 'scoped memory for tpu_custom_call.1']
    %10 = vsyncpa [#allocation3], 0
    // Predicated region
    $region2: #{tpu_custom_call.1} parent=1 // pred_check
      _
    $region3: #{tpu_custom_call.1} parent=1 // pred_check_branch
      %12 = sbr.rel (0) target = $region5
    $region4: #{tpu_custom_call.1} parent=1 // pred_region
      _
    $region5: #{tpu_custom_call.1} parent=1 // pred_fallthru
      _
    // Predicated region
    $region6: #{tpu_custom_call.1} parent=1 // pred_check
      _
    $region7: #{tpu_custom_call.1} parent=1 // pred_check_branch
      %14 = sbr.rel (0) target = $region9
    $region8: #{tpu_custom_call.1} parent=1 // pred_region
      _
    $region9: #{tpu_custom_call.1} parent=1 // pred_fallthru
      _
    // Predicated region
    $region10: #{tpu_custom_call.1} parent=1 // pred_check
      _
    $region11: #{tpu_custom_call.1} parent=1 // pred_check_branch
      %16 = sbr.rel (0) target = $region13
    $region12: #{tpu_custom_call.1} parent=1 // pred_region
      _
    $region13: #{tpu_custom_call.1} parent=1 // pred_fallthru
      _
    // Predicated region
    $region14: #{tpu_custom_call.1} parent=1 // pred_check
      _
    $region15: #{tpu_custom_call.1} parent=1 // pred_check_branch
      %18 = sbr.rel (0) target = $region17
    $region16: #{tpu_custom_call.1} parent=1 // pred_region
      _
    $region17: #{tpu_custom_call.1} parent=1 // pred_fallthru
      _
    // Predicated region
    $region18: #{tpu_custom_call.1} parent=1 // pred_check
      _
    $region19: #{tpu_custom_call.1} parent=1 // pred_check_branch
      %20 = sbr.rel (0) target = $region21
    $region20: #{tpu_custom_call.1} parent=1 // pred_region
      _
    $region21: #{tpu_custom_call.1} parent=1 // pred_fallthru
      _
    %v22 = vld [vmem:[%s0] sm:$0xff]
    %v23 = vld [vmem:[%s0 + $0x8] sm:$0xff]
    %v24 = vld [vmem:[%s0 + $0x10] sm:$0xff]
    %v25 = vld [vmem:[%s0 + $0x18] sm:$0xff]
    %v26 = vld [vmem:[%s0 + $0x20] sm:$0xff]
    %v27 = vld [vmem:[%s0 + $0x28] sm:$0xff]
    %v28 = vld [vmem:[%s0 + $0x30] sm:$0xff]
    %v29 = vld [vmem:[%s0 + $0x38] sm:$0xff]
    %v30 = vld [vmem:[%s0 + $0x40] sm:$0xff]
    %v31 = vld [vmem:[%s0 + $0x48] sm:$0xff]
    %v32 = vld [vmem:[%s0 + $0x50] sm:$0xff]
    %v33 = vld [vmem:[%s0 + $0x58] sm:$0xff]
    %v34 = vld [vmem:[%s0 + $0x60] sm:$0xff]
    %v35 = vld [vmem:[%s0 + $0x68] sm:$0xff]
    %v36 = vld [vmem:[%s0 + $0x70] sm:$0xff]
    %v37 = vld [vmem:[%s0 + $0x78] sm:$0xff]
    %v38 = vld [vmem:[%s0 + $0x80] sm:$0xff]
    %v39 = vld [vmem:[%s0 + $0x88] sm:$0xff]
    %v40 = vld [vmem:[%s0 + $0x90] sm:$0xff]
    %v41 = vld [vmem:[%s0 + $0x98] sm:$0xff]
    %v42 = vld [vmem:[%s0 + $0xa0] sm:$0xff]
    %v43 = vld [vmem:[%s0 + $0xa8] sm:$0xff]
    %v44 = vld [vmem:[%s0 + $0xb0] sm:$0xff]
    %v45 = vld [vmem:[%s0 + $0xb8] sm:$0xff]
    %v70 = vcombine.high %v22, %v22
    %v72 = vunpack.c.l.s4 1983009808
    %v73 = vunpack.c.0.s8 %v72
    %v74 = vlaneseq
    %v75 = vshrl.u32 %v74, 7
    %v76 = vsub.s32 %v73, %v75
    %v77 = vrot.slane %v22, %v76
    %v79 = vunpack.c.l.s4 1983009808
    %v80 = vunpack.c.0.s8 %v79
    %v81 = vlaneseq
    %v82 = vshrl.u32 %v81, 7
    %v83 = vsub.s32 %v80, %v82
    %v84 = vrot.slane %v70, %v83
    %v85 = vcombine.high %v77, %v77
    %v86 = vcombine.high %v84, %v84
    %v87 = vcombine.high %v23, %v23
    %v89 = vunpack.c.l.s4 1983009808
    %v90 = vunpack.c.0.s8 %v89
    %v91 = vlaneseq
    %v92 = vshrl.u32 %v91, 7
    %v93 = vsub.s32 %v90, %v92
    %v94 = vrot.slane %v23, %v93
    %v96 = vunpack.c.l.s4 1983009808
    %v97 = vunpack.c.0.s8 %v96
    %v98 = vlaneseq
    %v99 = vshrl.u32 %v98, 7
    %v100 = vsub.s32 %v97, %v99
    %v101 = vrot.slane %v87, %v100
    %v102 = vcombine.high %v94, %v94
    %v103 = vcombine.high %v101, %v101
    %v104 = vcombine.high %v24, %v24
    %v106 = vunpack.c.l.s4 1983009808
    %v107 = vunpack.c.0.s8 %v106
    %v108 = vlaneseq
    %v109 = vshrl.u32 %v108, 7
    %v110 = vsub.s32 %v107, %v109
    %v111 = vrot.slane %v24, %v110
    %v113 = vunpack.c.l.s4 1983009808
    %v114 = vunpack.c.0.s8 %v113
    %v115 = vlaneseq
    %v116 = vshrl.u32 %v115, 7
    %v117 = vsub.s32 %v114, %v116
    %v118 = vrot.slane %v104, %v117
    %v119 = vcombine.high %v111, %v111
    %v120 = vcombine.high %v118, %v118
    %v121 = vcombine.high %v25, %v25
    %v123 = vunpack.c.l.s4 1983009808
    %v124 = vunpack.c.0.s8 %v123
    %v125 = vlaneseq
    %v126 = vshrl.u32 %v125, 7
    %v127 = vsub.s32 %v124, %v126
    %v128 = vrot.slane %v25, %v127
    %v130 = vunpack.c.l.s4 1983009808
    %v131 = vunpack.c.0.s8 %v130
    %v132 = vlaneseq
    %v133 = vshrl.u32 %v132, 7
    %v134 = vsub.s32 %v131, %v133
    %v135 = vrot.slane %v121, %v134
    %v136 = vcombine.high %v128, %v128
    %v137 = vcombine.high %v135, %v135
    %v138 = vcombine.high %v26, %v26
    %v140 = vunpack.c.l.s4 1983009808
    %v141 = vunpack.c.0.s8 %v140
    %v142 = vlaneseq
    %v143 = vshrl.u32 %v142, 7
    %v144 = vsub.s32 %v141, %v143
    %v145 = vrot.slane %v26, %v144
    %v147 = vunpack.c.l.s4 1983009808
    %v148 = vunpack.c.0.s8 %v147
    %v149 = vlaneseq
    %v150 = vshrl.u32 %v149, 7
    %v151 = vsub.s32 %v148, %v150
    %v152 = vrot.slane %v138, %v151
    %v153 = vcombine.high %v145, %v145
    %v154 = vcombine.high %v152, %v152
    %v155 = vcombine.high %v27, %v27
    %v157 = vunpack.c.l.s4 1983009808
    %v158 = vunpack.c.0.s8 %v157
    %v159 = vlaneseq
    %v160 = vshrl.u32 %v159, 7
    %v161 = vsub.s32 %v158, %v160
    %v162 = vrot.slane %v27, %v161
    %v164 = vunpack.c.l.s4 1983009808
    %v165 = vunpack.c.0.s8 %v164
    %v166 = vlaneseq
    %v167 = vshrl.u32 %v166, 7
    %v168 = vsub.s32 %v165, %v167
    %v169 = vrot.slane %v155, %v168
    %v170 = vcombine.high %v162, %v162
    %v171 = vcombine.high %v169, %v169
    %v172 = vcombine.high %v28, %v28
    %v174 = vunpack.c.l.s4 1983009808
    %v175 = vunpack.c.0.s8 %v174
    %v176 = vlaneseq
    %v177 = vshrl.u32 %v176, 7
    %v178 = vsub.s32 %v175, %v177
    %v179 = vrot.slane %v28, %v178
    %v181 = vunpack.c.l.s4 1983009808
    %v182 = vunpack.c.0.s8 %v181
    %v183 = vlaneseq
    %v184 = vshrl.u32 %v183, 7
    %v185 = vsub.s32 %v182, %v184
    %v186 = vrot.slane %v172, %v185
    %v187 = vcombine.high %v179, %v179
    %v188 = vcombine.high %v186, %v186
    %v189 = vcombine.high %v29, %v29
    %v191 = vunpack.c.l.s4 1983009808
    %v192 = vunpack.c.0.s8 %v191
    %v193 = vlaneseq
    %v194 = vshrl.u32 %v193, 7
    %v195 = vsub.s32 %v192, %v194
    %v196 = vrot.slane %v29, %v195
    %v198 = vunpack.c.l.s4 1983009808
    %v199 = vunpack.c.0.s8 %v198
    %v200 = vlaneseq
    %v201 = vshrl.u32 %v200, 7
    %v202 = vsub.s32 %v199, %v201
    %v203 = vrot.slane %v189, %v202
    %v204 = vcombine.high %v196, %v196
    %v205 = vcombine.high %v203, %v203
    %v206 = vcombine.high %v30, %v30
    %v208 = vunpack.c.l.s4 1983009808
    %v209 = vunpack.c.0.s8 %v208
    %v210 = vlaneseq
    %v211 = vshrl.u32 %v210, 7
    %v212 = vsub.s32 %v209, %v211
    %v213 = vrot.slane %v30, %v212
    %v215 = vunpack.c.l.s4 1983009808
    %v216 = vunpack.c.0.s8 %v215
    %v217 = vlaneseq
    %v218 = vshrl.u32 %v217, 7
    %v219 = vsub.s32 %v216, %v218
    %v220 = vrot.slane %v206, %v219
    %v221 = vcombine.high %v213, %v213
    %v222 = vcombine.high %v220, %v220
    %v223 = vcombine.high %v31, %v31
    %v225 = vunpack.c.l.s4 1983009808
    %v226 = vunpack.c.0.s8 %v225
    %v227 = vlaneseq
    %v228 = vshrl.u32 %v227, 7
    %v229 = vsub.s32 %v226, %v228
    %v230 = vrot.slane %v31, %v229
    %v232 = vunpack.c.l.s4 1983009808
    %v233 = vunpack.c.0.s8 %v232
    %v234 = vlaneseq
    %v235 = vshrl.u32 %v234, 7
    %v236 = vsub.s32 %v233, %v235
    %v237 = vrot.slane %v223, %v236
    %v238 = vcombine.high %v230, %v230
    %v239 = vcombine.high %v237, %v237
    %v240 = vcombine.high %v32, %v32
    %v242 = vunpack.c.l.s4 1983009808
    %v243 = vunpack.c.0.s8 %v242
    %v244 = vlaneseq
    %v245 = vshrl.u32 %v244, 7
    %v246 = vsub.s32 %v243, %v245
    %v247 = vrot.slane %v32, %v246
    %v249 = vunpack.c.l.s4 1983009808
    %v250 = vunpack.c.0.s8 %v249
    %v251 = vlaneseq
    %v252 = vshrl.u32 %v251, 7
    %v253 = vsub.s32 %v250, %v252
    %v254 = vrot.slane %v240, %v253
    %v255 = vcombine.high %v247, %v247
    %v256 = vcombine.high %v254, %v254
    %v257 = vcombine.high %v33, %v33
    %v259 = vunpack.c.l.s4 1983009808
    %v260 = vunpack.c.0.s8 %v259
    %v261 = vlaneseq
    %v262 = vshrl.u32 %v261, 7
    %v263 = vsub.s32 %v260, %v262
    %v264 = vrot.slane %v33, %v263
    %v266 = vunpack.c.l.s4 1983009808
    %v267 = vunpack.c.0.s8 %v266
    %v268 = vlaneseq
    %v269 = vshrl.u32 %v268, 7
    %v270 = vsub.s32 %v267, %v269
    %v271 = vrot.slane %v257, %v270
    %v272 = vcombine.high %v264, %v264
    %v273 = vcombine.high %v271, %v271
    %v274 = vcombine.high %v34, %v34
    %v276 = vunpack.c.l.s4 1983009808
    %v277 = vunpack.c.0.s8 %v276
    %v278 = vlaneseq
    %v279 = vshrl.u32 %v278, 7
    %v280 = vsub.s32 %v277, %v279
    %v281 = vrot.slane %v34, %v280
    %v283 = vunpack.c.l.s4 1983009808
    %v284 = vunpack.c.0.s8 %v283
    %v285 = vlaneseq
    %v286 = vshrl.u32 %v285, 7
    %v287 = vsub.s32 %v284, %v286
    %v288 = vrot.slane %v274, %v287
    %v289 = vcombine.high %v281, %v281
    %v290 = vcombine.high %v288, %v288
    %v291 = vcombine.high %v35, %v35
    %v293 = vunpack.c.l.s4 1983009808
    %v294 = vunpack.c.0.s8 %v293
    %v295 = vlaneseq
    %v296 = vshrl.u32 %v295, 7
    %v297 = vsub.s32 %v294, %v296
    %v298 = vrot.slane %v35, %v297
    %v300 = vunpack.c.l.s4 1983009808
    %v301 = vunpack.c.0.s8 %v300
    %v302 = vlaneseq
    %v303 = vshrl.u32 %v302, 7
    %v304 = vsub.s32 %v301, %v303
    %v305 = vrot.slane %v291, %v304
    %v306 = vcombine.high %v298, %v298
    %v307 = vcombine.high %v305, %v305
    %v308 = vcombine.high %v36, %v36
    %v310 = vunpack.c.l.s4 1983009808
    %v311 = vunpack.c.0.s8 %v310
    %v312 = vlaneseq
    %v313 = vshrl.u32 %v312, 7
    %v314 = vsub.s32 %v311, %v313
    %v315 = vrot.slane %v36, %v314
    %v317 = vunpack.c.l.s4 1983009808
    %v318 = vunpack.c.0.s8 %v317
    %v319 = vlaneseq
    %v320 = vshrl.u32 %v319, 7
    %v321 = vsub.s32 %v318, %v320
    %v322 = vrot.slane %v308, %v321
    %v323 = vcombine.high %v315, %v315
    %v324 = vcombine.high %v322, %v322
    %v325 = vcombine.high %v37, %v37
    %v327 = vunpack.c.l.s4 1983009808
    %v328 = vunpack.c.0.s8 %v327
    %v329 = vlaneseq
    %v330 = vshrl.u32 %v329, 7
    %v331 = vsub.s32 %v328, %v330
    %v332 = vrot.slane %v37, %v331
    %v334 = vunpack.c.l.s4 1983009808
    %v335 = vunpack.c.0.s8 %v334
    %v336 = vlaneseq
    %v337 = vshrl.u32 %v336, 7
    %v338 = vsub.s32 %v335, %v337
    %v339 = vrot.slane %v325, %v338
    %v340 = vcombine.high %v332, %v332
    %v341 = vcombine.high %v339, %v339
    %v342 = vcombine.high %v38, %v38
    %v344 = vunpack.c.l.s4 1983009808
    %v345 = vunpack.c.0.s8 %v344
    %v346 = vlaneseq
    %v347 = vshrl.u32 %v346, 7
    %v348 = vsub.s32 %v345, %v347
    %v349 = vrot.slane %v38, %v348
    %v351 = vunpack.c.l.s4 1983009808
    %v352 = vunpack.c.0.s8 %v351
    %v353 = vlaneseq
    %v354 = vshrl.u32 %v353, 7
    %v355 = vsub.s32 %v352, %v354
    %v356 = vrot.slane %v342, %v355
    %v357 = vcombine.high %v349, %v349
    %v358 = vcombine.high %v356, %v356
    %v359 = vcombine.high %v39, %v39
    %v361 = vunpack.c.l.s4 1983009808
    %v362 = vunpack.c.0.s8 %v361
    %v363 = vlaneseq
    %v364 = vshrl.u32 %v363, 7
    %v365 = vsub.s32 %v362, %v364
    %v366 = vrot.slane %v39, %v365
    %v368 = vunpack.c.l.s4 1983009808
    %v369 = vunpack.c.0.s8 %v368
    %v370 = vlaneseq
    %v371 = vshrl.u32 %v370, 7
    %v372 = vsub.s32 %v369, %v371
    %v373 = vrot.slane %v359, %v372
    %v374 = vcombine.high %v366, %v366
    %v375 = vcombine.high %v373, %v373
    %v376 = vcombine.high %v40, %v40
    %v378 = vunpack.c.l.s4 1983009808
    %v379 = vunpack.c.0.s8 %v378
    %v380 = vlaneseq
    %v381 = vshrl.u32 %v380, 7
    %v382 = vsub.s32 %v379, %v381
    %v383 = vrot.slane %v40, %v382
    %v385 = vunpack.c.l.s4 1983009808
    %v386 = vunpack.c.0.s8 %v385
    %v387 = vlaneseq
    %v388 = vshrl.u32 %v387, 7
    %v389 = vsub.s32 %v386, %v388
    %v390 = vrot.slane %v376, %v389
    %v391 = vcombine.high %v383, %v383
    %v392 = vcombine.high %v390, %v390
    %v393 = vcombine.high %v41, %v41
    %v395 = vunpack.c.l.s4 1983009808
    %v396 = vunpack.c.0.s8 %v395
    %v397 = vlaneseq
    %v398 = vshrl.u32 %v397, 7
    %v399 = vsub.s32 %v396, %v398
    %v400 = vrot.slane %v41, %v399
    %v402 = vunpack.c.l.s4 1983009808
    %v403 = vunpack.c.0.s8 %v402
    %v404 = vlaneseq
    %v405 = vshrl.u32 %v404, 7
    %v406 = vsub.s32 %v403, %v405
    %v407 = vrot.slane %v393, %v406
    %v408 = vcombine.high %v400, %v400
    %v409 = vcombine.high %v407, %v407
    %v410 = vcombine.high %v42, %v42
    %v412 = vunpack.c.l.s4 1983009808
    %v413 = vunpack.c.0.s8 %v412
    %v414 = vlaneseq
    %v415 = vshrl.u32 %v414, 7
    %v416 = vsub.s32 %v413, %v415
    %v417 = vrot.slane %v42, %v416
    %v419 = vunpack.c.l.s4 1983009808
    %v420 = vunpack.c.0.s8 %v419
    %v421 = vlaneseq
    %v422 = vshrl.u32 %v421, 7
    %v423 = vsub.s32 %v420, %v422
    %v424 = vrot.slane %v410, %v423
    %v425 = vcombine.high %v417, %v417
    %v426 = vcombine.high %v424, %v424
    %v427 = vcombine.high %v43, %v43
    %v429 = vunpack.c.l.s4 1983009808
    %v430 = vunpack.c.0.s8 %v429
    %v431 = vlaneseq
    %v432 = vshrl.u32 %v431, 7
    %v433 = vsub.s32 %v430, %v432
    %v434 = vrot.slane %v43, %v433
    %v436 = vunpack.c.l.s4 1983009808
    %v437 = vunpack.c.0.s8 %v436
    %v438 = vlaneseq
    %v439 = vshrl.u32 %v438, 7
    %v440 = vsub.s32 %v437, %v439
    %v441 = vrot.slane %v427, %v440
    %v442 = vcombine.high %v434, %v434
    %v443 = vcombine.high %v441, %v441
    %v444 = vcombine.high %v44, %v44
    %v446 = vunpack.c.l.s4 1983009808
    %v447 = vunpack.c.0.s8 %v446
    %v448 = vlaneseq
    %v449 = vshrl.u32 %v448, 7
    %v450 = vsub.s32 %v447, %v449
    %v451 = vrot.slane %v44, %v450
    %v453 = vunpack.c.l.s4 1983009808
    %v454 = vunpack.c.0.s8 %v453
    %v455 = vlaneseq
    %v456 = vshrl.u32 %v455, 7
    %v457 = vsub.s32 %v454, %v456
    %v458 = vrot.slane %v444, %v457
    %v459 = vcombine.high %v451, %v451
    %v460 = vcombine.high %v458, %v458
    %v461 = vcombine.high %v45, %v45
    %v463 = vunpack.c.l.s4 1983009808
    %v464 = vunpack.c.0.s8 %v463
    %v465 = vlaneseq
    %v466 = vshrl.u32 %v465, 7
    %v467 = vsub.s32 %v464, %v466
    %v468 = vrot.slane %v45, %v467
    %v470 = vunpack.c.l.s4 1983009808
    %v471 = vunpack.c.0.s8 %v470
    %v472 = vlaneseq
    %v473 = vshrl.u32 %v472, 7
    %v474 = vsub.s32 %v471, %v473
    %v475 = vrot.slane %v461, %v474
    %v476 = vcombine.high %v468, %v468
    %v477 = vcombine.high %v475, %v475
    %v574 = vpack.c.bf16 %v77, %v77
    %v575 = vpack.c.bf16 %v85, %v85
    %v576 = vpack.c.bf16 %v84, %v84
    %v577 = vpack.c.bf16 %v86, %v86
    %v578 = vpack.c.bf16 %v94, %v94
    %v579 = vpack.c.bf16 %v102, %v102
    %v580 = vpack.c.bf16 %v101, %v101
    %v581 = vpack.c.bf16 %v103, %v103
    %v582 = vpack.c.bf16 %v111, %v111
    %v583 = vpack.c.bf16 %v119, %v119
    %v584 = vpack.c.bf16 %v118, %v118
    %v585 = vpack.c.bf16 %v120, %v120
    %v586 = vpack.c.bf16 %v128, %v128
    %v587 = vpack.c.bf16 %v136, %v136
    %v588 = vpack.c.bf16 %v135, %v135
    %v589 = vpack.c.bf16 %v137, %v137
    %v590 = vpack.c.bf16 %v145, %v145
    %v591 = vpack.c.bf16 %v153, %v153
    %v592 = vpack.c.bf16 %v152, %v152
    %v593 = vpack.c.bf16 %v154, %v154
    %v594 = vpack.c.bf16 %v162, %v162
    %v595 = vpack.c.bf16 %v170, %v170
    %v596 = vpack.c.bf16 %v169, %v169
    %v597 = vpack.c.bf16 %v171, %v171
    %v598 = vpack.c.bf16 %v179, %v179
    %v599 = vpack.c.bf16 %v187, %v187
    %v600 = vpack.c.bf16 %v186, %v186
    %v601 = vpack.c.bf16 %v188, %v188
    %v602 = vpack.c.bf16 %v196, %v196
    %v603 = vpack.c.bf16 %v204, %v204
    %v604 = vpack.c.bf16 %v203, %v203
    %v605 = vpack.c.bf16 %v205, %v205
    %v606 = vpack.c.bf16 %v213, %v213
    %v607 = vpack.c.bf16 %v221, %v221
    %v608 = vpack.c.bf16 %v220, %v220
    %v609 = vpack.c.bf16 %v222, %v222
    %v610 = vpack.c.bf16 %v230, %v230
    %v611 = vpack.c.bf16 %v238, %v238
    %v612 = vpack.c.bf16 %v237, %v237
    %v613 = vpack.c.bf16 %v239, %v239
    %v614 = vpack.c.bf16 %v247, %v247
    %v615 = vpack.c.bf16 %v255, %v255
    %v616 = vpack.c.bf16 %v254, %v254
    %v617 = vpack.c.bf16 %v256, %v256
    %v618 = vpack.c.bf16 %v264, %v264
    %v619 = vpack.c.bf16 %v272, %v272
    %v620 = vpack.c.bf16 %v271, %v271
    %v621 = vpack.c.bf16 %v273, %v273
    %v622 = vpack.c.bf16 %v281, %v281
    %v623 = vpack.c.bf16 %v289, %v289
    %v624 = vpack.c.bf16 %v288, %v288
    %v625 = vpack.c.bf16 %v290, %v290
    %v626 = vpack.c.bf16 %v298, %v298
    %v627 = vpack.c.bf16 %v306, %v306
    %v628 = vpack.c.bf16 %v305, %v305
    %v629 = vpack.c.bf16 %v307, %v307
    %v630 = vpack.c.bf16 %v315, %v315
    %v631 = vpack.c.bf16 %v323, %v323
    %v632 = vpack.c.bf16 %v322, %v322
    %v633 = vpack.c.bf16 %v324, %v324
    %v634 = vpack.c.bf16 %v332, %v332
    %v635 = vpack.c.bf16 %v340, %v340
    %v636 = vpack.c.bf16 %v339, %v339
    %v637 = vpack.c.bf16 %v341, %v341
    %v638 = vpack.c.bf16 %v349, %v349
    %v639 = vpack.c.bf16 %v357, %v357
    %v640 = vpack.c.bf16 %v356, %v356
    %v641 = vpack.c.bf16 %v358, %v358
    %v642 = vpack.c.bf16 %v366, %v366
    %v643 = vpack.c.bf16 %v374, %v374
    %v644 = vpack.c.bf16 %v373, %v373
    %v645 = vpack.c.bf16 %v375, %v375
    %v646 = vpack.c.bf16 %v383, %v383
    %v647 = vpack.c.bf16 %v391, %v391
    %v648 = vpack.c.bf16 %v390, %v390
    %v649 = vpack.c.bf16 %v392, %v392
    %v650 = vpack.c.bf16 %v400, %v400
    %v651 = vpack.c.bf16 %v408, %v408
    %v652 = vpack.c.bf16 %v407, %v407
    %v653 = vpack.c.bf16 %v409, %v409
    %v654 = vpack.c.bf16 %v417, %v417
    %v655 = vpack.c.bf16 %v425, %v425
    %v656 = vpack.c.bf16 %v424, %v424
    %v657 = vpack.c.bf16 %v426, %v426
    %v658 = vpack.c.bf16 %v434, %v434
    %v659 = vpack.c.bf16 %v442, %v442
    %v660 = vpack.c.bf16 %v441, %v441
    %v661 = vpack.c.bf16 %v443, %v443
    %v662 = vpack.c.bf16 %v451, %v451
    %v663 = vpack.c.bf16 %v459, %v459
    %v664 = vpack.c.bf16 %v458, %v458
    %v665 = vpack.c.bf16 %v460, %v460
    %v666 = vpack.c.bf16 %v468, %v468
    %v667 = vpack.c.bf16 %v476, %v476
    %v668 = vpack.c.bf16 %v475, %v475
    %v669 = vpack.c.bf16 %v477, %v477
    %v670 = vld [vmem:[%s1] sm:$0xf]
    %v671 = vld [vmem:[%s1 + $0x4] sm:$0xf]
    %v672 = vld [vmem:[%s1 + $0x8] sm:$0xf]
    %v673 = vld [vmem:[%s1 + $0xc] sm:$0xf]
    %v674 = vld [vmem:[%s1 + $0x10] sm:$0xf]
    %v675 = vld [vmem:[%s1 + $0x14] sm:$0xf]
    %v676 = vld [vmem:[%s1 + $0x18] sm:$0xf]
    %v677 = vld [vmem:[%s1 + $0x1c] sm:$0xf]
    %v678 = vld [vmem:[%s1 + $0x20] sm:$0xf]
    %v679 = vld [vmem:[%s1 + $0x24] sm:$0xf]
    %v680 = vld [vmem:[%s1 + $0x28] sm:$0xf]
    %v681 = vld [vmem:[%s1 + $0x2c] sm:$0xf]
    %v682 = vld [vmem:[%s1 + $0x30] sm:$0xf]
    %v683 = vld [vmem:[%s1 + $0x34] sm:$0xf]
    %v684 = vld [vmem:[%s1 + $0x38] sm:$0xf]
    %v685 = vld [vmem:[%s1 + $0x3c] sm:$0xf]
    %v686 = vld [vmem:[%s1 + $0x40] sm:$0xf]
    %v687 = vld [vmem:[%s1 + $0x44] sm:$0xf]
    %v688 = vld [vmem:[%s1 + $0x48] sm:$0xf]
    %v689 = vld [vmem:[%s1 + $0x4c] sm:$0xf]
    %v690 = vld [vmem:[%s1 + $0x50] sm:$0xf]
    %v691 = vld [vmem:[%s1 + $0x54] sm:$0xf]
    %v692 = vld [vmem:[%s1 + $0x58] sm:$0xf]
    %v693 = vld [vmem:[%s1 + $0x5c] sm:$0xf]
    %v694 = vld [vmem:[%s1 + $0x60] sm:$0xf]
    %v695 = vld [vmem:[%s1 + $0x64] sm:$0xf]
    %v696 = vld [vmem:[%s1 + $0x68] sm:$0xf]
    %v697 = vld [vmem:[%s1 + $0x6c] sm:$0xf]
    %v698 = vld [vmem:[%s1 + $0x70] sm:$0xf]
    %v699 = vld [vmem:[%s1 + $0x74] sm:$0xf]
    %v700 = vld [vmem:[%s1 + $0x78] sm:$0xf]
    %v701 = vld [vmem:[%s1 + $0x7c] sm:$0xf]
    %v702 = vld [vmem:[%s1 + $0x80] sm:$0xf]
    %v703 = vld [vmem:[%s1 + $0x84] sm:$0xf]
    %v704 = vld [vmem:[%s1 + $0x88] sm:$0xf]
    %v705 = vld [vmem:[%s1 + $0x8c] sm:$0xf]
    %v706 = vld [vmem:[%s1 + $0x90] sm:$0xf]
    %v707 = vld [vmem:[%s1 + $0x94] sm:$0xf]
    %v708 = vld [vmem:[%s1 + $0x98] sm:$0xf]
    %v709 = vld [vmem:[%s1 + $0x9c] sm:$0xf]
    %v710 = vld [vmem:[%s1 + $0xa0] sm:$0xf]
    %v711 = vld [vmem:[%s1 + $0xa4] sm:$0xf]
    %v712 = vld [vmem:[%s1 + $0xa8] sm:$0xf]
    %v713 = vld [vmem:[%s1 + $0xac] sm:$0xf]
    %v714 = vld [vmem:[%s1 + $0xb0] sm:$0xf]
    %v715 = vld [vmem:[%s1 + $0xb4] sm:$0xf]
    %v716 = vld [vmem:[%s1 + $0xb8] sm:$0xf]
    %v717 = vld [vmem:[%s1 + $0xbc] sm:$0xf]
    %v718 = vld [vmem:[%s1 + $0xc0] sm:$0xf]
    %v719 = vld [vmem:[%s1 + $0xc4] sm:$0xf]
    %v720 = vld [vmem:[%s1 + $0xc8] sm:$0xf]
    %v721 = vld [vmem:[%s1 + $0xcc] sm:$0xf]
    %v722 = vld [vmem:[%s1 + $0xd0] sm:$0xf]
    %v723 = vld [vmem:[%s1 + $0xd4] sm:$0xf]
    %v724 = vld [vmem:[%s1 + $0xd8] sm:$0xf]
    %v725 = vld [vmem:[%s1 + $0xdc] sm:$0xf]
    %v726 = vld [vmem:[%s1 + $0xe0] sm:$0xf]
    %v727 = vld [vmem:[%s1 + $0xe4] sm:$0xf]
    %v728 = vld [vmem:[%s1 + $0xe8] sm:$0xf]
    %v729 = vld [vmem:[%s1 + $0xec] sm:$0xf]
    %v730 = vld [vmem:[%s1 + $0xf0] sm:$0xf]
    %v731 = vld [vmem:[%s1 + $0xf4] sm:$0xf]
    %v732 = vld [vmem:[%s1 + $0xf8] sm:$0xf]
    %v733 = vld [vmem:[%s1 + $0xfc] sm:$0xf]
    %v734 = vld [vmem:[%s1 + $0x100] sm:$0xf]
    %v735 = vld [vmem:[%s1 + $0x104] sm:$0xf]
    %v736 = vld [vmem:[%s1 + $0x108] sm:$0xf]
    %v737 = vld [vmem:[%s1 + $0x10c] sm:$0xf]
    %v738 = vld [vmem:[%s1 + $0x110] sm:$0xf]
    %v739 = vld [vmem:[%s1 + $0x114] sm:$0xf]
    %v740 = vld [vmem:[%s1 + $0x118] sm:$0xf]
    %v741 = vld [vmem:[%s1 + $0x11c] sm:$0xf]
    %v742 = vld [vmem:[%s1 + $0x120] sm:$0xf]
    %v743 = vld [vmem:[%s1 + $0x124] sm:$0xf]
    %v744 = vld [vmem:[%s1 + $0x128] sm:$0xf]
    %v745 = vld [vmem:[%s1 + $0x12c] sm:$0xf]
    %v746 = vld [vmem:[%s1 + $0x130] sm:$0xf]
    %v747 = vld [vmem:[%s1 + $0x134] sm:$0xf]
    %v748 = vld [vmem:[%s1 + $0x138] sm:$0xf]
    %v749 = vld [vmem:[%s1 + $0x13c] sm:$0xf]
    %v750 = vld [vmem:[%s1 + $0x140] sm:$0xf]
    %v751 = vld [vmem:[%s1 + $0x144] sm:$0xf]
    %v752 = vld [vmem:[%s1 + $0x148] sm:$0xf]
    %v753 = vld [vmem:[%s1 + $0x14c] sm:$0xf]
    %v754 = vld [vmem:[%s1 + $0x150] sm:$0xf]
    %v755 = vld [vmem:[%s1 + $0x154] sm:$0xf]
    %v756 = vld [vmem:[%s1 + $0x158] sm:$0xf]
    %v757 = vld [vmem:[%s1 + $0x15c] sm:$0xf]
    %v758 = vld [vmem:[%s1 + $0x160] sm:$0xf]
    %v759 = vld [vmem:[%s1 + $0x164] sm:$0xf]
    %v760 = vld [vmem:[%s1 + $0x168] sm:$0xf]
    %v761 = vld [vmem:[%s1 + $0x16c] sm:$0xf]
    %v762 = vld [vmem:[%s1 + $0x170] sm:$0xf]
    %v763 = vld [vmem:[%s1 + $0x174] sm:$0xf]
    %v764 = vld [vmem:[%s1 + $0x178] sm:$0xf]
    %v765 = vld [vmem:[%s1 + $0x17c] sm:$0xf]
    %v766 = vld [vmem:[%s1 + $0x180] sm:$0xf]
    %v767 = vld [vmem:[%s1 + $0x184] sm:$0xf]
    %v768 = vld [vmem:[%s1 + $0x188] sm:$0xf]
    %v769 = vld [vmem:[%s1 + $0x18c] sm:$0xf]
    %v770 = vld [vmem:[%s1 + $0x190] sm:$0xf]
    %v771 = vld [vmem:[%s1 + $0x194] sm:$0xf]
    %v772 = vld [vmem:[%s1 + $0x198] sm:$0xf]
    %v773 = vld [vmem:[%s1 + $0x19c] sm:$0xf]
    %v774 = vld [vmem:[%s1 + $0x1a0] sm:$0xf]
    %v775 = vld [vmem:[%s1 + $0x1a4] sm:$0xf]
    %v776 = vld [vmem:[%s1 + $0x1a8] sm:$0xf]
    %v777 = vld [vmem:[%s1 + $0x1ac] sm:$0xf]
    %v778 = vld [vmem:[%s1 + $0x1b0] sm:$0xf]
    %v779 = vld [vmem:[%s1 + $0x1b4] sm:$0xf]
    %v780 = vld [vmem:[%s1 + $0x1b8] sm:$0xf]
    %v781 = vld [vmem:[%s1 + $0x1bc] sm:$0xf]
    %v782 = vld [vmem:[%s1 + $0x1c0] sm:$0xf]
    %v783 = vld [vmem:[%s1 + $0x1c4] sm:$0xf]
    %v784 = vld [vmem:[%s1 + $0x1c8] sm:$0xf]
    %v785 = vld [vmem:[%s1 + $0x1cc] sm:$0xf]
    %v786 = vld [vmem:[%s1 + $0x1d0] sm:$0xf]
    %v787 = vld [vmem:[%s1 + $0x1d4] sm:$0xf]
    %v788 = vld [vmem:[%s1 + $0x1d8] sm:$0xf]
    %v789 = vld [vmem:[%s1 + $0x1dc] sm:$0xf]
    %v790 = vld [vmem:[%s1 + $0x1e0] sm:$0xf]
    %v791 = vld [vmem:[%s1 + $0x1e4] sm:$0xf]
    %v792 = vld [vmem:[%s1 + $0x1e8] sm:$0xf]
    %v793 = vld [vmem:[%s1 + $0x1ec] sm:$0xf]
    %v794 = vld [vmem:[%s1 + $0x1f0] sm:$0xf]
    %v795 = vld [vmem:[%s1 + $0x1f4] sm:$0xf]
    %v796 = vld [vmem:[%s1 + $0x1f8] sm:$0xf]
    %v797 = vld [vmem:[%s1 + $0x1fc] sm:$0xf]
    %v798 = vld [vmem:[%s1 + $0x200] sm:$0xf]
    %v799 = vld [vmem:[%s1 + $0x204] sm:$0xf]
    %v800 = vld [vmem:[%s1 + $0x208] sm:$0xf]
    %v801 = vld [vmem:[%s1 + $0x20c] sm:$0xf]
    %v802 = vld [vmem:[%s1 + $0x210] sm:$0xf]
    %v803 = vld [vmem:[%s1 + $0x214] sm:$0xf]
    %v804 = vld [vmem:[%s1 + $0x218] sm:$0xf]
    %v805 = vld [vmem:[%s1 + $0x21c] sm:$0xf]
    %v806 = vld [vmem:[%s1 + $0x220] sm:$0xf]
    %v807 = vld [vmem:[%s1 + $0x224] sm:$0xf]
    %v808 = vld [vmem:[%s1 + $0x228] sm:$0xf]
    %v809 = vld [vmem:[%s1 + $0x22c] sm:$0xf]
    %v810 = vld [vmem:[%s1 + $0x230] sm:$0xf]
    %v811 = vld [vmem:[%s1 + $0x234] sm:$0xf]
    %v812 = vld [vmem:[%s1 + $0x238] sm:$0xf]
    %v813 = vld [vmem:[%s1 + $0x23c] sm:$0xf]
    %v814 = vld [vmem:[%s1 + $0x240] sm:$0xf]
    %v815 = vld [vmem:[%s1 + $0x244] sm:$0xf]
    %v816 = vld [vmem:[%s1 + $0x248] sm:$0xf]
    %v817 = vld [vmem:[%s1 + $0x24c] sm:$0xf]
    %v818 = vld [vmem:[%s1 + $0x250] sm:$0xf]
    %v819 = vld [vmem:[%s1 + $0x254] sm:$0xf]
    %v820 = vld [vmem:[%s1 + $0x258] sm:$0xf]
    %v821 = vld [vmem:[%s1 + $0x25c] sm:$0xf]
    %v822 = vld [vmem:[%s1 + $0x260] sm:$0xf]
    %v823 = vld [vmem:[%s1 + $0x264] sm:$0xf]
    %v824 = vld [vmem:[%s1 + $0x268] sm:$0xf]
    %v825 = vld [vmem:[%s1 + $0x26c] sm:$0xf]
    %v826 = vld [vmem:[%s1 + $0x270] sm:$0xf]
    %v827 = vld [vmem:[%s1 + $0x274] sm:$0xf]
    %v828 = vld [vmem:[%s1 + $0x278] sm:$0xf]
    %v829 = vld [vmem:[%s1 + $0x27c] sm:$0xf]
    %v830 = vld [vmem:[%s1 + $0x280] sm:$0xf]
    %v831 = vld [vmem:[%s1 + $0x284] sm:$0xf]
    %v832 = vld [vmem:[%s1 + $0x288] sm:$0xf]
    %v833 = vld [vmem:[%s1 + $0x28c] sm:$0xf]
    %v834 = vld [vmem:[%s1 + $0x290] sm:$0xf]
    %v835 = vld [vmem:[%s1 + $0x294] sm:$0xf]
    %v836 = vld [vmem:[%s1 + $0x298] sm:$0xf]
    %v837 = vld [vmem:[%s1 + $0x29c] sm:$0xf]
    %v838 = vld [vmem:[%s1 + $0x2a0] sm:$0xf]
    %v839 = vld [vmem:[%s1 + $0x2a4] sm:$0xf]
    %v840 = vld [vmem:[%s1 + $0x2a8] sm:$0xf]
    %v841 = vld [vmem:[%s1 + $0x2ac] sm:$0xf]
    %v842 = vld [vmem:[%s1 + $0x2b0] sm:$0xf]
    %v843 = vld [vmem:[%s1 + $0x2b4] sm:$0xf]
    %v844 = vld [vmem:[%s1 + $0x2b8] sm:$0xf]
    %v845 = vld [vmem:[%s1 + $0x2bc] sm:$0xf]
    %v846 = vld [vmem:[%s1 + $0x2c0] sm:$0xf]
    %v847 = vld [vmem:[%s1 + $0x2c4] sm:$0xf]
    %v848 = vld [vmem:[%s1 + $0x2c8] sm:$0xf]
    %v849 = vld [vmem:[%s1 + $0x2cc] sm:$0xf]
    %v850 = vld [vmem:[%s1 + $0x2d0] sm:$0xf]
    %v851 = vld [vmem:[%s1 + $0x2d4] sm:$0xf]
    %v852 = vld [vmem:[%s1 + $0x2d8] sm:$0xf]
    %v853 = vld [vmem:[%s1 + $0x2dc] sm:$0xf]
    %v854 = vld [vmem:[%s1 + $0x2e0] sm:$0xf]
    %v855 = vld [vmem:[%s1 + $0x2e4] sm:$0xf]
    %v856 = vld [vmem:[%s1 + $0x2e8] sm:$0xf]
    %v857 = vld [vmem:[%s1 + $0x2ec] sm:$0xf]
    %v858 = vld [vmem:[%s1 + $0x2f0] sm:$0xf]
    %v859 = vld [vmem:[%s1 + $0x2f4] sm:$0xf]
    %v860 = vld [vmem:[%s1 + $0x2f8] sm:$0xf]
    %v861 = vld [vmem:[%s1 + $0x2fc] sm:$0xf]
    %v862 = vld [vmem:[%s1 + $0x300] sm:$0xf]
    %v863 = vld [vmem:[%s1 + $0x304] sm:$0xf]
    %v864 = vld [vmem:[%s1 + $0x308] sm:$0xf]
    %v865 = vld [vmem:[%s1 + $0x30c] sm:$0xf]
    %v866 = vld [vmem:[%s1 + $0x310] sm:$0xf]
    %v867 = vld [vmem:[%s1 + $0x314] sm:$0xf]
    %v868 = vld [vmem:[%s1 + $0x318] sm:$0xf]
    %v869 = vld [vmem:[%s1 + $0x31c] sm:$0xf]
    %v870 = vld [vmem:[%s1 + $0x320] sm:$0xf]
    %v871 = vld [vmem:[%s1 + $0x324] sm:$0xf]
    %v872 = vld [vmem:[%s1 + $0x328] sm:$0xf]
    %v873 = vld [vmem:[%s1 + $0x32c] sm:$0xf]
    %v874 = vld [vmem:[%s1 + $0x330] sm:$0xf]
    %v875 = vld [vmem:[%s1 + $0x334] sm:$0xf]
    %v876 = vld [vmem:[%s1 + $0x338] sm:$0xf]
    %v877 = vld [vmem:[%s1 + $0x33c] sm:$0xf]
    %v878 = vld [vmem:[%s1 + $0x340] sm:$0xf]
    %v879 = vld [vmem:[%s1 + $0x344] sm:$0xf]
    %v880 = vld [vmem:[%s1 + $0x348] sm:$0xf]
    %v881 = vld [vmem:[%s1 + $0x34c] sm:$0xf]
    %v882 = vld [vmem:[%s1 + $0x350] sm:$0xf]
    %v883 = vld [vmem:[%s1 + $0x354] sm:$0xf]
    %v884 = vld [vmem:[%s1 + $0x358] sm:$0xf]
    %v885 = vld [vmem:[%s1 + $0x35c] sm:$0xf]
    %v886 = vld [vmem:[%s1 + $0x360] sm:$0xf]
    %v887 = vld [vmem:[%s1 + $0x364] sm:$0xf]
    %v888 = vld [vmem:[%s1 + $0x368] sm:$0xf]
    %v889 = vld [vmem:[%s1 + $0x36c] sm:$0xf]
    %v890 = vld [vmem:[%s1 + $0x370] sm:$0xf]
    %v891 = vld [vmem:[%s1 + $0x374] sm:$0xf]
    %v892 = vld [vmem:[%s1 + $0x378] sm:$0xf]
    %v893 = vld [vmem:[%s1 + $0x37c] sm:$0xf]
    %v894 = vld [vmem:[%s1 + $0x380] sm:$0xf]
    %v895 = vld [vmem:[%s1 + $0x384] sm:$0xf]
    %v896 = vld [vmem:[%s1 + $0x388] sm:$0xf]
    %v897 = vld [vmem:[%s1 + $0x38c] sm:$0xf]
    %v898 = vld [vmem:[%s1 + $0x390] sm:$0xf]
    %v899 = vld [vmem:[%s1 + $0x394] sm:$0xf]
    %v900 = vld [vmem:[%s1 + $0x398] sm:$0xf]
    %v901 = vld [vmem:[%s1 + $0x39c] sm:$0xf]
    %v902 = vld [vmem:[%s1 + $0x3a0] sm:$0xf]
    %v903 = vld [vmem:[%s1 + $0x3a4] sm:$0xf]
    %v904 = vld [vmem:[%s1 + $0x3a8] sm:$0xf]
    %v905 = vld [vmem:[%s1 + $0x3ac] sm:$0xf]
    %v906 = vld [vmem:[%s1 + $0x3b0] sm:$0xf]
    %v907 = vld [vmem:[%s1 + $0x3b4] sm:$0xf]
    %v908 = vld [vmem:[%s1 + $0x3b8] sm:$0xf]
    %v909 = vld [vmem:[%s1 + $0x3bc] sm:$0xf]
    %v910 = vld [vmem:[%s1 + $0x3c0] sm:$0xf]
    %v911 = vld [vmem:[%s1 + $0x3c4] sm:$0xf]
    %v912 = vld [vmem:[%s1 + $0x3c8] sm:$0xf]
    %v913 = vld [vmem:[%s1 + $0x3cc] sm:$0xf]
    %v914 = vld [vmem:[%s1 + $0x3d0] sm:$0xf]
    %v915 = vld [vmem:[%s1 + $0x3d4] sm:$0xf]
    %v916 = vld [vmem:[%s1 + $0x3d8] sm:$0xf]
    %v917 = vld [vmem:[%s1 + $0x3dc] sm:$0xf]
    %v918 = vld [vmem:[%s1 + $0x3e0] sm:$0xf]
    %v919 = vld [vmem:[%s1 + $0x3e4] sm:$0xf]
    %v920 = vld [vmem:[%s1 + $0x3e8] sm:$0xf]
    %v921 = vld [vmem:[%s1 + $0x3ec] sm:$0xf]
    %v922 = vld [vmem:[%s1 + $0x3f0] sm:$0xf]
    %v923 = vld [vmem:[%s1 + $0x3f4] sm:$0xf]
    %v924 = vld [vmem:[%s1 + $0x3f8] sm:$0xf]
    %v925 = vld [vmem:[%s1 + $0x3fc] sm:$0xf]
    %v926 = vld [vmem:[%s1 + $0x400] sm:$0xf]
    %v927 = vld [vmem:[%s1 + $0x404] sm:$0xf]
    %v928 = vld [vmem:[%s1 + $0x408] sm:$0xf]
    %v929 = vld [vmem:[%s1 + $0x40c] sm:$0xf]
    %v930 = vld [vmem:[%s1 + $0x410] sm:$0xf]
    %v931 = vld [vmem:[%s1 + $0x414] sm:$0xf]
    %v932 = vld [vmem:[%s1 + $0x418] sm:$0xf]
    %v933 = vld [vmem:[%s1 + $0x41c] sm:$0xf]
    %v934 = vld [vmem:[%s1 + $0x420] sm:$0xf]
    %v935 = vld [vmem:[%s1 + $0x424] sm:$0xf]
    %v936 = vld [vmem:[%s1 + $0x428] sm:$0xf]
    %v937 = vld [vmem:[%s1 + $0x42c] sm:$0xf]
    %v938 = vld [vmem:[%s1 + $0x430] sm:$0xf]
    %v939 = vld [vmem:[%s1 + $0x434] sm:$0xf]
    %v940 = vld [vmem:[%s1 + $0x438] sm:$0xf]
    %v941 = vld [vmem:[%s1 + $0x43c] sm:$0xf]
    %v942 = vld [vmem:[%s1 + $0x440] sm:$0xf]
    %v943 = vld [vmem:[%s1 + $0x444] sm:$0xf]
    %v944 = vld [vmem:[%s1 + $0x448] sm:$0xf]
    %v945 = vld [vmem:[%s1 + $0x44c] sm:$0xf]
    %v946 = vld [vmem:[%s1 + $0x450] sm:$0xf]
    %v947 = vld [vmem:[%s1 + $0x454] sm:$0xf]
    %v948 = vld [vmem:[%s1 + $0x458] sm:$0xf]
    %v949 = vld [vmem:[%s1 + $0x45c] sm:$0xf]
    %v950 = vld [vmem:[%s1 + $0x460] sm:$0xf]
    %v951 = vld [vmem:[%s1 + $0x464] sm:$0xf]
    %v952 = vld [vmem:[%s1 + $0x468] sm:$0xf]
    %v953 = vld [vmem:[%s1 + $0x46c] sm:$0xf]
    %v954 = vld [vmem:[%s1 + $0x470] sm:$0xf]
    %v955 = vld [vmem:[%s1 + $0x474] sm:$0xf]
    %v956 = vld [vmem:[%s1 + $0x478] sm:$0xf]
    %v957 = vld [vmem:[%s1 + $0x47c] sm:$0xf]
    %v958 = vld [vmem:[%s1 + $0x480] sm:$0xf]
    %v959 = vld [vmem:[%s1 + $0x484] sm:$0xf]
    %v960 = vld [vmem:[%s1 + $0x488] sm:$0xf]
    %v961 = vld [vmem:[%s1 + $0x48c] sm:$0xf]
    %v962 = vld [vmem:[%s1 + $0x490] sm:$0xf]
    %v963 = vld [vmem:[%s1 + $0x494] sm:$0xf]
    %v964 = vld [vmem:[%s1 + $0x498] sm:$0xf]
    %v965 = vld [vmem:[%s1 + $0x49c] sm:$0xf]
    %v966 = vld [vmem:[%s1 + $0x4a0] sm:$0xf]
    %v967 = vld [vmem:[%s1 + $0x4a4] sm:$0xf]
    %v968 = vld [vmem:[%s1 + $0x4a8] sm:$0xf]
    %v969 = vld [vmem:[%s1 + $0x4ac] sm:$0xf]
    %v970 = vld [vmem:[%s1 + $0x4b0] sm:$0xf]
    %v971 = vld [vmem:[%s1 + $0x4b4] sm:$0xf]
    %v972 = vld [vmem:[%s1 + $0x4b8] sm:$0xf]
    %v973 = vld [vmem:[%s1 + $0x4bc] sm:$0xf]
    %v974 = vld [vmem:[%s1 + $0x4c0] sm:$0xf]
    %v975 = vld [vmem:[%s1 + $0x4c4] sm:$0xf]
    %v976 = vld [vmem:[%s1 + $0x4c8] sm:$0xf]
    %v977 = vld [vmem:[%s1 + $0x4cc] sm:$0xf]
    %v978 = vld [vmem:[%s1 + $0x4d0] sm:$0xf]
    %v979 = vld [vmem:[%s1 + $0x4d4] sm:$0xf]
    %v980 = vld [vmem:[%s1 + $0x4d8] sm:$0xf]
    %v981 = vld [vmem:[%s1 + $0x4dc] sm:$0xf]
    %v982 = vld [vmem:[%s1 + $0x4e0] sm:$0xf]
    %v983 = vld [vmem:[%s1 + $0x4e4] sm:$0xf]
    %v984 = vld [vmem:[%s1 + $0x4e8] sm:$0xf]
    %v985 = vld [vmem:[%s1 + $0x4ec] sm:$0xf]
    %v986 = vld [vmem:[%s1 + $0x4f0] sm:$0xf]
    %v987 = vld [vmem:[%s1 + $0x4f4] sm:$0xf]
    %v988 = vld [vmem:[%s1 + $0x4f8] sm:$0xf]
    %v989 = vld [vmem:[%s1 + $0x4fc] sm:$0xf]
    %v990 = vld [vmem:[%s1 + $0x500] sm:$0xf]
    %v991 = vld [vmem:[%s1 + $0x504] sm:$0xf]
    %v992 = vld [vmem:[%s1 + $0x508] sm:$0xf]
    %v993 = vld [vmem:[%s1 + $0x50c] sm:$0xf]
    %v994 = vld [vmem:[%s1 + $0x510] sm:$0xf]
    %v995 = vld [vmem:[%s1 + $0x514] sm:$0xf]
    %v996 = vld [vmem:[%s1 + $0x518] sm:$0xf]
    %v997 = vld [vmem:[%s1 + $0x51c] sm:$0xf]
    %v998 = vld [vmem:[%s1 + $0x520] sm:$0xf]
    %v999 = vld [vmem:[%s1 + $0x524] sm:$0xf]
    %v1000 = vld [vmem:[%s1 + $0x528] sm:$0xf]
    %v1001 = vld [vmem:[%s1 + $0x52c] sm:$0xf]
    %v1002 = vld [vmem:[%s1 + $0x530] sm:$0xf]
    %v1003 = vld [vmem:[%s1 + $0x534] sm:$0xf]
    %v1004 = vld [vmem:[%s1 + $0x538] sm:$0xf]
    %v1005 = vld [vmem:[%s1 + $0x53c] sm:$0xf]
    %v1006 = vld [vmem:[%s1 + $0x540] sm:$0xf]
    %v1007 = vld [vmem:[%s1 + $0x544] sm:$0xf]
    %v1008 = vld [vmem:[%s1 + $0x548] sm:$0xf]
    %v1009 = vld [vmem:[%s1 + $0x54c] sm:$0xf]
    %v1010 = vld [vmem:[%s1 + $0x550] sm:$0xf]
    %v1011 = vld [vmem:[%s1 + $0x554] sm:$0xf]
    %v1012 = vld [vmem:[%s1 + $0x558] sm:$0xf]
    %v1013 = vld [vmem:[%s1 + $0x55c] sm:$0xf]
    %v1014 = vld [vmem:[%s1 + $0x560] sm:$0xf]
    %v1015 = vld [vmem:[%s1 + $0x564] sm:$0xf]
    %v1016 = vld [vmem:[%s1 + $0x568] sm:$0xf]
    %v1017 = vld [vmem:[%s1 + $0x56c] sm:$0xf]
    %v1018 = vld [vmem:[%s1 + $0x570] sm:$0xf]
    %v1019 = vld [vmem:[%s1 + $0x574] sm:$0xf]
    %v1020 = vld [vmem:[%s1 + $0x578] sm:$0xf]
    %v1021 = vld [vmem:[%s1 + $0x57c] sm:$0xf]
    %v1022 = vld [vmem:[%s1 + $0x580] sm:$0xf]
    %v1023 = vld [vmem:[%s1 + $0x584] sm:$0xf]
    %v1024 = vld [vmem:[%s1 + $0x588] sm:$0xf]
    %v1025 = vld [vmem:[%s1 + $0x58c] sm:$0xf]
    %v1026 = vld [vmem:[%s1 + $0x590] sm:$0xf]
    %v1027 = vld [vmem:[%s1 + $0x594] sm:$0xf]
    %v1028 = vld [vmem:[%s1 + $0x598] sm:$0xf]
    %v1029 = vld [vmem:[%s1 + $0x59c] sm:$0xf]
    %v1030 = vld [vmem:[%s1 + $0x5a0] sm:$0xf]
    %v1031 = vld [vmem:[%s1 + $0x5a4] sm:$0xf]
    %v1032 = vld [vmem:[%s1 + $0x5a8] sm:$0xf]
    %v1033 = vld [vmem:[%s1 + $0x5ac] sm:$0xf]
    %v1034 = vld [vmem:[%s1 + $0x5b0] sm:$0xf]
    %v1035 = vld [vmem:[%s1 + $0x5b4] sm:$0xf]
    %v1036 = vld [vmem:[%s1 + $0x5b8] sm:$0xf]
    %v1037 = vld [vmem:[%s1 + $0x5bc] sm:$0xf]
    %v1038 = vld [vmem:[%s1 + $0x5c0] sm:$0xf]
    %v1039 = vld [vmem:[%s1 + $0x5c4] sm:$0xf]
    %v1040 = vld [vmem:[%s1 + $0x5c8] sm:$0xf]
    %v1041 = vld [vmem:[%s1 + $0x5cc] sm:$0xf]
    %v1042 = vld [vmem:[%s1 + $0x5d0] sm:$0xf]
    %v1043 = vld [vmem:[%s1 + $0x5d4] sm:$0xf]
    %v1044 = vld [vmem:[%s1 + $0x5d8] sm:$0xf]
    %v1045 = vld [vmem:[%s1 + $0x5dc] sm:$0xf]
    %v1046 = vld [vmem:[%s1 + $0x5e0] sm:$0xf]
    %v1047 = vld [vmem:[%s1 + $0x5e4] sm:$0xf]
    %v1048 = vld [vmem:[%s1 + $0x5e8] sm:$0xf]
    %v1049 = vld [vmem:[%s1 + $0x5ec] sm:$0xf]
    %v1050 = vld [vmem:[%s1 + $0x5f0] sm:$0xf]
    %v1051 = vld [vmem:[%s1 + $0x5f4] sm:$0xf]
    %v1052 = vld [vmem:[%s1 + $0x5f8] sm:$0xf]
    %v1053 = vld [vmem:[%s1 + $0x5fc] sm:$0xf]
    %v1054 = vld [vmem:[%s1 + $0x600] sm:$0xf]
    %v1055 = vld [vmem:[%s1 + $0x604] sm:$0xf]
    %v1056 = vld [vmem:[%s1 + $0x608] sm:$0xf]
    %v1057 = vld [vmem:[%s1 + $0x60c] sm:$0xf]
    %v1058 = vld [vmem:[%s1 + $0x610] sm:$0xf]
    %v1059 = vld [vmem:[%s1 + $0x614] sm:$0xf]
    %v1060 = vld [vmem:[%s1 + $0x618] sm:$0xf]
    %v1061 = vld [vmem:[%s1 + $0x61c] sm:$0xf]
    %v1062 = vld [vmem:[%s1 + $0x620] sm:$0xf]
    %v1063 = vld [vmem:[%s1 + $0x624] sm:$0xf]
    %v1064 = vld [vmem:[%s1 + $0x628] sm:$0xf]
    %v1065 = vld [vmem:[%s1 + $0x62c] sm:$0xf]
    %v1066 = vld [vmem:[%s1 + $0x630] sm:$0xf]
    %v1067 = vld [vmem:[%s1 + $0x634] sm:$0xf]
    %v1068 = vld [vmem:[%s1 + $0x638] sm:$0xf]
    %v1069 = vld [vmem:[%s1 + $0x63c] sm:$0xf]
    %v1070 = vld [vmem:[%s1 + $0x640] sm:$0xf]
    %v1071 = vld [vmem:[%s1 + $0x644] sm:$0xf]
    %v1072 = vld [vmem:[%s1 + $0x648] sm:$0xf]
    %v1073 = vld [vmem:[%s1 + $0x64c] sm:$0xf]
    %v1074 = vld [vmem:[%s1 + $0x650] sm:$0xf]
    %v1075 = vld [vmem:[%s1 + $0x654] sm:$0xf]
    %v1076 = vld [vmem:[%s1 + $0x658] sm:$0xf]
    %v1077 = vld [vmem:[%s1 + $0x65c] sm:$0xf]
    %v1078 = vld [vmem:[%s1 + $0x660] sm:$0xf]
    %v1079 = vld [vmem:[%s1 + $0x664] sm:$0xf]
    %v1080 = vld [vmem:[%s1 + $0x668] sm:$0xf]
    %v1081 = vld [vmem:[%s1 + $0x66c] sm:$0xf]
    %v1082 = vld [vmem:[%s1 + $0x670] sm:$0xf]
    %v1083 = vld [vmem:[%s1 + $0x674] sm:$0xf]
    %v1084 = vld [vmem:[%s1 + $0x678] sm:$0xf]
    %v1085 = vld [vmem:[%s1 + $0x67c] sm:$0xf]
    %v1086 = vld [vmem:[%s1 + $0x680] sm:$0xf]
    %v1087 = vld [vmem:[%s1 + $0x684] sm:$0xf]
    %v1088 = vld [vmem:[%s1 + $0x688] sm:$0xf]
    %v1089 = vld [vmem:[%s1 + $0x68c] sm:$0xf]
    %v1090 = vld [vmem:[%s1 + $0x690] sm:$0xf]
    %v1091 = vld [vmem:[%s1 + $0x694] sm:$0xf]
    %v1092 = vld [vmem:[%s1 + $0x698] sm:$0xf]
    %v1093 = vld [vmem:[%s1 + $0x69c] sm:$0xf]
    %v1094 = vld [vmem:[%s1 + $0x6a0] sm:$0xf]
    %v1095 = vld [vmem:[%s1 + $0x6a4] sm:$0xf]
    %v1096 = vld [vmem:[%s1 + $0x6a8] sm:$0xf]
    %v1097 = vld [vmem:[%s1 + $0x6ac] sm:$0xf]
    %v1098 = vld [vmem:[%s1 + $0x6b0] sm:$0xf]
    %v1099 = vld [vmem:[%s1 + $0x6b4] sm:$0xf]
    %v1100 = vld [vmem:[%s1 + $0x6b8] sm:$0xf]
    %v1101 = vld [vmem:[%s1 + $0x6bc] sm:$0xf]
    %v1102 = vld [vmem:[%s1 + $0x6c0] sm:$0xf]
    %v1103 = vld [vmem:[%s1 + $0x6c4] sm:$0xf]
    %v1104 = vld [vmem:[%s1 + $0x6c8] sm:$0xf]
    %v1105 = vld [vmem:[%s1 + $0x6cc] sm:$0xf]
    %v1106 = vld [vmem:[%s1 + $0x6d0] sm:$0xf]
    %v1107 = vld [vmem:[%s1 + $0x6d4] sm:$0xf]
    %v1108 = vld [vmem:[%s1 + $0x6d8] sm:$0xf]
    %v1109 = vld [vmem:[%s1 + $0x6dc] sm:$0xf]
    %v1110 = vld [vmem:[%s1 + $0x6e0] sm:$0xf]
    %v1111 = vld [vmem:[%s1 + $0x6e4] sm:$0xf]
    %v1112 = vld [vmem:[%s1 + $0x6e8] sm:$0xf]
    %v1113 = vld [vmem:[%s1 + $0x6ec] sm:$0xf]
    %v1114 = vld [vmem:[%s1 + $0x6f0] sm:$0xf]
    %v1115 = vld [vmem:[%s1 + $0x6f4] sm:$0xf]
    %v1116 = vld [vmem:[%s1 + $0x6f8] sm:$0xf]
    %v1117 = vld [vmem:[%s1 + $0x6fc] sm:$0xf]
    %v1118 = vld [vmem:[%s1 + $0x700] sm:$0xf]
    %v1119 = vld [vmem:[%s1 + $0x704] sm:$0xf]
    %v1120 = vld [vmem:[%s1 + $0x708] sm:$0xf]
    %v1121 = vld [vmem:[%s1 + $0x70c] sm:$0xf]
    %v1122 = vld [vmem:[%s1 + $0x710] sm:$0xf]
    %v1123 = vld [vmem:[%s1 + $0x714] sm:$0xf]
    %v1124 = vld [vmem:[%s1 + $0x718] sm:$0xf]
    %v1125 = vld [vmem:[%s1 + $0x71c] sm:$0xf]
    %v1126 = vld [vmem:[%s1 + $0x720] sm:$0xf]
    %v1127 = vld [vmem:[%s1 + $0x724] sm:$0xf]
    %v1128 = vld [vmem:[%s1 + $0x728] sm:$0xf]
    %v1129 = vld [vmem:[%s1 + $0x72c] sm:$0xf]
    %v1130 = vld [vmem:[%s1 + $0x730] sm:$0xf]
    %v1131 = vld [vmem:[%s1 + $0x734] sm:$0xf]
    %v1132 = vld [vmem:[%s1 + $0x738] sm:$0xf]
    %v1133 = vld [vmem:[%s1 + $0x73c] sm:$0xf]
    %v1134 = vld [vmem:[%s1 + $0x740] sm:$0xf]
    %v1135 = vld [vmem:[%s1 + $0x744] sm:$0xf]
    %v1136 = vld [vmem:[%s1 + $0x748] sm:$0xf]
    %v1137 = vld [vmem:[%s1 + $0x74c] sm:$0xf]
    %v1138 = vld [vmem:[%s1 + $0x750] sm:$0xf]
    %v1139 = vld [vmem:[%s1 + $0x754] sm:$0xf]
    %v1140 = vld [vmem:[%s1 + $0x758] sm:$0xf]
    %v1141 = vld [vmem:[%s1 + $0x75c] sm:$0xf]
    %v1142 = vld [vmem:[%s1 + $0x760] sm:$0xf]
    %v1143 = vld [vmem:[%s1 + $0x764] sm:$0xf]
    %v1144 = vld [vmem:[%s1 + $0x768] sm:$0xf]
    %v1145 = vld [vmem:[%s1 + $0x76c] sm:$0xf]
    %v1146 = vld [vmem:[%s1 + $0x770] sm:$0xf]
    %v1147 = vld [vmem:[%s1 + $0x774] sm:$0xf]
    %v1148 = vld [vmem:[%s1 + $0x778] sm:$0xf]
    %v1149 = vld [vmem:[%s1 + $0x77c] sm:$0xf]
    %v1150 = vld [vmem:[%s1 + $0x780] sm:$0xf]
    %v1151 = vld [vmem:[%s1 + $0x784] sm:$0xf]
    %v1152 = vld [vmem:[%s1 + $0x788] sm:$0xf]
    %v1153 = vld [vmem:[%s1 + $0x78c] sm:$0xf]
    %v1154 = vld [vmem:[%s1 + $0x790] sm:$0xf]
    %v1155 = vld [vmem:[%s1 + $0x794] sm:$0xf]
    %v1156 = vld [vmem:[%s1 + $0x798] sm:$0xf]
    %v1157 = vld [vmem:[%s1 + $0x79c] sm:$0xf]
    %v1158 = vld [vmem:[%s1 + $0x7a0] sm:$0xf]
    %v1159 = vld [vmem:[%s1 + $0x7a4] sm:$0xf]
    %v1160 = vld [vmem:[%s1 + $0x7a8] sm:$0xf]
    %v1161 = vld [vmem:[%s1 + $0x7ac] sm:$0xf]
    %v1162 = vld [vmem:[%s1 + $0x7b0] sm:$0xf]
    %v1163 = vld [vmem:[%s1 + $0x7b4] sm:$0xf]
    %v1164 = vld [vmem:[%s1 + $0x7b8] sm:$0xf]
    %v1165 = vld [vmem:[%s1 + $0x7bc] sm:$0xf]
    %v1166 = vld [vmem:[%s1 + $0x7c0] sm:$0xf]
    %v1167 = vld [vmem:[%s1 + $0x7c4] sm:$0xf]
    %v1168 = vld [vmem:[%s1 + $0x7c8] sm:$0xf]
    %v1169 = vld [vmem:[%s1 + $0x7cc] sm:$0xf]
    %v1170 = vld [vmem:[%s1 + $0x7d0] sm:$0xf]
    %v1171 = vld [vmem:[%s1 + $0x7d4] sm:$0xf]
    %v1172 = vld [vmem:[%s1 + $0x7d8] sm:$0xf]
    %v1173 = vld [vmem:[%s1 + $0x7dc] sm:$0xf]
    %v1174 = vld [vmem:[%s1 + $0x7e0] sm:$0xf]
    %v1175 = vld [vmem:[%s1 + $0x7e4] sm:$0xf]
    %v1176 = vld [vmem:[%s1 + $0x7e8] sm:$0xf]
    %v1177 = vld [vmem:[%s1 + $0x7ec] sm:$0xf]
    %v1178 = vld [vmem:[%s1 + $0x7f0] sm:$0xf]
    %v1179 = vld [vmem:[%s1 + $0x7f4] sm:$0xf]
    %v1180 = vld [vmem:[%s1 + $0x7f8] sm:$0xf]
    %v1181 = vld [vmem:[%s1 + $0x7fc] sm:$0xf]
    %v1182 = vld [vmem:[%s1 + $0x800] sm:$0xf]
    %v1183 = vld [vmem:[%s1 + $0x804] sm:$0xf]
    %v1184 = vld [vmem:[%s1 + $0x808] sm:$0xf]
    %v1185 = vld [vmem:[%s1 + $0x80c] sm:$0xf]
    %v1186 = vld [vmem:[%s1 + $0x810] sm:$0xf]
    %v1187 = vld [vmem:[%s1 + $0x814] sm:$0xf]
    %v1188 = vld [vmem:[%s1 + $0x818] sm:$0xf]
    %v1189 = vld [vmem:[%s1 + $0x81c] sm:$0xf]
    %v1190 = vld [vmem:[%s1 + $0x820] sm:$0xf]
    %v1191 = vld [vmem:[%s1 + $0x824] sm:$0xf]
    %v1192 = vld [vmem:[%s1 + $0x828] sm:$0xf]
    %v1193 = vld [vmem:[%s1 + $0x82c] sm:$0xf]
    %v1194 = vld [vmem:[%s1 + $0x830] sm:$0xf]
    %v1195 = vld [vmem:[%s1 + $0x834] sm:$0xf]
    %v1196 = vld [vmem:[%s1 + $0x838] sm:$0xf]
    %v1197 = vld [vmem:[%s1 + $0x83c] sm:$0xf]
    %v1198 = vld [vmem:[%s1 + $0x840] sm:$0xf]
    %v1199 = vld [vmem:[%s1 + $0x844] sm:$0xf]
    %v1200 = vld [vmem:[%s1 + $0x848] sm:$0xf]
    %v1201 = vld [vmem:[%s1 + $0x84c] sm:$0xf]
    %v1202 = vld [vmem:[%s1 + $0x850] sm:$0xf]
    %v1203 = vld [vmem:[%s1 + $0x854] sm:$0xf]
    %v1204 = vld [vmem:[%s1 + $0x858] sm:$0xf]
    %v1205 = vld [vmem:[%s1 + $0x85c] sm:$0xf]
    %v1206 = vld [vmem:[%s1 + $0x860] sm:$0xf]
    %v1207 = vld [vmem:[%s1 + $0x864] sm:$0xf]
    %v1208 = vld [vmem:[%s1 + $0x868] sm:$0xf]
    %v1209 = vld [vmem:[%s1 + $0x86c] sm:$0xf]
    %v1210 = vld [vmem:[%s1 + $0x870] sm:$0xf]
    %v1211 = vld [vmem:[%s1 + $0x874] sm:$0xf]
    %v1212 = vld [vmem:[%s1 + $0x878] sm:$0xf]
    %v1213 = vld [vmem:[%s1 + $0x87c] sm:$0xf]
    %v1214 = vld [vmem:[%s1 + $0x880] sm:$0xf]
    %v1215 = vld [vmem:[%s1 + $0x884] sm:$0xf]
    %v1216 = vld [vmem:[%s1 + $0x888] sm:$0xf]
    %v1217 = vld [vmem:[%s1 + $0x88c] sm:$0xf]
    %v1218 = vld [vmem:[%s1 + $0x890] sm:$0xf]
    %v1219 = vld [vmem:[%s1 + $0x894] sm:$0xf]
    %v1220 = vld [vmem:[%s1 + $0x898] sm:$0xf]
    %v1221 = vld [vmem:[%s1 + $0x89c] sm:$0xf]
    %v1222 = vld [vmem:[%s1 + $0x8a0] sm:$0xf]
    %v1223 = vld [vmem:[%s1 + $0x8a4] sm:$0xf]
    %v1224 = vld [vmem:[%s1 + $0x8a8] sm:$0xf]
    %v1225 = vld [vmem:[%s1 + $0x8ac] sm:$0xf]
    %v1226 = vld [vmem:[%s1 + $0x8b0] sm:$0xf]
    %v1227 = vld [vmem:[%s1 + $0x8b4] sm:$0xf]
    %v1228 = vld [vmem:[%s1 + $0x8b8] sm:$0xf]
    %v1229 = vld [vmem:[%s1 + $0x8bc] sm:$0xf]
    %v1230 = vld [vmem:[%s1 + $0x8c0] sm:$0xf]
    %v1231 = vld [vmem:[%s1 + $0x8c4] sm:$0xf]
    %v1232 = vld [vmem:[%s1 + $0x8c8] sm:$0xf]
    %v1233 = vld [vmem:[%s1 + $0x8cc] sm:$0xf]
    %v1234 = vld [vmem:[%s1 + $0x8d0] sm:$0xf]
    %v1235 = vld [vmem:[%s1 + $0x8d4] sm:$0xf]
    %v1236 = vld [vmem:[%s1 + $0x8d8] sm:$0xf]
    %v1237 = vld [vmem:[%s1 + $0x8dc] sm:$0xf]
    %v1238 = vld [vmem:[%s1 + $0x8e0] sm:$0xf]
    %v1239 = vld [vmem:[%s1 + $0x8e4] sm:$0xf]
    %v1240 = vld [vmem:[%s1 + $0x8e8] sm:$0xf]
    %v1241 = vld [vmem:[%s1 + $0x8ec] sm:$0xf]
    %v1242 = vld [vmem:[%s1 + $0x8f0] sm:$0xf]
    %v1243 = vld [vmem:[%s1 + $0x8f4] sm:$0xf]
    %v1244 = vld [vmem:[%s1 + $0x8f8] sm:$0xf]
    %v1245 = vld [vmem:[%s1 + $0x8fc] sm:$0xf]
    %v1246 = vld [vmem:[%s1 + $0x900] sm:$0xf]
    %v1247 = vld [vmem:[%s1 + $0x904] sm:$0xf]
    %v1248 = vld [vmem:[%s1 + $0x908] sm:$0xf]
    %v1249 = vld [vmem:[%s1 + $0x90c] sm:$0xf]
    %v1250 = vld [vmem:[%s1 + $0x910] sm:$0xf]
    %v1251 = vld [vmem:[%s1 + $0x914] sm:$0xf]
    %v1252 = vld [vmem:[%s1 + $0x918] sm:$0xf]
    %v1253 = vld [vmem:[%s1 + $0x91c] sm:$0xf]
    %v1254 = vld [vmem:[%s1 + $0x920] sm:$0xf]
    %v1255 = vld [vmem:[%s1 + $0x924] sm:$0xf]
    %v1256 = vld [vmem:[%s1 + $0x928] sm:$0xf]
    %v1257 = vld [vmem:[%s1 + $0x92c] sm:$0xf]
    %v1258 = vld [vmem:[%s1 + $0x930] sm:$0xf]
    %v1259 = vld [vmem:[%s1 + $0x934] sm:$0xf]
    %v1260 = vld [vmem:[%s1 + $0x938] sm:$0xf]
    %v1261 = vld [vmem:[%s1 + $0x93c] sm:$0xf]
    %v1262 = vld [vmem:[%s1 + $0x940] sm:$0xf]
    %v1263 = vld [vmem:[%s1 + $0x944] sm:$0xf]
    %v1264 = vld [vmem:[%s1 + $0x948] sm:$0xf]
    %v1265 = vld [vmem:[%s1 + $0x94c] sm:$0xf]
    %v1266 = vld [vmem:[%s1 + $0x950] sm:$0xf]
    %v1267 = vld [vmem:[%s1 + $0x954] sm:$0xf]
    %v1268 = vld [vmem:[%s1 + $0x958] sm:$0xf]
    %v1269 = vld [vmem:[%s1 + $0x95c] sm:$0xf]
    %v1270 = vld [vmem:[%s1 + $0x960] sm:$0xf]
    %v1271 = vld [vmem:[%s1 + $0x964] sm:$0xf]
    %v1272 = vld [vmem:[%s1 + $0x968] sm:$0xf]
    %v1273 = vld [vmem:[%s1 + $0x96c] sm:$0xf]
    %v1274 = vld [vmem:[%s1 + $0x970] sm:$0xf]
    %v1275 = vld [vmem:[%s1 + $0x974] sm:$0xf]
    %v1276 = vld [vmem:[%s1 + $0x978] sm:$0xf]
    %v1277 = vld [vmem:[%s1 + $0x97c] sm:$0xf]
    %v1278 = vld [vmem:[%s1 + $0x980] sm:$0xf]
    %v1279 = vld [vmem:[%s1 + $0x984] sm:$0xf]
    %v1280 = vld [vmem:[%s1 + $0x988] sm:$0xf]
    %v1281 = vld [vmem:[%s1 + $0x98c] sm:$0xf]
    %v1282 = vld [vmem:[%s1 + $0x990] sm:$0xf]
    %v1283 = vld [vmem:[%s1 + $0x994] sm:$0xf]
    %v1284 = vld [vmem:[%s1 + $0x998] sm:$0xf]
    %v1285 = vld [vmem:[%s1 + $0x99c] sm:$0xf]
    %v1286 = vld [vmem:[%s1 + $0x9a0] sm:$0xf]
    %v1287 = vld [vmem:[%s1 + $0x9a4] sm:$0xf]
    %v1288 = vld [vmem:[%s1 + $0x9a8] sm:$0xf]
    %v1289 = vld [vmem:[%s1 + $0x9ac] sm:$0xf]
    %v1290 = vld [vmem:[%s1 + $0x9b0] sm:$0xf]
    %v1291 = vld [vmem:[%s1 + $0x9b4] sm:$0xf]
    %v1292 = vld [vmem:[%s1 + $0x9b8] sm:$0xf]
    %v1293 = vld [vmem:[%s1 + $0x9bc] sm:$0xf]
    %v1294 = vld [vmem:[%s1 + $0x9c0] sm:$0xf]
    %v1295 = vld [vmem:[%s1 + $0x9c4] sm:$0xf]
    %v1296 = vld [vmem:[%s1 + $0x9c8] sm:$0xf]
    %v1297 = vld [vmem:[%s1 + $0x9cc] sm:$0xf]
    %v1298 = vld [vmem:[%s1 + $0x9d0] sm:$0xf]
    %v1299 = vld [vmem:[%s1 + $0x9d4] sm:$0xf]
    %v1300 = vld [vmem:[%s1 + $0x9d8] sm:$0xf]
    %v1301 = vld [vmem:[%s1 + $0x9dc] sm:$0xf]
    %v1302 = vld [vmem:[%s1 + $0x9e0] sm:$0xf]
    %v1303 = vld [vmem:[%s1 + $0x9e4] sm:$0xf]
    %v1304 = vld [vmem:[%s1 + $0x9e8] sm:$0xf]
    %v1305 = vld [vmem:[%s1 + $0x9ec] sm:$0xf]
    %v1306 = vld [vmem:[%s1 + $0x9f0] sm:$0xf]
    %v1307 = vld [vmem:[%s1 + $0x9f4] sm:$0xf]
    %v1308 = vld [vmem:[%s1 + $0x9f8] sm:$0xf]
    %v1309 = vld [vmem:[%s1 + $0x9fc] sm:$0xf]
    %v1310 = vld [vmem:[%s1 + $0xa00] sm:$0xf]
    %v1311 = vld [vmem:[%s1 + $0xa04] sm:$0xf]
    %v1312 = vld [vmem:[%s1 + $0xa08] sm:$0xf]
    %v1313 = vld [vmem:[%s1 + $0xa0c] sm:$0xf]
    %v1314 = vld [vmem:[%s1 + $0xa10] sm:$0xf]
    %v1315 = vld [vmem:[%s1 + $0xa14] sm:$0xf]
    %v1316 = vld [vmem:[%s1 + $0xa18] sm:$0xf]
    %v1317 = vld [vmem:[%s1 + $0xa1c] sm:$0xf]
    %v1318 = vld [vmem:[%s1 + $0xa20] sm:$0xf]
    %v1319 = vld [vmem:[%s1 + $0xa24] sm:$0xf]
    %v1320 = vld [vmem:[%s1 + $0xa28] sm:$0xf]
    %v1321 = vld [vmem:[%s1 + $0xa2c] sm:$0xf]
    %v1322 = vld [vmem:[%s1 + $0xa30] sm:$0xf]
    %v1323 = vld [vmem:[%s1 + $0xa34] sm:$0xf]
    %v1324 = vld [vmem:[%s1 + $0xa38] sm:$0xf]
    %v1325 = vld [vmem:[%s1 + $0xa3c] sm:$0xf]
    %v1326 = vld [vmem:[%s1 + $0xa40] sm:$0xf]
    %v1327 = vld [vmem:[%s1 + $0xa44] sm:$0xf]
    %v1328 = vld [vmem:[%s1 + $0xa48] sm:$0xf]
    %v1329 = vld [vmem:[%s1 + $0xa4c] sm:$0xf]
    %v1330 = vld [vmem:[%s1 + $0xa50] sm:$0xf]
    %v1331 = vld [vmem:[%s1 + $0xa54] sm:$0xf]
    %v1332 = vld [vmem:[%s1 + $0xa58] sm:$0xf]
    %v1333 = vld [vmem:[%s1 + $0xa5c] sm:$0xf]
    %v1334 = vld [vmem:[%s1 + $0xa60] sm:$0xf]
    %v1335 = vld [vmem:[%s1 + $0xa64] sm:$0xf]
    %v1336 = vld [vmem:[%s1 + $0xa68] sm:$0xf]
    %v1337 = vld [vmem:[%s1 + $0xa6c] sm:$0xf]
    %v1338 = vld [vmem:[%s1 + $0xa70] sm:$0xf]
    %v1339 = vld [vmem:[%s1 + $0xa74] sm:$0xf]
    %v1340 = vld [vmem:[%s1 + $0xa78] sm:$0xf]
    %v1341 = vld [vmem:[%s1 + $0xa7c] sm:$0xf]
    %v1342 = vld [vmem:[%s1 + $0xa80] sm:$0xf]
    %v1343 = vld [vmem:[%s1 + $0xa84] sm:$0xf]
    %v1344 = vld [vmem:[%s1 + $0xa88] sm:$0xf]
    %v1345 = vld [vmem:[%s1 + $0xa8c] sm:$0xf]
    %v1346 = vld [vmem:[%s1 + $0xa90] sm:$0xf]
    %v1347 = vld [vmem:[%s1 + $0xa94] sm:$0xf]
    %v1348 = vld [vmem:[%s1 + $0xa98] sm:$0xf]
    %v1349 = vld [vmem:[%s1 + $0xa9c] sm:$0xf]
    %v1350 = vld [vmem:[%s1 + $0xaa0] sm:$0xf]
    %v1351 = vld [vmem:[%s1 + $0xaa4] sm:$0xf]
    %v1352 = vld [vmem:[%s1 + $0xaa8] sm:$0xf]
    %v1353 = vld [vmem:[%s1 + $0xaac] sm:$0xf]
    %v1354 = vld [vmem:[%s1 + $0xab0] sm:$0xf]
    %v1355 = vld [vmem:[%s1 + $0xab4] sm:$0xf]
    %v1356 = vld [vmem:[%s1 + $0xab8] sm:$0xf]
    %v1357 = vld [vmem:[%s1 + $0xabc] sm:$0xf]
    %v1358 = vld [vmem:[%s1 + $0xac0] sm:$0xf]
    %v1359 = vld [vmem:[%s1 + $0xac4] sm:$0xf]
    %v1360 = vld [vmem:[%s1 + $0xac8] sm:$0xf]
    %v1361 = vld [vmem:[%s1 + $0xacc] sm:$0xf]
    %v1362 = vld [vmem:[%s1 + $0xad0] sm:$0xf]
    %v1363 = vld [vmem:[%s1 + $0xad4] sm:$0xf]
    %v1364 = vld [vmem:[%s1 + $0xad8] sm:$0xf]
    %v1365 = vld [vmem:[%s1 + $0xadc] sm:$0xf]
    %v1366 = vld [vmem:[%s1 + $0xae0] sm:$0xf]
    %v1367 = vld [vmem:[%s1 + $0xae4] sm:$0xf]
    %v1368 = vld [vmem:[%s1 + $0xae8] sm:$0xf]
    %v1369 = vld [vmem:[%s1 + $0xaec] sm:$0xf]
    %v1370 = vld [vmem:[%s1 + $0xaf0] sm:$0xf]
    %v1371 = vld [vmem:[%s1 + $0xaf4] sm:$0xf]
    %v1372 = vld [vmem:[%s1 + $0xaf8] sm:$0xf]
    %v1373 = vld [vmem:[%s1 + $0xafc] sm:$0xf]
    %v1374 = vld [vmem:[%s1 + $0xb00] sm:$0xf]
    %v1375 = vld [vmem:[%s1 + $0xb04] sm:$0xf]
    %v1376 = vld [vmem:[%s1 + $0xb08] sm:$0xf]
    %v1377 = vld [vmem:[%s1 + $0xb0c] sm:$0xf]
    %v1378 = vld [vmem:[%s1 + $0xb10] sm:$0xf]
    %v1379 = vld [vmem:[%s1 + $0xb14] sm:$0xf]
    %v1380 = vld [vmem:[%s1 + $0xb18] sm:$0xf]
    %v1381 = vld [vmem:[%s1 + $0xb1c] sm:$0xf]
    %v1382 = vld [vmem:[%s1 + $0xb20] sm:$0xf]
    %v1383 = vld [vmem:[%s1 + $0xb24] sm:$0xf]
    %v1384 = vld [vmem:[%s1 + $0xb28] sm:$0xf]
    %v1385 = vld [vmem:[%s1 + $0xb2c] sm:$0xf]
    %v1386 = vld [vmem:[%s1 + $0xb30] sm:$0xf]
    %v1387 = vld [vmem:[%s1 + $0xb34] sm:$0xf]
    %v1388 = vld [vmem:[%s1 + $0xb38] sm:$0xf]
    %v1389 = vld [vmem:[%s1 + $0xb3c] sm:$0xf]
    %v1390 = vld [vmem:[%s1 + $0xb40] sm:$0xf]
    %v1391 = vld [vmem:[%s1 + $0xb44] sm:$0xf]
    %v1392 = vld [vmem:[%s1 + $0xb48] sm:$0xf]
    %v1393 = vld [vmem:[%s1 + $0xb4c] sm:$0xf]
    %v1394 = vld [vmem:[%s1 + $0xb50] sm:$0xf]
    %v1395 = vld [vmem:[%s1 + $0xb54] sm:$0xf]
    %v1396 = vld [vmem:[%s1 + $0xb58] sm:$0xf]
    %v1397 = vld [vmem:[%s1 + $0xb5c] sm:$0xf]
    %v1398 = vld [vmem:[%s1 + $0xb60] sm:$0xf]
    %v1399 = vld [vmem:[%s1 + $0xb64] sm:$0xf]
    %v1400 = vld [vmem:[%s1 + $0xb68] sm:$0xf]
    %v1401 = vld [vmem:[%s1 + $0xb6c] sm:$0xf]
    %v1402 = vld [vmem:[%s1 + $0xb70] sm:$0xf]
    %v1403 = vld [vmem:[%s1 + $0xb74] sm:$0xf]
    %v1404 = vld [vmem:[%s1 + $0xb78] sm:$0xf]
    %v1405 = vld [vmem:[%s1 + $0xb7c] sm:$0xf]
    %v1406 = vld [vmem:[%s1 + $0xb80] sm:$0xf]
    %v1407 = vld [vmem:[%s1 + $0xb84] sm:$0xf]
    %v1408 = vld [vmem:[%s1 + $0xb88] sm:$0xf]
    %v1409 = vld [vmem:[%s1 + $0xb8c] sm:$0xf]
    %v1410 = vld [vmem:[%s1 + $0xb90] sm:$0xf]
    %v1411 = vld [vmem:[%s1 + $0xb94] sm:$0xf]
    %v1412 = vld [vmem:[%s1 + $0xb98] sm:$0xf]
    %v1413 = vld [vmem:[%s1 + $0xb9c] sm:$0xf]
    %v1414 = vld [vmem:[%s1 + $0xba0] sm:$0xf]
    %v1415 = vld [vmem:[%s1 + $0xba4] sm:$0xf]
    %v1416 = vld [vmem:[%s1 + $0xba8] sm:$0xf]
    %v1417 = vld [vmem:[%s1 + $0xbac] sm:$0xf]
    %v1418 = vld [vmem:[%s1 + $0xbb0] sm:$0xf]
    %v1419 = vld [vmem:[%s1 + $0xbb4] sm:$0xf]
    %v1420 = vld [vmem:[%s1 + $0xbb8] sm:$0xf]
    %v1421 = vld [vmem:[%s1 + $0xbbc] sm:$0xf]
    %v1422 = vld [vmem:[%s1 + $0xbc0] sm:$0xf]
    %v1423 = vld [vmem:[%s1 + $0xbc4] sm:$0xf]
    %v1424 = vld [vmem:[%s1 + $0xbc8] sm:$0xf]
    %v1425 = vld [vmem:[%s1 + $0xbcc] sm:$0xf]
    %v1426 = vld [vmem:[%s1 + $0xbd0] sm:$0xf]
    %v1427 = vld [vmem:[%s1 + $0xbd4] sm:$0xf]
    %v1428 = vld [vmem:[%s1 + $0xbd8] sm:$0xf]
    %v1429 = vld [vmem:[%s1 + $0xbdc] sm:$0xf]
    %v1430 = vld [vmem:[%s1 + $0xbe0] sm:$0xf]
    %v1431 = vld [vmem:[%s1 + $0xbe4] sm:$0xf]
    %v1432 = vld [vmem:[%s1 + $0xbe8] sm:$0xf]
    %v1433 = vld [vmem:[%s1 + $0xbec] sm:$0xf]
    %v1434 = vld [vmem:[%s1 + $0xbf0] sm:$0xf]
    %v1435 = vld [vmem:[%s1 + $0xbf4] sm:$0xf]
    %v1436 = vld [vmem:[%s1 + $0xbf8] sm:$0xf]
    %v1437 = vld [vmem:[%s1 + $0xbfc] sm:$0xf]
    %v1438 = vld [vmem:[%s1 + $0xc00] sm:$0xf]
    %v1439 = vld [vmem:[%s1 + $0xc04] sm:$0xf]
    %v1440 = vld [vmem:[%s1 + $0xc08] sm:$0xf]
    %v1441 = vld [vmem:[%s1 + $0xc0c] sm:$0xf]
    %v1442 = vld [vmem:[%s1 + $0xc10] sm:$0xf]
    %v1443 = vld [vmem:[%s1 + $0xc14] sm:$0xf]
    %v1444 = vld [vmem:[%s1 + $0xc18] sm:$0xf]
    %v1445 = vld [vmem:[%s1 + $0xc1c] sm:$0xf]
    %v1446 = vld [vmem:[%s1 + $0xc20] sm:$0xf]
    %v1447 = vld [vmem:[%s1 + $0xc24] sm:$0xf]
    %v1448 = vld [vmem:[%s1 + $0xc28] sm:$0xf]
    %v1449 = vld [vmem:[%s1 + $0xc2c] sm:$0xf]
    %v1450 = vld [vmem:[%s1 + $0xc30] sm:$0xf]
    %v1451 = vld [vmem:[%s1 + $0xc34] sm:$0xf]
    %v1452 = vld [vmem:[%s1 + $0xc38] sm:$0xf]
    %v1453 = vld [vmem:[%s1 + $0xc3c] sm:$0xf]
    %v1454 = vld [vmem:[%s1 + $0xc40] sm:$0xf]
    %v1455 = vld [vmem:[%s1 + $0xc44] sm:$0xf]
    %v1456 = vld [vmem:[%s1 + $0xc48] sm:$0xf]
    %v1457 = vld [vmem:[%s1 + $0xc4c] sm:$0xf]
    %v1458 = vld [vmem:[%s1 + $0xc50] sm:$0xf]
    %v1459 = vld [vmem:[%s1 + $0xc54] sm:$0xf]
    %v1460 = vld [vmem:[%s1 + $0xc58] sm:$0xf]
    %v1461 = vld [vmem:[%s1 + $0xc5c] sm:$0xf]
    %v1462 = vld [vmem:[%s1 + $0xc60] sm:$0xf]
    %v1463 = vld [vmem:[%s1 + $0xc64] sm:$0xf]
    %v1464 = vld [vmem:[%s1 + $0xc68] sm:$0xf]
    %v1465 = vld [vmem:[%s1 + $0xc6c] sm:$0xf]
    %v1466 = vld [vmem:[%s1 + $0xc70] sm:$0xf]
    %v1467 = vld [vmem:[%s1 + $0xc74] sm:$0xf]
    %v1468 = vld [vmem:[%s1 + $0xc78] sm:$0xf]
    %v1469 = vld [vmem:[%s1 + $0xc7c] sm:$0xf]
    %v1470 = vld [vmem:[%s1 + $0xc80] sm:$0xf]
    %v1471 = vld [vmem:[%s1 + $0xc84] sm:$0xf]
    %v1472 = vld [vmem:[%s1 + $0xc88] sm:$0xf]
    %v1473 = vld [vmem:[%s1 + $0xc8c] sm:$0xf]
    %v1474 = vld [vmem:[%s1 + $0xc90] sm:$0xf]
    %v1475 = vld [vmem:[%s1 + $0xc94] sm:$0xf]
    %v1476 = vld [vmem:[%s1 + $0xc98] sm:$0xf]
    %v1477 = vld [vmem:[%s1 + $0xc9c] sm:$0xf]
    %v1478 = vld [vmem:[%s1 + $0xca0] sm:$0xf]
    %v1479 = vld [vmem:[%s1 + $0xca4] sm:$0xf]
    %v1480 = vld [vmem:[%s1 + $0xca8] sm:$0xf]
    %v1481 = vld [vmem:[%s1 + $0xcac] sm:$0xf]
    %v1482 = vld [vmem:[%s1 + $0xcb0] sm:$0xf]
    %v1483 = vld [vmem:[%s1 + $0xcb4] sm:$0xf]
    %v1484 = vld [vmem:[%s1 + $0xcb8] sm:$0xf]
    %v1485 = vld [vmem:[%s1 + $0xcbc] sm:$0xf]
    %v1486 = vld [vmem:[%s1 + $0xcc0] sm:$0xf]
    %v1487 = vld [vmem:[%s1 + $0xcc4] sm:$0xf]
    %v1488 = vld [vmem:[%s1 + $0xcc8] sm:$0xf]
    %v1489 = vld [vmem:[%s1 + $0xccc] sm:$0xf]
    %v1490 = vld [vmem:[%s1 + $0xcd0] sm:$0xf]
    %v1491 = vld [vmem:[%s1 + $0xcd4] sm:$0xf]
    %v1492 = vld [vmem:[%s1 + $0xcd8] sm:$0xf]
    %v1493 = vld [vmem:[%s1 + $0xcdc] sm:$0xf]
    %v1494 = vld [vmem:[%s1 + $0xce0] sm:$0xf]
    %v1495 = vld [vmem:[%s1 + $0xce4] sm:$0xf]
    %v1496 = vld [vmem:[%s1 + $0xce8] sm:$0xf]
    %v1497 = vld [vmem:[%s1 + $0xcec] sm:$0xf]
    %v1498 = vld [vmem:[%s1 + $0xcf0] sm:$0xf]
    %v1499 = vld [vmem:[%s1 + $0xcf4] sm:$0xf]
    %v1500 = vld [vmem:[%s1 + $0xcf8] sm:$0xf]
    %v1501 = vld [vmem:[%s1 + $0xcfc] sm:$0xf]
    %v1502 = vld [vmem:[%s1 + $0xd00] sm:$0xf]
    %v1503 = vld [vmem:[%s1 + $0xd04] sm:$0xf]
    %v1504 = vld [vmem:[%s1 + $0xd08] sm:$0xf]
    %v1505 = vld [vmem:[%s1 + $0xd0c] sm:$0xf]
    %v1506 = vld [vmem:[%s1 + $0xd10] sm:$0xf]
    %v1507 = vld [vmem:[%s1 + $0xd14] sm:$0xf]
    %v1508 = vld [vmem:[%s1 + $0xd18] sm:$0xf]
    %v1509 = vld [vmem:[%s1 + $0xd1c] sm:$0xf]
    %v1510 = vld [vmem:[%s1 + $0xd20] sm:$0xf]
    %v1511 = vld [vmem:[%s1 + $0xd24] sm:$0xf]
    %v1512 = vld [vmem:[%s1 + $0xd28] sm:$0xf]
    %v1513 = vld [vmem:[%s1 + $0xd2c] sm:$0xf]
    %v1514 = vld [vmem:[%s1 + $0xd30] sm:$0xf]
    %v1515 = vld [vmem:[%s1 + $0xd34] sm:$0xf]
    %v1516 = vld [vmem:[%s1 + $0xd38] sm:$0xf]
    %v1517 = vld [vmem:[%s1 + $0xd3c] sm:$0xf]
    %v1518 = vld [vmem:[%s1 + $0xd40] sm:$0xf]
    %v1519 = vld [vmem:[%s1 + $0xd44] sm:$0xf]
    %v1520 = vld [vmem:[%s1 + $0xd48] sm:$0xf]
    %v1521 = vld [vmem:[%s1 + $0xd4c] sm:$0xf]
    %v1522 = vld [vmem:[%s1 + $0xd50] sm:$0xf]
    %v1523 = vld [vmem:[%s1 + $0xd54] sm:$0xf]
    %v1524 = vld [vmem:[%s1 + $0xd58] sm:$0xf]
    %v1525 = vld [vmem:[%s1 + $0xd5c] sm:$0xf]
    %v1526 = vld [vmem:[%s1 + $0xd60] sm:$0xf]
    %v1527 = vld [vmem:[%s1 + $0xd64] sm:$0xf]
    %v1528 = vld [vmem:[%s1 + $0xd68] sm:$0xf]
    %v1529 = vld [vmem:[%s1 + $0xd6c] sm:$0xf]
    %v1530 = vld [vmem:[%s1 + $0xd70] sm:$0xf]
    %v1531 = vld [vmem:[%s1 + $0xd74] sm:$0xf]
    %v1532 = vld [vmem:[%s1 + $0xd78] sm:$0xf]
    %v1533 = vld [vmem:[%s1 + $0xd7c] sm:$0xf]
    %v1534 = vld [vmem:[%s1 + $0xd80] sm:$0xf]
    %v1535 = vld [vmem:[%s1 + $0xd84] sm:$0xf]
    %v1536 = vld [vmem:[%s1 + $0xd88] sm:$0xf]
    %v1537 = vld [vmem:[%s1 + $0xd8c] sm:$0xf]
    %v1538 = vld [vmem:[%s1 + $0xd90] sm:$0xf]
    %v1539 = vld [vmem:[%s1 + $0xd94] sm:$0xf]
    %v1540 = vld [vmem:[%s1 + $0xd98] sm:$0xf]
    %v1541 = vld [vmem:[%s1 + $0xd9c] sm:$0xf]
    %v1542 = vld [vmem:[%s1 + $0xda0] sm:$0xf]
    %v1543 = vld [vmem:[%s1 + $0xda4] sm:$0xf]
    %v1544 = vld [vmem:[%s1 + $0xda8] sm:$0xf]
    %v1545 = vld [vmem:[%s1 + $0xdac] sm:$0xf]
    %v1546 = vld [vmem:[%s1 + $0xdb0] sm:$0xf]
    %v1547 = vld [vmem:[%s1 + $0xdb4] sm:$0xf]
    %v1548 = vld [vmem:[%s1 + $0xdb8] sm:$0xf]
    %v1549 = vld [vmem:[%s1 + $0xdbc] sm:$0xf]
    %v1550 = vld [vmem:[%s1 + $0xdc0] sm:$0xf]
    %v1551 = vld [vmem:[%s1 + $0xdc4] sm:$0xf]
    %v1552 = vld [vmem:[%s1 + $0xdc8] sm:$0xf]
    %v1553 = vld [vmem:[%s1 + $0xdcc] sm:$0xf]
    %v1554 = vld [vmem:[%s1 + $0xdd0] sm:$0xf]
    %v1555 = vld [vmem:[%s1 + $0xdd4] sm:$0xf]
    %v1556 = vld [vmem:[%s1 + $0xdd8] sm:$0xf]
    %v1557 = vld [vmem:[%s1 + $0xddc] sm:$0xf]
    %v1558 = vld [vmem:[%s1 + $0xde0] sm:$0xf]
    %v1559 = vld [vmem:[%s1 + $0xde4] sm:$0xf]
    %v1560 = vld [vmem:[%s1 + $0xde8] sm:$0xf]
    %v1561 = vld [vmem:[%s1 + $0xdec] sm:$0xf]
    %v1562 = vld [vmem:[%s1 + $0xdf0] sm:$0xf]
    %v1563 = vld [vmem:[%s1 + $0xdf4] sm:$0xf]
    %v1564 = vld [vmem:[%s1 + $0xdf8] sm:$0xf]
    %v1565 = vld [vmem:[%s1 + $0xdfc] sm:$0xf]
    %v1566 = vld [vmem:[%s1 + $0xe00] sm:$0xf]
    %v1567 = vld [vmem:[%s1 + $0xe04] sm:$0xf]
    %v1568 = vld [vmem:[%s1 + $0xe08] sm:$0xf]
    %v1569 = vld [vmem:[%s1 + $0xe0c] sm:$0xf]
    %v1570 = vld [vmem:[%s1 + $0xe10] sm:$0xf]
    %v1571 = vld [vmem:[%s1 + $0xe14] sm:$0xf]
    %v1572 = vld [vmem:[%s1 + $0xe18] sm:$0xf]
    %v1573 = vld [vmem:[%s1 + $0xe1c] sm:$0xf]
    %v1574 = vld [vmem:[%s1 + $0xe20] sm:$0xf]
    %v1575 = vld [vmem:[%s1 + $0xe24] sm:$0xf]
    %v1576 = vld [vmem:[%s1 + $0xe28] sm:$0xf]
    %v1577 = vld [vmem:[%s1 + $0xe2c] sm:$0xf]
    %v1578 = vld [vmem:[%s1 + $0xe30] sm:$0xf]
    %v1579 = vld [vmem:[%s1 + $0xe34] sm:$0xf]
    %v1580 = vld [vmem:[%s1 + $0xe38] sm:$0xf]
    %v1581 = vld [vmem:[%s1 + $0xe3c] sm:$0xf]
    %v1582 = vld [vmem:[%s1 + $0xe40] sm:$0xf]
    %v1583 = vld [vmem:[%s1 + $0xe44] sm:$0xf]
    %v1584 = vld [vmem:[%s1 + $0xe48] sm:$0xf]
    %v1585 = vld [vmem:[%s1 + $0xe4c] sm:$0xf]
    %v1586 = vld [vmem:[%s1 + $0xe50] sm:$0xf]
    %v1587 = vld [vmem:[%s1 + $0xe54] sm:$0xf]
    %v1588 = vld [vmem:[%s1 + $0xe58] sm:$0xf]
    %v1589 = vld [vmem:[%s1 + $0xe5c] sm:$0xf]
    %v1590 = vld [vmem:[%s1 + $0xe60] sm:$0xf]
    %v1591 = vld [vmem:[%s1 + $0xe64] sm:$0xf]
    %v1592 = vld [vmem:[%s1 + $0xe68] sm:$0xf]
    %v1593 = vld [vmem:[%s1 + $0xe6c] sm:$0xf]
    %v1594 = vld [vmem:[%s1 + $0xe70] sm:$0xf]
    %v1595 = vld [vmem:[%s1 + $0xe74] sm:$0xf]
    %v1596 = vld [vmem:[%s1 + $0xe78] sm:$0xf]
    %v1597 = vld [vmem:[%s1 + $0xe7c] sm:$0xf]
    %v1598 = vld [vmem:[%s1 + $0xe80] sm:$0xf]
    %v1599 = vld [vmem:[%s1 + $0xe84] sm:$0xf]
    %v1600 = vld [vmem:[%s1 + $0xe88] sm:$0xf]
    %v1601 = vld [vmem:[%s1 + $0xe8c] sm:$0xf]
    %v1602 = vld [vmem:[%s1 + $0xe90] sm:$0xf]
    %v1603 = vld [vmem:[%s1 + $0xe94] sm:$0xf]
    %v1604 = vld [vmem:[%s1 + $0xe98] sm:$0xf]
    %v1605 = vld [vmem:[%s1 + $0xe9c] sm:$0xf]
    %v1606 = vld [vmem:[%s1 + $0xea0] sm:$0xf]
    %v1607 = vld [vmem:[%s1 + $0xea4] sm:$0xf]
    %v1608 = vld [vmem:[%s1 + $0xea8] sm:$0xf]
    %v1609 = vld [vmem:[%s1 + $0xeac] sm:$0xf]
    %v1610 = vld [vmem:[%s1 + $0xeb0] sm:$0xf]
    %v1611 = vld [vmem:[%s1 + $0xeb4] sm:$0xf]
    %v1612 = vld [vmem:[%s1 + $0xeb8] sm:$0xf]
    %v1613 = vld [vmem:[%s1 + $0xebc] sm:$0xf]
    %v1614 = vld [vmem:[%s1 + $0xec0] sm:$0xf]
    %v1615 = vld [vmem:[%s1 + $0xec4] sm:$0xf]
    %v1616 = vld [vmem:[%s1 + $0xec8] sm:$0xf]
    %v1617 = vld [vmem:[%s1 + $0xecc] sm:$0xf]
    %v1618 = vld [vmem:[%s1 + $0xed0] sm:$0xf]
    %v1619 = vld [vmem:[%s1 + $0xed4] sm:$0xf]
    %v1620 = vld [vmem:[%s1 + $0xed8] sm:$0xf]
    %v1621 = vld [vmem:[%s1 + $0xedc] sm:$0xf]
    %v1622 = vld [vmem:[%s1 + $0xee0] sm:$0xf]
    %v1623 = vld [vmem:[%s1 + $0xee4] sm:$0xf]
    %v1624 = vld [vmem:[%s1 + $0xee8] sm:$0xf]
    %v1625 = vld [vmem:[%s1 + $0xeec] sm:$0xf]
    %v1626 = vld [vmem:[%s1 + $0xef0] sm:$0xf]
    %v1627 = vld [vmem:[%s1 + $0xef4] sm:$0xf]
    %v1628 = vld [vmem:[%s1 + $0xef8] sm:$0xf]
    %v1629 = vld [vmem:[%s1 + $0xefc] sm:$0xf]
    %v1630 = vld [vmem:[%s1 + $0xf00] sm:$0xf]
    %v1631 = vld [vmem:[%s1 + $0xf04] sm:$0xf]
    %v1632 = vld [vmem:[%s1 + $0xf08] sm:$0xf]
    %v1633 = vld [vmem:[%s1 + $0xf0c] sm:$0xf]
    %v1634 = vld [vmem:[%s1 + $0xf10] sm:$0xf]
    %v1635 = vld [vmem:[%s1 + $0xf14] sm:$0xf]
    %v1636 = vld [vmem:[%s1 + $0xf18] sm:$0xf]
    %v1637 = vld [vmem:[%s1 + $0xf1c] sm:$0xf]
    %v1638 = vld [vmem:[%s1 + $0xf20] sm:$0xf]
    %v1639 = vld [vmem:[%s1 + $0xf24] sm:$0xf]
    %v1640 = vld [vmem:[%s1 + $0xf28] sm:$0xf]
    %v1641 = vld [vmem:[%s1 + $0xf2c] sm:$0xf]
    %v1642 = vld [vmem:[%s1 + $0xf30] sm:$0xf]
    %v1643 = vld [vmem:[%s1 + $0xf34] sm:$0xf]
    %v1644 = vld [vmem:[%s1 + $0xf38] sm:$0xf]
    %v1645 = vld [vmem:[%s1 + $0xf3c] sm:$0xf]
    %v1646 = vld [vmem:[%s1 + $0xf40] sm:$0xf]
    %v1647 = vld [vmem:[%s1 + $0xf44] sm:$0xf]
    %v1648 = vld [vmem:[%s1 + $0xf48] sm:$0xf]
    %v1649 = vld [vmem:[%s1 + $0xf4c] sm:$0xf]
    %v1650 = vld [vmem:[%s1 + $0xf50] sm:$0xf]
    %v1651 = vld [vmem:[%s1 + $0xf54] sm:$0xf]
    %v1652 = vld [vmem:[%s1 + $0xf58] sm:$0xf]
    %v1653 = vld [vmem:[%s1 + $0xf5c] sm:$0xf]
    %v1654 = vld [vmem:[%s1 + $0xf60] sm:$0xf]
    %v1655 = vld [vmem:[%s1 + $0xf64] sm:$0xf]
    %v1656 = vld [vmem:[%s1 + $0xf68] sm:$0xf]
    %v1657 = vld [vmem:[%s1 + $0xf6c] sm:$0xf]
    %v1658 = vld [vmem:[%s1 + $0xf70] sm:$0xf]
    %v1659 = vld [vmem:[%s1 + $0xf74] sm:$0xf]
    %v1660 = vld [vmem:[%s1 + $0xf78] sm:$0xf]
    %v1661 = vld [vmem:[%s1 + $0xf7c] sm:$0xf]
    %v1662 = vld [vmem:[%s1 + $0xf80] sm:$0xf]
    %v1663 = vld [vmem:[%s1 + $0xf84] sm:$0xf]
    %v1664 = vld [vmem:[%s1 + $0xf88] sm:$0xf]
    %v1665 = vld [vmem:[%s1 + $0xf8c] sm:$0xf]
    %v1666 = vld [vmem:[%s1 + $0xf90] sm:$0xf]
    %v1667 = vld [vmem:[%s1 + $0xf94] sm:$0xf]
    %v1668 = vld [vmem:[%s1 + $0xf98] sm:$0xf]
    %v1669 = vld [vmem:[%s1 + $0xf9c] sm:$0xf]
    %v1670 = vld [vmem:[%s1 + $0xfa0] sm:$0xf]
    %v1671 = vld [vmem:[%s1 + $0xfa4] sm:$0xf]
    %v1672 = vld [vmem:[%s1 + $0xfa8] sm:$0xf]
    %v1673 = vld [vmem:[%s1 + $0xfac] sm:$0xf]
    %v1674 = vld [vmem:[%s1 + $0xfb0] sm:$0xf]
    %v1675 = vld [vmem:[%s1 + $0xfb4] sm:$0xf]
    %v1676 = vld [vmem:[%s1 + $0xfb8] sm:$0xf]
    %v1677 = vld [vmem:[%s1 + $0xfbc] sm:$0xf]
    %v1678 = vld [vmem:[%s1 + $0xfc0] sm:$0xf]
    %v1679 = vld [vmem:[%s1 + $0xfc4] sm:$0xf]
    %v1680 = vld [vmem:[%s1 + $0xfc8] sm:$0xf]
    %v1681 = vld [vmem:[%s1 + $0xfcc] sm:$0xf]
    %v1682 = vld [vmem:[%s1 + $0xfd0] sm:$0xf]
    %v1683 = vld [vmem:[%s1 + $0xfd4] sm:$0xf]
    %v1684 = vld [vmem:[%s1 + $0xfd8] sm:$0xf]
    %v1685 = vld [vmem:[%s1 + $0xfdc] sm:$0xf]
    %v1686 = vld [vmem:[%s1 + $0xfe0] sm:$0xf]
    %v1687 = vld [vmem:[%s1 + $0xfe4] sm:$0xf]
    %v1688 = vld [vmem:[%s1 + $0xfe8] sm:$0xf]
    %v1689 = vld [vmem:[%s1 + $0xfec] sm:$0xf]
    %v1690 = vld [vmem:[%s1 + $0xff0] sm:$0xf]
    %v1691 = vld [vmem:[%s1 + $0xff4] sm:$0xf]
    %v1692 = vld [vmem:[%s1 + $0xff8] sm:$0xf]
    %v1693 = vld [vmem:[%s1 + $0xffc] sm:$0xf]
    %v1694 = vld [vmem:[%s1 + $0x1000] sm:$0xf]
    %v1695 = vld [vmem:[%s1 + $0x1004] sm:$0xf]
    %v1696 = vld [vmem:[%s1 + $0x1008] sm:$0xf]
    %v1697 = vld [vmem:[%s1 + $0x100c] sm:$0xf]
    %v1698 = vld [vmem:[%s1 + $0x1010] sm:$0xf]
    %v1699 = vld [vmem:[%s1 + $0x1014] sm:$0xf]
    %v1700 = vld [vmem:[%s1 + $0x1018] sm:$0xf]
    %v1701 = vld [vmem:[%s1 + $0x101c] sm:$0xf]
    %v1702 = vld [vmem:[%s1 + $0x1020] sm:$0xf]
    %v1703 = vld [vmem:[%s1 + $0x1024] sm:$0xf]
    %v1704 = vld [vmem:[%s1 + $0x1028] sm:$0xf]
    %v1705 = vld [vmem:[%s1 + $0x102c] sm:$0xf]
    %v1706 = vld [vmem:[%s1 + $0x1030] sm:$0xf]
    %v1707 = vld [vmem:[%s1 + $0x1034] sm:$0xf]
    %v1708 = vld [vmem:[%s1 + $0x1038] sm:$0xf]
    %v1709 = vld [vmem:[%s1 + $0x103c] sm:$0xf]
    %v1710 = vld [vmem:[%s1 + $0x1040] sm:$0xf]
    %v1711 = vld [vmem:[%s1 + $0x1044] sm:$0xf]
    %v1712 = vld [vmem:[%s1 + $0x1048] sm:$0xf]
    %v1713 = vld [vmem:[%s1 + $0x104c] sm:$0xf]
    %v1714 = vld [vmem:[%s1 + $0x1050] sm:$0xf]
    %v1715 = vld [vmem:[%s1 + $0x1054] sm:$0xf]
    %v1716 = vld [vmem:[%s1 + $0x1058] sm:$0xf]
    %v1717 = vld [vmem:[%s1 + $0x105c] sm:$0xf]
    %v1718 = vld [vmem:[%s1 + $0x1060] sm:$0xf]
    %v1719 = vld [vmem:[%s1 + $0x1064] sm:$0xf]
    %v1720 = vld [vmem:[%s1 + $0x1068] sm:$0xf]
    %v1721 = vld [vmem:[%s1 + $0x106c] sm:$0xf]
    %v1722 = vld [vmem:[%s1 + $0x1070] sm:$0xf]
    %v1723 = vld [vmem:[%s1 + $0x1074] sm:$0xf]
    %v1724 = vld [vmem:[%s1 + $0x1078] sm:$0xf]
    %v1725 = vld [vmem:[%s1 + $0x107c] sm:$0xf]
    %v1726 = vld [vmem:[%s1 + $0x1080] sm:$0xf]
    %v1727 = vld [vmem:[%s1 + $0x1084] sm:$0xf]
    %v1728 = vld [vmem:[%s1 + $0x1088] sm:$0xf]
    %v1729 = vld [vmem:[%s1 + $0x108c] sm:$0xf]
    %v1730 = vld [vmem:[%s1 + $0x1090] sm:$0xf]
    %v1731 = vld [vmem:[%s1 + $0x1094] sm:$0xf]
    %v1732 = vld [vmem:[%s1 + $0x1098] sm:$0xf]
    %v1733 = vld [vmem:[%s1 + $0x109c] sm:$0xf]
    %v1734 = vld [vmem:[%s1 + $0x10a0] sm:$0xf]
    %v1735 = vld [vmem:[%s1 + $0x10a4] sm:$0xf]
    %v1736 = vld [vmem:[%s1 + $0x10a8] sm:$0xf]
    %v1737 = vld [vmem:[%s1 + $0x10ac] sm:$0xf]
    %v1738 = vld [vmem:[%s1 + $0x10b0] sm:$0xf]
    %v1739 = vld [vmem:[%s1 + $0x10b4] sm:$0xf]
    %v1740 = vld [vmem:[%s1 + $0x10b8] sm:$0xf]
    %v1741 = vld [vmem:[%s1 + $0x10bc] sm:$0xf]
    %v1742 = vld [vmem:[%s1 + $0x10c0] sm:$0xf]
    %v1743 = vld [vmem:[%s1 + $0x10c4] sm:$0xf]
    %v1744 = vld [vmem:[%s1 + $0x10c8] sm:$0xf]
    %v1745 = vld [vmem:[%s1 + $0x10cc] sm:$0xf]
    %v1746 = vld [vmem:[%s1 + $0x10d0] sm:$0xf]
    %v1747 = vld [vmem:[%s1 + $0x10d4] sm:$0xf]
    %v1748 = vld [vmem:[%s1 + $0x10d8] sm:$0xf]
    %v1749 = vld [vmem:[%s1 + $0x10dc] sm:$0xf]
    %v1750 = vld [vmem:[%s1 + $0x10e0] sm:$0xf]
    %v1751 = vld [vmem:[%s1 + $0x10e4] sm:$0xf]
    %v1752 = vld [vmem:[%s1 + $0x10e8] sm:$0xf]
    %v1753 = vld [vmem:[%s1 + $0x10ec] sm:$0xf]
    %v1754 = vld [vmem:[%s1 + $0x10f0] sm:$0xf]
    %v1755 = vld [vmem:[%s1 + $0x10f4] sm:$0xf]
    %v1756 = vld [vmem:[%s1 + $0x10f8] sm:$0xf]
    %v1757 = vld [vmem:[%s1 + $0x10fc] sm:$0xf]
    %v1758 = vld [vmem:[%s1 + $0x1100] sm:$0xf]
    %v1759 = vld [vmem:[%s1 + $0x1104] sm:$0xf]
    %v1760 = vld [vmem:[%s1 + $0x1108] sm:$0xf]
    %v1761 = vld [vmem:[%s1 + $0x110c] sm:$0xf]
    %v1762 = vld [vmem:[%s1 + $0x1110] sm:$0xf]
    %v1763 = vld [vmem:[%s1 + $0x1114] sm:$0xf]
    %v1764 = vld [vmem:[%s1 + $0x1118] sm:$0xf]
    %v1765 = vld [vmem:[%s1 + $0x111c] sm:$0xf]
    %v1766 = vld [vmem:[%s1 + $0x1120] sm:$0xf]
    %v1767 = vld [vmem:[%s1 + $0x1124] sm:$0xf]
    %v1768 = vld [vmem:[%s1 + $0x1128] sm:$0xf]
    %v1769 = vld [vmem:[%s1 + $0x112c] sm:$0xf]
    %v1770 = vld [vmem:[%s1 + $0x1130] sm:$0xf]
    %v1771 = vld [vmem:[%s1 + $0x1134] sm:$0xf]
    %v1772 = vld [vmem:[%s1 + $0x1138] sm:$0xf]
    %v1773 = vld [vmem:[%s1 + $0x113c] sm:$0xf]
    %v1774 = vld [vmem:[%s1 + $0x1140] sm:$0xf]
    %v1775 = vld [vmem:[%s1 + $0x1144] sm:$0xf]
    %v1776 = vld [vmem:[%s1 + $0x1148] sm:$0xf]
    %v1777 = vld [vmem:[%s1 + $0x114c] sm:$0xf]
    %v1778 = vld [vmem:[%s1 + $0x1150] sm:$0xf]
    %v1779 = vld [vmem:[%s1 + $0x1154] sm:$0xf]
    %v1780 = vld [vmem:[%s1 + $0x1158] sm:$0xf]
    %v1781 = vld [vmem:[%s1 + $0x115c] sm:$0xf]
    %v1782 = vld [vmem:[%s1 + $0x1160] sm:$0xf]
    %v1783 = vld [vmem:[%s1 + $0x1164] sm:$0xf]
    %v1784 = vld [vmem:[%s1 + $0x1168] sm:$0xf]
    %v1785 = vld [vmem:[%s1 + $0x116c] sm:$0xf]
    %v1786 = vld [vmem:[%s1 + $0x1170] sm:$0xf]
    %v1787 = vld [vmem:[%s1 + $0x1174] sm:$0xf]
    %v1788 = vld [vmem:[%s1 + $0x1178] sm:$0xf]
    %v1789 = vld [vmem:[%s1 + $0x117c] sm:$0xf]
    %v1790 = vld [vmem:[%s1 + $0x1180] sm:$0xf]
    %v1791 = vld [vmem:[%s1 + $0x1184] sm:$0xf]
    %v1792 = vld [vmem:[%s1 + $0x1188] sm:$0xf]
    %v1793 = vld [vmem:[%s1 + $0x118c] sm:$0xf]
    %v1794 = vld [vmem:[%s1 + $0x1190] sm:$0xf]
    %v1795 = vld [vmem:[%s1 + $0x1194] sm:$0xf]
    %v1796 = vld [vmem:[%s1 + $0x1198] sm:$0xf]
    %v1797 = vld [vmem:[%s1 + $0x119c] sm:$0xf]
    %v1798 = vld [vmem:[%s1 + $0x11a0] sm:$0xf]
    %v1799 = vld [vmem:[%s1 + $0x11a4] sm:$0xf]
    %v1800 = vld [vmem:[%s1 + $0x11a8] sm:$0xf]
    %v1801 = vld [vmem:[%s1 + $0x11ac] sm:$0xf]
    %v1802 = vld [vmem:[%s1 + $0x11b0] sm:$0xf]
    %v1803 = vld [vmem:[%s1 + $0x11b4] sm:$0xf]
    %v1804 = vld [vmem:[%s1 + $0x11b8] sm:$0xf]
    %v1805 = vld [vmem:[%s1 + $0x11bc] sm:$0xf]
    %v1806 = vld [vmem:[%s1 + $0x11c0] sm:$0xf]
    %v1807 = vld [vmem:[%s1 + $0x11c4] sm:$0xf]
    %v1808 = vld [vmem:[%s1 + $0x11c8] sm:$0xf]
    %v1809 = vld [vmem:[%s1 + $0x11cc] sm:$0xf]
    %v1810 = vld [vmem:[%s1 + $0x11d0] sm:$0xf]
    %v1811 = vld [vmem:[%s1 + $0x11d4] sm:$0xf]
    %v1812 = vld [vmem:[%s1 + $0x11d8] sm:$0xf]
    %v1813 = vld [vmem:[%s1 + $0x11dc] sm:$0xf]
    %v1814 = vld [vmem:[%s1 + $0x11e0] sm:$0xf]
    %v1815 = vld [vmem:[%s1 + $0x11e4] sm:$0xf]
    %v1816 = vld [vmem:[%s1 + $0x11e8] sm:$0xf]
    %v1817 = vld [vmem:[%s1 + $0x11ec] sm:$0xf]
    %v1818 = vld [vmem:[%s1 + $0x11f0] sm:$0xf]
    %v1819 = vld [vmem:[%s1 + $0x11f4] sm:$0xf]
    %v1820 = vld [vmem:[%s1 + $0x11f8] sm:$0xf]
    %v1821 = vld [vmem:[%s1 + $0x11fc] sm:$0xf]
    %v1822 = vld [vmem:[%s1 + $0x1200] sm:$0xf]
    %v1823 = vld [vmem:[%s1 + $0x1204] sm:$0xf]
    %v1824 = vld [vmem:[%s1 + $0x1208] sm:$0xf]
    %v1825 = vld [vmem:[%s1 + $0x120c] sm:$0xf]
    %v1826 = vld [vmem:[%s1 + $0x1210] sm:$0xf]
    %v1827 = vld [vmem:[%s1 + $0x1214] sm:$0xf]
    %v1828 = vld [vmem:[%s1 + $0x1218] sm:$0xf]
    %v1829 = vld [vmem:[%s1 + $0x121c] sm:$0xf]
    %v1830 = vld [vmem:[%s1 + $0x1220] sm:$0xf]
    %v1831 = vld [vmem:[%s1 + $0x1224] sm:$0xf]
    %v1832 = vld [vmem:[%s1 + $0x1228] sm:$0xf]
    %v1833 = vld [vmem:[%s1 + $0x122c] sm:$0xf]
    %v1834 = vld [vmem:[%s1 + $0x1230] sm:$0xf]
    %v1835 = vld [vmem:[%s1 + $0x1234] sm:$0xf]
    %v1836 = vld [vmem:[%s1 + $0x1238] sm:$0xf]
    %v1837 = vld [vmem:[%s1 + $0x123c] sm:$0xf]
    %v1838 = vld [vmem:[%s1 + $0x1240] sm:$0xf]
    %v1839 = vld [vmem:[%s1 + $0x1244] sm:$0xf]
    %v1840 = vld [vmem:[%s1 + $0x1248] sm:$0xf]
    %v1841 = vld [vmem:[%s1 + $0x124c] sm:$0xf]
    %v1842 = vld [vmem:[%s1 + $0x1250] sm:$0xf]
    %v1843 = vld [vmem:[%s1 + $0x1254] sm:$0xf]
    %v1844 = vld [vmem:[%s1 + $0x1258] sm:$0xf]
    %v1845 = vld [vmem:[%s1 + $0x125c] sm:$0xf]
    %v1846 = vld [vmem:[%s1 + $0x1260] sm:$0xf]
    %v1847 = vld [vmem:[%s1 + $0x1264] sm:$0xf]
    %v1848 = vld [vmem:[%s1 + $0x1268] sm:$0xf]
    %v1849 = vld [vmem:[%s1 + $0x126c] sm:$0xf]
    %v1850 = vld [vmem:[%s1 + $0x1270] sm:$0xf]
    %v1851 = vld [vmem:[%s1 + $0x1274] sm:$0xf]
    %v1852 = vld [vmem:[%s1 + $0x1278] sm:$0xf]
    %v1853 = vld [vmem:[%s1 + $0x127c] sm:$0xf]
    %v1854 = vld [vmem:[%s1 + $0x1280] sm:$0xf]
    %v1855 = vld [vmem:[%s1 + $0x1284] sm:$0xf]
    %v1856 = vld [vmem:[%s1 + $0x1288] sm:$0xf]
    %v1857 = vld [vmem:[%s1 + $0x128c] sm:$0xf]
    %v1858 = vld [vmem:[%s1 + $0x1290] sm:$0xf]
    %v1859 = vld [vmem:[%s1 + $0x1294] sm:$0xf]
    %v1860 = vld [vmem:[%s1 + $0x1298] sm:$0xf]
    %v1861 = vld [vmem:[%s1 + $0x129c] sm:$0xf]
    %v1862 = vld [vmem:[%s1 + $0x12a0] sm:$0xf]
    %v1863 = vld [vmem:[%s1 + $0x12a4] sm:$0xf]
    %v1864 = vld [vmem:[%s1 + $0x12a8] sm:$0xf]
    %v1865 = vld [vmem:[%s1 + $0x12ac] sm:$0xf]
    %v1866 = vld [vmem:[%s1 + $0x12b0] sm:$0xf]
    %v1867 = vld [vmem:[%s1 + $0x12b4] sm:$0xf]
    %v1868 = vld [vmem:[%s1 + $0x12b8] sm:$0xf]
    %v1869 = vld [vmem:[%s1 + $0x12bc] sm:$0xf]
    %v1870 = vld [vmem:[%s1 + $0x12c0] sm:$0xf]
    %v1871 = vld [vmem:[%s1 + $0x12c4] sm:$0xf]
    %v1872 = vld [vmem:[%s1 + $0x12c8] sm:$0xf]
    %v1873 = vld [vmem:[%s1 + $0x12cc] sm:$0xf]
    %v1874 = vld [vmem:[%s1 + $0x12d0] sm:$0xf]
    %v1875 = vld [vmem:[%s1 + $0x12d4] sm:$0xf]
    %v1876 = vld [vmem:[%s1 + $0x12d8] sm:$0xf]
    %v1877 = vld [vmem:[%s1 + $0x12dc] sm:$0xf]
    %v1878 = vld [vmem:[%s1 + $0x12e0] sm:$0xf]
    %v1879 = vld [vmem:[%s1 + $0x12e4] sm:$0xf]
    %v1880 = vld [vmem:[%s1 + $0x12e8] sm:$0xf]
    %v1881 = vld [vmem:[%s1 + $0x12ec] sm:$0xf]
    %v1882 = vld [vmem:[%s1 + $0x12f0] sm:$0xf]
    %v1883 = vld [vmem:[%s1 + $0x12f4] sm:$0xf]
    %v1884 = vld [vmem:[%s1 + $0x12f8] sm:$0xf]
    %v1885 = vld [vmem:[%s1 + $0x12fc] sm:$0xf]
    %v1886 = vld [vmem:[%s1 + $0x1300] sm:$0xf]
    %v1887 = vld [vmem:[%s1 + $0x1304] sm:$0xf]
    %v1888 = vld [vmem:[%s1 + $0x1308] sm:$0xf]
    %v1889 = vld [vmem:[%s1 + $0x130c] sm:$0xf]
    %v1890 = vld [vmem:[%s1 + $0x1310] sm:$0xf]
    %v1891 = vld [vmem:[%s1 + $0x1314] sm:$0xf]
    %v1892 = vld [vmem:[%s1 + $0x1318] sm:$0xf]
    %v1893 = vld [vmem:[%s1 + $0x131c] sm:$0xf]
    %v1894 = vld [vmem:[%s1 + $0x1320] sm:$0xf]
    %v1895 = vld [vmem:[%s1 + $0x1324] sm:$0xf]
    %v1896 = vld [vmem:[%s1 + $0x1328] sm:$0xf]
    %v1897 = vld [vmem:[%s1 + $0x132c] sm:$0xf]
    %v1898 = vld [vmem:[%s1 + $0x1330] sm:$0xf]
    %v1899 = vld [vmem:[%s1 + $0x1334] sm:$0xf]
    %v1900 = vld [vmem:[%s1 + $0x1338] sm:$0xf]
    %v1901 = vld [vmem:[%s1 + $0x133c] sm:$0xf]
    %v1902 = vld [vmem:[%s1 + $0x1340] sm:$0xf]
    %v1903 = vld [vmem:[%s1 + $0x1344] sm:$0xf]
    %v1904 = vld [vmem:[%s1 + $0x1348] sm:$0xf]
    %v1905 = vld [vmem:[%s1 + $0x134c] sm:$0xf]
    %v1906 = vld [vmem:[%s1 + $0x1350] sm:$0xf]
    %v1907 = vld [vmem:[%s1 + $0x1354] sm:$0xf]
    %v1908 = vld [vmem:[%s1 + $0x1358] sm:$0xf]
    %v1909 = vld [vmem:[%s1 + $0x135c] sm:$0xf]
    %v1910 = vld [vmem:[%s1 + $0x1360] sm:$0xf]
    %v1911 = vld [vmem:[%s1 + $0x1364] sm:$0xf]
    %v1912 = vld [vmem:[%s1 + $0x1368] sm:$0xf]
    %v1913 = vld [vmem:[%s1 + $0x136c] sm:$0xf]
    %v1914 = vld [vmem:[%s1 + $0x1370] sm:$0xf]
    %v1915 = vld [vmem:[%s1 + $0x1374] sm:$0xf]
    %v1916 = vld [vmem:[%s1 + $0x1378] sm:$0xf]
    %v1917 = vld [vmem:[%s1 + $0x137c] sm:$0xf]
    %v1918 = vld [vmem:[%s1 + $0x1380] sm:$0xf]
    %v1919 = vld [vmem:[%s1 + $0x1384] sm:$0xf]
    %v1920 = vld [vmem:[%s1 + $0x1388] sm:$0xf]
    %v1921 = vld [vmem:[%s1 + $0x138c] sm:$0xf]
    %v1922 = vld [vmem:[%s1 + $0x1390] sm:$0xf]
    %v1923 = vld [vmem:[%s1 + $0x1394] sm:$0xf]
    %v1924 = vld [vmem:[%s1 + $0x1398] sm:$0xf]
    %v1925 = vld [vmem:[%s1 + $0x139c] sm:$0xf]
    %v1926 = vld [vmem:[%s1 + $0x13a0] sm:$0xf]
    %v1927 = vld [vmem:[%s1 + $0x13a4] sm:$0xf]
    %v1928 = vld [vmem:[%s1 + $0x13a8] sm:$0xf]
    %v1929 = vld [vmem:[%s1 + $0x13ac] sm:$0xf]
    %v1930 = vld [vmem:[%s1 + $0x13b0] sm:$0xf]
    %v1931 = vld [vmem:[%s1 + $0x13b4] sm:$0xf]
    %v1932 = vld [vmem:[%s1 + $0x13b8] sm:$0xf]
    %v1933 = vld [vmem:[%s1 + $0x13bc] sm:$0xf]
    %v1934 = vld [vmem:[%s1 + $0x13c0] sm:$0xf]
    %v1935 = vld [vmem:[%s1 + $0x13c4] sm:$0xf]
    %v1936 = vld [vmem:[%s1 + $0x13c8] sm:$0xf]
    %v1937 = vld [vmem:[%s1 + $0x13cc] sm:$0xf]
    %v1938 = vld [vmem:[%s1 + $0x13d0] sm:$0xf]
    %v1939 = vld [vmem:[%s1 + $0x13d4] sm:$0xf]
    %v1940 = vld [vmem:[%s1 + $0x13d8] sm:$0xf]
    %v1941 = vld [vmem:[%s1 + $0x13dc] sm:$0xf]
    %v1942 = vld [vmem:[%s1 + $0x13e0] sm:$0xf]
    %v1943 = vld [vmem:[%s1 + $0x13e4] sm:$0xf]
    %v1944 = vld [vmem:[%s1 + $0x13e8] sm:$0xf]
    %v1945 = vld [vmem:[%s1 + $0x13ec] sm:$0xf]
    %v1946 = vld [vmem:[%s1 + $0x13f0] sm:$0xf]
    %v1947 = vld [vmem:[%s1 + $0x13f4] sm:$0xf]
    %v1948 = vld [vmem:[%s1 + $0x13f8] sm:$0xf]
    %v1949 = vld [vmem:[%s1 + $0x13fc] sm:$0xf]
    %v1950 = vld [vmem:[%s1 + $0x1400] sm:$0xf]
    %v1951 = vld [vmem:[%s1 + $0x1404] sm:$0xf]
    %v1952 = vld [vmem:[%s1 + $0x1408] sm:$0xf]
    %v1953 = vld [vmem:[%s1 + $0x140c] sm:$0xf]
    %v1954 = vld [vmem:[%s1 + $0x1410] sm:$0xf]
    %v1955 = vld [vmem:[%s1 + $0x1414] sm:$0xf]
    %v1956 = vld [vmem:[%s1 + $0x1418] sm:$0xf]
    %v1957 = vld [vmem:[%s1 + $0x141c] sm:$0xf]
    %v1958 = vld [vmem:[%s1 + $0x1420] sm:$0xf]
    %v1959 = vld [vmem:[%s1 + $0x1424] sm:$0xf]
    %v1960 = vld [vmem:[%s1 + $0x1428] sm:$0xf]
    %v1961 = vld [vmem:[%s1 + $0x142c] sm:$0xf]
    %v1962 = vld [vmem:[%s1 + $0x1430] sm:$0xf]
    %v1963 = vld [vmem:[%s1 + $0x1434] sm:$0xf]
    %v1964 = vld [vmem:[%s1 + $0x1438] sm:$0xf]
    %v1965 = vld [vmem:[%s1 + $0x143c] sm:$0xf]
    %v1966 = vld [vmem:[%s1 + $0x1440] sm:$0xf]
    %v1967 = vld [vmem:[%s1 + $0x1444] sm:$0xf]
    %v1968 = vld [vmem:[%s1 + $0x1448] sm:$0xf]
    %v1969 = vld [vmem:[%s1 + $0x144c] sm:$0xf]
    %v1970 = vld [vmem:[%s1 + $0x1450] sm:$0xf]
    %v1971 = vld [vmem:[%s1 + $0x1454] sm:$0xf]
    %v1972 = vld [vmem:[%s1 + $0x1458] sm:$0xf]
    %v1973 = vld [vmem:[%s1 + $0x145c] sm:$0xf]
    %v1974 = vld [vmem:[%s1 + $0x1460] sm:$0xf]
    %v1975 = vld [vmem:[%s1 + $0x1464] sm:$0xf]
    %v1976 = vld [vmem:[%s1 + $0x1468] sm:$0xf]
    %v1977 = vld [vmem:[%s1 + $0x146c] sm:$0xf]
    %v1978 = vld [vmem:[%s1 + $0x1470] sm:$0xf]
    %v1979 = vld [vmem:[%s1 + $0x1474] sm:$0xf]
    %v1980 = vld [vmem:[%s1 + $0x1478] sm:$0xf]
    %v1981 = vld [vmem:[%s1 + $0x147c] sm:$0xf]
    %v1982 = vld [vmem:[%s1 + $0x1480] sm:$0xf]
    %v1983 = vld [vmem:[%s1 + $0x1484] sm:$0xf]
    %v1984 = vld [vmem:[%s1 + $0x1488] sm:$0xf]
    %v1985 = vld [vmem:[%s1 + $0x148c] sm:$0xf]
    %v1986 = vld [vmem:[%s1 + $0x1490] sm:$0xf]
    %v1987 = vld [vmem:[%s1 + $0x1494] sm:$0xf]
    %v1988 = vld [vmem:[%s1 + $0x1498] sm:$0xf]
    %v1989 = vld [vmem:[%s1 + $0x149c] sm:$0xf]
    %v1990 = vld [vmem:[%s1 + $0x14a0] sm:$0xf]
    %v1991 = vld [vmem:[%s1 + $0x14a4] sm:$0xf]
    %v1992 = vld [vmem:[%s1 + $0x14a8] sm:$0xf]
    %v1993 = vld [vmem:[%s1 + $0x14ac] sm:$0xf]
    %v1994 = vld [vmem:[%s1 + $0x14b0] sm:$0xf]
    %v1995 = vld [vmem:[%s1 + $0x14b4] sm:$0xf]
    %v1996 = vld [vmem:[%s1 + $0x14b8] sm:$0xf]
    %v1997 = vld [vmem:[%s1 + $0x14bc] sm:$0xf]
    %v1998 = vld [vmem:[%s1 + $0x14c0] sm:$0xf]
    %v1999 = vld [vmem:[%s1 + $0x14c4] sm:$0xf]
    %v2000 = vld [vmem:[%s1 + $0x14c8] sm:$0xf]
    %v2001 = vld [vmem:[%s1 + $0x14cc] sm:$0xf]
    %v2002 = vld [vmem:[%s1 + $0x14d0] sm:$0xf]
    %v2003 = vld [vmem:[%s1 + $0x14d4] sm:$0xf]
    %v2004 = vld [vmem:[%s1 + $0x14d8] sm:$0xf]
    %v2005 = vld [vmem:[%s1 + $0x14dc] sm:$0xf]
    %v2006 = vld [vmem:[%s1 + $0x14e0] sm:$0xf]
    %v2007 = vld [vmem:[%s1 + $0x14e4] sm:$0xf]
    %v2008 = vld [vmem:[%s1 + $0x14e8] sm:$0xf]
    %v2009 = vld [vmem:[%s1 + $0x14ec] sm:$0xf]
    %v2010 = vld [vmem:[%s1 + $0x14f0] sm:$0xf]
    %v2011 = vld [vmem:[%s1 + $0x14f4] sm:$0xf]
    %v2012 = vld [vmem:[%s1 + $0x14f8] sm:$0xf]
    %v2013 = vld [vmem:[%s1 + $0x14fc] sm:$0xf]
    %v2014 = vld [vmem:[%s1 + $0x1500] sm:$0xf]
    %v2015 = vld [vmem:[%s1 + $0x1504] sm:$0xf]
    %v2016 = vld [vmem:[%s1 + $0x1508] sm:$0xf]
    %v2017 = vld [vmem:[%s1 + $0x150c] sm:$0xf]
    %v2018 = vld [vmem:[%s1 + $0x1510] sm:$0xf]
    %v2019 = vld [vmem:[%s1 + $0x1514] sm:$0xf]
    %v2020 = vld [vmem:[%s1 + $0x1518] sm:$0xf]
    %v2021 = vld [vmem:[%s1 + $0x151c] sm:$0xf]
    %v2022 = vld [vmem:[%s1 + $0x1520] sm:$0xf]
    %v2023 = vld [vmem:[%s1 + $0x1524] sm:$0xf]
    %v2024 = vld [vmem:[%s1 + $0x1528] sm:$0xf]
    %v2025 = vld [vmem:[%s1 + $0x152c] sm:$0xf]
    %v2026 = vld [vmem:[%s1 + $0x1530] sm:$0xf]
    %v2027 = vld [vmem:[%s1 + $0x1534] sm:$0xf]
    %v2028 = vld [vmem:[%s1 + $0x1538] sm:$0xf]
    %v2029 = vld [vmem:[%s1 + $0x153c] sm:$0xf]
    %v2030 = vld [vmem:[%s1 + $0x1540] sm:$0xf]
    %v2031 = vld [vmem:[%s1 + $0x1544] sm:$0xf]
    %v2032 = vld [vmem:[%s1 + $0x1548] sm:$0xf]
    %v2033 = vld [vmem:[%s1 + $0x154c] sm:$0xf]
    %v2034 = vld [vmem:[%s1 + $0x1550] sm:$0xf]
    %v2035 = vld [vmem:[%s1 + $0x1554] sm:$0xf]
    %v2036 = vld [vmem:[%s1 + $0x1558] sm:$0xf]
    %v2037 = vld [vmem:[%s1 + $0x155c] sm:$0xf]
    %v2038 = vld [vmem:[%s1 + $0x1560] sm:$0xf]
    %v2039 = vld [vmem:[%s1 + $0x1564] sm:$0xf]
    %v2040 = vld [vmem:[%s1 + $0x1568] sm:$0xf]
    %v2041 = vld [vmem:[%s1 + $0x156c] sm:$0xf]
    %v2042 = vld [vmem:[%s1 + $0x1570] sm:$0xf]
    %v2043 = vld [vmem:[%s1 + $0x1574] sm:$0xf]
    %v2044 = vld [vmem:[%s1 + $0x1578] sm:$0xf]
    %v2045 = vld [vmem:[%s1 + $0x157c] sm:$0xf]
    %v2046 = vld [vmem:[%s1 + $0x1580] sm:$0xf]
    %v2047 = vld [vmem:[%s1 + $0x1584] sm:$0xf]
    %v2048 = vld [vmem:[%s1 + $0x1588] sm:$0xf]
    %v2049 = vld [vmem:[%s1 + $0x158c] sm:$0xf]
    %v2050 = vld [vmem:[%s1 + $0x1590] sm:$0xf]
    %v2051 = vld [vmem:[%s1 + $0x1594] sm:$0xf]
    %v2052 = vld [vmem:[%s1 + $0x1598] sm:$0xf]
    %v2053 = vld [vmem:[%s1 + $0x159c] sm:$0xf]
    %v2054 = vld [vmem:[%s1 + $0x15a0] sm:$0xf]
    %v2055 = vld [vmem:[%s1 + $0x15a4] sm:$0xf]
    %v2056 = vld [vmem:[%s1 + $0x15a8] sm:$0xf]
    %v2057 = vld [vmem:[%s1 + $0x15ac] sm:$0xf]
    %v2058 = vld [vmem:[%s1 + $0x15b0] sm:$0xf]
    %v2059 = vld [vmem:[%s1 + $0x15b4] sm:$0xf]
    %v2060 = vld [vmem:[%s1 + $0x15b8] sm:$0xf]
    %v2061 = vld [vmem:[%s1 + $0x15bc] sm:$0xf]
    %v2062 = vld [vmem:[%s1 + $0x15c0] sm:$0xf]
    %v2063 = vld [vmem:[%s1 + $0x15c4] sm:$0xf]
    %v2064 = vld [vmem:[%s1 + $0x15c8] sm:$0xf]
    %v2065 = vld [vmem:[%s1 + $0x15cc] sm:$0xf]
    %v2066 = vld [vmem:[%s1 + $0x15d0] sm:$0xf]
    %v2067 = vld [vmem:[%s1 + $0x15d4] sm:$0xf]
    %v2068 = vld [vmem:[%s1 + $0x15d8] sm:$0xf]
    %v2069 = vld [vmem:[%s1 + $0x15dc] sm:$0xf]
    %v2070 = vld [vmem:[%s1 + $0x15e0] sm:$0xf]
    %v2071 = vld [vmem:[%s1 + $0x15e4] sm:$0xf]
    %v2072 = vld [vmem:[%s1 + $0x15e8] sm:$0xf]
    %v2073 = vld [vmem:[%s1 + $0x15ec] sm:$0xf]
    %v2074 = vld [vmem:[%s1 + $0x15f0] sm:$0xf]
    %v2075 = vld [vmem:[%s1 + $0x15f4] sm:$0xf]
    %v2076 = vld [vmem:[%s1 + $0x15f8] sm:$0xf]
    %v2077 = vld [vmem:[%s1 + $0x15fc] sm:$0xf]
    %v2078 = vld [vmem:[%s1 + $0x1600] sm:$0xf]
    %v2079 = vld [vmem:[%s1 + $0x1604] sm:$0xf]
    %v2080 = vld [vmem:[%s1 + $0x1608] sm:$0xf]
    %v2081 = vld [vmem:[%s1 + $0x160c] sm:$0xf]
    %v2082 = vld [vmem:[%s1 + $0x1610] sm:$0xf]
    %v2083 = vld [vmem:[%s1 + $0x1614] sm:$0xf]
    %v2084 = vld [vmem:[%s1 + $0x1618] sm:$0xf]
    %v2085 = vld [vmem:[%s1 + $0x161c] sm:$0xf]
    %v2086 = vld [vmem:[%s1 + $0x1620] sm:$0xf]
    %v2087 = vld [vmem:[%s1 + $0x1624] sm:$0xf]
    %v2088 = vld [vmem:[%s1 + $0x1628] sm:$0xf]
    %v2089 = vld [vmem:[%s1 + $0x162c] sm:$0xf]
    %v2090 = vld [vmem:[%s1 + $0x1630] sm:$0xf]
    %v2091 = vld [vmem:[%s1 + $0x1634] sm:$0xf]
    %v2092 = vld [vmem:[%s1 + $0x1638] sm:$0xf]
    %v2093 = vld [vmem:[%s1 + $0x163c] sm:$0xf]
    %v2094 = vld [vmem:[%s1 + $0x1640] sm:$0xf]
    %v2095 = vld [vmem:[%s1 + $0x1644] sm:$0xf]
    %v2096 = vld [vmem:[%s1 + $0x1648] sm:$0xf]
    %v2097 = vld [vmem:[%s1 + $0x164c] sm:$0xf]
    %v2098 = vld [vmem:[%s1 + $0x1650] sm:$0xf]
    %v2099 = vld [vmem:[%s1 + $0x1654] sm:$0xf]
    %v2100 = vld [vmem:[%s1 + $0x1658] sm:$0xf]
    %v2101 = vld [vmem:[%s1 + $0x165c] sm:$0xf]
    %v2102 = vld [vmem:[%s1 + $0x1660] sm:$0xf]
    %v2103 = vld [vmem:[%s1 + $0x1664] sm:$0xf]
    %v2104 = vld [vmem:[%s1 + $0x1668] sm:$0xf]
    %v2105 = vld [vmem:[%s1 + $0x166c] sm:$0xf]
    %v2106 = vld [vmem:[%s1 + $0x1670] sm:$0xf]
    %v2107 = vld [vmem:[%s1 + $0x1674] sm:$0xf]
    %v2108 = vld [vmem:[%s1 + $0x1678] sm:$0xf]
    %v2109 = vld [vmem:[%s1 + $0x167c] sm:$0xf]
    %v2110 = vld [vmem:[%s1 + $0x1680] sm:$0xf]
    %v2111 = vld [vmem:[%s1 + $0x1684] sm:$0xf]
    %v2112 = vld [vmem:[%s1 + $0x1688] sm:$0xf]
    %v2113 = vld [vmem:[%s1 + $0x168c] sm:$0xf]
    %v2114 = vld [vmem:[%s1 + $0x1690] sm:$0xf]
    %v2115 = vld [vmem:[%s1 + $0x1694] sm:$0xf]
    %v2116 = vld [vmem:[%s1 + $0x1698] sm:$0xf]
    %v2117 = vld [vmem:[%s1 + $0x169c] sm:$0xf]
    %v2118 = vld [vmem:[%s1 + $0x16a0] sm:$0xf]
    %v2119 = vld [vmem:[%s1 + $0x16a4] sm:$0xf]
    %v2120 = vld [vmem:[%s1 + $0x16a8] sm:$0xf]
    %v2121 = vld [vmem:[%s1 + $0x16ac] sm:$0xf]
    %v2122 = vld [vmem:[%s1 + $0x16b0] sm:$0xf]
    %v2123 = vld [vmem:[%s1 + $0x16b4] sm:$0xf]
    %v2124 = vld [vmem:[%s1 + $0x16b8] sm:$0xf]
    %v2125 = vld [vmem:[%s1 + $0x16bc] sm:$0xf]
    %v2126 = vld [vmem:[%s1 + $0x16c0] sm:$0xf]
    %v2127 = vld [vmem:[%s1 + $0x16c4] sm:$0xf]
    %v2128 = vld [vmem:[%s1 + $0x16c8] sm:$0xf]
    %v2129 = vld [vmem:[%s1 + $0x16cc] sm:$0xf]
    %v2130 = vld [vmem:[%s1 + $0x16d0] sm:$0xf]
    %v2131 = vld [vmem:[%s1 + $0x16d4] sm:$0xf]
    %v2132 = vld [vmem:[%s1 + $0x16d8] sm:$0xf]
    %v2133 = vld [vmem:[%s1 + $0x16dc] sm:$0xf]
    %v2134 = vld [vmem:[%s1 + $0x16e0] sm:$0xf]
    %v2135 = vld [vmem:[%s1 + $0x16e4] sm:$0xf]
    %v2136 = vld [vmem:[%s1 + $0x16e8] sm:$0xf]
    %v2137 = vld [vmem:[%s1 + $0x16ec] sm:$0xf]
    %v2138 = vld [vmem:[%s1 + $0x16f0] sm:$0xf]
    %v2139 = vld [vmem:[%s1 + $0x16f4] sm:$0xf]
    %v2140 = vld [vmem:[%s1 + $0x16f8] sm:$0xf]
    %v2141 = vld [vmem:[%s1 + $0x16fc] sm:$0xf]
    %v2142 = vld [vmem:[%s1 + $0x1700] sm:$0xf]
    %v2143 = vld [vmem:[%s1 + $0x1704] sm:$0xf]
    %v2144 = vld [vmem:[%s1 + $0x1708] sm:$0xf]
    %v2145 = vld [vmem:[%s1 + $0x170c] sm:$0xf]
    %v2146 = vld [vmem:[%s1 + $0x1710] sm:$0xf]
    %v2147 = vld [vmem:[%s1 + $0x1714] sm:$0xf]
    %v2148 = vld [vmem:[%s1 + $0x1718] sm:$0xf]
    %v2149 = vld [vmem:[%s1 + $0x171c] sm:$0xf]
    %v2150 = vld [vmem:[%s1 + $0x1720] sm:$0xf]
    %v2151 = vld [vmem:[%s1 + $0x1724] sm:$0xf]
    %v2152 = vld [vmem:[%s1 + $0x1728] sm:$0xf]
    %v2153 = vld [vmem:[%s1 + $0x172c] sm:$0xf]
    %v2154 = vld [vmem:[%s1 + $0x1730] sm:$0xf]
    %v2155 = vld [vmem:[%s1 + $0x1734] sm:$0xf]
    %v2156 = vld [vmem:[%s1 + $0x1738] sm:$0xf]
    %v2157 = vld [vmem:[%s1 + $0x173c] sm:$0xf]
    %v2158 = vld [vmem:[%s1 + $0x1740] sm:$0xf]
    %v2159 = vld [vmem:[%s1 + $0x1744] sm:$0xf]
    %v2160 = vld [vmem:[%s1 + $0x1748] sm:$0xf]
    %v2161 = vld [vmem:[%s1 + $0x174c] sm:$0xf]
    %v2162 = vld [vmem:[%s1 + $0x1750] sm:$0xf]
    %v2163 = vld [vmem:[%s1 + $0x1754] sm:$0xf]
    %v2164 = vld [vmem:[%s1 + $0x1758] sm:$0xf]
    %v2165 = vld [vmem:[%s1 + $0x175c] sm:$0xf]
    %v2166 = vld [vmem:[%s1 + $0x1760] sm:$0xf]
    %v2167 = vld [vmem:[%s1 + $0x1764] sm:$0xf]
    %v2168 = vld [vmem:[%s1 + $0x1768] sm:$0xf]
    %v2169 = vld [vmem:[%s1 + $0x176c] sm:$0xf]
    %v2170 = vld [vmem:[%s1 + $0x1770] sm:$0xf]
    %v2171 = vld [vmem:[%s1 + $0x1774] sm:$0xf]
    %v2172 = vld [vmem:[%s1 + $0x1778] sm:$0xf]
    %v2173 = vld [vmem:[%s1 + $0x177c] sm:$0xf]
    %v2174 = vld [vmem:[%s1 + $0x1780] sm:$0xf]
    %v2175 = vld [vmem:[%s1 + $0x1784] sm:$0xf]
    %v2176 = vld [vmem:[%s1 + $0x1788] sm:$0xf]
    %v2177 = vld [vmem:[%s1 + $0x178c] sm:$0xf]
    %v2178 = vld [vmem:[%s1 + $0x1790] sm:$0xf]
    %v2179 = vld [vmem:[%s1 + $0x1794] sm:$0xf]
    %v2180 = vld [vmem:[%s1 + $0x1798] sm:$0xf]
    %v2181 = vld [vmem:[%s1 + $0x179c] sm:$0xf]
    %v2182 = vld [vmem:[%s1 + $0x17a0] sm:$0xf]
    %v2183 = vld [vmem:[%s1 + $0x17a4] sm:$0xf]
    %v2184 = vld [vmem:[%s1 + $0x17a8] sm:$0xf]
    %v2185 = vld [vmem:[%s1 + $0x17ac] sm:$0xf]
    %v2186 = vld [vmem:[%s1 + $0x17b0] sm:$0xf]
    %v2187 = vld [vmem:[%s1 + $0x17b4] sm:$0xf]
    %v2188 = vld [vmem:[%s1 + $0x17b8] sm:$0xf]
    %v2189 = vld [vmem:[%s1 + $0x17bc] sm:$0xf]
    %v2190 = vld [vmem:[%s1 + $0x17c0] sm:$0xf]
    %v2191 = vld [vmem:[%s1 + $0x17c4] sm:$0xf]
    %v2192 = vld [vmem:[%s1 + $0x17c8] sm:$0xf]
    %v2193 = vld [vmem:[%s1 + $0x17cc] sm:$0xf]
    %v2194 = vld [vmem:[%s1 + $0x17d0] sm:$0xf]
    %v2195 = vld [vmem:[%s1 + $0x17d4] sm:$0xf]
    %v2196 = vld [vmem:[%s1 + $0x17d8] sm:$0xf]
    %v2197 = vld [vmem:[%s1 + $0x17dc] sm:$0xf]
    %v2198 = vld [vmem:[%s1 + $0x17e0] sm:$0xf]
    %v2199 = vld [vmem:[%s1 + $0x17e4] sm:$0xf]
    %v2200 = vld [vmem:[%s1 + $0x17e8] sm:$0xf]
    %v2201 = vld [vmem:[%s1 + $0x17ec] sm:$0xf]
    %v2202 = vld [vmem:[%s1 + $0x17f0] sm:$0xf]
    %v2203 = vld [vmem:[%s1 + $0x17f4] sm:$0xf]
    %v2204 = vld [vmem:[%s1 + $0x17f8] sm:$0xf]
    %v2205 = vld [vmem:[%s1 + $0x17fc] sm:$0xf]
    %v2206 = vld [vmem:[%s2] sm:$0x1]
    %v2208 = vlaneseq
    %v2209 = vshrl.u32 %v2208, 7
    %v2210 = vsub.s32 0, %v2209
    %v2211 = vrot.slane %v2206, %v2210
    %v3749 = vunpack.c.l.b16 %v670
    %v3750 = vunpack.c.l.b16 %v671
    %v3751 = vunpack.c.l.b16 %v672
    %v3752 = vunpack.c.l.b16 %v673
    %v3753 = vunpack.c.l.b16 %v674
    %v3754 = vunpack.c.l.b16 %v675
    %v3755 = vunpack.c.l.b16 %v676
    %v3756 = vunpack.c.l.b16 %v677
    %v3757 = vunpack.c.l.b16 %v678
    %v3758 = vunpack.c.l.b16 %v679
    %v3759 = vunpack.c.l.b16 %v680
    %v3760 = vunpack.c.l.b16 %v681
    %v3761 = vunpack.c.l.b16 %v682
    %v3762 = vunpack.c.l.b16 %v683
    %v3763 = vunpack.c.l.b16 %v684
    %v3764 = vunpack.c.l.b16 %v685
    %v3765 = vunpack.c.l.b16 %v686
    %v3766 = vunpack.c.l.b16 %v687
    %v3767 = vunpack.c.l.b16 %v688
    %v3768 = vunpack.c.l.b16 %v689
    %v3769 = vunpack.c.l.b16 %v690
    %v3770 = vunpack.c.l.b16 %v691
    %v3771 = vunpack.c.l.b16 %v692
    %v3772 = vunpack.c.l.b16 %v693
    %v3773 = vunpack.c.l.b16 %v694
    %v3774 = vunpack.c.l.b16 %v695
    %v3775 = vunpack.c.l.b16 %v696
    %v3776 = vunpack.c.l.b16 %v697
    %v3777 = vunpack.c.l.b16 %v698
    %v3778 = vunpack.c.l.b16 %v699
    %v3779 = vunpack.c.l.b16 %v700
    %v3780 = vunpack.c.l.b16 %v701
    %v3781 = vunpack.c.l.b16 %v702
    %v3782 = vunpack.c.l.b16 %v703
    %v3783 = vunpack.c.l.b16 %v704
    %v3784 = vunpack.c.l.b16 %v705
    %v3785 = vunpack.c.l.b16 %v706
    %v3786 = vunpack.c.l.b16 %v707
    %v3787 = vunpack.c.l.b16 %v708
    %v3788 = vunpack.c.l.b16 %v709
    %v3789 = vunpack.c.l.b16 %v710
    %v3790 = vunpack.c.l.b16 %v711
    %v3791 = vunpack.c.l.b16 %v712
    %v3792 = vunpack.c.l.b16 %v713
    %v3793 = vunpack.c.l.b16 %v714
    %v3794 = vunpack.c.l.b16 %v715
    %v3795 = vunpack.c.l.b16 %v716
    %v3796 = vunpack.c.l.b16 %v717
    %v3797 = vunpack.c.l.b16 %v718
    %v3798 = vunpack.c.l.b16 %v719
    %v3799 = vunpack.c.l.b16 %v720
    %v3800 = vunpack.c.l.b16 %v721
    %v3801 = vunpack.c.l.b16 %v722
    %v3802 = vunpack.c.l.b16 %v723
    %v3803 = vunpack.c.l.b16 %v724
    %v3804 = vunpack.c.l.b16 %v725
    %v3805 = vunpack.c.l.b16 %v726
    %v3806 = vunpack.c.l.b16 %v727
    %v3807 = vunpack.c.l.b16 %v728
    %v3808 = vunpack.c.l.b16 %v729
    %v3809 = vunpack.c.l.b16 %v730
    %v3810 = vunpack.c.l.b16 %v731
    %v3811 = vunpack.c.l.b16 %v732
    %v3812 = vunpack.c.l.b16 %v733
    %v3813 = vunpack.c.l.b16 %v734
    %v3814 = vunpack.c.l.b16 %v735
    %v3815 = vunpack.c.l.b16 %v736
    %v3816 = vunpack.c.l.b16 %v737
    %v3817 = vunpack.c.l.b16 %v738
    %v3818 = vunpack.c.l.b16 %v739
    %v3819 = vunpack.c.l.b16 %v740
    %v3820 = vunpack.c.l.b16 %v741
    %v3821 = vunpack.c.l.b16 %v742
    %v3822 = vunpack.c.l.b16 %v743
    %v3823 = vunpack.c.l.b16 %v744
    %v3824 = vunpack.c.l.b16 %v745
    %v3825 = vunpack.c.l.b16 %v746
    %v3826 = vunpack.c.l.b16 %v747
    %v3827 = vunpack.c.l.b16 %v748
    %v3828 = vunpack.c.l.b16 %v749
    %v3829 = vunpack.c.l.b16 %v750
    %v3830 = vunpack.c.l.b16 %v751
    %v3831 = vunpack.c.l.b16 %v752
    %v3832 = vunpack.c.l.b16 %v753
    %v3833 = vunpack.c.l.b16 %v754
    %v3834 = vunpack.c.l.b16 %v755
    %v3835 = vunpack.c.l.b16 %v756
    %v3836 = vunpack.c.l.b16 %v757
    %v3837 = vunpack.c.l.b16 %v758
    %v3838 = vunpack.c.l.b16 %v759
    %v3839 = vunpack.c.l.b16 %v760
    %v3840 = vunpack.c.l.b16 %v761
    %v3841 = vunpack.c.l.b16 %v762
    %v3842 = vunpack.c.l.b16 %v763
    %v3843 = vunpack.c.l.b16 %v764
    %v3844 = vunpack.c.l.b16 %v765
    %v3845 = vunpack.c.l.b16 %v766
    %v3846 = vunpack.c.l.b16 %v767
    %v3847 = vunpack.c.l.b16 %v768
    %v3848 = vunpack.c.l.b16 %v769
    %v3849 = vunpack.c.l.b16 %v770
    %v3850 = vunpack.c.l.b16 %v771
    %v3851 = vunpack.c.l.b16 %v772
    %v3852 = vunpack.c.l.b16 %v773
    %v3853 = vunpack.c.l.b16 %v774
    %v3854 = vunpack.c.l.b16 %v775
    %v3855 = vunpack.c.l.b16 %v776
    %v3856 = vunpack.c.l.b16 %v777
    %v3857 = vunpack.c.l.b16 %v778
    %v3858 = vunpack.c.l.b16 %v779
    %v3859 = vunpack.c.l.b16 %v780
    %v3860 = vunpack.c.l.b16 %v781
    %v3861 = vunpack.c.l.b16 %v782
    %v3862 = vunpack.c.l.b16 %v783
    %v3863 = vunpack.c.l.b16 %v784
    %v3864 = vunpack.c.l.b16 %v785
    %v3865 = vunpack.c.l.b16 %v786
    %v3866 = vunpack.c.l.b16 %v787
    %v3867 = vunpack.c.l.b16 %v788
    %v3868 = vunpack.c.l.b16 %v789
    %v3869 = vunpack.c.l.b16 %v790
    %v3870 = vunpack.c.l.b16 %v791
    %v3871 = vunpack.c.l.b16 %v792
    %v3872 = vunpack.c.l.b16 %v793
    %v3873 = vunpack.c.l.b16 %v794
    %v3874 = vunpack.c.l.b16 %v795
    %v3875 = vunpack.c.l.b16 %v796
    %v3876 = vunpack.c.l.b16 %v797
    %v3877 = vunpack.c.l.b16 %v798
    %v3878 = vunpack.c.l.b16 %v799
    %v3879 = vunpack.c.l.b16 %v800
    %v3880 = vunpack.c.l.b16 %v801
    %v3881 = vunpack.c.l.b16 %v802
    %v3882 = vunpack.c.l.b16 %v803
    %v3883 = vunpack.c.l.b16 %v804
    %v3884 = vunpack.c.l.b16 %v805
    %v3885 = vunpack.c.l.b16 %v806
    %v3886 = vunpack.c.l.b16 %v807
    %v3887 = vunpack.c.l.b16 %v808
    %v3888 = vunpack.c.l.b16 %v809
    %v3889 = vunpack.c.l.b16 %v810
    %v3890 = vunpack.c.l.b16 %v811
    %v3891 = vunpack.c.l.b16 %v812
    %v3892 = vunpack.c.l.b16 %v813
    %v3893 = vunpack.c.l.b16 %v814
    %v3894 = vunpack.c.l.b16 %v815
    %v3895 = vunpack.c.l.b16 %v816
    %v3896 = vunpack.c.l.b16 %v817
    %v3897 = vunpack.c.l.b16 %v818
    %v3898 = vunpack.c.l.b16 %v819
    %v3899 = vunpack.c.l.b16 %v820
    %v3900 = vunpack.c.l.b16 %v821
    %v3901 = vunpack.c.l.b16 %v822
    %v3902 = vunpack.c.l.b16 %v823
    %v3903 = vunpack.c.l.b16 %v824
    %v3904 = vunpack.c.l.b16 %v825
    %v3905 = vunpack.c.l.b16 %v826
    %v3906 = vunpack.c.l.b16 %v827
    %v3907 = vunpack.c.l.b16 %v828
    %v3908 = vunpack.c.l.b16 %v829
    %v3909 = vunpack.c.l.b16 %v830
    %v3910 = vunpack.c.l.b16 %v831
    %v3911 = vunpack.c.l.b16 %v832
    %v3912 = vunpack.c.l.b16 %v833
    %v3913 = vunpack.c.l.b16 %v834
    %v3914 = vunpack.c.l.b16 %v835
    %v3915 = vunpack.c.l.b16 %v836
    %v3916 = vunpack.c.l.b16 %v837
    %v3917 = vunpack.c.l.b16 %v838
    %v3918 = vunpack.c.l.b16 %v839
    %v3919 = vunpack.c.l.b16 %v840
    %v3920 = vunpack.c.l.b16 %v841
    %v3921 = vunpack.c.l.b16 %v842
    %v3922 = vunpack.c.l.b16 %v843
    %v3923 = vunpack.c.l.b16 %v844
    %v3924 = vunpack.c.l.b16 %v845
    %v3925 = vunpack.c.l.b16 %v846
    %v3926 = vunpack.c.l.b16 %v847
    %v3927 = vunpack.c.l.b16 %v848
    %v3928 = vunpack.c.l.b16 %v849
    %v3929 = vunpack.c.l.b16 %v850
    %v3930 = vunpack.c.l.b16 %v851
    %v3931 = vunpack.c.l.b16 %v852
    %v3932 = vunpack.c.l.b16 %v853
    %v3933 = vunpack.c.l.b16 %v854
    %v3934 = vunpack.c.l.b16 %v855
    %v3935 = vunpack.c.l.b16 %v856
    %v3936 = vunpack.c.l.b16 %v857
    %v3937 = vunpack.c.l.b16 %v858
    %v3938 = vunpack.c.l.b16 %v859
    %v3939 = vunpack.c.l.b16 %v860
    %v3940 = vunpack.c.l.b16 %v861
    %v3941 = vunpack.c.l.b16 %v862
    %v3942 = vunpack.c.l.b16 %v863
    %v3943 = vunpack.c.l.b16 %v864
    %v3944 = vunpack.c.l.b16 %v865
    %v3945 = vunpack.c.l.b16 %v866
    %v3946 = vunpack.c.l.b16 %v867
    %v3947 = vunpack.c.l.b16 %v868
    %v3948 = vunpack.c.l.b16 %v869
    %v3949 = vunpack.c.l.b16 %v870
    %v3950 = vunpack.c.l.b16 %v871
    %v3951 = vunpack.c.l.b16 %v872
    %v3952 = vunpack.c.l.b16 %v873
    %v3953 = vunpack.c.l.b16 %v874
    %v3954 = vunpack.c.l.b16 %v875
    %v3955 = vunpack.c.l.b16 %v876
    %v3956 = vunpack.c.l.b16 %v877
    %v3957 = vunpack.c.l.b16 %v878
    %v3958 = vunpack.c.l.b16 %v879
    %v3959 = vunpack.c.l.b16 %v880
    %v3960 = vunpack.c.l.b16 %v881
    %v3961 = vunpack.c.l.b16 %v882
    %v3962 = vunpack.c.l.b16 %v883
    %v3963 = vunpack.c.l.b16 %v884
    %v3964 = vunpack.c.l.b16 %v885
    %v3965 = vunpack.c.l.b16 %v886
    %v3966 = vunpack.c.l.b16 %v887
    %v3967 = vunpack.c.l.b16 %v888
    %v3968 = vunpack.c.l.b16 %v889
    %v3969 = vunpack.c.l.b16 %v890
    %v3970 = vunpack.c.l.b16 %v891
    %v3971 = vunpack.c.l.b16 %v892
    %v3972 = vunpack.c.l.b16 %v893
    %v3973 = vunpack.c.l.b16 %v894
    %v3974 = vunpack.c.l.b16 %v895
    %v3975 = vunpack.c.l.b16 %v896
    %v3976 = vunpack.c.l.b16 %v897
    %v3977 = vunpack.c.l.b16 %v898
    %v3978 = vunpack.c.l.b16 %v899
    %v3979 = vunpack.c.l.b16 %v900
    %v3980 = vunpack.c.l.b16 %v901
    %v3981 = vunpack.c.l.b16 %v902
    %v3982 = vunpack.c.l.b16 %v903
    %v3983 = vunpack.c.l.b16 %v904
    %v3984 = vunpack.c.l.b16 %v905
    %v3985 = vunpack.c.l.b16 %v906
    %v3986 = vunpack.c.l.b16 %v907
    %v3987 = vunpack.c.l.b16 %v908
    %v3988 = vunpack.c.l.b16 %v909
    %v3989 = vunpack.c.l.b16 %v910
    %v3990 = vunpack.c.l.b16 %v911
    %v3991 = vunpack.c.l.b16 %v912
    %v3992 = vunpack.c.l.b16 %v913
    %v3993 = vunpack.c.l.b16 %v914
    %v3994 = vunpack.c.l.b16 %v915
    %v3995 = vunpack.c.l.b16 %v916
    %v3996 = vunpack.c.l.b16 %v917
    %v3997 = vunpack.c.l.b16 %v918
    %v3998 = vunpack.c.l.b16 %v919
    %v3999 = vunpack.c.l.b16 %v920
    %v4000 = vunpack.c.l.b16 %v921
    %v4001 = vunpack.c.l.b16 %v922
    %v4002 = vunpack.c.l.b16 %v923
    %v4003 = vunpack.c.l.b16 %v924
    %v4004 = vunpack.c.l.b16 %v925
    %v4005 = vunpack.c.l.b16 %v926
    %v4006 = vunpack.c.l.b16 %v927
    %v4007 = vunpack.c.l.b16 %v928
    %v4008 = vunpack.c.l.b16 %v929
    %v4009 = vunpack.c.l.b16 %v930
    %v4010 = vunpack.c.l.b16 %v931
    %v4011 = vunpack.c.l.b16 %v932
    %v4012 = vunpack.c.l.b16 %v933
    %v4013 = vunpack.c.l.b16 %v934
    %v4014 = vunpack.c.l.b16 %v935
    %v4015 = vunpack.c.l.b16 %v936
    %v4016 = vunpack.c.l.b16 %v937
    %v4017 = vunpack.c.l.b16 %v938
    %v4018 = vunpack.c.l.b16 %v939
    %v4019 = vunpack.c.l.b16 %v940
    %v4020 = vunpack.c.l.b16 %v941
    %v4021 = vunpack.c.l.b16 %v942
    %v4022 = vunpack.c.l.b16 %v943
    %v4023 = vunpack.c.l.b16 %v944
    %v4024 = vunpack.c.l.b16 %v945
    %v4025 = vunpack.c.l.b16 %v946
    %v4026 = vunpack.c.l.b16 %v947
    %v4027 = vunpack.c.l.b16 %v948
    %v4028 = vunpack.c.l.b16 %v949
    %v4029 = vunpack.c.l.b16 %v950
    %v4030 = vunpack.c.l.b16 %v951
    %v4031 = vunpack.c.l.b16 %v952
    %v4032 = vunpack.c.l.b16 %v953
    %v4033 = vunpack.c.l.b16 %v954
    %v4034 = vunpack.c.l.b16 %v955
    %v4035 = vunpack.c.l.b16 %v956
    %v4036 = vunpack.c.l.b16 %v957
    %v4037 = vunpack.c.l.b16 %v958
    %v4038 = vunpack.c.l.b16 %v959
    %v4039 = vunpack.c.l.b16 %v960
    %v4040 = vunpack.c.l.b16 %v961
    %v4041 = vunpack.c.l.b16 %v962
    %v4042 = vunpack.c.l.b16 %v963
    %v4043 = vunpack.c.l.b16 %v964
    %v4044 = vunpack.c.l.b16 %v965
    %v4045 = vunpack.c.l.b16 %v966
    %v4046 = vunpack.c.l.b16 %v967
    %v4047 = vunpack.c.l.b16 %v968
    %v4048 = vunpack.c.l.b16 %v969
    %v4049 = vunpack.c.l.b16 %v970
    %v4050 = vunpack.c.l.b16 %v971
    %v4051 = vunpack.c.l.b16 %v972
    %v4052 = vunpack.c.l.b16 %v973
    %v4053 = vunpack.c.l.b16 %v974
    %v4054 = vunpack.c.l.b16 %v975
    %v4055 = vunpack.c.l.b16 %v976
    %v4056 = vunpack.c.l.b16 %v977
    %v4057 = vunpack.c.l.b16 %v978
    %v4058 = vunpack.c.l.b16 %v979
    %v4059 = vunpack.c.l.b16 %v980
    %v4060 = vunpack.c.l.b16 %v981
    %v4061 = vunpack.c.l.b16 %v982
    %v4062 = vunpack.c.l.b16 %v983
    %v4063 = vunpack.c.l.b16 %v984
    %v4064 = vunpack.c.l.b16 %v985
    %v4065 = vunpack.c.l.b16 %v986
    %v4066 = vunpack.c.l.b16 %v987
    %v4067 = vunpack.c.l.b16 %v988
    %v4068 = vunpack.c.l.b16 %v989
    %v4069 = vunpack.c.l.b16 %v990
    %v4070 = vunpack.c.l.b16 %v991
    %v4071 = vunpack.c.l.b16 %v992
    %v4072 = vunpack.c.l.b16 %v993
    %v4073 = vunpack.c.l.b16 %v994
    %v4074 = vunpack.c.l.b16 %v995
    %v4075 = vunpack.c.l.b16 %v996
    %v4076 = vunpack.c.l.b16 %v997
    %v4077 = vunpack.c.l.b16 %v998
    %v4078 = vunpack.c.l.b16 %v999
    %v4079 = vunpack.c.l.b16 %v1000
    %v4080 = vunpack.c.l.b16 %v1001
    %v4081 = vunpack.c.l.b16 %v1002
    %v4082 = vunpack.c.l.b16 %v1003
    %v4083 = vunpack.c.l.b16 %v1004
    %v4084 = vunpack.c.l.b16 %v1005
    %v4085 = vunpack.c.l.b16 %v1006
    %v4086 = vunpack.c.l.b16 %v1007
    %v4087 = vunpack.c.l.b16 %v1008
    %v4088 = vunpack.c.l.b16 %v1009
    %v4089 = vunpack.c.l.b16 %v1010
    %v4090 = vunpack.c.l.b16 %v1011
    %v4091 = vunpack.c.l.b16 %v1012
    %v4092 = vunpack.c.l.b16 %v1013
    %v4093 = vunpack.c.l.b16 %v1014
    %v4094 = vunpack.c.l.b16 %v1015
    %v4095 = vunpack.c.l.b16 %v1016
    %v4096 = vunpack.c.l.b16 %v1017
    %v4097 = vunpack.c.l.b16 %v1018
    %v4098 = vunpack.c.l.b16 %v1019
    %v4099 = vunpack.c.l.b16 %v1020
    %v4100 = vunpack.c.l.b16 %v1021
    %v4101 = vunpack.c.l.b16 %v1022
    %v4102 = vunpack.c.l.b16 %v1023
    %v4103 = vunpack.c.l.b16 %v1024
    %v4104 = vunpack.c.l.b16 %v1025
    %v4105 = vunpack.c.l.b16 %v1026
    %v4106 = vunpack.c.l.b16 %v1027
    %v4107 = vunpack.c.l.b16 %v1028
    %v4108 = vunpack.c.l.b16 %v1029
    %v4109 = vunpack.c.l.b16 %v1030
    %v4110 = vunpack.c.l.b16 %v1031
    %v4111 = vunpack.c.l.b16 %v1032
    %v4112 = vunpack.c.l.b16 %v1033
    %v4113 = vunpack.c.l.b16 %v1034
    %v4114 = vunpack.c.l.b16 %v1035
    %v4115 = vunpack.c.l.b16 %v1036
    %v4116 = vunpack.c.l.b16 %v1037
    %v4117 = vunpack.c.l.b16 %v1038
    %v4118 = vunpack.c.l.b16 %v1039
    %v4119 = vunpack.c.l.b16 %v1040
    %v4120 = vunpack.c.l.b16 %v1041
    %v4121 = vunpack.c.l.b16 %v1042
    %v4122 = vunpack.c.l.b16 %v1043
    %v4123 = vunpack.c.l.b16 %v1044
    %v4124 = vunpack.c.l.b16 %v1045
    %v4125 = vunpack.c.l.b16 %v1046
    %v4126 = vunpack.c.l.b16 %v1047
    %v4127 = vunpack.c.l.b16 %v1048
    %v4128 = vunpack.c.l.b16 %v1049
    %v4129 = vunpack.c.l.b16 %v1050
    %v4130 = vunpack.c.l.b16 %v1051
    %v4131 = vunpack.c.l.b16 %v1052
    %v4132 = vunpack.c.l.b16 %v1053
    %v4133 = vunpack.c.l.b16 %v1054
    %v4134 = vunpack.c.l.b16 %v1055
    %v4135 = vunpack.c.l.b16 %v1056
    %v4136 = vunpack.c.l.b16 %v1057
    %v4137 = vunpack.c.l.b16 %v1058
    %v4138 = vunpack.c.l.b16 %v1059
    %v4139 = vunpack.c.l.b16 %v1060
    %v4140 = vunpack.c.l.b16 %v1061
    %v4141 = vunpack.c.l.b16 %v1062
    %v4142 = vunpack.c.l.b16 %v1063
    %v4143 = vunpack.c.l.b16 %v1064
    %v4144 = vunpack.c.l.b16 %v1065
    %v4145 = vunpack.c.l.b16 %v1066
    %v4146 = vunpack.c.l.b16 %v1067
    %v4147 = vunpack.c.l.b16 %v1068
    %v4148 = vunpack.c.l.b16 %v1069
    %v4149 = vunpack.c.l.b16 %v1070
    %v4150 = vunpack.c.l.b16 %v1071
    %v4151 = vunpack.c.l.b16 %v1072
    %v4152 = vunpack.c.l.b16 %v1073
    %v4153 = vunpack.c.l.b16 %v1074
    %v4154 = vunpack.c.l.b16 %v1075
    %v4155 = vunpack.c.l.b16 %v1076
    %v4156 = vunpack.c.l.b16 %v1077
    %v4157 = vunpack.c.l.b16 %v1078
    %v4158 = vunpack.c.l.b16 %v1079
    %v4159 = vunpack.c.l.b16 %v1080
    %v4160 = vunpack.c.l.b16 %v1081
    %v4161 = vunpack.c.l.b16 %v1082
    %v4162 = vunpack.c.l.b16 %v1083
    %v4163 = vunpack.c.l.b16 %v1084
    %v4164 = vunpack.c.l.b16 %v1085
    %v4165 = vunpack.c.l.b16 %v1086
    %v4166 = vunpack.c.l.b16 %v1087
    %v4167 = vunpack.c.l.b16 %v1088
    %v4168 = vunpack.c.l.b16 %v1089
    %v4169 = vunpack.c.l.b16 %v1090
    %v4170 = vunpack.c.l.b16 %v1091
    %v4171 = vunpack.c.l.b16 %v1092
    %v4172 = vunpack.c.l.b16 %v1093
    %v4173 = vunpack.c.l.b16 %v1094
    %v4174 = vunpack.c.l.b16 %v1095
    %v4175 = vunpack.c.l.b16 %v1096
    %v4176 = vunpack.c.l.b16 %v1097
    %v4177 = vunpack.c.l.b16 %v1098
    %v4178 = vunpack.c.l.b16 %v1099
    %v4179 = vunpack.c.l.b16 %v1100
    %v4180 = vunpack.c.l.b16 %v1101
    %v4181 = vunpack.c.l.b16 %v1102
    %v4182 = vunpack.c.l.b16 %v1103
    %v4183 = vunpack.c.l.b16 %v1104
    %v4184 = vunpack.c.l.b16 %v1105
    %v4185 = vunpack.c.l.b16 %v1106
    %v4186 = vunpack.c.l.b16 %v1107
    %v4187 = vunpack.c.l.b16 %v1108
    %v4188 = vunpack.c.l.b16 %v1109
    %v4189 = vunpack.c.l.b16 %v1110
    %v4190 = vunpack.c.l.b16 %v1111
    %v4191 = vunpack.c.l.b16 %v1112
    %v4192 = vunpack.c.l.b16 %v1113
    %v4193 = vunpack.c.l.b16 %v1114
    %v4194 = vunpack.c.l.b16 %v1115
    %v4195 = vunpack.c.l.b16 %v1116
    %v4196 = vunpack.c.l.b16 %v1117
    %v4197 = vunpack.c.l.b16 %v1118
    %v4198 = vunpack.c.l.b16 %v1119
    %v4199 = vunpack.c.l.b16 %v1120
    %v4200 = vunpack.c.l.b16 %v1121
    %v4201 = vunpack.c.l.b16 %v1122
    %v4202 = vunpack.c.l.b16 %v1123
    %v4203 = vunpack.c.l.b16 %v1124
    %v4204 = vunpack.c.l.b16 %v1125
    %v4205 = vunpack.c.l.b16 %v1126
    %v4206 = vunpack.c.l.b16 %v1127
    %v4207 = vunpack.c.l.b16 %v1128
    %v4208 = vunpack.c.l.b16 %v1129
    %v4209 = vunpack.c.l.b16 %v1130
    %v4210 = vunpack.c.l.b16 %v1131
    %v4211 = vunpack.c.l.b16 %v1132
    %v4212 = vunpack.c.l.b16 %v1133
    %v4213 = vunpack.c.l.b16 %v1134
    %v4214 = vunpack.c.l.b16 %v1135
    %v4215 = vunpack.c.l.b16 %v1136
    %v4216 = vunpack.c.l.b16 %v1137
    %v4217 = vunpack.c.l.b16 %v1138
    %v4218 = vunpack.c.l.b16 %v1139
    %v4219 = vunpack.c.l.b16 %v1140
    %v4220 = vunpack.c.l.b16 %v1141
    %v4221 = vunpack.c.l.b16 %v1142
    %v4222 = vunpack.c.l.b16 %v1143
    %v4223 = vunpack.c.l.b16 %v1144
    %v4224 = vunpack.c.l.b16 %v1145
    %v4225 = vunpack.c.l.b16 %v1146
    %v4226 = vunpack.c.l.b16 %v1147
    %v4227 = vunpack.c.l.b16 %v1148
    %v4228 = vunpack.c.l.b16 %v1149
    %v4229 = vunpack.c.l.b16 %v1150
    %v4230 = vunpack.c.l.b16 %v1151
    %v4231 = vunpack.c.l.b16 %v1152
    %v4232 = vunpack.c.l.b16 %v1153
    %v4233 = vunpack.c.l.b16 %v1154
    %v4234 = vunpack.c.l.b16 %v1155
    %v4235 = vunpack.c.l.b16 %v1156
    %v4236 = vunpack.c.l.b16 %v1157
    %v4237 = vunpack.c.l.b16 %v1158
    %v4238 = vunpack.c.l.b16 %v1159
    %v4239 = vunpack.c.l.b16 %v1160
    %v4240 = vunpack.c.l.b16 %v1161
    %v4241 = vunpack.c.l.b16 %v1162
    %v4242 = vunpack.c.l.b16 %v1163
    %v4243 = vunpack.c.l.b16 %v1164
    %v4244 = vunpack.c.l.b16 %v1165
    %v4245 = vunpack.c.l.b16 %v1166
    %v4246 = vunpack.c.l.b16 %v1167
    %v4247 = vunpack.c.l.b16 %v1168
    %v4248 = vunpack.c.l.b16 %v1169
    %v4249 = vunpack.c.l.b16 %v1170
    %v4250 = vunpack.c.l.b16 %v1171
    %v4251 = vunpack.c.l.b16 %v1172
    %v4252 = vunpack.c.l.b16 %v1173
    %v4253 = vunpack.c.l.b16 %v1174
    %v4254 = vunpack.c.l.b16 %v1175
    %v4255 = vunpack.c.l.b16 %v1176
    %v4256 = vunpack.c.l.b16 %v1177
    %v4257 = vunpack.c.l.b16 %v1178
    %v4258 = vunpack.c.l.b16 %v1179
    %v4259 = vunpack.c.l.b16 %v1180
    %v4260 = vunpack.c.l.b16 %v1181
    %v4261 = vunpack.c.l.b16 %v1182
    %v4262 = vunpack.c.l.b16 %v1183
    %v4263 = vunpack.c.l.b16 %v1184
    %v4264 = vunpack.c.l.b16 %v1185
    %v4265 = vunpack.c.l.b16 %v1186
    %v4266 = vunpack.c.l.b16 %v1187
    %v4267 = vunpack.c.l.b16 %v1188
    %v4268 = vunpack.c.l.b16 %v1189
    %v4269 = vunpack.c.l.b16 %v1190
    %v4270 = vunpack.c.l.b16 %v1191
    %v4271 = vunpack.c.l.b16 %v1192
    %v4272 = vunpack.c.l.b16 %v1193
    %v4273 = vunpack.c.l.b16 %v1194
    %v4274 = vunpack.c.l.b16 %v1195
    %v4275 = vunpack.c.l.b16 %v1196
    %v4276 = vunpack.c.l.b16 %v1197
    %v4277 = vunpack.c.l.b16 %v1198
    %v4278 = vunpack.c.l.b16 %v1199
    %v4279 = vunpack.c.l.b16 %v1200
    %v4280 = vunpack.c.l.b16 %v1201
    %v4281 = vunpack.c.l.b16 %v1202
    %v4282 = vunpack.c.l.b16 %v1203
    %v4283 = vunpack.c.l.b16 %v1204
    %v4284 = vunpack.c.l.b16 %v1205
    %v4285 = vunpack.c.l.b16 %v1206
    %v4286 = vunpack.c.l.b16 %v1207
    %v4287 = vunpack.c.l.b16 %v1208
    %v4288 = vunpack.c.l.b16 %v1209
    %v4289 = vunpack.c.l.b16 %v1210
    %v4290 = vunpack.c.l.b16 %v1211
    %v4291 = vunpack.c.l.b16 %v1212
    %v4292 = vunpack.c.l.b16 %v1213
    %v4293 = vunpack.c.l.b16 %v1214
    %v4294 = vunpack.c.l.b16 %v1215
    %v4295 = vunpack.c.l.b16 %v1216
    %v4296 = vunpack.c.l.b16 %v1217
    %v4297 = vunpack.c.l.b16 %v1218
    %v4298 = vunpack.c.l.b16 %v1219
    %v4299 = vunpack.c.l.b16 %v1220
    %v4300 = vunpack.c.l.b16 %v1221
    %v4301 = vunpack.c.l.b16 %v1222
    %v4302 = vunpack.c.l.b16 %v1223
    %v4303 = vunpack.c.l.b16 %v1224
    %v4304 = vunpack.c.l.b16 %v1225
    %v4305 = vunpack.c.l.b16 %v1226
    %v4306 = vunpack.c.l.b16 %v1227
    %v4307 = vunpack.c.l.b16 %v1228
    %v4308 = vunpack.c.l.b16 %v1229
    %v4309 = vunpack.c.l.b16 %v1230
    %v4310 = vunpack.c.l.b16 %v1231
    %v4311 = vunpack.c.l.b16 %v1232
    %v4312 = vunpack.c.l.b16 %v1233
    %v4313 = vunpack.c.l.b16 %v1234
    %v4314 = vunpack.c.l.b16 %v1235
    %v4315 = vunpack.c.l.b16 %v1236
    %v4316 = vunpack.c.l.b16 %v1237
    %v4317 = vunpack.c.l.b16 %v1238
    %v4318 = vunpack.c.l.b16 %v1239
    %v4319 = vunpack.c.l.b16 %v1240
    %v4320 = vunpack.c.l.b16 %v1241
    %v4321 = vunpack.c.l.b16 %v1242
    %v4322 = vunpack.c.l.b16 %v1243
    %v4323 = vunpack.c.l.b16 %v1244
    %v4324 = vunpack.c.l.b16 %v1245
    %v4325 = vunpack.c.l.b16 %v1246
    %v4326 = vunpack.c.l.b16 %v1247
    %v4327 = vunpack.c.l.b16 %v1248
    %v4328 = vunpack.c.l.b16 %v1249
    %v4329 = vunpack.c.l.b16 %v1250
    %v4330 = vunpack.c.l.b16 %v1251
    %v4331 = vunpack.c.l.b16 %v1252
    %v4332 = vunpack.c.l.b16 %v1253
    %v4333 = vunpack.c.l.b16 %v1254
    %v4334 = vunpack.c.l.b16 %v1255
    %v4335 = vunpack.c.l.b16 %v1256
    %v4336 = vunpack.c.l.b16 %v1257
    %v4337 = vunpack.c.l.b16 %v1258
    %v4338 = vunpack.c.l.b16 %v1259
    %v4339 = vunpack.c.l.b16 %v1260
    %v4340 = vunpack.c.l.b16 %v1261
    %v4341 = vunpack.c.l.b16 %v1262
    %v4342 = vunpack.c.l.b16 %v1263
    %v4343 = vunpack.c.l.b16 %v1264
    %v4344 = vunpack.c.l.b16 %v1265
    %v4345 = vunpack.c.l.b16 %v1266
    %v4346 = vunpack.c.l.b16 %v1267
    %v4347 = vunpack.c.l.b16 %v1268
    %v4348 = vunpack.c.l.b16 %v1269
    %v4349 = vunpack.c.l.b16 %v1270
    %v4350 = vunpack.c.l.b16 %v1271
    %v4351 = vunpack.c.l.b16 %v1272
    %v4352 = vunpack.c.l.b16 %v1273
    %v4353 = vunpack.c.l.b16 %v1274
    %v4354 = vunpack.c.l.b16 %v1275
    %v4355 = vunpack.c.l.b16 %v1276
    %v4356 = vunpack.c.l.b16 %v1277
    %v4357 = vunpack.c.l.b16 %v1278
    %v4358 = vunpack.c.l.b16 %v1279
    %v4359 = vunpack.c.l.b16 %v1280
    %v4360 = vunpack.c.l.b16 %v1281
    %v4361 = vunpack.c.l.b16 %v1282
    %v4362 = vunpack.c.l.b16 %v1283
    %v4363 = vunpack.c.l.b16 %v1284
    %v4364 = vunpack.c.l.b16 %v1285
    %v4365 = vunpack.c.l.b16 %v1286
    %v4366 = vunpack.c.l.b16 %v1287
    %v4367 = vunpack.c.l.b16 %v1288
    %v4368 = vunpack.c.l.b16 %v1289
    %v4369 = vunpack.c.l.b16 %v1290
    %v4370 = vunpack.c.l.b16 %v1291
    %v4371 = vunpack.c.l.b16 %v1292
    %v4372 = vunpack.c.l.b16 %v1293
    %v4373 = vunpack.c.l.b16 %v1294
    %v4374 = vunpack.c.l.b16 %v1295
    %v4375 = vunpack.c.l.b16 %v1296
    %v4376 = vunpack.c.l.b16 %v1297
    %v4377 = vunpack.c.l.b16 %v1298
    %v4378 = vunpack.c.l.b16 %v1299
    %v4379 = vunpack.c.l.b16 %v1300
    %v4380 = vunpack.c.l.b16 %v1301
    %v4381 = vunpack.c.l.b16 %v1302
    %v4382 = vunpack.c.l.b16 %v1303
    %v4383 = vunpack.c.l.b16 %v1304
    %v4384 = vunpack.c.l.b16 %v1305
    %v4385 = vunpack.c.l.b16 %v1306
    %v4386 = vunpack.c.l.b16 %v1307
    %v4387 = vunpack.c.l.b16 %v1308
    %v4388 = vunpack.c.l.b16 %v1309
    %v4389 = vunpack.c.l.b16 %v1310
    %v4390 = vunpack.c.l.b16 %v1311
    %v4391 = vunpack.c.l.b16 %v1312
    %v4392 = vunpack.c.l.b16 %v1313
    %v4393 = vunpack.c.l.b16 %v1314
    %v4394 = vunpack.c.l.b16 %v1315
    %v4395 = vunpack.c.l.b16 %v1316
    %v4396 = vunpack.c.l.b16 %v1317
    %v4397 = vunpack.c.l.b16 %v1318
    %v4398 = vunpack.c.l.b16 %v1319
    %v4399 = vunpack.c.l.b16 %v1320
    %v4400 = vunpack.c.l.b16 %v1321
    %v4401 = vunpack.c.l.b16 %v1322
    %v4402 = vunpack.c.l.b16 %v1323
    %v4403 = vunpack.c.l.b16 %v1324
    %v4404 = vunpack.c.l.b16 %v1325
    %v4405 = vunpack.c.l.b16 %v1326
    %v4406 = vunpack.c.l.b16 %v1327
    %v4407 = vunpack.c.l.b16 %v1328
    %v4408 = vunpack.c.l.b16 %v1329
    %v4409 = vunpack.c.l.b16 %v1330
    %v4410 = vunpack.c.l.b16 %v1331
    %v4411 = vunpack.c.l.b16 %v1332
    %v4412 = vunpack.c.l.b16 %v1333
    %v4413 = vunpack.c.l.b16 %v1334
    %v4414 = vunpack.c.l.b16 %v1335
    %v4415 = vunpack.c.l.b16 %v1336
    %v4416 = vunpack.c.l.b16 %v1337
    %v4417 = vunpack.c.l.b16 %v1338
    %v4418 = vunpack.c.l.b16 %v1339
    %v4419 = vunpack.c.l.b16 %v1340
    %v4420 = vunpack.c.l.b16 %v1341
    %v4421 = vunpack.c.l.b16 %v1342
    %v4422 = vunpack.c.l.b16 %v1343
    %v4423 = vunpack.c.l.b16 %v1344
    %v4424 = vunpack.c.l.b16 %v1345
    %v4425 = vunpack.c.l.b16 %v1346
    %v4426 = vunpack.c.l.b16 %v1347
    %v4427 = vunpack.c.l.b16 %v1348
    %v4428 = vunpack.c.l.b16 %v1349
    %v4429 = vunpack.c.l.b16 %v1350
    %v4430 = vunpack.c.l.b16 %v1351
    %v4431 = vunpack.c.l.b16 %v1352
    %v4432 = vunpack.c.l.b16 %v1353
    %v4433 = vunpack.c.l.b16 %v1354
    %v4434 = vunpack.c.l.b16 %v1355
    %v4435 = vunpack.c.l.b16 %v1356
    %v4436 = vunpack.c.l.b16 %v1357
    %v4437 = vunpack.c.l.b16 %v1358
    %v4438 = vunpack.c.l.b16 %v1359
    %v4439 = vunpack.c.l.b16 %v1360
    %v4440 = vunpack.c.l.b16 %v1361
    %v4441 = vunpack.c.l.b16 %v1362
    %v4442 = vunpack.c.l.b16 %v1363
    %v4443 = vunpack.c.l.b16 %v1364
    %v4444 = vunpack.c.l.b16 %v1365
    %v4445 = vunpack.c.l.b16 %v1366
    %v4446 = vunpack.c.l.b16 %v1367
    %v4447 = vunpack.c.l.b16 %v1368
    %v4448 = vunpack.c.l.b16 %v1369
    %v4449 = vunpack.c.l.b16 %v1370
    %v4450 = vunpack.c.l.b16 %v1371
    %v4451 = vunpack.c.l.b16 %v1372
    %v4452 = vunpack.c.l.b16 %v1373
    %v4453 = vunpack.c.l.b16 %v1374
    %v4454 = vunpack.c.l.b16 %v1375
    %v4455 = vunpack.c.l.b16 %v1376
    %v4456 = vunpack.c.l.b16 %v1377
    %v4457 = vunpack.c.l.b16 %v1378
    %v4458 = vunpack.c.l.b16 %v1379
    %v4459 = vunpack.c.l.b16 %v1380
    %v4460 = vunpack.c.l.b16 %v1381
    %v4461 = vunpack.c.l.b16 %v1382
    %v4462 = vunpack.c.l.b16 %v1383
    %v4463 = vunpack.c.l.b16 %v1384
    %v4464 = vunpack.c.l.b16 %v1385
    %v4465 = vunpack.c.l.b16 %v1386
    %v4466 = vunpack.c.l.b16 %v1387
    %v4467 = vunpack.c.l.b16 %v1388
    %v4468 = vunpack.c.l.b16 %v1389
    %v4469 = vunpack.c.l.b16 %v1390
    %v4470 = vunpack.c.l.b16 %v1391
    %v4471 = vunpack.c.l.b16 %v1392
    %v4472 = vunpack.c.l.b16 %v1393
    %v4473 = vunpack.c.l.b16 %v1394
    %v4474 = vunpack.c.l.b16 %v1395
    %v4475 = vunpack.c.l.b16 %v1396
    %v4476 = vunpack.c.l.b16 %v1397
    %v4477 = vunpack.c.l.b16 %v1398
    %v4478 = vunpack.c.l.b16 %v1399
    %v4479 = vunpack.c.l.b16 %v1400
    %v4480 = vunpack.c.l.b16 %v1401
    %v4481 = vunpack.c.l.b16 %v1402
    %v4482 = vunpack.c.l.b16 %v1403
    %v4483 = vunpack.c.l.b16 %v1404
    %v4484 = vunpack.c.l.b16 %v1405
    %v4485 = vunpack.c.l.b16 %v1406
    %v4486 = vunpack.c.l.b16 %v1407
    %v4487 = vunpack.c.l.b16 %v1408
    %v4488 = vunpack.c.l.b16 %v1409
    %v4489 = vunpack.c.l.b16 %v1410
    %v4490 = vunpack.c.l.b16 %v1411
    %v4491 = vunpack.c.l.b16 %v1412
    %v4492 = vunpack.c.l.b16 %v1413
    %v4493 = vunpack.c.l.b16 %v1414
    %v4494 = vunpack.c.l.b16 %v1415
    %v4495 = vunpack.c.l.b16 %v1416
    %v4496 = vunpack.c.l.b16 %v1417
    %v4497 = vunpack.c.l.b16 %v1418
    %v4498 = vunpack.c.l.b16 %v1419
    %v4499 = vunpack.c.l.b16 %v1420
    %v4500 = vunpack.c.l.b16 %v1421
    %v4501 = vunpack.c.l.b16 %v1422
    %v4502 = vunpack.c.l.b16 %v1423
    %v4503 = vunpack.c.l.b16 %v1424
    %v4504 = vunpack.c.l.b16 %v1425
    %v4505 = vunpack.c.l.b16 %v1426
    %v4506 = vunpack.c.l.b16 %v1427
    %v4507 = vunpack.c.l.b16 %v1428
    %v4508 = vunpack.c.l.b16 %v1429
    %v4509 = vunpack.c.l.b16 %v1430
    %v4510 = vunpack.c.l.b16 %v1431
    %v4511 = vunpack.c.l.b16 %v1432
    %v4512 = vunpack.c.l.b16 %v1433
    %v4513 = vunpack.c.l.b16 %v1434
    %v4514 = vunpack.c.l.b16 %v1435
    %v4515 = vunpack.c.l.b16 %v1436
    %v4516 = vunpack.c.l.b16 %v1437
    %v4517 = vunpack.c.l.b16 %v1438
    %v4518 = vunpack.c.l.b16 %v1439
    %v4519 = vunpack.c.l.b16 %v1440
    %v4520 = vunpack.c.l.b16 %v1441
    %v4521 = vunpack.c.l.b16 %v1442
    %v4522 = vunpack.c.l.b16 %v1443
    %v4523 = vunpack.c.l.b16 %v1444
    %v4524 = vunpack.c.l.b16 %v1445
    %v4525 = vunpack.c.l.b16 %v1446
    %v4526 = vunpack.c.l.b16 %v1447
    %v4527 = vunpack.c.l.b16 %v1448
    %v4528 = vunpack.c.l.b16 %v1449
    %v4529 = vunpack.c.l.b16 %v1450
    %v4530 = vunpack.c.l.b16 %v1451
    %v4531 = vunpack.c.l.b16 %v1452
    %v4532 = vunpack.c.l.b16 %v1453
    %v4533 = vunpack.c.l.b16 %v1454
    %v4534 = vunpack.c.l.b16 %v1455
    %v4535 = vunpack.c.l.b16 %v1456
    %v4536 = vunpack.c.l.b16 %v1457
    %v4537 = vunpack.c.l.b16 %v1458
    %v4538 = vunpack.c.l.b16 %v1459
    %v4539 = vunpack.c.l.b16 %v1460
    %v4540 = vunpack.c.l.b16 %v1461
    %v4541 = vunpack.c.l.b16 %v1462
    %v4542 = vunpack.c.l.b16 %v1463
    %v4543 = vunpack.c.l.b16 %v1464
    %v4544 = vunpack.c.l.b16 %v1465
    %v4545 = vunpack.c.l.b16 %v1466
    %v4546 = vunpack.c.l.b16 %v1467
    %v4547 = vunpack.c.l.b16 %v1468
    %v4548 = vunpack.c.l.b16 %v1469
    %v4549 = vunpack.c.l.b16 %v1470
    %v4550 = vunpack.c.l.b16 %v1471
    %v4551 = vunpack.c.l.b16 %v1472
    %v4552 = vunpack.c.l.b16 %v1473
    %v4553 = vunpack.c.l.b16 %v1474
    %v4554 = vunpack.c.l.b16 %v1475
    %v4555 = vunpack.c.l.b16 %v1476
    %v4556 = vunpack.c.l.b16 %v1477
    %v4557 = vunpack.c.l.b16 %v1478
    %v4558 = vunpack.c.l.b16 %v1479
    %v4559 = vunpack.c.l.b16 %v1480
    %v4560 = vunpack.c.l.b16 %v1481
    %v4561 = vunpack.c.l.b16 %v1482
    %v4562 = vunpack.c.l.b16 %v1483
    %v4563 = vunpack.c.l.b16 %v1484
    %v4564 = vunpack.c.l.b16 %v1485
    %v4565 = vunpack.c.l.b16 %v1486
    %v4566 = vunpack.c.l.b16 %v1487
    %v4567 = vunpack.c.l.b16 %v1488
    %v4568 = vunpack.c.l.b16 %v1489
    %v4569 = vunpack.c.l.b16 %v1490
    %v4570 = vunpack.c.l.b16 %v1491
    %v4571 = vunpack.c.l.b16 %v1492
    %v4572 = vunpack.c.l.b16 %v1493
    %v4573 = vunpack.c.l.b16 %v1494
    %v4574 = vunpack.c.l.b16 %v1495
    %v4575 = vunpack.c.l.b16 %v1496
    %v4576 = vunpack.c.l.b16 %v1497
    %v4577 = vunpack.c.l.b16 %v1498
    %v4578 = vunpack.c.l.b16 %v1499
    %v4579 = vunpack.c.l.b16 %v1500
    %v4580 = vunpack.c.l.b16 %v1501
    %v4581 = vunpack.c.l.b16 %v1502
    %v4582 = vunpack.c.l.b16 %v1503
    %v4583 = vunpack.c.l.b16 %v1504
    %v4584 = vunpack.c.l.b16 %v1505
    %v4585 = vunpack.c.l.b16 %v1506
    %v4586 = vunpack.c.l.b16 %v1507
    %v4587 = vunpack.c.l.b16 %v1508
    %v4588 = vunpack.c.l.b16 %v1509
    %v4589 = vunpack.c.l.b16 %v1510
    %v4590 = vunpack.c.l.b16 %v1511
    %v4591 = vunpack.c.l.b16 %v1512
    %v4592 = vunpack.c.l.b16 %v1513
    %v4593 = vunpack.c.l.b16 %v1514
    %v4594 = vunpack.c.l.b16 %v1515
    %v4595 = vunpack.c.l.b16 %v1516
    %v4596 = vunpack.c.l.b16 %v1517
    %v4597 = vunpack.c.l.b16 %v1518
    %v4598 = vunpack.c.l.b16 %v1519
    %v4599 = vunpack.c.l.b16 %v1520
    %v4600 = vunpack.c.l.b16 %v1521
    %v4601 = vunpack.c.l.b16 %v1522
    %v4602 = vunpack.c.l.b16 %v1523
    %v4603 = vunpack.c.l.b16 %v1524
    %v4604 = vunpack.c.l.b16 %v1525
    %v4605 = vunpack.c.l.b16 %v1526
    %v4606 = vunpack.c.l.b16 %v1527
    %v4607 = vunpack.c.l.b16 %v1528
    %v4608 = vunpack.c.l.b16 %v1529
    %v4609 = vunpack.c.l.b16 %v1530
    %v4610 = vunpack.c.l.b16 %v1531
    %v4611 = vunpack.c.l.b16 %v1532
    %v4612 = vunpack.c.l.b16 %v1533
    %v4613 = vunpack.c.l.b16 %v1534
    %v4614 = vunpack.c.l.b16 %v1535
    %v4615 = vunpack.c.l.b16 %v1536
    %v4616 = vunpack.c.l.b16 %v1537
    %v4617 = vunpack.c.l.b16 %v1538
    %v4618 = vunpack.c.l.b16 %v1539
    %v4619 = vunpack.c.l.b16 %v1540
    %v4620 = vunpack.c.l.b16 %v1541
    %v4621 = vunpack.c.l.b16 %v1542
    %v4622 = vunpack.c.l.b16 %v1543
    %v4623 = vunpack.c.l.b16 %v1544
    %v4624 = vunpack.c.l.b16 %v1545
    %v4625 = vunpack.c.l.b16 %v1546
    %v4626 = vunpack.c.l.b16 %v1547
    %v4627 = vunpack.c.l.b16 %v1548
    %v4628 = vunpack.c.l.b16 %v1549
    %v4629 = vunpack.c.l.b16 %v1550
    %v4630 = vunpack.c.l.b16 %v1551
    %v4631 = vunpack.c.l.b16 %v1552
    %v4632 = vunpack.c.l.b16 %v1553
    %v4633 = vunpack.c.l.b16 %v1554
    %v4634 = vunpack.c.l.b16 %v1555
    %v4635 = vunpack.c.l.b16 %v1556
    %v4636 = vunpack.c.l.b16 %v1557
    %v4637 = vunpack.c.l.b16 %v1558
    %v4638 = vunpack.c.l.b16 %v1559
    %v4639 = vunpack.c.l.b16 %v1560
    %v4640 = vunpack.c.l.b16 %v1561
    %v4641 = vunpack.c.l.b16 %v1562
    %v4642 = vunpack.c.l.b16 %v1563
    %v4643 = vunpack.c.l.b16 %v1564
    %v4644 = vunpack.c.l.b16 %v1565
    %v4645 = vunpack.c.l.b16 %v1566
    %v4646 = vunpack.c.l.b16 %v1567
    %v4647 = vunpack.c.l.b16 %v1568
    %v4648 = vunpack.c.l.b16 %v1569
    %v4649 = vunpack.c.l.b16 %v1570
    %v4650 = vunpack.c.l.b16 %v1571
    %v4651 = vunpack.c.l.b16 %v1572
    %v4652 = vunpack.c.l.b16 %v1573
    %v4653 = vunpack.c.l.b16 %v1574
    %v4654 = vunpack.c.l.b16 %v1575
    %v4655 = vunpack.c.l.b16 %v1576
    %v4656 = vunpack.c.l.b16 %v1577
    %v4657 = vunpack.c.l.b16 %v1578
    %v4658 = vunpack.c.l.b16 %v1579
    %v4659 = vunpack.c.l.b16 %v1580
    %v4660 = vunpack.c.l.b16 %v1581
    %v4661 = vunpack.c.l.b16 %v1582
    %v4662 = vunpack.c.l.b16 %v1583
    %v4663 = vunpack.c.l.b16 %v1584
    %v4664 = vunpack.c.l.b16 %v1585
    %v4665 = vunpack.c.l.b16 %v1586
    %v4666 = vunpack.c.l.b16 %v1587
    %v4667 = vunpack.c.l.b16 %v1588
    %v4668 = vunpack.c.l.b16 %v1589
    %v4669 = vunpack.c.l.b16 %v1590
    %v4670 = vunpack.c.l.b16 %v1591
    %v4671 = vunpack.c.l.b16 %v1592
    %v4672 = vunpack.c.l.b16 %v1593
    %v4673 = vunpack.c.l.b16 %v1594
    %v4674 = vunpack.c.l.b16 %v1595
    %v4675 = vunpack.c.l.b16 %v1596
    %v4676 = vunpack.c.l.b16 %v1597
    %v4677 = vunpack.c.l.b16 %v1598
    %v4678 = vunpack.c.l.b16 %v1599
    %v4679 = vunpack.c.l.b16 %v1600
    %v4680 = vunpack.c.l.b16 %v1601
    %v4681 = vunpack.c.l.b16 %v1602
    %v4682 = vunpack.c.l.b16 %v1603
    %v4683 = vunpack.c.l.b16 %v1604
    %v4684 = vunpack.c.l.b16 %v1605
    %v4685 = vunpack.c.l.b16 %v1606
    %v4686 = vunpack.c.l.b16 %v1607
    %v4687 = vunpack.c.l.b16 %v1608
    %v4688 = vunpack.c.l.b16 %v1609
    %v4689 = vunpack.c.l.b16 %v1610
    %v4690 = vunpack.c.l.b16 %v1611
    %v4691 = vunpack.c.l.b16 %v1612
    %v4692 = vunpack.c.l.b16 %v1613
    %v4693 = vunpack.c.l.b16 %v1614
    %v4694 = vunpack.c.l.b16 %v1615
    %v4695 = vunpack.c.l.b16 %v1616
    %v4696 = vunpack.c.l.b16 %v1617
    %v4697 = vunpack.c.l.b16 %v1618
    %v4698 = vunpack.c.l.b16 %v1619
    %v4699 = vunpack.c.l.b16 %v1620
    %v4700 = vunpack.c.l.b16 %v1621
    %v4701 = vunpack.c.l.b16 %v1622
    %v4702 = vunpack.c.l.b16 %v1623
    %v4703 = vunpack.c.l.b16 %v1624
    %v4704 = vunpack.c.l.b16 %v1625
    %v4705 = vunpack.c.l.b16 %v1626
    %v4706 = vunpack.c.l.b16 %v1627
    %v4707 = vunpack.c.l.b16 %v1628
    %v4708 = vunpack.c.l.b16 %v1629
    %v4709 = vunpack.c.l.b16 %v1630
    %v4710 = vunpack.c.l.b16 %v1631
    %v4711 = vunpack.c.l.b16 %v1632
    %v4712 = vunpack.c.l.b16 %v1633
    %v4713 = vunpack.c.l.b16 %v1634
    %v4714 = vunpack.c.l.b16 %v1635
    %v4715 = vunpack.c.l.b16 %v1636
    %v4716 = vunpack.c.l.b16 %v1637
    %v4717 = vunpack.c.l.b16 %v1638
    %v4718 = vunpack.c.l.b16 %v1639
    %v4719 = vunpack.c.l.b16 %v1640
    %v4720 = vunpack.c.l.b16 %v1641
    %v4721 = vunpack.c.l.b16 %v1642
    %v4722 = vunpack.c.l.b16 %v1643
    %v4723 = vunpack.c.l.b16 %v1644
    %v4724 = vunpack.c.l.b16 %v1645
    %v4725 = vunpack.c.l.b16 %v1646
    %v4726 = vunpack.c.l.b16 %v1647
    %v4727 = vunpack.c.l.b16 %v1648
    %v4728 = vunpack.c.l.b16 %v1649
    %v4729 = vunpack.c.l.b16 %v1650
    %v4730 = vunpack.c.l.b16 %v1651
    %v4731 = vunpack.c.l.b16 %v1652
    %v4732 = vunpack.c.l.b16 %v1653
    %v4733 = vunpack.c.l.b16 %v1654
    %v4734 = vunpack.c.l.b16 %v1655
    %v4735 = vunpack.c.l.b16 %v1656
    %v4736 = vunpack.c.l.b16 %v1657
    %v4737 = vunpack.c.l.b16 %v1658
    %v4738 = vunpack.c.l.b16 %v1659
    %v4739 = vunpack.c.l.b16 %v1660
    %v4740 = vunpack.c.l.b16 %v1661
    %v4741 = vunpack.c.l.b16 %v1662
    %v4742 = vunpack.c.l.b16 %v1663
    %v4743 = vunpack.c.l.b16 %v1664
    %v4744 = vunpack.c.l.b16 %v1665
    %v4745 = vunpack.c.l.b16 %v1666
    %v4746 = vunpack.c.l.b16 %v1667
    %v4747 = vunpack.c.l.b16 %v1668
    %v4748 = vunpack.c.l.b16 %v1669
    %v4749 = vunpack.c.l.b16 %v1670
    %v4750 = vunpack.c.l.b16 %v1671
    %v4751 = vunpack.c.l.b16 %v1672
    %v4752 = vunpack.c.l.b16 %v1673
    %v4753 = vunpack.c.l.b16 %v1674
    %v4754 = vunpack.c.l.b16 %v1675
    %v4755 = vunpack.c.l.b16 %v1676
    %v4756 = vunpack.c.l.b16 %v1677
    %v4757 = vunpack.c.l.b16 %v1678
    %v4758 = vunpack.c.l.b16 %v1679
    %v4759 = vunpack.c.l.b16 %v1680
    %v4760 = vunpack.c.l.b16 %v1681
    %v4761 = vunpack.c.l.b16 %v1682
    %v4762 = vunpack.c.l.b16 %v1683
    %v4763 = vunpack.c.l.b16 %v1684
    %v4764 = vunpack.c.l.b16 %v1685
    %v4765 = vunpack.c.l.b16 %v1686
    %v4766 = vunpack.c.l.b16 %v1687
    %v4767 = vunpack.c.l.b16 %v1688
    %v4768 = vunpack.c.l.b16 %v1689
    %v4769 = vunpack.c.l.b16 %v1690
    %v4770 = vunpack.c.l.b16 %v1691
    %v4771 = vunpack.c.l.b16 %v1692
    %v4772 = vunpack.c.l.b16 %v1693
    %v4773 = vunpack.c.l.b16 %v1694
    %v4774 = vunpack.c.l.b16 %v1695
    %v4775 = vunpack.c.l.b16 %v1696
    %v4776 = vunpack.c.l.b16 %v1697
    %v4777 = vunpack.c.l.b16 %v1698
    %v4778 = vunpack.c.l.b16 %v1699
    %v4779 = vunpack.c.l.b16 %v1700
    %v4780 = vunpack.c.l.b16 %v1701
    %v4781 = vunpack.c.l.b16 %v1702
    %v4782 = vunpack.c.l.b16 %v1703
    %v4783 = vunpack.c.l.b16 %v1704
    %v4784 = vunpack.c.l.b16 %v1705
    %v4785 = vunpack.c.l.b16 %v1706
    %v4786 = vunpack.c.l.b16 %v1707
    %v4787 = vunpack.c.l.b16 %v1708
    %v4788 = vunpack.c.l.b16 %v1709
    %v4789 = vunpack.c.l.b16 %v1710
    %v4790 = vunpack.c.l.b16 %v1711
    %v4791 = vunpack.c.l.b16 %v1712
    %v4792 = vunpack.c.l.b16 %v1713
    %v4793 = vunpack.c.l.b16 %v1714
    %v4794 = vunpack.c.l.b16 %v1715
    %v4795 = vunpack.c.l.b16 %v1716
    %v4796 = vunpack.c.l.b16 %v1717
    %v4797 = vunpack.c.l.b16 %v1718
    %v4798 = vunpack.c.l.b16 %v1719
    %v4799 = vunpack.c.l.b16 %v1720
    %v4800 = vunpack.c.l.b16 %v1721
    %v4801 = vunpack.c.l.b16 %v1722
    %v4802 = vunpack.c.l.b16 %v1723
    %v4803 = vunpack.c.l.b16 %v1724
    %v4804 = vunpack.c.l.b16 %v1725
    %v4805 = vunpack.c.l.b16 %v1726
    %v4806 = vunpack.c.l.b16 %v1727
    %v4807 = vunpack.c.l.b16 %v1728
    %v4808 = vunpack.c.l.b16 %v1729
    %v4809 = vunpack.c.l.b16 %v1730
    %v4810 = vunpack.c.l.b16 %v1731
    %v4811 = vunpack.c.l.b16 %v1732
    %v4812 = vunpack.c.l.b16 %v1733
    %v4813 = vunpack.c.l.b16 %v1734
    %v4814 = vunpack.c.l.b16 %v1735
    %v4815 = vunpack.c.l.b16 %v1736
    %v4816 = vunpack.c.l.b16 %v1737
    %v4817 = vunpack.c.l.b16 %v1738
    %v4818 = vunpack.c.l.b16 %v1739
    %v4819 = vunpack.c.l.b16 %v1740
    %v4820 = vunpack.c.l.b16 %v1741
    %v4821 = vunpack.c.l.b16 %v1742
    %v4822 = vunpack.c.l.b16 %v1743
    %v4823 = vunpack.c.l.b16 %v1744
    %v4824 = vunpack.c.l.b16 %v1745
    %v4825 = vunpack.c.l.b16 %v1746
    %v4826 = vunpack.c.l.b16 %v1747
    %v4827 = vunpack.c.l.b16 %v1748
    %v4828 = vunpack.c.l.b16 %v1749
    %v4829 = vunpack.c.l.b16 %v1750
    %v4830 = vunpack.c.l.b16 %v1751
    %v4831 = vunpack.c.l.b16 %v1752
    %v4832 = vunpack.c.l.b16 %v1753
    %v4833 = vunpack.c.l.b16 %v1754
    %v4834 = vunpack.c.l.b16 %v1755
    %v4835 = vunpack.c.l.b16 %v1756
    %v4836 = vunpack.c.l.b16 %v1757
    %v4837 = vunpack.c.l.b16 %v1758
    %v4838 = vunpack.c.l.b16 %v1759
    %v4839 = vunpack.c.l.b16 %v1760
    %v4840 = vunpack.c.l.b16 %v1761
    %v4841 = vunpack.c.l.b16 %v1762
    %v4842 = vunpack.c.l.b16 %v1763
    %v4843 = vunpack.c.l.b16 %v1764
    %v4844 = vunpack.c.l.b16 %v1765
    %v4845 = vunpack.c.l.b16 %v1766
    %v4846 = vunpack.c.l.b16 %v1767
    %v4847 = vunpack.c.l.b16 %v1768
    %v4848 = vunpack.c.l.b16 %v1769
    %v4849 = vunpack.c.l.b16 %v1770
    %v4850 = vunpack.c.l.b16 %v1771
    %v4851 = vunpack.c.l.b16 %v1772
    %v4852 = vunpack.c.l.b16 %v1773
    %v4853 = vunpack.c.l.b16 %v1774
    %v4854 = vunpack.c.l.b16 %v1775
    %v4855 = vunpack.c.l.b16 %v1776
    %v4856 = vunpack.c.l.b16 %v1777
    %v4857 = vunpack.c.l.b16 %v1778
    %v4858 = vunpack.c.l.b16 %v1779
    %v4859 = vunpack.c.l.b16 %v1780
    %v4860 = vunpack.c.l.b16 %v1781
    %v4861 = vunpack.c.l.b16 %v1782
    %v4862 = vunpack.c.l.b16 %v1783
    %v4863 = vunpack.c.l.b16 %v1784
    %v4864 = vunpack.c.l.b16 %v1785
    %v4865 = vunpack.c.l.b16 %v1786
    %v4866 = vunpack.c.l.b16 %v1787
    %v4867 = vunpack.c.l.b16 %v1788
    %v4868 = vunpack.c.l.b16 %v1789
    %v4869 = vunpack.c.l.b16 %v1790
    %v4870 = vunpack.c.l.b16 %v1791
    %v4871 = vunpack.c.l.b16 %v1792
    %v4872 = vunpack.c.l.b16 %v1793
    %v4873 = vunpack.c.l.b16 %v1794
    %v4874 = vunpack.c.l.b16 %v1795
    %v4875 = vunpack.c.l.b16 %v1796
    %v4876 = vunpack.c.l.b16 %v1797
    %v4877 = vunpack.c.l.b16 %v1798
    %v4878 = vunpack.c.l.b16 %v1799
    %v4879 = vunpack.c.l.b16 %v1800
    %v4880 = vunpack.c.l.b16 %v1801
    %v4881 = vunpack.c.l.b16 %v1802
    %v4882 = vunpack.c.l.b16 %v1803
    %v4883 = vunpack.c.l.b16 %v1804
    %v4884 = vunpack.c.l.b16 %v1805
    %v4885 = vunpack.c.l.b16 %v1806
    %v4886 = vunpack.c.l.b16 %v1807
    %v4887 = vunpack.c.l.b16 %v1808
    %v4888 = vunpack.c.l.b16 %v1809
    %v4889 = vunpack.c.l.b16 %v1810
    %v4890 = vunpack.c.l.b16 %v1811
    %v4891 = vunpack.c.l.b16 %v1812
    %v4892 = vunpack.c.l.b16 %v1813
    %v4893 = vunpack.c.l.b16 %v1814
    %v4894 = vunpack.c.l.b16 %v1815
    %v4895 = vunpack.c.l.b16 %v1816
    %v4896 = vunpack.c.l.b16 %v1817
    %v4897 = vunpack.c.l.b16 %v1818
    %v4898 = vunpack.c.l.b16 %v1819
    %v4899 = vunpack.c.l.b16 %v1820
    %v4900 = vunpack.c.l.b16 %v1821
    %v4901 = vunpack.c.l.b16 %v1822
    %v4902 = vunpack.c.l.b16 %v1823
    %v4903 = vunpack.c.l.b16 %v1824
    %v4904 = vunpack.c.l.b16 %v1825
    %v4905 = vunpack.c.l.b16 %v1826
    %v4906 = vunpack.c.l.b16 %v1827
    %v4907 = vunpack.c.l.b16 %v1828
    %v4908 = vunpack.c.l.b16 %v1829
    %v4909 = vunpack.c.l.b16 %v1830
    %v4910 = vunpack.c.l.b16 %v1831
    %v4911 = vunpack.c.l.b16 %v1832
    %v4912 = vunpack.c.l.b16 %v1833
    %v4913 = vunpack.c.l.b16 %v1834
    %v4914 = vunpack.c.l.b16 %v1835
    %v4915 = vunpack.c.l.b16 %v1836
    %v4916 = vunpack.c.l.b16 %v1837
    %v4917 = vunpack.c.l.b16 %v1838
    %v4918 = vunpack.c.l.b16 %v1839
    %v4919 = vunpack.c.l.b16 %v1840
    %v4920 = vunpack.c.l.b16 %v1841
    %v4921 = vunpack.c.l.b16 %v1842
    %v4922 = vunpack.c.l.b16 %v1843
    %v4923 = vunpack.c.l.b16 %v1844
    %v4924 = vunpack.c.l.b16 %v1845
    %v4925 = vunpack.c.l.b16 %v1846
    %v4926 = vunpack.c.l.b16 %v1847
    %v4927 = vunpack.c.l.b16 %v1848
    %v4928 = vunpack.c.l.b16 %v1849
    %v4929 = vunpack.c.l.b16 %v1850
    %v4930 = vunpack.c.l.b16 %v1851
    %v4931 = vunpack.c.l.b16 %v1852
    %v4932 = vunpack.c.l.b16 %v1853
    %v4933 = vunpack.c.l.b16 %v1854
    %v4934 = vunpack.c.l.b16 %v1855
    %v4935 = vunpack.c.l.b16 %v1856
    %v4936 = vunpack.c.l.b16 %v1857
    %v4937 = vunpack.c.l.b16 %v1858
    %v4938 = vunpack.c.l.b16 %v1859
    %v4939 = vunpack.c.l.b16 %v1860
    %v4940 = vunpack.c.l.b16 %v1861
    %v4941 = vunpack.c.l.b16 %v1862
    %v4942 = vunpack.c.l.b16 %v1863
    %v4943 = vunpack.c.l.b16 %v1864
    %v4944 = vunpack.c.l.b16 %v1865
    %v4945 = vunpack.c.l.b16 %v1866
    %v4946 = vunpack.c.l.b16 %v1867
    %v4947 = vunpack.c.l.b16 %v1868
    %v4948 = vunpack.c.l.b16 %v1869
    %v4949 = vunpack.c.l.b16 %v1870
    %v4950 = vunpack.c.l.b16 %v1871
    %v4951 = vunpack.c.l.b16 %v1872
    %v4952 = vunpack.c.l.b16 %v1873
    %v4953 = vunpack.c.l.b16 %v1874
    %v4954 = vunpack.c.l.b16 %v1875
    %v4955 = vunpack.c.l.b16 %v1876
    %v4956 = vunpack.c.l.b16 %v1877
    %v4957 = vunpack.c.l.b16 %v1878
    %v4958 = vunpack.c.l.b16 %v1879
    %v4959 = vunpack.c.l.b16 %v1880
    %v4960 = vunpack.c.l.b16 %v1881
    %v4961 = vunpack.c.l.b16 %v1882
    %v4962 = vunpack.c.l.b16 %v1883
    %v4963 = vunpack.c.l.b16 %v1884
    %v4964 = vunpack.c.l.b16 %v1885
    %v4965 = vunpack.c.l.b16 %v1886
    %v4966 = vunpack.c.l.b16 %v1887
    %v4967 = vunpack.c.l.b16 %v1888
    %v4968 = vunpack.c.l.b16 %v1889
    %v4969 = vunpack.c.l.b16 %v1890
    %v4970 = vunpack.c.l.b16 %v1891
    %v4971 = vunpack.c.l.b16 %v1892
    %v4972 = vunpack.c.l.b16 %v1893
    %v4973 = vunpack.c.l.b16 %v1894
    %v4974 = vunpack.c.l.b16 %v1895
    %v4975 = vunpack.c.l.b16 %v1896
    %v4976 = vunpack.c.l.b16 %v1897
    %v4977 = vunpack.c.l.b16 %v1898
    %v4978 = vunpack.c.l.b16 %v1899
    %v4979 = vunpack.c.l.b16 %v1900
    %v4980 = vunpack.c.l.b16 %v1901
    %v4981 = vunpack.c.l.b16 %v1902
    %v4982 = vunpack.c.l.b16 %v1903
    %v4983 = vunpack.c.l.b16 %v1904
    %v4984 = vunpack.c.l.b16 %v1905
    %v4985 = vunpack.c.l.b16 %v1906
    %v4986 = vunpack.c.l.b16 %v1907
    %v4987 = vunpack.c.l.b16 %v1908
    %v4988 = vunpack.c.l.b16 %v1909
    %v4989 = vunpack.c.l.b16 %v1910
    %v4990 = vunpack.c.l.b16 %v1911
    %v4991 = vunpack.c.l.b16 %v1912
    %v4992 = vunpack.c.l.b16 %v1913
    %v4993 = vunpack.c.l.b16 %v1914
    %v4994 = vunpack.c.l.b16 %v1915
    %v4995 = vunpack.c.l.b16 %v1916
    %v4996 = vunpack.c.l.b16 %v1917
    %v4997 = vunpack.c.l.b16 %v1918
    %v4998 = vunpack.c.l.b16 %v1919
    %v4999 = vunpack.c.l.b16 %v1920
    %v5000 = vunpack.c.l.b16 %v1921
    %v5001 = vunpack.c.l.b16 %v1922
    %v5002 = vunpack.c.l.b16 %v1923
    %v5003 = vunpack.c.l.b16 %v1924
    %v5004 = vunpack.c.l.b16 %v1925
    %v5005 = vunpack.c.l.b16 %v1926
    %v5006 = vunpack.c.l.b16 %v1927
    %v5007 = vunpack.c.l.b16 %v1928
    %v5008 = vunpack.c.l.b16 %v1929
    %v5009 = vunpack.c.l.b16 %v1930
    %v5010 = vunpack.c.l.b16 %v1931
    %v5011 = vunpack.c.l.b16 %v1932
    %v5012 = vunpack.c.l.b16 %v1933
    %v5013 = vunpack.c.l.b16 %v1934
    %v5014 = vunpack.c.l.b16 %v1935
    %v5015 = vunpack.c.l.b16 %v1936
    %v5016 = vunpack.c.l.b16 %v1937
    %v5017 = vunpack.c.l.b16 %v1938
    %v5018 = vunpack.c.l.b16 %v1939
    %v5019 = vunpack.c.l.b16 %v1940
    %v5020 = vunpack.c.l.b16 %v1941
    %v5021 = vunpack.c.l.b16 %v1942
    %v5022 = vunpack.c.l.b16 %v1943
    %v5023 = vunpack.c.l.b16 %v1944
    %v5024 = vunpack.c.l.b16 %v1945
    %v5025 = vunpack.c.l.b16 %v1946
    %v5026 = vunpack.c.l.b16 %v1947
    %v5027 = vunpack.c.l.b16 %v1948
    %v5028 = vunpack.c.l.b16 %v1949
    %v5029 = vunpack.c.l.b16 %v1950
    %v5030 = vunpack.c.l.b16 %v1951
    %v5031 = vunpack.c.l.b16 %v1952
    %v5032 = vunpack.c.l.b16 %v1953
    %v5033 = vunpack.c.l.b16 %v1954
    %v5034 = vunpack.c.l.b16 %v1955
    %v5035 = vunpack.c.l.b16 %v1956
    %v5036 = vunpack.c.l.b16 %v1957
    %v5037 = vunpack.c.l.b16 %v1958
    %v5038 = vunpack.c.l.b16 %v1959
    %v5039 = vunpack.c.l.b16 %v1960
    %v5040 = vunpack.c.l.b16 %v1961
    %v5041 = vunpack.c.l.b16 %v1962
    %v5042 = vunpack.c.l.b16 %v1963
    %v5043 = vunpack.c.l.b16 %v1964
    %v5044 = vunpack.c.l.b16 %v1965
    %v5045 = vunpack.c.l.b16 %v1966
    %v5046 = vunpack.c.l.b16 %v1967
    %v5047 = vunpack.c.l.b16 %v1968
    %v5048 = vunpack.c.l.b16 %v1969
    %v5049 = vunpack.c.l.b16 %v1970
    %v5050 = vunpack.c.l.b16 %v1971
    %v5051 = vunpack.c.l.b16 %v1972
    %v5052 = vunpack.c.l.b16 %v1973
    %v5053 = vunpack.c.l.b16 %v1974
    %v5054 = vunpack.c.l.b16 %v1975
    %v5055 = vunpack.c.l.b16 %v1976
    %v5056 = vunpack.c.l.b16 %v1977
    %v5057 = vunpack.c.l.b16 %v1978
    %v5058 = vunpack.c.l.b16 %v1979
    %v5059 = vunpack.c.l.b16 %v1980
    %v5060 = vunpack.c.l.b16 %v1981
    %v5061 = vunpack.c.l.b16 %v1982
    %v5062 = vunpack.c.l.b16 %v1983
    %v5063 = vunpack.c.l.b16 %v1984
    %v5064 = vunpack.c.l.b16 %v1985
    %v5065 = vunpack.c.l.b16 %v1986
    %v5066 = vunpack.c.l.b16 %v1987
    %v5067 = vunpack.c.l.b16 %v1988
    %v5068 = vunpack.c.l.b16 %v1989
    %v5069 = vunpack.c.l.b16 %v1990
    %v5070 = vunpack.c.l.b16 %v1991
    %v5071 = vunpack.c.l.b16 %v1992
    %v5072 = vunpack.c.l.b16 %v1993
    %v5073 = vunpack.c.l.b16 %v1994
    %v5074 = vunpack.c.l.b16 %v1995
    %v5075 = vunpack.c.l.b16 %v1996
    %v5076 = vunpack.c.l.b16 %v1997
    %v5077 = vunpack.c.l.b16 %v1998
    %v5078 = vunpack.c.l.b16 %v1999
    %v5079 = vunpack.c.l.b16 %v2000
    %v5080 = vunpack.c.l.b16 %v2001
    %v5081 = vunpack.c.l.b16 %v2002
    %v5082 = vunpack.c.l.b16 %v2003
    %v5083 = vunpack.c.l.b16 %v2004
    %v5084 = vunpack.c.l.b16 %v2005
    %v5085 = vunpack.c.l.b16 %v2006
    %v5086 = vunpack.c.l.b16 %v2007
    %v5087 = vunpack.c.l.b16 %v2008
    %v5088 = vunpack.c.l.b16 %v2009
    %v5089 = vunpack.c.l.b16 %v2010
    %v5090 = vunpack.c.l.b16 %v2011
    %v5091 = vunpack.c.l.b16 %v2012
    %v5092 = vunpack.c.l.b16 %v2013
    %v5093 = vunpack.c.l.b16 %v2014
    %v5094 = vunpack.c.l.b16 %v2015
    %v5095 = vunpack.c.l.b16 %v2016
    %v5096 = vunpack.c.l.b16 %v2017
    %v5097 = vunpack.c.l.b16 %v2018
    %v5098 = vunpack.c.l.b16 %v2019
    %v5099 = vunpack.c.l.b16 %v2020
    %v5100 = vunpack.c.l.b16 %v2021
    %v5101 = vunpack.c.l.b16 %v2022
    %v5102 = vunpack.c.l.b16 %v2023
    %v5103 = vunpack.c.l.b16 %v2024
    %v5104 = vunpack.c.l.b16 %v2025
    %v5105 = vunpack.c.l.b16 %v2026
    %v5106 = vunpack.c.l.b16 %v2027
    %v5107 = vunpack.c.l.b16 %v2028
    %v5108 = vunpack.c.l.b16 %v2029
    %v5109 = vunpack.c.l.b16 %v2030
    %v5110 = vunpack.c.l.b16 %v2031
    %v5111 = vunpack.c.l.b16 %v2032
    %v5112 = vunpack.c.l.b16 %v2033
    %v5113 = vunpack.c.l.b16 %v2034
    %v5114 = vunpack.c.l.b16 %v2035
    %v5115 = vunpack.c.l.b16 %v2036
    %v5116 = vunpack.c.l.b16 %v2037
    %v5117 = vunpack.c.l.b16 %v2038
    %v5118 = vunpack.c.l.b16 %v2039
    %v5119 = vunpack.c.l.b16 %v2040
    %v5120 = vunpack.c.l.b16 %v2041
    %v5121 = vunpack.c.l.b16 %v2042
    %v5122 = vunpack.c.l.b16 %v2043
    %v5123 = vunpack.c.l.b16 %v2044
    %v5124 = vunpack.c.l.b16 %v2045
    %v5125 = vunpack.c.l.b16 %v2046
    %v5126 = vunpack.c.l.b16 %v2047
    %v5127 = vunpack.c.l.b16 %v2048
    %v5128 = vunpack.c.l.b16 %v2049
    %v5129 = vunpack.c.l.b16 %v2050
    %v5130 = vunpack.c.l.b16 %v2051
    %v5131 = vunpack.c.l.b16 %v2052
    %v5132 = vunpack.c.l.b16 %v2053
    %v5133 = vunpack.c.l.b16 %v2054
    %v5134 = vunpack.c.l.b16 %v2055
    %v5135 = vunpack.c.l.b16 %v2056
    %v5136 = vunpack.c.l.b16 %v2057
    %v5137 = vunpack.c.l.b16 %v2058
    %v5138 = vunpack.c.l.b16 %v2059
    %v5139 = vunpack.c.l.b16 %v2060
    %v5140 = vunpack.c.l.b16 %v2061
    %v5141 = vunpack.c.l.b16 %v2062
    %v5142 = vunpack.c.l.b16 %v2063
    %v5143 = vunpack.c.l.b16 %v2064
    %v5144 = vunpack.c.l.b16 %v2065
    %v5145 = vunpack.c.l.b16 %v2066
    %v5146 = vunpack.c.l.b16 %v2067
    %v5147 = vunpack.c.l.b16 %v2068
    %v5148 = vunpack.c.l.b16 %v2069
    %v5149 = vunpack.c.l.b16 %v2070
    %v5150 = vunpack.c.l.b16 %v2071
    %v5151 = vunpack.c.l.b16 %v2072
    %v5152 = vunpack.c.l.b16 %v2073
    %v5153 = vunpack.c.l.b16 %v2074
    %v5154 = vunpack.c.l.b16 %v2075
    %v5155 = vunpack.c.l.b16 %v2076
    %v5156 = vunpack.c.l.b16 %v2077
    %v5157 = vunpack.c.l.b16 %v2078
    %v5158 = vunpack.c.l.b16 %v2079
    %v5159 = vunpack.c.l.b16 %v2080
    %v5160 = vunpack.c.l.b16 %v2081
    %v5161 = vunpack.c.l.b16 %v2082
    %v5162 = vunpack.c.l.b16 %v2083
    %v5163 = vunpack.c.l.b16 %v2084
    %v5164 = vunpack.c.l.b16 %v2085
    %v5165 = vunpack.c.l.b16 %v2086
    %v5166 = vunpack.c.l.b16 %v2087
    %v5167 = vunpack.c.l.b16 %v2088
    %v5168 = vunpack.c.l.b16 %v2089
    %v5169 = vunpack.c.l.b16 %v2090
    %v5170 = vunpack.c.l.b16 %v2091
    %v5171 = vunpack.c.l.b16 %v2092
    %v5172 = vunpack.c.l.b16 %v2093
    %v5173 = vunpack.c.l.b16 %v2094
    %v5174 = vunpack.c.l.b16 %v2095
    %v5175 = vunpack.c.l.b16 %v2096
    %v5176 = vunpack.c.l.b16 %v2097
    %v5177 = vunpack.c.l.b16 %v2098
    %v5178 = vunpack.c.l.b16 %v2099
    %v5179 = vunpack.c.l.b16 %v2100
    %v5180 = vunpack.c.l.b16 %v2101
    %v5181 = vunpack.c.l.b16 %v2102
    %v5182 = vunpack.c.l.b16 %v2103
    %v5183 = vunpack.c.l.b16 %v2104
    %v5184 = vunpack.c.l.b16 %v2105
    %v5185 = vunpack.c.l.b16 %v2106
    %v5186 = vunpack.c.l.b16 %v2107
    %v5187 = vunpack.c.l.b16 %v2108
    %v5188 = vunpack.c.l.b16 %v2109
    %v5189 = vunpack.c.l.b16 %v2110
    %v5190 = vunpack.c.l.b16 %v2111
    %v5191 = vunpack.c.l.b16 %v2112
    %v5192 = vunpack.c.l.b16 %v2113
    %v5193 = vunpack.c.l.b16 %v2114
    %v5194 = vunpack.c.l.b16 %v2115
    %v5195 = vunpack.c.l.b16 %v2116
    %v5196 = vunpack.c.l.b16 %v2117
    %v5197 = vunpack.c.l.b16 %v2118
    %v5198 = vunpack.c.l.b16 %v2119
    %v5199 = vunpack.c.l.b16 %v2120
    %v5200 = vunpack.c.l.b16 %v2121
    %v5201 = vunpack.c.l.b16 %v2122
    %v5202 = vunpack.c.l.b16 %v2123
    %v5203 = vunpack.c.l.b16 %v2124
    %v5204 = vunpack.c.l.b16 %v2125
    %v5205 = vunpack.c.l.b16 %v2126
    %v5206 = vunpack.c.l.b16 %v2127
    %v5207 = vunpack.c.l.b16 %v2128
    %v5208 = vunpack.c.l.b16 %v2129
    %v5209 = vunpack.c.l.b16 %v2130
    %v5210 = vunpack.c.l.b16 %v2131
    %v5211 = vunpack.c.l.b16 %v2132
    %v5212 = vunpack.c.l.b16 %v2133
    %v5213 = vunpack.c.l.b16 %v2134
    %v5214 = vunpack.c.l.b16 %v2135
    %v5215 = vunpack.c.l.b16 %v2136
    %v5216 = vunpack.c.l.b16 %v2137
    %v5217 = vunpack.c.l.b16 %v2138
    %v5218 = vunpack.c.l.b16 %v2139
    %v5219 = vunpack.c.l.b16 %v2140
    %v5220 = vunpack.c.l.b16 %v2141
    %v5221 = vunpack.c.l.b16 %v2142
    %v5222 = vunpack.c.l.b16 %v2143
    %v5223 = vunpack.c.l.b16 %v2144
    %v5224 = vunpack.c.l.b16 %v2145
    %v5225 = vunpack.c.l.b16 %v2146
    %v5226 = vunpack.c.l.b16 %v2147
    %v5227 = vunpack.c.l.b16 %v2148
    %v5228 = vunpack.c.l.b16 %v2149
    %v5229 = vunpack.c.l.b16 %v2150
    %v5230 = vunpack.c.l.b16 %v2151
    %v5231 = vunpack.c.l.b16 %v2152
    %v5232 = vunpack.c.l.b16 %v2153
    %v5233 = vunpack.c.l.b16 %v2154
    %v5234 = vunpack.c.l.b16 %v2155
    %v5235 = vunpack.c.l.b16 %v2156
    %v5236 = vunpack.c.l.b16 %v2157
    %v5237 = vunpack.c.l.b16 %v2158
    %v5238 = vunpack.c.l.b16 %v2159
    %v5239 = vunpack.c.l.b16 %v2160
    %v5240 = vunpack.c.l.b16 %v2161
    %v5241 = vunpack.c.l.b16 %v2162
    %v5242 = vunpack.c.l.b16 %v2163
    %v5243 = vunpack.c.l.b16 %v2164
    %v5244 = vunpack.c.l.b16 %v2165
    %v5245 = vunpack.c.l.b16 %v2166
    %v5246 = vunpack.c.l.b16 %v2167
    %v5247 = vunpack.c.l.b16 %v2168
    %v5248 = vunpack.c.l.b16 %v2169
    %v5249 = vunpack.c.l.b16 %v2170
    %v5250 = vunpack.c.l.b16 %v2171
    %v5251 = vunpack.c.l.b16 %v2172
    %v5252 = vunpack.c.l.b16 %v2173
    %v5253 = vunpack.c.l.b16 %v2174
    %v5254 = vunpack.c.l.b16 %v2175
    %v5255 = vunpack.c.l.b16 %v2176
    %v5256 = vunpack.c.l.b16 %v2177
    %v5257 = vunpack.c.l.b16 %v2178
    %v5258 = vunpack.c.l.b16 %v2179
    %v5259 = vunpack.c.l.b16 %v2180
    %v5260 = vunpack.c.l.b16 %v2181
    %v5261 = vunpack.c.l.b16 %v2182
    %v5262 = vunpack.c.l.b16 %v2183
    %v5263 = vunpack.c.l.b16 %v2184
    %v5264 = vunpack.c.l.b16 %v2185
    %v5265 = vunpack.c.l.b16 %v2186
    %v5266 = vunpack.c.l.b16 %v2187
    %v5267 = vunpack.c.l.b16 %v2188
    %v5268 = vunpack.c.l.b16 %v2189
    %v5269 = vunpack.c.l.b16 %v2190
    %v5270 = vunpack.c.l.b16 %v2191
    %v5271 = vunpack.c.l.b16 %v2192
    %v5272 = vunpack.c.l.b16 %v2193
    %v5273 = vunpack.c.l.b16 %v2194
    %v5274 = vunpack.c.l.b16 %v2195
    %v5275 = vunpack.c.l.b16 %v2196
    %v5276 = vunpack.c.l.b16 %v2197
    %v5277 = vunpack.c.l.b16 %v2198
    %v5278 = vunpack.c.l.b16 %v2199
    %v5279 = vunpack.c.l.b16 %v2200
    %v5280 = vunpack.c.l.b16 %v2201
    %v5281 = vunpack.c.l.b16 %v2202
    %v5282 = vunpack.c.l.b16 %v2203
    %v5283 = vunpack.c.l.b16 %v2204
    %v5284 = vunpack.c.l.b16 %v2205
    %v5285 = vpack.c.b16 %v3750, %v3749
    %v5286 = vpack.c.b16 %v3752, %v3751
    %v5287 = vpack.c.b16 %v3754, %v3753
    %v5288 = vpack.c.b16 %v3756, %v3755
    %v5289 = vpack.c.b16 %v3758, %v3757
    %v5290 = vpack.c.b16 %v3760, %v3759
    %v5291 = vpack.c.b16 %v3762, %v3761
    %v5292 = vpack.c.b16 %v3764, %v3763
    %v5293 = vpack.c.b16 %v3766, %v3765
    %v5294 = vpack.c.b16 %v3768, %v3767
    %v5295 = vpack.c.b16 %v3770, %v3769
    %v5296 = vpack.c.b16 %v3772, %v3771
    %v5297 = vpack.c.b16 %v3774, %v3773
    %v5298 = vpack.c.b16 %v3776, %v3775
    %v5299 = vpack.c.b16 %v3778, %v3777
    %v5300 = vpack.c.b16 %v3780, %v3779
    %v5301 = vpack.c.b16 %v3782, %v3781
    %v5302 = vpack.c.b16 %v3784, %v3783
    %v5303 = vpack.c.b16 %v3786, %v3785
    %v5304 = vpack.c.b16 %v3788, %v3787
    %v5305 = vpack.c.b16 %v3790, %v3789
    %v5306 = vpack.c.b16 %v3792, %v3791
    %v5307 = vpack.c.b16 %v3794, %v3793
    %v5308 = vpack.c.b16 %v3796, %v3795
    %v5309 = vpack.c.b16 %v3798, %v3797
    %v5310 = vpack.c.b16 %v3800, %v3799
    %v5311 = vpack.c.b16 %v3802, %v3801
    %v5312 = vpack.c.b16 %v3804, %v3803
    %v5313 = vpack.c.b16 %v3806, %v3805
    %v5314 = vpack.c.b16 %v3808, %v3807
    %v5315 = vpack.c.b16 %v3810, %v3809
    %v5316 = vpack.c.b16 %v3812, %v3811
    %v5317 = vpack.c.b16 %v3814, %v3813
    %v5318 = vpack.c.b16 %v3816, %v3815
    %v5319 = vpack.c.b16 %v3818, %v3817
    %v5320 = vpack.c.b16 %v3820, %v3819
    %v5321 = vpack.c.b16 %v3822, %v3821
    %v5322 = vpack.c.b16 %v3824, %v3823
    %v5323 = vpack.c.b16 %v3826, %v3825
    %v5324 = vpack.c.b16 %v3828, %v3827
    %v5325 = vpack.c.b16 %v3830, %v3829
    %v5326 = vpack.c.b16 %v3832, %v3831
    %v5327 = vpack.c.b16 %v3834, %v3833
    %v5328 = vpack.c.b16 %v3836, %v3835
    %v5329 = vpack.c.b16 %v3838, %v3837
    %v5330 = vpack.c.b16 %v3840, %v3839
    %v5331 = vpack.c.b16 %v3842, %v3841
    %v5332 = vpack.c.b16 %v3844, %v3843
    %v5333 = vpack.c.b16 %v3846, %v3845
    %v5334 = vpack.c.b16 %v3848, %v3847
    %v5335 = vpack.c.b16 %v3850, %v3849
    %v5336 = vpack.c.b16 %v3852, %v3851
    %v5337 = vpack.c.b16 %v3854, %v3853
    %v5338 = vpack.c.b16 %v3856, %v3855
    %v5339 = vpack.c.b16 %v3858, %v3857
    %v5340 = vpack.c.b16 %v3860, %v3859
    %v5341 = vpack.c.b16 %v3862, %v3861
    %v5342 = vpack.c.b16 %v3864, %v3863
    %v5343 = vpack.c.b16 %v3866, %v3865
    %v5344 = vpack.c.b16 %v3868, %v3867
    %v5345 = vpack.c.b16 %v3870, %v3869
    %v5346 = vpack.c.b16 %v3872, %v3871
    %v5347 = vpack.c.b16 %v3874, %v3873
    %v5348 = vpack.c.b16 %v3876, %v3875
    %v5349 = vpack.c.b16 %v3878, %v3877
    %v5350 = vpack.c.b16 %v3880, %v3879
    %v5351 = vpack.c.b16 %v3882, %v3881
    %v5352 = vpack.c.b16 %v3884, %v3883
    %v5353 = vpack.c.b16 %v3886, %v3885
    %v5354 = vpack.c.b16 %v3888, %v3887
    %v5355 = vpack.c.b16 %v3890, %v3889
    %v5356 = vpack.c.b16 %v3892, %v3891
    %v5357 = vpack.c.b16 %v3894, %v3893
    %v5358 = vpack.c.b16 %v3896, %v3895
    %v5359 = vpack.c.b16 %v3898, %v3897
    %v5360 = vpack.c.b16 %v3900, %v3899
    %v5361 = vpack.c.b16 %v3902, %v3901
    %v5362 = vpack.c.b16 %v3904, %v3903
    %v5363 = vpack.c.b16 %v3906, %v3905
    %v5364 = vpack.c.b16 %v3908, %v3907
    %v5365 = vpack.c.b16 %v3910, %v3909
    %v5366 = vpack.c.b16 %v3912, %v3911
    %v5367 = vpack.c.b16 %v3914, %v3913
    %v5368 = vpack.c.b16 %v3916, %v3915
    %v5369 = vpack.c.b16 %v3918, %v3917
    %v5370 = vpack.c.b16 %v3920, %v3919
    %v5371 = vpack.c.b16 %v3922, %v3921
    %v5372 = vpack.c.b16 %v3924, %v3923
    %v5373 = vpack.c.b16 %v3926, %v3925
    %v5374 = vpack.c.b16 %v3928, %v3927
    %v5375 = vpack.c.b16 %v3930, %v3929
    %v5376 = vpack.c.b16 %v3932, %v3931
    %v5377 = vpack.c.b16 %v3934, %v3933
    %v5378 = vpack.c.b16 %v3936, %v3935
    %v5379 = vpack.c.b16 %v3938, %v3937
    %v5380 = vpack.c.b16 %v3940, %v3939
    %v5381 = vpack.c.b16 %v3942, %v3941
    %v5382 = vpack.c.b16 %v3944, %v3943
    %v5383 = vpack.c.b16 %v3946, %v3945
    %v5384 = vpack.c.b16 %v3948, %v3947
    %v5385 = vpack.c.b16 %v3950, %v3949
    %v5386 = vpack.c.b16 %v3952, %v3951
    %v5387 = vpack.c.b16 %v3954, %v3953
    %v5388 = vpack.c.b16 %v3956, %v3955
    %v5389 = vpack.c.b16 %v3958, %v3957
    %v5390 = vpack.c.b16 %v3960, %v3959
    %v5391 = vpack.c.b16 %v3962, %v3961
    %v5392 = vpack.c.b16 %v3964, %v3963
    %v5393 = vpack.c.b16 %v3966, %v3965
    %v5394 = vpack.c.b16 %v3968, %v3967
    %v5395 = vpack.c.b16 %v3970, %v3969
    %v5396 = vpack.c.b16 %v3972, %v3971
    %v5397 = vpack.c.b16 %v3974, %v3973
    %v5398 = vpack.c.b16 %v3976, %v3975
    %v5399 = vpack.c.b16 %v3978, %v3977
    %v5400 = vpack.c.b16 %v3980, %v3979
    %v5401 = vpack.c.b16 %v3982, %v3981
    %v5402 = vpack.c.b16 %v3984, %v3983
    %v5403 = vpack.c.b16 %v3986, %v3985
    %v5404 = vpack.c.b16 %v3988, %v3987
    %v5405 = vpack.c.b16 %v3990, %v3989
    %v5406 = vpack.c.b16 %v3992, %v3991
    %v5407 = vpack.c.b16 %v3994, %v3993
    %v5408 = vpack.c.b16 %v3996, %v3995
    %v5409 = vpack.c.b16 %v3998, %v3997
    %v5410 = vpack.c.b16 %v4000, %v3999
    %v5411 = vpack.c.b16 %v4002, %v4001
    %v5412 = vpack.c.b16 %v4004, %v4003
    %v5413 = vpack.c.b16 %v4006, %v4005
    %v5414 = vpack.c.b16 %v4008, %v4007
    %v5415 = vpack.c.b16 %v4010, %v4009
    %v5416 = vpack.c.b16 %v4012, %v4011
    %v5417 = vpack.c.b16 %v4014, %v4013
    %v5418 = vpack.c.b16 %v4016, %v4015
    %v5419 = vpack.c.b16 %v4018, %v4017
    %v5420 = vpack.c.b16 %v4020, %v4019
    %v5421 = vpack.c.b16 %v4022, %v4021
    %v5422 = vpack.c.b16 %v4024, %v4023
    %v5423 = vpack.c.b16 %v4026, %v4025
    %v5424 = vpack.c.b16 %v4028, %v4027
    %v5425 = vpack.c.b16 %v4030, %v4029
    %v5426 = vpack.c.b16 %v4032, %v4031
    %v5427 = vpack.c.b16 %v4034, %v4033
    %v5428 = vpack.c.b16 %v4036, %v4035
    %v5429 = vpack.c.b16 %v4038, %v4037
    %v5430 = vpack.c.b16 %v4040, %v4039
    %v5431 = vpack.c.b16 %v4042, %v4041
    %v5432 = vpack.c.b16 %v4044, %v4043
    %v5433 = vpack.c.b16 %v4046, %v4045
    %v5434 = vpack.c.b16 %v4048, %v4047
    %v5435 = vpack.c.b16 %v4050, %v4049
    %v5436 = vpack.c.b16 %v4052, %v4051
    %v5437 = vpack.c.b16 %v4054, %v4053
    %v5438 = vpack.c.b16 %v4056, %v4055
    %v5439 = vpack.c.b16 %v4058, %v4057
    %v5440 = vpack.c.b16 %v4060, %v4059
    %v5441 = vpack.c.b16 %v4062, %v4061
    %v5442 = vpack.c.b16 %v4064, %v4063
    %v5443 = vpack.c.b16 %v4066, %v4065
    %v5444 = vpack.c.b16 %v4068, %v4067
    %v5445 = vpack.c.b16 %v4070, %v4069
    %v5446 = vpack.c.b16 %v4072, %v4071
    %v5447 = vpack.c.b16 %v4074, %v4073
    %v5448 = vpack.c.b16 %v4076, %v4075
    %v5449 = vpack.c.b16 %v4078, %v4077
    %v5450 = vpack.c.b16 %v4080, %v4079
    %v5451 = vpack.c.b16 %v4082, %v4081
    %v5452 = vpack.c.b16 %v4084, %v4083
    %v5453 = vpack.c.b16 %v4086, %v4085
    %v5454 = vpack.c.b16 %v4088, %v4087
    %v5455 = vpack.c.b16 %v4090, %v4089
    %v5456 = vpack.c.b16 %v4092, %v4091
    %v5457 = vpack.c.b16 %v4094, %v4093
    %v5458 = vpack.c.b16 %v4096, %v4095
    %v5459 = vpack.c.b16 %v4098, %v4097
    %v5460 = vpack.c.b16 %v4100, %v4099
    %v5461 = vpack.c.b16 %v4102, %v4101
    %v5462 = vpack.c.b16 %v4104, %v4103
    %v5463 = vpack.c.b16 %v4106, %v4105
    %v5464 = vpack.c.b16 %v4108, %v4107
    %v5465 = vpack.c.b16 %v4110, %v4109
    %v5466 = vpack.c.b16 %v4112, %v4111
    %v5467 = vpack.c.b16 %v4114, %v4113
    %v5468 = vpack.c.b16 %v4116, %v4115
    %v5469 = vpack.c.b16 %v4118, %v4117
    %v5470 = vpack.c.b16 %v4120, %v4119
    %v5471 = vpack.c.b16 %v4122, %v4121
    %v5472 = vpack.c.b16 %v4124, %v4123
    %v5473 = vpack.c.b16 %v4126, %v4125
    %v5474 = vpack.c.b16 %v4128, %v4127
    %v5475 = vpack.c.b16 %v4130, %v4129
    %v5476 = vpack.c.b16 %v4132, %v4131
    %v5477 = vpack.c.b16 %v4134, %v4133
    %v5478 = vpack.c.b16 %v4136, %v4135
    %v5479 = vpack.c.b16 %v4138, %v4137
    %v5480 = vpack.c.b16 %v4140, %v4139
    %v5481 = vpack.c.b16 %v4142, %v4141
    %v5482 = vpack.c.b16 %v4144, %v4143
    %v5483 = vpack.c.b16 %v4146, %v4145
    %v5484 = vpack.c.b16 %v4148, %v4147
    %v5485 = vpack.c.b16 %v4150, %v4149
    %v5486 = vpack.c.b16 %v4152, %v4151
    %v5487 = vpack.c.b16 %v4154, %v4153
    %v5488 = vpack.c.b16 %v4156, %v4155
    %v5489 = vpack.c.b16 %v4158, %v4157
    %v5490 = vpack.c.b16 %v4160, %v4159
    %v5491 = vpack.c.b16 %v4162, %v4161
    %v5492 = vpack.c.b16 %v4164, %v4163
    %v5493 = vpack.c.b16 %v4166, %v4165
    %v5494 = vpack.c.b16 %v4168, %v4167
    %v5495 = vpack.c.b16 %v4170, %v4169
    %v5496 = vpack.c.b16 %v4172, %v4171
    %v5497 = vpack.c.b16 %v4174, %v4173
    %v5498 = vpack.c.b16 %v4176, %v4175
    %v5499 = vpack.c.b16 %v4178, %v4177
    %v5500 = vpack.c.b16 %v4180, %v4179
    %v5501 = vpack.c.b16 %v4182, %v4181
    %v5502 = vpack.c.b16 %v4184, %v4183
    %v5503 = vpack.c.b16 %v4186, %v4185
    %v5504 = vpack.c.b16 %v4188, %v4187
    %v5505 = vpack.c.b16 %v4190, %v4189
    %v5506 = vpack.c.b16 %v4192, %v4191
    %v5507 = vpack.c.b16 %v4194, %v4193
    %v5508 = vpack.c.b16 %v4196, %v4195
    %v5509 = vpack.c.b16 %v4198, %v4197
    %v5510 = vpack.c.b16 %v4200, %v4199
    %v5511 = vpack.c.b16 %v4202, %v4201
    %v5512 = vpack.c.b16 %v4204, %v4203
    %v5513 = vpack.c.b16 %v4206, %v4205
    %v5514 = vpack.c.b16 %v4208, %v4207
    %v5515 = vpack.c.b16 %v4210, %v4209
    %v5516 = vpack.c.b16 %v4212, %v4211
    %v5517 = vpack.c.b16 %v4214, %v4213
    %v5518 = vpack.c.b16 %v4216, %v4215
    %v5519 = vpack.c.b16 %v4218, %v4217
    %v5520 = vpack.c.b16 %v4220, %v4219
    %v5521 = vpack.c.b16 %v4222, %v4221
    %v5522 = vpack.c.b16 %v4224, %v4223
    %v5523 = vpack.c.b16 %v4226, %v4225
    %v5524 = vpack.c.b16 %v4228, %v4227
    %v5525 = vpack.c.b16 %v4230, %v4229
    %v5526 = vpack.c.b16 %v4232, %v4231
    %v5527 = vpack.c.b16 %v4234, %v4233
    %v5528 = vpack.c.b16 %v4236, %v4235
    %v5529 = vpack.c.b16 %v4238, %v4237
    %v5530 = vpack.c.b16 %v4240, %v4239
    %v5531 = vpack.c.b16 %v4242, %v4241
    %v5532 = vpack.c.b16 %v4244, %v4243
    %v5533 = vpack.c.b16 %v4246, %v4245
    %v5534 = vpack.c.b16 %v4248, %v4247
    %v5535 = vpack.c.b16 %v4250, %v4249
    %v5536 = vpack.c.b16 %v4252, %v4251
    %v5537 = vpack.c.b16 %v4254, %v4253
    %v5538 = vpack.c.b16 %v4256, %v4255
    %v5539 = vpack.c.b16 %v4258, %v4257
    %v5540 = vpack.c.b16 %v4260, %v4259
    %v5541 = vpack.c.b16 %v4262, %v4261
    %v5542 = vpack.c.b16 %v4264, %v4263
    %v5543 = vpack.c.b16 %v4266, %v4265
    %v5544 = vpack.c.b16 %v4268, %v4267
    %v5545 = vpack.c.b16 %v4270, %v4269
    %v5546 = vpack.c.b16 %v4272, %v4271
    %v5547 = vpack.c.b16 %v4274, %v4273
    %v5548 = vpack.c.b16 %v4276, %v4275
    %v5549 = vpack.c.b16 %v4278, %v4277
    %v5550 = vpack.c.b16 %v4280, %v4279
    %v5551 = vpack.c.b16 %v4282, %v4281
    %v5552 = vpack.c.b16 %v4284, %v4283
    %v5553 = vpack.c.b16 %v4286, %v4285
    %v5554 = vpack.c.b16 %v4288, %v4287
    %v5555 = vpack.c.b16 %v4290, %v4289
    %v5556 = vpack.c.b16 %v4292, %v4291
    %v5557 = vpack.c.b16 %v4294, %v4293
    %v5558 = vpack.c.b16 %v4296, %v4295
    %v5559 = vpack.c.b16 %v4298, %v4297
    %v5560 = vpack.c.b16 %v4300, %v4299
    %v5561 = vpack.c.b16 %v4302, %v4301
    %v5562 = vpack.c.b16 %v4304, %v4303
    %v5563 = vpack.c.b16 %v4306, %v4305
    %v5564 = vpack.c.b16 %v4308, %v4307
    %v5565 = vpack.c.b16 %v4310, %v4309
    %v5566 = vpack.c.b16 %v4312, %v4311
    %v5567 = vpack.c.b16 %v4314, %v4313
    %v5568 = vpack.c.b16 %v4316, %v4315
    %v5569 = vpack.c.b16 %v4318, %v4317
    %v5570 = vpack.c.b16 %v4320, %v4319
    %v5571 = vpack.c.b16 %v4322, %v4321
    %v5572 = vpack.c.b16 %v4324, %v4323
    %v5573 = vpack.c.b16 %v4326, %v4325
    %v5574 = vpack.c.b16 %v4328, %v4327
    %v5575 = vpack.c.b16 %v4330, %v4329
    %v5576 = vpack.c.b16 %v4332, %v4331
    %v5577 = vpack.c.b16 %v4334, %v4333
    %v5578 = vpack.c.b16 %v4336, %v4335
    %v5579 = vpack.c.b16 %v4338, %v4337
    %v5580 = vpack.c.b16 %v4340, %v4339
    %v5581 = vpack.c.b16 %v4342, %v4341
    %v5582 = vpack.c.b16 %v4344, %v4343
    %v5583 = vpack.c.b16 %v4346, %v4345
    %v5584 = vpack.c.b16 %v4348, %v4347
    %v5585 = vpack.c.b16 %v4350, %v4349
    %v5586 = vpack.c.b16 %v4352, %v4351
    %v5587 = vpack.c.b16 %v4354, %v4353
    %v5588 = vpack.c.b16 %v4356, %v4355
    %v5589 = vpack.c.b16 %v4358, %v4357
    %v5590 = vpack.c.b16 %v4360, %v4359
    %v5591 = vpack.c.b16 %v4362, %v4361
    %v5592 = vpack.c.b16 %v4364, %v4363
    %v5593 = vpack.c.b16 %v4366, %v4365
    %v5594 = vpack.c.b16 %v4368, %v4367
    %v5595 = vpack.c.b16 %v4370, %v4369
    %v5596 = vpack.c.b16 %v4372, %v4371
    %v5597 = vpack.c.b16 %v4374, %v4373
    %v5598 = vpack.c.b16 %v4376, %v4375
    %v5599 = vpack.c.b16 %v4378, %v4377
    %v5600 = vpack.c.b16 %v4380, %v4379
    %v5601 = vpack.c.b16 %v4382, %v4381
    %v5602 = vpack.c.b16 %v4384, %v4383
    %v5603 = vpack.c.b16 %v4386, %v4385
    %v5604 = vpack.c.b16 %v4388, %v4387
    %v5605 = vpack.c.b16 %v4390, %v4389
    %v5606 = vpack.c.b16 %v4392, %v4391
    %v5607 = vpack.c.b16 %v4394, %v4393
    %v5608 = vpack.c.b16 %v4396, %v4395
    %v5609 = vpack.c.b16 %v4398, %v4397
    %v5610 = vpack.c.b16 %v4400, %v4399
    %v5611 = vpack.c.b16 %v4402, %v4401
    %v5612 = vpack.c.b16 %v4404, %v4403
    %v5613 = vpack.c.b16 %v4406, %v4405
    %v5614 = vpack.c.b16 %v4408, %v4407
    %v5615 = vpack.c.b16 %v4410, %v4409
    %v5616 = vpack.c.b16 %v4412, %v4411
    %v5617 = vpack.c.b16 %v4414, %v4413
    %v5618 = vpack.c.b16 %v4416, %v4415
    %v5619 = vpack.c.b16 %v4418, %v4417
    %v5620 = vpack.c.b16 %v4420, %v4419
    %v5621 = vpack.c.b16 %v4422, %v4421
    %v5622 = vpack.c.b16 %v4424, %v4423
    %v5623 = vpack.c.b16 %v4426, %v4425
    %v5624 = vpack.c.b16 %v4428, %v4427
    %v5625 = vpack.c.b16 %v4430, %v4429
    %v5626 = vpack.c.b16 %v4432, %v4431
    %v5627 = vpack.c.b16 %v4434, %v4433
    %v5628 = vpack.c.b16 %v4436, %v4435
    %v5629 = vpack.c.b16 %v4438, %v4437
    %v5630 = vpack.c.b16 %v4440, %v4439
    %v5631 = vpack.c.b16 %v4442, %v4441
    %v5632 = vpack.c.b16 %v4444, %v4443
    %v5633 = vpack.c.b16 %v4446, %v4445
    %v5634 = vpack.c.b16 %v4448, %v4447
    %v5635 = vpack.c.b16 %v4450, %v4449
    %v5636 = vpack.c.b16 %v4452, %v4451
    %v5637 = vpack.c.b16 %v4454, %v4453
    %v5638 = vpack.c.b16 %v4456, %v4455
    %v5639 = vpack.c.b16 %v4458, %v4457
    %v5640 = vpack.c.b16 %v4460, %v4459
    %v5641 = vpack.c.b16 %v4462, %v4461
    %v5642 = vpack.c.b16 %v4464, %v4463
    %v5643 = vpack.c.b16 %v4466, %v4465
    %v5644 = vpack.c.b16 %v4468, %v4467
    %v5645 = vpack.c.b16 %v4470, %v4469
    %v5646 = vpack.c.b16 %v4472, %v4471
    %v5647 = vpack.c.b16 %v4474, %v4473
    %v5648 = vpack.c.b16 %v4476, %v4475
    %v5649 = vpack.c.b16 %v4478, %v4477
    %v5650 = vpack.c.b16 %v4480, %v4479
    %v5651 = vpack.c.b16 %v4482, %v4481
    %v5652 = vpack.c.b16 %v4484, %v4483
    %v5653 = vpack.c.b16 %v4486, %v4485
    %v5654 = vpack.c.b16 %v4488, %v4487
    %v5655 = vpack.c.b16 %v4490, %v4489
    %v5656 = vpack.c.b16 %v4492, %v4491
    %v5657 = vpack.c.b16 %v4494, %v4493
    %v5658 = vpack.c.b16 %v4496, %v4495
    %v5659 = vpack.c.b16 %v4498, %v4497
    %v5660 = vpack.c.b16 %v4500, %v4499
    %v5661 = vpack.c.b16 %v4502, %v4501
    %v5662 = vpack.c.b16 %v4504, %v4503
    %v5663 = vpack.c.b16 %v4506, %v4505
    %v5664 = vpack.c.b16 %v4508, %v4507
    %v5665 = vpack.c.b16 %v4510, %v4509
    %v5666 = vpack.c.b16 %v4512, %v4511
    %v5667 = vpack.c.b16 %v4514, %v4513
    %v5668 = vpack.c.b16 %v4516, %v4515
    %v5669 = vpack.c.b16 %v4518, %v4517
    %v5670 = vpack.c.b16 %v4520, %v4519
    %v5671 = vpack.c.b16 %v4522, %v4521
    %v5672 = vpack.c.b16 %v4524, %v4523
    %v5673 = vpack.c.b16 %v4526, %v4525
    %v5674 = vpack.c.b16 %v4528, %v4527
    %v5675 = vpack.c.b16 %v4530, %v4529
    %v5676 = vpack.c.b16 %v4532, %v4531
    %v5677 = vpack.c.b16 %v4534, %v4533
    %v5678 = vpack.c.b16 %v4536, %v4535
    %v5679 = vpack.c.b16 %v4538, %v4537
    %v5680 = vpack.c.b16 %v4540, %v4539
    %v5681 = vpack.c.b16 %v4542, %v4541
    %v5682 = vpack.c.b16 %v4544, %v4543
    %v5683 = vpack.c.b16 %v4546, %v4545
    %v5684 = vpack.c.b16 %v4548, %v4547
    %v5685 = vpack.c.b16 %v4550, %v4549
    %v5686 = vpack.c.b16 %v4552, %v4551
    %v5687 = vpack.c.b16 %v4554, %v4553
    %v5688 = vpack.c.b16 %v4556, %v4555
    %v5689 = vpack.c.b16 %v4558, %v4557
    %v5690 = vpack.c.b16 %v4560, %v4559
    %v5691 = vpack.c.b16 %v4562, %v4561
    %v5692 = vpack.c.b16 %v4564, %v4563
    %v5693 = vpack.c.b16 %v4566, %v4565
    %v5694 = vpack.c.b16 %v4568, %v4567
    %v5695 = vpack.c.b16 %v4570, %v4569
    %v5696 = vpack.c.b16 %v4572, %v4571
    %v5697 = vpack.c.b16 %v4574, %v4573
    %v5698 = vpack.c.b16 %v4576, %v4575
    %v5699 = vpack.c.b16 %v4578, %v4577
    %v5700 = vpack.c.b16 %v4580, %v4579
    %v5701 = vpack.c.b16 %v4582, %v4581
    %v5702 = vpack.c.b16 %v4584, %v4583
    %v5703 = vpack.c.b16 %v4586, %v4585
    %v5704 = vpack.c.b16 %v4588, %v4587
    %v5705 = vpack.c.b16 %v4590, %v4589
    %v5706 = vpack.c.b16 %v4592, %v4591
    %v5707 = vpack.c.b16 %v4594, %v4593
    %v5708 = vpack.c.b16 %v4596, %v4595
    %v5709 = vpack.c.b16 %v4598, %v4597
    %v5710 = vpack.c.b16 %v4600, %v4599
    %v5711 = vpack.c.b16 %v4602, %v4601
    %v5712 = vpack.c.b16 %v4604, %v4603
    %v5713 = vpack.c.b16 %v4606, %v4605
    %v5714 = vpack.c.b16 %v4608, %v4607
    %v5715 = vpack.c.b16 %v4610, %v4609
    %v5716 = vpack.c.b16 %v4612, %v4611
    %v5717 = vpack.c.b16 %v4614, %v4613
    %v5718 = vpack.c.b16 %v4616, %v4615
    %v5719 = vpack.c.b16 %v4618, %v4617
    %v5720 = vpack.c.b16 %v4620, %v4619
    %v5721 = vpack.c.b16 %v4622, %v4621
    %v5722 = vpack.c.b16 %v4624, %v4623
    %v5723 = vpack.c.b16 %v4626, %v4625
    %v5724 = vpack.c.b16 %v4628, %v4627
    %v5725 = vpack.c.b16 %v4630, %v4629
    %v5726 = vpack.c.b16 %v4632, %v4631
    %v5727 = vpack.c.b16 %v4634, %v4633
    %v5728 = vpack.c.b16 %v4636, %v4635
    %v5729 = vpack.c.b16 %v4638, %v4637
    %v5730 = vpack.c.b16 %v4640, %v4639
    %v5731 = vpack.c.b16 %v4642, %v4641
    %v5732 = vpack.c.b16 %v4644, %v4643
    %v5733 = vpack.c.b16 %v4646, %v4645
    %v5734 = vpack.c.b16 %v4648, %v4647
    %v5735 = vpack.c.b16 %v4650, %v4649
    %v5736 = vpack.c.b16 %v4652, %v4651
    %v5737 = vpack.c.b16 %v4654, %v4653
    %v5738 = vpack.c.b16 %v4656, %v4655
    %v5739 = vpack.c.b16 %v4658, %v4657
    %v5740 = vpack.c.b16 %v4660, %v4659
    %v5741 = vpack.c.b16 %v4662, %v4661
    %v5742 = vpack.c.b16 %v4664, %v4663
    %v5743 = vpack.c.b16 %v4666, %v4665
    %v5744 = vpack.c.b16 %v4668, %v4667
    %v5745 = vpack.c.b16 %v4670, %v4669
    %v5746 = vpack.c.b16 %v4672, %v4671
    %v5747 = vpack.c.b16 %v4674, %v4673
    %v5748 = vpack.c.b16 %v4676, %v4675
    %v5749 = vpack.c.b16 %v4678, %v4677
    %v5750 = vpack.c.b16 %v4680, %v4679
    %v5751 = vpack.c.b16 %v4682, %v4681
    %v5752 = vpack.c.b16 %v4684, %v4683
    %v5753 = vpack.c.b16 %v4686, %v4685
    %v5754 = vpack.c.b16 %v4688, %v4687
    %v5755 = vpack.c.b16 %v4690, %v4689
    %v5756 = vpack.c.b16 %v4692, %v4691
    %v5757 = vpack.c.b16 %v4694, %v4693
    %v5758 = vpack.c.b16 %v4696, %v4695
    %v5759 = vpack.c.b16 %v4698, %v4697
    %v5760 = vpack.c.b16 %v4700, %v4699
    %v5761 = vpack.c.b16 %v4702, %v4701
    %v5762 = vpack.c.b16 %v4704, %v4703
    %v5763 = vpack.c.b16 %v4706, %v4705
    %v5764 = vpack.c.b16 %v4708, %v4707
    %v5765 = vpack.c.b16 %v4710, %v4709
    %v5766 = vpack.c.b16 %v4712, %v4711
    %v5767 = vpack.c.b16 %v4714, %v4713
    %v5768 = vpack.c.b16 %v4716, %v4715
    %v5769 = vpack.c.b16 %v4718, %v4717
    %v5770 = vpack.c.b16 %v4720, %v4719
    %v5771 = vpack.c.b16 %v4722, %v4721
    %v5772 = vpack.c.b16 %v4724, %v4723
    %v5773 = vpack.c.b16 %v4726, %v4725
    %v5774 = vpack.c.b16 %v4728, %v4727
    %v5775 = vpack.c.b16 %v4730, %v4729
    %v5776 = vpack.c.b16 %v4732, %v4731
    %v5777 = vpack.c.b16 %v4734, %v4733
    %v5778 = vpack.c.b16 %v4736, %v4735
    %v5779 = vpack.c.b16 %v4738, %v4737
    %v5780 = vpack.c.b16 %v4740, %v4739
    %v5781 = vpack.c.b16 %v4742, %v4741
    %v5782 = vpack.c.b16 %v4744, %v4743
    %v5783 = vpack.c.b16 %v4746, %v4745
    %v5784 = vpack.c.b16 %v4748, %v4747
    %v5785 = vpack.c.b16 %v4750, %v4749
    %v5786 = vpack.c.b16 %v4752, %v4751
    %v5787 = vpack.c.b16 %v4754, %v4753
    %v5788 = vpack.c.b16 %v4756, %v4755
    %v5789 = vpack.c.b16 %v4758, %v4757
    %v5790 = vpack.c.b16 %v4760, %v4759
    %v5791 = vpack.c.b16 %v4762, %v4761
    %v5792 = vpack.c.b16 %v4764, %v4763
    %v5793 = vpack.c.b16 %v4766, %v4765
    %v5794 = vpack.c.b16 %v4768, %v4767
    %v5795 = vpack.c.b16 %v4770, %v4769
    %v5796 = vpack.c.b16 %v4772, %v4771
    %v5797 = vpack.c.b16 %v4774, %v4773
    %v5798 = vpack.c.b16 %v4776, %v4775
    %v5799 = vpack.c.b16 %v4778, %v4777
    %v5800 = vpack.c.b16 %v4780, %v4779
    %v5801 = vpack.c.b16 %v4782, %v4781
    %v5802 = vpack.c.b16 %v4784, %v4783
    %v5803 = vpack.c.b16 %v4786, %v4785
    %v5804 = vpack.c.b16 %v4788, %v4787
    %v5805 = vpack.c.b16 %v4790, %v4789
    %v5806 = vpack.c.b16 %v4792, %v4791
    %v5807 = vpack.c.b16 %v4794, %v4793
    %v5808 = vpack.c.b16 %v4796, %v4795
    %v5809 = vpack.c.b16 %v4798, %v4797
    %v5810 = vpack.c.b16 %v4800, %v4799
    %v5811 = vpack.c.b16 %v4802, %v4801
    %v5812 = vpack.c.b16 %v4804, %v4803
    %v5813 = vpack.c.b16 %v4806, %v4805
    %v5814 = vpack.c.b16 %v4808, %v4807
    %v5815 = vpack.c.b16 %v4810, %v4809
    %v5816 = vpack.c.b16 %v4812, %v4811
    %v5817 = vpack.c.b16 %v4814, %v4813
    %v5818 = vpack.c.b16 %v4816, %v4815
    %v5819 = vpack.c.b16 %v4818, %v4817
    %v5820 = vpack.c.b16 %v4820, %v4819
    %v5821 = vpack.c.b16 %v4822, %v4821
    %v5822 = vpack.c.b16 %v4824, %v4823
    %v5823 = vpack.c.b16 %v4826, %v4825
    %v5824 = vpack.c.b16 %v4828, %v4827
    %v5825 = vpack.c.b16 %v4830, %v4829
    %v5826 = vpack.c.b16 %v4832, %v4831
    %v5827 = vpack.c.b16 %v4834, %v4833
    %v5828 = vpack.c.b16 %v4836, %v4835
    %v5829 = vpack.c.b16 %v4838, %v4837
    %v5830 = vpack.c.b16 %v4840, %v4839
    %v5831 = vpack.c.b16 %v4842, %v4841
    %v5832 = vpack.c.b16 %v4844, %v4843
    %v5833 = vpack.c.b16 %v4846, %v4845
    %v5834 = vpack.c.b16 %v4848, %v4847
    %v5835 = vpack.c.b16 %v4850, %v4849
    %v5836 = vpack.c.b16 %v4852, %v4851
    %v5837 = vpack.c.b16 %v4854, %v4853
    %v5838 = vpack.c.b16 %v4856, %v4855
    %v5839 = vpack.c.b16 %v4858, %v4857
    %v5840 = vpack.c.b16 %v4860, %v4859
    %v5841 = vpack.c.b16 %v4862, %v4861
    %v5842 = vpack.c.b16 %v4864, %v4863
    %v5843 = vpack.c.b16 %v4866, %v4865
    %v5844 = vpack.c.b16 %v4868, %v4867
    %v5845 = vpack.c.b16 %v4870, %v4869
    %v5846 = vpack.c.b16 %v4872, %v4871
    %v5847 = vpack.c.b16 %v4874, %v4873
    %v5848 = vpack.c.b16 %v4876, %v4875
    %v5849 = vpack.c.b16 %v4878, %v4877
    %v5850 = vpack.c.b16 %v4880, %v4879
    %v5851 = vpack.c.b16 %v4882, %v4881
    %v5852 = vpack.c.b16 %v4884, %v4883
    %v5853 = vpack.c.b16 %v4886, %v4885
    %v5854 = vpack.c.b16 %v4888, %v4887
    %v5855 = vpack.c.b16 %v4890, %v4889
    %v5856 = vpack.c.b16 %v4892, %v4891
    %v5857 = vpack.c.b16 %v4894, %v4893
    %v5858 = vpack.c.b16 %v4896, %v4895
    %v5859 = vpack.c.b16 %v4898, %v4897
    %v5860 = vpack.c.b16 %v4900, %v4899
    %v5861 = vpack.c.b16 %v4902, %v4901
    %v5862 = vpack.c.b16 %v4904, %v4903
    %v5863 = vpack.c.b16 %v4906, %v4905
    %v5864 = vpack.c.b16 %v4908, %v4907
    %v5865 = vpack.c.b16 %v4910, %v4909
    %v5866 = vpack.c.b16 %v4912, %v4911
    %v5867 = vpack.c.b16 %v4914, %v4913
    %v5868 = vpack.c.b16 %v4916, %v4915
    %v5869 = vpack.c.b16 %v4918, %v4917
    %v5870 = vpack.c.b16 %v4920, %v4919
    %v5871 = vpack.c.b16 %v4922, %v4921
    %v5872 = vpack.c.b16 %v4924, %v4923
    %v5873 = vpack.c.b16 %v4926, %v4925
    %v5874 = vpack.c.b16 %v4928, %v4927
    %v5875 = vpack.c.b16 %v4930, %v4929
    %v5876 = vpack.c.b16 %v4932, %v4931
    %v5877 = vpack.c.b16 %v4934, %v4933
    %v5878 = vpack.c.b16 %v4936, %v4935
    %v5879 = vpack.c.b16 %v4938, %v4937
    %v5880 = vpack.c.b16 %v4940, %v4939
    %v5881 = vpack.c.b16 %v4942, %v4941
    %v5882 = vpack.c.b16 %v4944, %v4943
    %v5883 = vpack.c.b16 %v4946, %v4945
    %v5884 = vpack.c.b16 %v4948, %v4947
    %v5885 = vpack.c.b16 %v4950, %v4949
    %v5886 = vpack.c.b16 %v4952, %v4951
    %v5887 = vpack.c.b16 %v4954, %v4953
    %v5888 = vpack.c.b16 %v4956, %v4955
    %v5889 = vpack.c.b16 %v4958, %v4957
    %v5890 = vpack.c.b16 %v4960, %v4959
    %v5891 = vpack.c.b16 %v4962, %v4961
    %v5892 = vpack.c.b16 %v4964, %v4963
    %v5893 = vpack.c.b16 %v4966, %v4965
    %v5894 = vpack.c.b16 %v4968, %v4967
    %v5895 = vpack.c.b16 %v4970, %v4969
    %v5896 = vpack.c.b16 %v4972, %v4971
    %v5897 = vpack.c.b16 %v4974, %v4973
    %v5898 = vpack.c.b16 %v4976, %v4975
    %v5899 = vpack.c.b16 %v4978, %v4977
    %v5900 = vpack.c.b16 %v4980, %v4979
    %v5901 = vpack.c.b16 %v4982, %v4981
    %v5902 = vpack.c.b16 %v4984, %v4983
    %v5903 = vpack.c.b16 %v4986, %v4985
    %v5904 = vpack.c.b16 %v4988, %v4987
    %v5905 = vpack.c.b16 %v4990, %v4989
    %v5906 = vpack.c.b16 %v4992, %v4991
    %v5907 = vpack.c.b16 %v4994, %v4993
    %v5908 = vpack.c.b16 %v4996, %v4995
    %v5909 = vpack.c.b16 %v4998, %v4997
    %v5910 = vpack.c.b16 %v5000, %v4999
    %v5911 = vpack.c.b16 %v5002, %v5001
    %v5912 = vpack.c.b16 %v5004, %v5003
    %v5913 = vpack.c.b16 %v5006, %v5005
    %v5914 = vpack.c.b16 %v5008, %v5007
    %v5915 = vpack.c.b16 %v5010, %v5009
    %v5916 = vpack.c.b16 %v5012, %v5011
    %v5917 = vpack.c.b16 %v5014, %v5013
    %v5918 = vpack.c.b16 %v5016, %v5015
    %v5919 = vpack.c.b16 %v5018, %v5017
    %v5920 = vpack.c.b16 %v5020, %v5019
    %v5921 = vpack.c.b16 %v5022, %v5021
    %v5922 = vpack.c.b16 %v5024, %v5023
    %v5923 = vpack.c.b16 %v5026, %v5025
    %v5924 = vpack.c.b16 %v5028, %v5027
    %v5925 = vpack.c.b16 %v5030, %v5029
    %v5926 = vpack.c.b16 %v5032, %v5031
    %v5927 = vpack.c.b16 %v5034, %v5033
    %v5928 = vpack.c.b16 %v5036, %v5035
    %v5929 = vpack.c.b16 %v5038, %v5037
    %v5930 = vpack.c.b16 %v5040, %v5039
    %v5931 = vpack.c.b16 %v5042, %v5041
    %v5932 = vpack.c.b16 %v5044, %v5043
    %v5933 = vpack.c.b16 %v5046, %v5045
    %v5934 = vpack.c.b16 %v5048, %v5047
    %v5935 = vpack.c.b16 %v5050, %v5049
    %v5936 = vpack.c.b16 %v5052, %v5051
    %v5937 = vpack.c.b16 %v5054, %v5053
    %v5938 = vpack.c.b16 %v5056, %v5055
    %v5939 = vpack.c.b16 %v5058, %v5057
    %v5940 = vpack.c.b16 %v5060, %v5059
    %v5941 = vpack.c.b16 %v5062, %v5061
    %v5942 = vpack.c.b16 %v5064, %v5063
    %v5943 = vpack.c.b16 %v5066, %v5065
    %v5944 = vpack.c.b16 %v5068, %v5067
    %v5945 = vpack.c.b16 %v5070, %v5069
    %v5946 = vpack.c.b16 %v5072, %v5071
    %v5947 = vpack.c.b16 %v5074, %v5073
    %v5948 = vpack.c.b16 %v5076, %v5075
    %v5949 = vpack.c.b16 %v5078, %v5077
    %v5950 = vpack.c.b16 %v5080, %v5079
    %v5951 = vpack.c.b16 %v5082, %v5081
    %v5952 = vpack.c.b16 %v5084, %v5083
    %v5953 = vpack.c.b16 %v5086, %v5085
    %v5954 = vpack.c.b16 %v5088, %v5087
    %v5955 = vpack.c.b16 %v5090, %v5089
    %v5956 = vpack.c.b16 %v5092, %v5091
    %v5957 = vpack.c.b16 %v5094, %v5093
    %v5958 = vpack.c.b16 %v5096, %v5095
    %v5959 = vpack.c.b16 %v5098, %v5097
    %v5960 = vpack.c.b16 %v5100, %v5099
    %v5961 = vpack.c.b16 %v5102, %v5101
    %v5962 = vpack.c.b16 %v5104, %v5103
    %v5963 = vpack.c.b16 %v5106, %v5105
    %v5964 = vpack.c.b16 %v5108, %v5107
    %v5965 = vpack.c.b16 %v5110, %v5109
    %v5966 = vpack.c.b16 %v5112, %v5111
    %v5967 = vpack.c.b16 %v5114, %v5113
    %v5968 = vpack.c.b16 %v5116, %v5115
    %v5969 = vpack.c.b16 %v5118, %v5117
    %v5970 = vpack.c.b16 %v5120, %v5119
    %v5971 = vpack.c.b16 %v5122, %v5121
    %v5972 = vpack.c.b16 %v5124, %v5123
    %v5973 = vpack.c.b16 %v5126, %v5125
    %v5974 = vpack.c.b16 %v5128, %v5127
    %v5975 = vpack.c.b16 %v5130, %v5129
    %v5976 = vpack.c.b16 %v5132, %v5131
    %v5977 = vpack.c.b16 %v5134, %v5133
    %v5978 = vpack.c.b16 %v5136, %v5135
    %v5979 = vpack.c.b16 %v5138, %v5137
    %v5980 = vpack.c.b16 %v5140, %v5139
    %v5981 = vpack.c.b16 %v5142, %v5141
    %v5982 = vpack.c.b16 %v5144, %v5143
    %v5983 = vpack.c.b16 %v5146, %v5145
    %v5984 = vpack.c.b16 %v5148, %v5147
    %v5985 = vpack.c.b16 %v5150, %v5149
    %v5986 = vpack.c.b16 %v5152, %v5151
    %v5987 = vpack.c.b16 %v5154, %v5153
    %v5988 = vpack.c.b16 %v5156, %v5155
    %v5989 = vpack.c.b16 %v5158, %v5157
    %v5990 = vpack.c.b16 %v5160, %v5159
    %v5991 = vpack.c.b16 %v5162, %v5161
    %v5992 = vpack.c.b16 %v5164, %v5163
    %v5993 = vpack.c.b16 %v5166, %v5165
    %v5994 = vpack.c.b16 %v5168, %v5167
    %v5995 = vpack.c.b16 %v5170, %v5169
    %v5996 = vpack.c.b16 %v5172, %v5171
    %v5997 = vpack.c.b16 %v5174, %v5173
    %v5998 = vpack.c.b16 %v5176, %v5175
    %v5999 = vpack.c.b16 %v5178, %v5177
    %v6000 = vpack.c.b16 %v5180, %v5179
    %v6001 = vpack.c.b16 %v5182, %v5181
    %v6002 = vpack.c.b16 %v5184, %v5183
    %v6003 = vpack.c.b16 %v5186, %v5185
    %v6004 = vpack.c.b16 %v5188, %v5187
    %v6005 = vpack.c.b16 %v5190, %v5189
    %v6006 = vpack.c.b16 %v5192, %v5191
    %v6007 = vpack.c.b16 %v5194, %v5193
    %v6008 = vpack.c.b16 %v5196, %v5195
    %v6009 = vpack.c.b16 %v5198, %v5197
    %v6010 = vpack.c.b16 %v5200, %v5199
    %v6011 = vpack.c.b16 %v5202, %v5201
    %v6012 = vpack.c.b16 %v5204, %v5203
    %v6013 = vpack.c.b16 %v5206, %v5205
    %v6014 = vpack.c.b16 %v5208, %v5207
    %v6015 = vpack.c.b16 %v5210, %v5209
    %v6016 = vpack.c.b16 %v5212, %v5211
    %v6017 = vpack.c.b16 %v5214, %v5213
    %v6018 = vpack.c.b16 %v5216, %v5215
    %v6019 = vpack.c.b16 %v5218, %v5217
    %v6020 = vpack.c.b16 %v5220, %v5219
    %v6021 = vpack.c.b16 %v5222, %v5221
    %v6022 = vpack.c.b16 %v5224, %v5223
    %v6023 = vpack.c.b16 %v5226, %v5225
    %v6024 = vpack.c.b16 %v5228, %v5227
    %v6025 = vpack.c.b16 %v5230, %v5229
    %v6026 = vpack.c.b16 %v5232, %v5231
    %v6027 = vpack.c.b16 %v5234, %v5233
    %v6028 = vpack.c.b16 %v5236, %v5235
    %v6029 = vpack.c.b16 %v5238, %v5237
    %v6030 = vpack.c.b16 %v5240, %v5239
    %v6031 = vpack.c.b16 %v5242, %v5241
    %v6032 = vpack.c.b16 %v5244, %v5243
    %v6033 = vpack.c.b16 %v5246, %v5245
    %v6034 = vpack.c.b16 %v5248, %v5247
    %v6035 = vpack.c.b16 %v5250, %v5249
    %v6036 = vpack.c.b16 %v5252, %v5251
    %v6037 = vpack.c.b16 %v5254, %v5253
    %v6038 = vpack.c.b16 %v5256, %v5255
    %v6039 = vpack.c.b16 %v5258, %v5257
    %v6040 = vpack.c.b16 %v5260, %v5259
    %v6041 = vpack.c.b16 %v5262, %v5261
    %v6042 = vpack.c.b16 %v5264, %v5263
    %v6043 = vpack.c.b16 %v5266, %v5265
    %v6044 = vpack.c.b16 %v5268, %v5267
    %v6045 = vpack.c.b16 %v5270, %v5269
    %v6046 = vpack.c.b16 %v5272, %v5271
    %v6047 = vpack.c.b16 %v5274, %v5273
    %v6048 = vpack.c.b16 %v5276, %v5275
    %v6049 = vpack.c.b16 %v5278, %v5277
    %v6050 = vpack.c.b16 %v5280, %v5279
    %v6051 = vpack.c.b16 %v5282, %v5281
    %v6052 = vpack.c.b16 %v5284, %v5283
    %6821 = vmatprep.subr.bf16.mxu0 0
    %6822 = vmatpush1.bf16.msra.mxu0 %v5285
    %6823 = vmatprep.subr.bf16.mxu0 0
    %6824 = vmatpush1.bf16.msra.mxu0 %v5286
    %6825 = vmatprep.subr.bf16.mxu0 0
    %6826 = vmatpush1.bf16.msra.mxu0 %v5287
    %6827 = vmatprep.subr.bf16.mxu0 0
    %6828 = vmatpush1.bf16.msra.mxu0 %v5288
    %6829 = vmatprep.subr.bf16.mxu0 0
    %6830 = vmatpush1.bf16.msra.mxu0 %v5289
    %6831 = vmatprep.subr.bf16.mxu0 0
    %6832 = vmatpush1.bf16.msra.mxu0 %v5290
    %6833 = vmatprep.subr.bf16.mxu0 0
    %6834 = vmatpush1.bf16.msra.mxu0 %v5291
    %6835 = vmatprep.subr.bf16.mxu0 0
    %6836 = vmatpush1.bf16.msra.mxu0 %v5292
    %6837 = vmatprep.subr.bf16.mxu0 0
    %6838 = vmatpush1.bf16.msra.mxu0 %v5293
    %6839 = vmatprep.subr.bf16.mxu0 0
    %6840 = vmatpush1.bf16.msra.mxu0 %v5294
    %6841 = vmatprep.subr.bf16.mxu0 0
    %6842 = vmatpush1.bf16.msra.mxu0 %v5295
    %6843 = vmatprep.subr.bf16.mxu0 0
    %6844 = vmatpush1.bf16.msra.mxu0 %v5296
    %6845 = vmatprep.subr.bf16.mxu0 0
    %6846 = vmatpush1.bf16.msra.mxu0 %v5297
    %6847 = vmatprep.subr.bf16.mxu0 0
    %6848 = vmatpush1.bf16.msra.mxu0 %v5298
    %6849 = vmatprep.subr.bf16.mxu0 0
    %6850 = vmatpush1.bf16.msra.mxu0 %v5299
    %6851 = vmatprep.subr.bf16.mxu0 0
    %6852 = vmatpush1.bf16.msra.mxu0 %v5300
    %6853 = vmatprep.mubr.bf16.mxu0 %v575
    %6854 = vmatmul.mubr.bf16.gmra.mrb[0].mxu0 %v574
    %v6855 = vpop.f32.mrb[0].mxu0
    %v6856 = vadd.f32 %v2211, %v6855
    %v6857 = vpop.f32.mrb[0].mxu0
    %v6858 = vpop.f32.mrb[0].mxu0
    %v6859 = vpop.f32.mrb[0].mxu0
    %6860 = vdwg.mxu0
    %6861 = vmatprep.subr.bf16.mxu0 0
    %6862 = vmatpush1.bf16.msra.mxu0 %v5301
    %6863 = vmatprep.subr.bf16.mxu0 0
    %6864 = vmatpush1.bf16.msra.mxu0 %v5302
    %6865 = vmatprep.subr.bf16.mxu0 0
    %6866 = vmatpush1.bf16.msra.mxu0 %v5303
    %6867 = vmatprep.subr.bf16.mxu0 0
    %6868 = vmatpush1.bf16.msra.mxu0 %v5304
    %6869 = vmatprep.subr.bf16.mxu0 0
    %6870 = vmatpush1.bf16.msra.mxu0 %v5305
    %6871 = vmatprep.subr.bf16.mxu0 0
    %6872 = vmatpush1.bf16.msra.mxu0 %v5306
    %6873 = vmatprep.subr.bf16.mxu0 0
    %6874 = vmatpush1.bf16.msra.mxu0 %v5307
    %6875 = vmatprep.subr.bf16.mxu0 0
    %6876 = vmatpush1.bf16.msra.mxu0 %v5308
    %6877 = vmatprep.subr.bf16.mxu0 0
    %6878 = vmatpush1.bf16.msra.mxu0 %v5309
    %6879 = vmatprep.subr.bf16.mxu0 0
    %6880 = vmatpush1.bf16.msra.mxu0 %v5310
    %6881 = vmatprep.subr.bf16.mxu0 0
    %6882 = vmatpush1.bf16.msra.mxu0 %v5311
    %6883 = vmatprep.subr.bf16.mxu0 0
    %6884 = vmatpush1.bf16.msra.mxu0 %v5312
    %6885 = vmatprep.subr.bf16.mxu0 0
    %6886 = vmatpush1.bf16.msra.mxu0 %v5313
    %6887 = vmatprep.subr.bf16.mxu0 0
    %6888 = vmatpush1.bf16.msra.mxu0 %v5314
    %6889 = vmatprep.subr.bf16.mxu0 0
    %6890 = vmatpush1.bf16.msra.mxu0 %v5315
    %6891 = vmatprep.subr.bf16.mxu0 0
    %6892 = vmatpush1.bf16.msra.mxu0 %v5316
    %6893 = vmatprep.mubr.bf16.mxu0 %v577
    %6894 = vmatmul.mubr.bf16.gmra.mrb[0].mxu0 %v576
    %v6895 = vpop.f32.mrb[0].mxu0
    %v6896 = vadd.f32 %v6856, %v6895
    %v6897 = vpop.f32.mrb[0].mxu0
    %v6898 = vpop.f32.mrb[0].mxu0
    %v6899 = vpop.f32.mrb[0].mxu0
    %6900 = vdwg.mxu0
    %6901 = vmatprep.subr.bf16.mxu0 0
    %6902 = vmatpush1.bf16.msra.mxu0 %v5317
    %6903 = vmatprep.subr.bf16.mxu0 0
    %6904 = vmatpush1.bf16.msra.mxu0 %v5318
    %6905 = vmatprep.subr.bf16.mxu0 0
    %6906 = vmatpush1.bf16.msra.mxu0 %v5319
    %6907 = vmatprep.subr.bf16.mxu0 0
    %6908 = vmatpush1.bf16.msra.mxu0 %v5320
    %6909 = vmatprep.subr.bf16.mxu0 0
    %6910 = vmatpush1.bf16.msra.mxu0 %v5321
    %6911 = vmatprep.subr.bf16.mxu0 0
    %6912 = vmatpush1.bf16.msra.mxu0 %v5322
    %6913 = vmatprep.subr.bf16.mxu0 0
    %6914 = vmatpush1.bf16.msra.mxu0 %v5323
    %6915 = vmatprep.subr.bf16.mxu0 0
    %6916 = vmatpush1.bf16.msra.mxu0 %v5324
    %6917 = vmatprep.subr.bf16.mxu0 0
    %6918 = vmatpush1.bf16.msra.mxu0 %v5325
    %6919 = vmatprep.subr.bf16.mxu0 0
    %6920 = vmatpush1.bf16.msra.mxu0 %v5326
    %6921 = vmatprep.subr.bf16.mxu0 0
    %6922 = vmatpush1.bf16.msra.mxu0 %v5327
    %6923 = vmatprep.subr.bf16.mxu0 0
    %6924 = vmatpush1.bf16.msra.mxu0 %v5328
    %6925 = vmatprep.subr.bf16.mxu0 0
    %6926 = vmatpush1.bf16.msra.mxu0 %v5329
    %6927 = vmatprep.subr.bf16.mxu0 0
    %6928 = vmatpush1.bf16.msra.mxu0 %v5330
    %6929 = vmatprep.subr.bf16.mxu0 0
    %6930 = vmatpush1.bf16.msra.mxu0 %v5331
    %6931 = vmatprep.subr.bf16.mxu0 0
    %6932 = vmatpush1.bf16.msra.mxu0 %v5332
    %6933 = vmatprep.mubr.bf16.mxu0 %v579
    %6934 = vmatmul.mubr.bf16.gmra.mrb[0].mxu0 %v578
    %v6935 = vpop.f32.mrb[0].mxu0
    %v6936 = vadd.f32 %v6896, %v6935
    %v6937 = vpop.f32.mrb[0].mxu0
    %v6938 = vpop.f32.mrb[0].mxu0
    %v6939 = vpop.f32.mrb[0].mxu0
    %6940 = vdwg.mxu0
    %6941 = vmatprep.subr.bf16.mxu0 0
    %6942 = vmatpush1.bf16.msra.mxu0 %v5333
    %6943 = vmatprep.subr.bf16.mxu0 0
    %6944 = vmatpush1.bf16.msra.mxu0 %v5334
    %6945 = vmatprep.subr.bf16.mxu0 0
    %6946 = vmatpush1.bf16.msra.mxu0 %v5335
    %6947 = vmatprep.subr.bf16.mxu0 0
    %6948 = vmatpush1.bf16.msra.mxu0 %v5336
    %6949 = vmatprep.subr.bf16.mxu0 0
    %6950 = vmatpush1.bf16.msra.mxu0 %v5337
    %6951 = vmatprep.subr.bf16.mxu0 0
    %6952 = vmatpush1.bf16.msra.mxu0 %v5338
    %6953 = vmatprep.subr.bf16.mxu0 0
    %6954 = vmatpush1.bf16.msra.mxu0 %v5339
    %6955 = vmatprep.subr.bf16.mxu0 0
    %6956 = vmatpush1.bf16.msra.mxu0 %v5340
    %6957 = vmatprep.subr.bf16.mxu0 0
    %6958 = vmatpush1.bf16.msra.mxu0 %v5341
    %6959 = vmatprep.subr.bf16.mxu0 0
    %6960 = vmatpush1.bf16.msra.mxu0 %v5342
    %6961 = vmatprep.subr.bf16.mxu0 0
    %6962 = vmatpush1.bf16.msra.mxu0 %v5343
    %6963 = vmatprep.subr.bf16.mxu0 0
    %6964 = vmatpush1.bf16.msra.mxu0 %v5344
    %6965 = vmatprep.subr.bf16.mxu0 0
    %6966 = vmatpush1.bf16.msra.mxu0 %v5345
    %6967 = vmatprep.subr.bf16.mxu0 0
    %6968 = vmatpush1.bf16.msra.mxu0 %v5346
    %6969 = vmatprep.subr.bf16.mxu0 0
    %6970 = vmatpush1.bf16.msra.mxu0 %v5347
    %6971 = vmatprep.subr.bf16.mxu0 0
    %6972 = vmatpush1.bf16.msra.mxu0 %v5348
    %6973 = vmatprep.mubr.bf16.mxu0 %v581
    %6974 = vmatmul.mubr.bf16.gmra.mrb[0].mxu0 %v580
    %v6975 = vpop.f32.mrb[0].mxu0
    %v6976 = vadd.f32 %v6936, %v6975
    %v6977 = vpop.f32.mrb[0].mxu0
    %v6978 = vpop.f32.mrb[0].mxu0
    %v6979 = vpop.f32.mrb[0].mxu0
    %6980 = vdwg.mxu0
    %6981 = vmatprep.subr.bf16.mxu0 0
    %6982 = vmatpush1.bf16.msra.mxu0 %v5349
    %6983 = vmatprep.subr.bf16.mxu0 0
    %6984 = vmatpush1.bf16.msra.mxu0 %v5350
    %6985 = vmatprep.subr.bf16.mxu0 0
    %6986 = vmatpush1.bf16.msra.mxu0 %v5351
    %6987 = vmatprep.subr.bf16.mxu0 0
    %6988 = vmatpush1.bf16.msra.mxu0 %v5352
    %6989 = vmatprep.subr.bf16.mxu0 0
    %6990 = vmatpush1.bf16.msra.mxu0 %v5353
    %6991 = vmatprep.subr.bf16.mxu0 0
    %6992 = vmatpush1.bf16.msra.mxu0 %v5354
    %6993 = vmatprep.subr.bf16.mxu0 0
    %6994 = vmatpush1.bf16.msra.mxu0 %v5355
    %6995 = vmatprep.subr.bf16.mxu0 0
    %6996 = vmatpush1.bf16.msra.mxu0 %v5356
    %6997 = vmatprep.subr.bf16.mxu0 0
    %6998 = vmatpush1.bf16.msra.mxu0 %v5357
    %6999 = vmatprep.subr.bf16.mxu0 0
    %7000 = vmatpush1.bf16.msra.mxu0 %v5358
    %7001 = vmatprep.subr.bf16.mxu0 0
    %7002 = vmatpush1.bf16.msra.mxu0 %v5359
    %7003 = vmatprep.subr.bf16.mxu0 0
    %7004 = vmatpush1.bf16.msra.mxu0 %v5360
    %7005 = vmatprep.subr.bf16.mxu0 0
    %7006 = vmatpush1.bf16.msra.mxu0 %v5361
    %7007 = vmatprep.subr.bf16.mxu0 0
    %7008 = vmatpush1.bf16.msra.mxu0 %v5362
    %7009 = vmatprep.subr.bf16.mxu0 0
    %7010 = vmatpush1.bf16.msra.mxu0 %v5363
    %7011 = vmatprep.subr.bf16.mxu0 0
    %7012 = vmatpush1.bf16.msra.mxu0 %v5364
    %7013 = vmatprep.mubr.bf16.mxu0 %v583
    %7014 = vmatmul.mubr.bf16.gmra.mrb[0].mxu0 %v582
    %v7015 = vpop.f32.mrb[0].mxu0
    %v7016 = vadd.f32 %v6976, %v7015
    %v7017 = vpop.f32.mrb[0].mxu0
    %v7018 = vpop.f32.mrb[0].mxu0
    %v7019 = vpop.f32.mrb[0].mxu0
    %7020 = vdwg.mxu0
    %7021 = vmatprep.subr.bf16.mxu0 0
    %7022 = vmatpush1.bf16.msra.mxu0 %v5365
    %7023 = vmatprep.subr.bf16.mxu0 0
    %7024 = vmatpush1.bf16.msra.mxu0 %v5366
    %7025 = vmatprep.subr.bf16.mxu0 0
    %7026 = vmatpush1.bf16.msra.mxu0 %v5367
    %7027 = vmatprep.subr.bf16.mxu0 0
    %7028 = vmatpush1.bf16.msra.mxu0 %v5368
    %7029 = vmatprep.subr.bf16.mxu0 0
    %7030 = vmatpush1.bf16.msra.mxu0 %v5369
    %7031 = vmatprep.subr.bf16.mxu0 0
    %7032 = vmatpush1.bf16.msra.mxu0 %v5370
    %7033 = vmatprep.subr.bf16.mxu0 0
    %7034 = vmatpush1.bf16.msra.mxu0 %v5371
    %7035 = vmatprep.subr.bf16.mxu0 0
    %7036 = vmatpush1.bf16.msra.mxu0 %v5372
    %7037 = vmatprep.subr.bf16.mxu0 0
    %7038 = vmatpush1.bf16.msra.mxu0 %v5373
    %7039 = vmatprep.subr.bf16.mxu0 0
    %7040 = vmatpush1.bf16.msra.mxu0 %v5374
    %7041 = vmatprep.subr.bf16.mxu0 0
    %7042 = vmatpush1.bf16.msra.mxu0 %v5375
    %7043 = vmatprep.subr.bf16.mxu0 0
    %7044 = vmatpush1.bf16.msra.mxu0 %v5376
    %7045 = vmatprep.subr.bf16.mxu0 0
    %7046 = vmatpush1.bf16.msra.mxu0 %v5377
    %7047 = vmatprep.subr.bf16.mxu0 0
    %7048 = vmatpush1.bf16.msra.mxu0 %v5378
    %7049 = vmatprep.subr.bf16.mxu0 0
    %7050 = vmatpush1.bf16.msra.mxu0 %v5379
    %7051 = vmatprep.subr.bf16.mxu0 0
    %7052 = vmatpush1.bf16.msra.mxu0 %v5380
    %7053 = vmatprep.mubr.bf16.mxu0 %v585
    %7054 = vmatmul.mubr.bf16.gmra.mrb[0].mxu0 %v584
    %v7055 = vpop.f32.mrb[0].mxu0
    %v7056 = vadd.f32 %v7016, %v7055
    %v7057 = vpop.f32.mrb[0].mxu0
    %v7058 = vpop.f32.mrb[0].mxu0
    %v7059 = vpop.f32.mrb[0].mxu0
    %7060 = vdwg.mxu0
    %7061 = vmatprep.subr.bf16.mxu0 0
    %7062 = vmatpush1.bf16.msra.mxu0 %v5381
    %7063 = vmatprep.subr.bf16.mxu0 0
    %7064 = vmatpush1.bf16.msra.mxu0 %v5382
    %7065 = vmatprep.subr.bf16.mxu0 0
    %7066 = vmatpush1.bf16.msra.mxu0 %v5383
    %7067 = vmatprep.subr.bf16.mxu0 0
    %7068 = vmatpush1.bf16.msra.mxu0 %v5384
    %7069 = vmatprep.subr.bf16.mxu0 0
    %7070 = vmatpush1.bf16.msra.mxu0 %v5385
    %7071 = vmatprep.subr.bf16.mxu0 0
    %7072 = vmatpush1.bf16.msra.mxu0 %v5386
    %7073 = vmatprep.subr.bf16.mxu0 0
    %7074 = vmatpush1.bf16.msra.mxu0 %v5387
    %7075 = vmatprep.subr.bf16.mxu0 0
    %7076 = vmatpush1.bf16.msra.mxu0 %v5388
    %7077 = vmatprep.subr.bf16.mxu0 0
    %7078 = vmatpush1.bf16.msra.mxu0 %v5389
    %7079 = vmatprep.subr.bf16.mxu0 0
    %7080 = vmatpush1.bf16.msra.mxu0 %v5390
    %7081 = vmatprep.subr.bf16.mxu0 0
    %7082 = vmatpush1.bf16.msra.mxu0 %v5391
    %7083 = vmatprep.subr.bf16.mxu0 0
    %7084 = vmatpush1.bf16.msra.mxu0 %v5392
    %7085 = vmatprep.subr.bf16.mxu0 0
    %7086 = vmatpush1.bf16.msra.mxu0 %v5393
    %7087 = vmatprep.subr.bf16.mxu0 0
    %7088 = vmatpush1.bf16.msra.mxu0 %v5394
    %7089 = vmatprep.subr.bf16.mxu0 0
    %7090 = vmatpush1.bf16.msra.mxu0 %v5395
    %7091 = vmatprep.subr.bf16.mxu0 0
    %7092 = vmatpush1.bf16.msra.mxu0 %v5396
    %7093 = vmatprep.mubr.bf16.mxu0 %v587
    %7094 = vmatmul.mubr.bf16.gmra.mrb[0].mxu0 %v586
    %v7095 = vpop.f32.mrb[0].mxu0
    %v7096 = vadd.f32 %v7056, %v7095
    %v7097 = vpop.f32.mrb[0].mxu0
    %v7098 = vpop.f32.mrb[0].mxu0
    %v7099 = vpop.f32.mrb[0].mxu0
    %7100 = vdwg.mxu0
    %7101 = vmatprep.subr.bf16.mxu0 0
    %7102 = vmatpush1.bf16.msra.mxu0 %v5397
    %7103 = vmatprep.subr.bf16.mxu0 0
    %7104 = vmatpush1.bf16.msra.mxu0 %v5398
    %7105 = vmatprep.subr.bf16.mxu0 0
    %7106 = vmatpush1.bf16.msra.mxu0 %v5399
    %7107 = vmatprep.subr.bf16.mxu0 0
    %7108 = vmatpush1.bf16.msra.mxu0 %v5400
    %7109 = vmatprep.subr.bf16.mxu0 0
    %7110 = vmatpush1.bf16.msra.mxu0 %v5401
    %7111 = vmatprep.subr.bf16.mxu0 0
    %7112 = vmatpush1.bf16.msra.mxu0 %v5402
    %7113 = vmatprep.subr.bf16.mxu0 0
    %7114 = vmatpush1.bf16.msra.mxu0 %v5403
    %7115 = vmatprep.subr.bf16.mxu0 0
    %7116 = vmatpush1.bf16.msra.mxu0 %v5404
    %7117 = vmatprep.subr.bf16.mxu0 0
    %7118 = vmatpush1.bf16.msra.mxu0 %v5405
    %7119 = vmatprep.subr.bf16.mxu0 0
    %7120 = vmatpush1.bf16.msra.mxu0 %v5406
    %7121 = vmatprep.subr.bf16.mxu0 0
    %7122 = vmatpush1.bf16.msra.mxu0 %v5407
    %7123 = vmatprep.subr.bf16.mxu0 0
    %7124 = vmatpush1.bf16.msra.mxu0 %v5408
    %7125 = vmatprep.subr.bf16.mxu0 0
    %7126 = vmatpush1.bf16.msra.mxu0 %v5409
    %7127 = vmatprep.subr.bf16.mxu0 0
    %7128 = vmatpush1.bf16.msra.mxu0 %v5410
    %7129 = vmatprep.subr.bf16.mxu0 0
    %7130 = vmatpush1.bf16.msra.mxu0 %v5411
    %7131 = vmatprep.subr.bf16.mxu0 0
    %7132 = vmatpush1.bf16.msra.mxu0 %v5412
    %7133 = vmatprep.mubr.bf16.mxu0 %v589
    %7134 = vmatmul.mubr.bf16.gmra.mrb[0].mxu0 %v588
    %v7135 = vpop.f32.mrb[0].mxu0
    %v7136 = vadd.f32 %v7096, %v7135
    %v7137 = vpop.f32.mrb[0].mxu0
    %v7138 = vpop.f32.mrb[0].mxu0
    %v7139 = vpop.f32.mrb[0].mxu0
    %7140 = vdwg.mxu0
    %7141 = vmatprep.subr.bf16.mxu0 0
    %7142 = vmatpush1.bf16.msra.mxu0 %v5413
    %7143 = vmatprep.subr.bf16.mxu0 0
    %7144 = vmatpush1.bf16.msra.mxu0 %v5414
    %7145 = vmatprep.subr.bf16.mxu0 0
    %7146 = vmatpush1.bf16.msra.mxu0 %v5415
    %7147 = vmatprep.subr.bf16.mxu0 0
    %7148 = vmatpush1.bf16.msra.mxu0 %v5416
    %7149 = vmatprep.subr.bf16.mxu0 0
    %7150 = vmatpush1.bf16.msra.mxu0 %v5417
    %7151 = vmatprep.subr.bf16.mxu0 0
    %7152 = vmatpush1.bf16.msra.mxu0 %v5418
    %7153 = vmatprep.subr.bf16.mxu0 0
    %7154 = vmatpush1.bf16.msra.mxu0 %v5419
    %7155 = vmatprep.subr.bf16.mxu0 0
    %7156 = vmatpush1.bf16.msra.mxu0 %v5420
    %7157 = vmatprep.subr.bf16.mxu0 0
    %7158 = vmatpush1.bf16.msra.mxu0 %v5421
    %7159 = vmatprep.subr.bf16.mxu0 0
    %7160 = vmatpush1.bf16.msra.mxu0 %v5422
    %7161 = vmatprep.subr.bf16.mxu0 0
    %7162 = vmatpush1.bf16.msra.mxu0 %v5423
    %7163 = vmatprep.subr.bf16.mxu0 0
    %7164 = vmatpush1.bf16.msra.mxu0 %v5424
    %7165 = vmatprep.subr.bf16.mxu0 0
    %7166 = vmatpush1.bf16.msra.mxu0 %v5425
    %7167 = vmatprep.subr.bf16.mxu0 0
    %7168 = vmatpush1.bf16.msra.mxu0 %v5426
    %7169 = vmatprep.subr.bf16.mxu0 0
    %7170 = vmatpush1.bf16.msra.mxu0 %v5427
    %7171 = vmatprep.subr.bf16.mxu0 0
    %7172 = vmatpush1.bf16.msra.mxu0 %v5428
    %7173 = vmatprep.mubr.bf16.mxu0 %v591
    %7174 = vmatmul.mubr.bf16.gmra.mrb[0].mxu0 %v590
    %v7175 = vpop.f32.mrb[0].mxu0
    %v7176 = vadd.f32 %v7136, %v7175
    %v7177 = vpop.f32.mrb[0].mxu0
    %v7178 = vpop.f32.mrb[0].mxu0
    %v7179 = vpop.f32.mrb[0].mxu0
    %7180 = vdwg.mxu0
    %7181 = vmatprep.subr.bf16.mxu0 0
    %7182 = vmatpush1.bf16.msra.mxu0 %v5429
    %7183 = vmatprep.subr.bf16.mxu0 0
    %7184 = vmatpush1.bf16.msra.mxu0 %v5430
    %7185 = vmatprep.subr.bf16.mxu0 0
    %7186 = vmatpush1.bf16.msra.mxu0 %v5431
    %7187 = vmatprep.subr.bf16.mxu0 0
    %7188 = vmatpush1.bf16.msra.mxu0 %v5432
    %7189 = vmatprep.subr.bf16.mxu0 0
    %7190 = vmatpush1.bf16.msra.mxu0 %v5433
    %7191 = vmatprep.subr.bf16.mxu0 0
    %7192 = vmatpush1.bf16.msra.mxu0 %v5434
    %7193 = vmatprep.subr.bf16.mxu0 0
    %7194 = vmatpush1.bf16.msra.mxu0 %v5435
    %7195 = vmatprep.subr.bf16.mxu0 0
    %7196 = vmatpush1.bf16.msra.mxu0 %v5436
    %7197 = vmatprep.subr.bf16.mxu0 0
    %7198 = vmatpush1.bf16.msra.mxu0 %v5437
    %7199 = vmatprep.subr.bf16.mxu0 0
    %7200 = vmatpush1.bf16.msra.mxu0 %v5438
    %7201 = vmatprep.subr.bf16.mxu0 0
    %7202 = vmatpush1.bf16.msra.mxu0 %v5439
    %7203 = vmatprep.subr.bf16.mxu0 0
    %7204 = vmatpush1.bf16.msra.mxu0 %v5440
    %7205 = vmatprep.subr.bf16.mxu0 0
    %7206 = vmatpush1.bf16.msra.mxu0 %v5441
    %7207 = vmatprep.subr.bf16.mxu0 0
    %7208 = vmatpush1.bf16.msra.mxu0 %v5442
    %7209 = vmatprep.subr.bf16.mxu0 0
    %7210 = vmatpush1.bf16.msra.mxu0 %v5443
    %7211 = vmatprep.subr.bf16.mxu0 0
    %7212 = vmatpush1.bf16.msra.mxu0 %v5444
    %7213 = vmatprep.mubr.bf16.mxu0 %v593
    %7214 = vmatmul.mubr.bf16.gmra.mrb[0].mxu0 %v592
    %v7215 = vpop.f32.mrb[0].mxu0
    %v7216 = vadd.f32 %v7176, %v7215
    %v7217 = vpop.f32.mrb[0].mxu0
    %v7218 = vpop.f32.mrb[0].mxu0
    %v7219 = vpop.f32.mrb[0].mxu0
    %7220 = vdwg.mxu0
    %7221 = vmatprep.subr.bf16.mxu0 0
    %7222 = vmatpush1.bf16.msra.mxu0 %v5445
    %7223 = vmatprep.subr.bf16.mxu0 0
    %7224 = vmatpush1.bf16.msra.mxu0 %v5446
    %7225 = vmatprep.subr.bf16.mxu0 0
    %7226 = vmatpush1.bf16.msra.mxu0 %v5447
    %7227 = vmatprep.subr.bf16.mxu0 0
    %7228 = vmatpush1.bf16.msra.mxu0 %v5448
    %7229 = vmatprep.subr.bf16.mxu0 0
    %7230 = vmatpush1.bf16.msra.mxu0 %v5449
    %7231 = vmatprep.subr.bf16.mxu0 0
    %7232 = vmatpush1.bf16.msra.mxu0 %v5450
    %7233 = vmatprep.subr.bf16.mxu0 0
    %7234 = vmatpush1.bf16.msra.mxu0 %v5451
    %7235 = vmatprep.subr.bf16.mxu0 0
    %7236 = vmatpush1.bf16.msra.mxu0 %v5452
    %7237 = vmatprep.subr.bf16.mxu0 0
    %7238 = vmatpush1.bf16.msra.mxu0 %v5453
    %7239 = vmatprep.subr.bf16.mxu0 0
    %7240 = vmatpush1.bf16.msra.mxu0 %v5454
    %7241 = vmatprep.subr.bf16.mxu0 0
    %7242 = vmatpush1.bf16.msra.mxu0 %v5455
    %7243 = vmatprep.subr.bf16.mxu0 0
    %7244 = vmatpush1.bf16.msra.mxu0 %v5456
    %7245 = vmatprep.subr.bf16.mxu0 0
    %7246 = vmatpush1.bf16.msra.mxu0 %v5457
    %7247 = vmatprep.subr.bf16.mxu0 0
    %7248 = vmatpush1.bf16.msra.mxu0 %v5458
    %7249 = vmatprep.subr.bf16.mxu0 0
    %7250 = vmatpush1.bf16.msra.mxu0 %v5459
    %7251 = vmatprep.subr.bf16.mxu0 0
    %7252 = vmatpush1.bf16.msra.mxu0 %v5460
    %7253 = vmatprep.mubr.bf16.mxu0 %v595
    %7254 = vmatmul.mubr.bf16.gmra.mrb[0].mxu0 %v594
    %v7255 = vpop.f32.mrb[0].mxu0
    %v7256 = vadd.f32 %v7216, %v7255
    %v7257 = vpop.f32.mrb[0].mxu0
    %v7258 = vpop.f32.mrb[0].mxu0
    %v7259 = vpop.f32.mrb[0].mxu0
    %7260 = vdwg.mxu0
    %7261 = vmatprep.subr.bf16.mxu0 0
    %7262 = vmatpush1.bf16.msra.mxu0 %v5461
    %7263 = vmatprep.subr.bf16.mxu0 0
    %7264 = vmatpush1.bf16.msra.mxu0 %v5462
    %7265 = vmatprep.subr.bf16.mxu0 0
    %7266 = vmatpush1.bf16.msra.mxu0 %v5463
    %7267 = vmatprep.subr.bf16.mxu0 0
    %7268 = vmatpush1.bf16.msra.mxu0 %v5464
    %7269 = vmatprep.subr.bf16.mxu0 0
    %7270 = vmatpush1.bf16.msra.mxu0 %v5465
    %7271 = vmatprep.subr.bf16.mxu0 0
    %7272 = vmatpush1.bf16.msra.mxu0 %v5466
    %7273 = vmatprep.subr.bf16.mxu0 0
    %7274 = vmatpush1.bf16.msra.mxu0 %v5467
    %7275 = vmatprep.subr.bf16.mxu0 0
    %7276 = vmatpush1.bf16.msra.mxu0 %v5468
    %7277 = vmatprep.subr.bf16.mxu0 0
    %7278 = vmatpush1.bf16.msra.mxu0 %v5469
    %7279 = vmatprep.subr.bf16.mxu0 0
    %7280 = vmatpush1.bf16.msra.mxu0 %v5470
    %7281 = vmatprep.subr.bf16.mxu0 0
    %7282 = vmatpush1.bf16.msra.mxu0 %v5471
    %7283 = vmatprep.subr.bf16.mxu0 0
    %7284 = vmatpush1.bf16.msra.mxu0 %v5472
    %7285 = vmatprep.subr.bf16.mxu0 0
    %7286 = vmatpush1.bf16.msra.mxu0 %v5473
    %7287 = vmatprep.subr.bf16.mxu0 0
    %7288 = vmatpush1.bf16.msra.mxu0 %v5474
    %7289 = vmatprep.subr.bf16.mxu0 0
    %7290 = vmatpush1.bf16.msra.mxu0 %v5475
    %7291 = vmatprep.subr.bf16.mxu0 0
    %7292 = vmatpush1.bf16.msra.mxu0 %v5476
    %7293 = vmatprep.mubr.bf16.mxu0 %v597
    %7294 = vmatmul.mubr.bf16.gmra.mrb[0].mxu0 %v596
    %v7295 = vpop.f32.mrb[0].mxu0
    %v7296 = vadd.f32 %v7256, %v7295
    %v7297 = vpop.f32.mrb[0].mxu0
    %v7298 = vpop.f32.mrb[0].mxu0
    %v7299 = vpop.f32.mrb[0].mxu0
    %7300 = vdwg.mxu0
    %7301 = vmatprep.subr.bf16.mxu0 0
    %7302 = vmatpush1.bf16.msra.mxu0 %v5477
    %7303 = vmatprep.subr.bf16.mxu0 0
    %7304 = vmatpush1.bf16.msra.mxu0 %v5478
    %7305 = vmatprep.subr.bf16.mxu0 0
    %7306 = vmatpush1.bf16.msra.mxu0 %v5479
    %7307 = vmatprep.subr.bf16.mxu0 0
    %7308 = vmatpush1.bf16.msra.mxu0 %v5480
    %7309 = vmatprep.subr.bf16.mxu0 0
    %7310 = vmatpush1.bf16.msra.mxu0 %v5481
    %7311 = vmatprep.subr.bf16.mxu0 0
    %7312 = vmatpush1.bf16.msra.mxu0 %v5482
    %7313 = vmatprep.subr.bf16.mxu0 0
    %7314 = vmatpush1.bf16.msra.mxu0 %v5483
    %7315 = vmatprep.subr.bf16.mxu0 0
    %7316 = vmatpush1.bf16.msra.mxu0 %v5484
    %7317 = vmatprep.subr.bf16.mxu0 0
    %7318 = vmatpush1.bf16.msra.mxu0 %v5485
    %7319 = vmatprep.subr.bf16.mxu0 0
    %7320 = vmatpush1.bf16.msra.mxu0 %v5486
    %7321 = vmatprep.subr.bf16.mxu0 0
    %7322 = vmatpush1.bf16.msra.mxu0 %v5487
    %7323 = vmatprep.subr.bf16.mxu0 0
    %7324 = vmatpush1.bf16.msra.mxu0 %v5488
    %7325 = vmatprep.subr.bf16.mxu0 0
    %7326 = vmatpush1.bf16.msra.mxu0 %v5489
    %7327 = vmatprep.subr.bf16.mxu0 0
    %7328 = vmatpush1.bf16.msra.mxu0 %v5490
    %7329 = vmatprep.subr.bf16.mxu0 0
    %7330 = vmatpush1.bf16.msra.mxu0 %v5491
    %7331 = vmatprep.subr.bf16.mxu0 0
    %7332 = vmatpush1.bf16.msra.mxu0 %v5492
    %7333 = vmatprep.mubr.bf16.mxu0 %v599
    %7334 = vmatmul.mubr.bf16.gmra.mrb[0].mxu0 %v598
    %v7335 = vpop.f32.mrb[0].mxu0
    %v7336 = vadd.f32 %v7296, %v7335
    %v7337 = vpop.f32.mrb[0].mxu0
    %v7338 = vpop.f32.mrb[0].mxu0
    %v7339 = vpop.f32.mrb[0].mxu0
    %7340 = vdwg.mxu0
    %7341 = vmatprep.subr.bf16.mxu0 0
    %7342 = vmatpush1.bf16.msra.mxu0 %v5493
    %7343 = vmatprep.subr.bf16.mxu0 0
    %7344 = vmatpush1.bf16.msra.mxu0 %v5494
    %7345 = vmatprep.subr.bf16.mxu0 0
    %7346 = vmatpush1.bf16.msra.mxu0 %v5495
    %7347 = vmatprep.subr.bf16.mxu0 0
    %7348 = vmatpush1.bf16.msra.mxu0 %v5496
    %7349 = vmatprep.subr.bf16.mxu0 0
    %7350 = vmatpush1.bf16.msra.mxu0 %v5497
    %7351 = vmatprep.subr.bf16.mxu0 0
    %7352 = vmatpush1.bf16.msra.mxu0 %v5498
    %7353 = vmatprep.subr.bf16.mxu0 0
    %7354 = vmatpush1.bf16.msra.mxu0 %v5499
    %7355 = vmatprep.subr.bf16.mxu0 0
    %7356 = vmatpush1.bf16.msra.mxu0 %v5500
    %7357 = vmatprep.subr.bf16.mxu0 0
    %7358 = vmatpush1.bf16.msra.mxu0 %v5501
    %7359 = vmatprep.subr.bf16.mxu0 0
    %7360 = vmatpush1.bf16.msra.mxu0 %v5502
    %7361 = vmatprep.subr.bf16.mxu0 0
    %7362 = vmatpush1.bf16.msra.mxu0 %v5503
    %7363 = vmatprep.subr.bf16.mxu0 0
    %7364 = vmatpush1.bf16.msra.mxu0 %v5504
    %7365 = vmatprep.subr.bf16.mxu0 0
    %7366 = vmatpush1.bf16.msra.mxu0 %v5505
    %7367 = vmatprep.subr.bf16.mxu0 0
    %7368 = vmatpush1.bf16.msra.mxu0 %v5506
    %7369 = vmatprep.subr.bf16.mxu0 0
    %7370 = vmatpush1.bf16.msra.mxu0 %v5507
    %7371 = vmatprep.subr.bf16.mxu0 0
    %7372 = vmatpush1.bf16.msra.mxu0 %v5508
    %7373 = vmatprep.mubr.bf16.mxu0 %v601
    %7374 = vmatmul.mubr.bf16.gmra.mrb[0].mxu0 %v600
    %v7375 = vpop.f32.mrb[0].mxu0
    %v7376 = vadd.f32 %v7336, %v7375
    %v7377 = vpop.f32.mrb[0].mxu0
    %v7378 = vpop.f32.mrb[0].mxu0
    %v7379 = vpop.f32.mrb[0].mxu0
    %7380 = vdwg.mxu0
    %7381 = vmatprep.subr.bf16.mxu0 0
    %7382 = vmatpush1.bf16.msra.mxu0 %v5509
    %7383 = vmatprep.subr.bf16.mxu0 0
    %7384 = vmatpush1.bf16.msra.mxu0 %v5510
    %7385 = vmatprep.subr.bf16.mxu0 0
    %7386 = vmatpush1.bf16.msra.mxu0 %v5511
    %7387 = vmatprep.subr.bf16.mxu0 0
    %7388 = vmatpush1.bf16.msra.mxu0 %v5512
    %7389 = vmatprep.subr.bf16.mxu0 0
    %7390 = vmatpush1.bf16.msra.mxu0 %v5513
    %7391 = vmatprep.subr.bf16.mxu0 0
    %7392 = vmatpush1.bf16.msra.mxu0 %v5514
    %7393 = vmatprep.subr.bf16.mxu0 0
    %7394 = vmatpush1.bf16.msra.mxu0 %v5515
    %7395 = vmatprep.subr.bf16.mxu0 0
    %7396 = vmatpush1.bf16.msra.mxu0 %v5516
    %7397 = vmatprep.subr.bf16.mxu0 0
    %7398 = vmatpush1.bf16.msra.mxu0 %v5517
    %7399 = vmatprep.subr.bf16.mxu0 0
    %7400 = vmatpush1.bf16.msra.mxu0 %v5518
    %7401 = vmatprep.subr.bf16.mxu0 0
    %7402 = vmatpush1.bf16.msra.mxu0 %v5519
    %7403 = vmatprep.subr.bf16.mxu0 0
    %7404 = vmatpush1.bf16.msra.mxu0 %v5520
    %7405 = vmatprep.subr.bf16.mxu0 0
    %7406 = vmatpush1.bf16.msra.mxu0 %v5521
    %7407 = vmatprep.subr.bf16.mxu0 0
    %7408 = vmatpush1.bf16.msra.mxu0 %v5522
    %7409 = vmatprep.subr.bf16.mxu0 0
    %7410 = vmatpush1.bf16.msra.mxu0 %v5523
    %7411 = vmatprep.subr.bf16.mxu0 0
    %7412 = vmatpush1.bf16.msra.mxu0 %v5524
    %7413 = vmatprep.mubr.bf16.mxu0 %v603
    %7414 = vmatmul.mubr.bf16.gmra.mrb[0].mxu0 %v602
    %v7415 = vpop.f32.mrb[0].mxu0
    %v7416 = vadd.f32 %v7376, %v7415
    %v7417 = vpop.f32.mrb[0].mxu0
    %v7418 = vpop.f32.mrb[0].mxu0
    %v7419 = vpop.f32.mrb[0].mxu0
    %7420 = vdwg.mxu0
    %7421 = vmatprep.subr.bf16.mxu0 0
    %7422 = vmatpush1.bf16.msra.mxu0 %v5525
    %7423 = vmatprep.subr.bf16.mxu0 0
    %7424 = vmatpush1.bf16.msra.mxu0 %v5526
    %7425 = vmatprep.subr.bf16.mxu0 0
    %7426 = vmatpush1.bf16.msra.mxu0 %v5527
    %7427 = vmatprep.subr.bf16.mxu0 0
    %7428 = vmatpush1.bf16.msra.mxu0 %v5528
    %7429 = vmatprep.subr.bf16.mxu0 0
    %7430 = vmatpush1.bf16.msra.mxu0 %v5529
    %7431 = vmatprep.subr.bf16.mxu0 0
    %7432 = vmatpush1.bf16.msra.mxu0 %v5530
    %7433 = vmatprep.subr.bf16.mxu0 0
    %7434 = vmatpush1.bf16.msra.mxu0 %v5531
    %7435 = vmatprep.subr.bf16.mxu0 0
    %7436 = vmatpush1.bf16.msra.mxu0 %v5532
    %7437 = vmatprep.subr.bf16.mxu0 0
    %7438 = vmatpush1.bf16.msra.mxu0 %v5533
    %7439 = vmatprep.subr.bf16.mxu0 0
    %7440 = vmatpush1.bf16.msra.mxu0 %v5534
    %7441 = vmatprep.subr.bf16.mxu0 0
    %7442 = vmatpush1.bf16.msra.mxu0 %v5535
    %7443 = vmatprep.subr.bf16.mxu0 0
    %7444 = vmatpush1.bf16.msra.mxu0 %v5536
    %7445 = vmatprep.subr.bf16.mxu0 0
    %7446 = vmatpush1.bf16.msra.mxu0 %v5537
    %7447 = vmatprep.subr.bf16.mxu0 0
    %7448 = vmatpush1.bf16.msra.mxu0 %v5538
    %7449 = vmatprep.subr.bf16.mxu0 0
    %7450 = vmatpush1.bf16.msra.mxu0 %v5539
    %7451 = vmatprep.subr.bf16.mxu0 0
    %7452 = vmatpush1.bf16.msra.mxu0 %v5540
    %7453 = vmatprep.mubr.bf16.mxu0 %v605
    %7454 = vmatmul.mubr.bf16.gmra.mrb[0].mxu0 %v604
    %v7455 = vpop.f32.mrb[0].mxu0
    %v7456 = vadd.f32 %v7416, %v7455
    %v7457 = vpop.f32.mrb[0].mxu0
    %v7458 = vpop.f32.mrb[0].mxu0
    %v7459 = vpop.f32.mrb[0].mxu0
    %7460 = vdwg.mxu0
    %7461 = vmatprep.subr.bf16.mxu0 0
    %7462 = vmatpush1.bf16.msra.mxu0 %v5541
    %7463 = vmatprep.subr.bf16.mxu0 0
    %7464 = vmatpush1.bf16.msra.mxu0 %v5542
    %7465 = vmatprep.subr.bf16.mxu0 0
    %7466 = vmatpush1.bf16.msra.mxu0 %v5543
    %7467 = vmatprep.subr.bf16.mxu0 0
    %7468 = vmatpush1.bf16.msra.mxu0 %v5544
    %7469 = vmatprep.subr.bf16.mxu0 0
    %7470 = vmatpush1.bf16.msra.mxu0 %v5545
    %7471 = vmatprep.subr.bf16.mxu0 0
    %7472 = vmatpush1.bf16.msra.mxu0 %v5546
    %7473 = vmatprep.subr.bf16.mxu0 0
    %7474 = vmatpush1.bf16.msra.mxu0 %v5547
    %7475 = vmatprep.subr.bf16.mxu0 0
    %7476 = vmatpush1.bf16.msra.mxu0 %v5548
    %7477 = vmatprep.subr.bf16.mxu0 0
    %7478 = vmatpush1.bf16.msra.mxu0 %v5549
    %7479 = vmatprep.subr.bf16.mxu0 0
    %7480 = vmatpush1.bf16.msra.mxu0 %v5550
    %7481 = vmatprep.subr.bf16.mxu0 0
    %7482 = vmatpush1.bf16.msra.mxu0 %v5551
    %7483 = vmatprep.subr.bf16.mxu0 0
    %7484 = vmatpush1.bf16.msra.mxu0 %v5552
    %7485 = vmatprep.subr.bf16.mxu0 0
    %7486 = vmatpush1.bf16.msra.mxu0 %v5553
    %7487 = vmatprep.subr.bf16.mxu0 0
    %7488 = vmatpush1.bf16.msra.mxu0 %v5554
    %7489 = vmatprep.subr.bf16.mxu0 0
    %7490 = vmatpush1.bf16.msra.mxu0 %v5555
    %7491 = vmatprep.subr.bf16.mxu0 0
    %7492 = vmatpush1.bf16.msra.mxu0 %v5556
    %7493 = vmatprep.mubr.bf16.mxu0 %v607
    %7494 = vmatmul.mubr.bf16.gmra.mrb[0].mxu0 %v606
    %v7495 = vpop.f32.mrb[0].mxu0
    %v7496 = vadd.f32 %v7456, %v7495
    %v7497 = vpop.f32.mrb[0].mxu0
    %v7498 = vpop.f32.mrb[0].mxu0
    %v7499 = vpop.f32.mrb[0].mxu0
    %7500 = vdwg.mxu0
    %7501 = vmatprep.subr.bf16.mxu0 0
    %7502 = vmatpush1.bf16.msra.mxu0 %v5557
    %7503 = vmatprep.subr.bf16.mxu0 0
    %7504 = vmatpush1.bf16.msra.mxu0 %v5558
    %7505 = vmatprep.subr.bf16.mxu0 0
    %7506 = vmatpush1.bf16.msra.mxu0 %v5559
    %7507 = vmatprep.subr.bf16.mxu0 0
    %7508 = vmatpush1.bf16.msra.mxu0 %v5560
    %7509 = vmatprep.subr.bf16.mxu0 0
    %7510 = vmatpush1.bf16.msra.mxu0 %v5561
    %7511 = vmatprep.subr.bf16.mxu0 0
    %7512 = vmatpush1.bf16.msra.mxu0 %v5562
    %7513 = vmatprep.subr.bf16.mxu0 0
    %7514 = vmatpush1.bf16.msra.mxu0 %v5563
    %7515 = vmatprep.subr.bf16.mxu0 0
    %7516 = vmatpush1.bf16.msra.mxu0 %v5564
    %7517 = vmatprep.subr.bf16.mxu0 0
    %7518 = vmatpush1.bf16.msra.mxu0 %v5565
    %7519 = vmatprep.subr.bf16.mxu0 0
    %7520 = vmatpush1.bf16.msra.mxu0 %v5566
    %7521 = vmatprep.subr.bf16.mxu0 0
    %7522 = vmatpush1.bf16.msra.mxu0 %v5567
    %7523 = vmatprep.subr.bf16.mxu0 0
    %7524 = vmatpush1.bf16.msra.mxu0 %v5568
    %7525 = vmatprep.subr.bf16.mxu0 0
    %7526 = vmatpush1.bf16.msra.mxu0 %v5569
    %7527 = vmatprep.subr.bf16.mxu0 0
    %7528 = vmatpush1.bf16.msra.mxu0 %v5570
    %7529 = vmatprep.subr.bf16.mxu0 0
    %7530 = vmatpush1.bf16.msra.mxu0 %v5571
    %7531 = vmatprep.subr.bf16.mxu0 0
    %7532 = vmatpush1.bf16.msra.mxu0 %v5572
    %7533 = vmatprep.mubr.bf16.mxu0 %v609
    %7534 = vmatmul.mubr.bf16.gmra.mrb[0].mxu0 %v608
    %v7535 = vpop.f32.mrb[0].mxu0
    %v7536 = vadd.f32 %v7496, %v7535
    %v7537 = vpop.f32.mrb[0].mxu0
    %v7538 = vpop.f32.mrb[0].mxu0
    %v7539 = vpop.f32.mrb[0].mxu0
    %7540 = vdwg.mxu0
    %7541 = vmatprep.subr.bf16.mxu0 0
    %7542 = vmatpush1.bf16.msra.mxu0 %v5573
    %7543 = vmatprep.subr.bf16.mxu0 0
    %7544 = vmatpush1.bf16.msra.mxu0 %v5574
    %7545 = vmatprep.subr.bf16.mxu0 0
    %7546 = vmatpush1.bf16.msra.mxu0 %v5575
    %7547 = vmatprep.subr.bf16.mxu0 0
    %7548 = vmatpush1.bf16.msra.mxu0 %v5576
    %7549 = vmatprep.subr.bf16.mxu0 0
    %7550 = vmatpush1.bf16.msra.mxu0 %v5577
    %7551 = vmatprep.subr.bf16.mxu0 0
    %7552 = vmatpush1.bf16.msra.mxu0 %v5578
    %7553 = vmatprep.subr.bf16.mxu0 0
    %7554 = vmatpush1.bf16.msra.mxu0 %v5579
    %7555 = vmatprep.subr.bf16.mxu0 0
    %7556 = vmatpush1.bf16.msra.mxu0 %v5580
    %7557 = vmatprep.subr.bf16.mxu0 0
    %7558 = vmatpush1.bf16.msra.mxu0 %v5581
    %7559 = vmatprep.subr.bf16.mxu0 0
    %7560 = vmatpush1.bf16.msra.mxu0 %v5582
    %7561 = vmatprep.subr.bf16.mxu0 0
    %7562 = vmatpush1.bf16.msra.mxu0 %v5583
    %7563 = vmatprep.subr.bf16.mxu0 0
    %7564 = vmatpush1.bf16.msra.mxu0 %v5584
    %7565 = vmatprep.subr.bf16.mxu0 0
    %7566 = vmatpush1.bf16.msra.mxu0 %v5585
    %7567 = vmatprep.subr.bf16.mxu0 0
    %7568 = vmatpush1.bf16.msra.mxu0 %v5586
    %7569 = vmatprep.subr.bf16.mxu0 0
    %7570 = vmatpush1.bf16.msra.mxu0 %v5587
    %7571 = vmatprep.subr.bf16.mxu0 0
    %7572 = vmatpush1.bf16.msra.mxu0 %v5588
    %7573 = vmatprep.mubr.bf16.mxu0 %v611
    %7574 = vmatmul.mubr.bf16.gmra.mrb[0].mxu0 %v610
    %v7575 = vpop.f32.mrb[0].mxu0
    %v7576 = vadd.f32 %v7536, %v7575
    %v7577 = vpop.f32.mrb[0].mxu0
    %v7578 = vpop.f32.mrb[0].mxu0
    %v7579 = vpop.f32.mrb[0].mxu0
    %7580 = vdwg.mxu0
    %7581 = vmatprep.subr.bf16.mxu0 0
    %7582 = vmatpush1.bf16.msra.mxu0 %v5589
    %7583 = vmatprep.subr.bf16.mxu0 0
    %7584 = vmatpush1.bf16.msra.mxu0 %v5590
    %7585 = vmatprep.subr.bf16.mxu0 0
    %7586 = vmatpush1.bf16.msra.mxu0 %v5591
    %7587 = vmatprep.subr.bf16.mxu0 0
    %7588 = vmatpush1.bf16.msra.mxu0 %v5592
    %7589 = vmatprep.subr.bf16.mxu0 0
    %7590 = vmatpush1.bf16.msra.mxu0 %v5593
    %7591 = vmatprep.subr.bf16.mxu0 0
    %7592 = vmatpush1.bf16.msra.mxu0 %v5594
    %7593 = vmatprep.subr.bf16.mxu0 0
    %7594 = vmatpush1.bf16.msra.mxu0 %v5595
    %7595 = vmatprep.subr.bf16.mxu0 0
    %7596 = vmatpush1.bf16.msra.mxu0 %v5596
    %7597 = vmatprep.subr.bf16.mxu0 0
    %7598 = vmatpush1.bf16.msra.mxu0 %v5597
    %7599 = vmatprep.subr.bf16.mxu0 0
    %7600 = vmatpush1.bf16.msra.mxu0 %v5598
    %7601 = vmatprep.subr.bf16.mxu0 0
    %7602 = vmatpush1.bf16.msra.mxu0 %v5599
    %7603 = vmatprep.subr.bf16.mxu0 0
    %7604 = vmatpush1.bf16.msra.mxu0 %v5600
    %7605 = vmatprep.subr.bf16.mxu0 0
    %7606 = vmatpush1.bf16.msra.mxu0 %v5601
    %7607 = vmatprep.subr.bf16.mxu0 0
    %7608 = vmatpush1.bf16.msra.mxu0 %v5602
    %7609 = vmatprep.subr.bf16.mxu0 0
    %7610 = vmatpush1.bf16.msra.mxu0 %v5603
    %7611 = vmatprep.subr.bf16.mxu0 0
    %7612 = vmatpush1.bf16.msra.mxu0 %v5604
    %7613 = vmatprep.mubr.bf16.mxu0 %v613
    %7614 = vmatmul.mubr.bf16.gmra.mrb[0].mxu0 %v612
    %v7615 = vpop.f32.mrb[0].mxu0
    %v7616 = vadd.f32 %v7576, %v7615
    %v7617 = vpop.f32.mrb[0].mxu0
    %v7618 = vpop.f32.mrb[0].mxu0
    %v7619 = vpop.f32.mrb[0].mxu0
    %7620 = vdwg.mxu0
    %7621 = vmatprep.subr.bf16.mxu0 0
    %7622 = vmatpush1.bf16.msra.mxu0 %v5605
    %7623 = vmatprep.subr.bf16.mxu0 0
    %7624 = vmatpush1.bf16.msra.mxu0 %v5606
    %7625 = vmatprep.subr.bf16.mxu0 0
    %7626 = vmatpush1.bf16.msra.mxu0 %v5607
    %7627 = vmatprep.subr.bf16.mxu0 0
    %7628 = vmatpush1.bf16.msra.mxu0 %v5608
    %7629 = vmatprep.subr.bf16.mxu0 0
    %7630 = vmatpush1.bf16.msra.mxu0 %v5609
    %7631 = vmatprep.subr.bf16.mxu0 0
    %7632 = vmatpush1.bf16.msra.mxu0 %v5610
    %7633 = vmatprep.subr.bf16.mxu0 0
    %7634 = vmatpush1.bf16.msra.mxu0 %v5611
    %7635 = vmatprep.subr.bf16.mxu0 0
    %7636 = vmatpush1.bf16.msra.mxu0 %v5612
    %7637 = vmatprep.subr.bf16.mxu0 0
    %7638 = vmatpush1.bf16.msra.mxu0 %v5613
    %7639 = vmatprep.subr.bf16.mxu0 0
    %7640 = vmatpush1.bf16.msra.mxu0 %v5614
    %7641 = vmatprep.subr.bf16.mxu0 0
    %7642 = vmatpush1.bf16.msra.mxu0 %v5615
    %7643 = vmatprep.subr.bf16.mxu0 0
    %7644 = vmatpush1.bf16.msra.mxu0 %v5616
    %7645 = vmatprep.subr.bf16.mxu0 0
    %7646 = vmatpush1.bf16.msra.mxu0 %v5617
    %7647 = vmatprep.subr.bf16.mxu0 0
    %7648 = vmatpush1.bf16.msra.mxu0 %v5618
    %7649 = vmatprep.subr.bf16.mxu0 0
    %7650 = vmatpush1.bf16.msra.mxu0 %v5619
    %7651 = vmatprep.subr.bf16.mxu0 0
    %7652 = vmatpush1.bf16.msra.mxu0 %v5620
    %7653 = vmatprep.mubr.bf16.mxu0 %v615
    %7654 = vmatmul.mubr.bf16.gmra.mrb[0].mxu0 %v614
    %v7655 = vpop.f32.mrb[0].mxu0
    %v7656 = vadd.f32 %v7616, %v7655
    %v7657 = vpop.f32.mrb[0].mxu0
    %v7658 = vpop.f32.mrb[0].mxu0
    %v7659 = vpop.f32.mrb[0].mxu0
    %7660 = vdwg.mxu0
    %7661 = vmatprep.subr.bf16.mxu0 0
    %7662 = vmatpush1.bf16.msra.mxu0 %v5621
    %7663 = vmatprep.subr.bf16.mxu0 0
    %7664 = vmatpush1.bf16.msra.mxu0 %v5622
    %7665 = vmatprep.subr.bf16.mxu0 0
    %7666 = vmatpush1.bf16.msra.mxu0 %v5623
    %7667 = vmatprep.subr.bf16.mxu0 0
    %7668 = vmatpush1.bf16.msra.mxu0 %v5624
    %7669 = vmatprep.subr.bf16.mxu0 0
    %7670 = vmatpush1.bf16.msra.mxu0 %v5625
    %7671 = vmatprep.subr.bf16.mxu0 0
    %7672 = vmatpush1.bf16.msra.mxu0 %v5626
    %7673 = vmatprep.subr.bf16.mxu0 0
    %7674 = vmatpush1.bf16.msra.mxu0 %v5627
    %7675 = vmatprep.subr.bf16.mxu0 0
    %7676 = vmatpush1.bf16.msra.mxu0 %v5628
    %7677 = vmatprep.subr.bf16.mxu0 0
    %7678 = vmatpush1.bf16.msra.mxu0 %v5629
    %7679 = vmatprep.subr.bf16.mxu0 0
    %7680 = vmatpush1.bf16.msra.mxu0 %v5630
    %7681 = vmatprep.subr.bf16.mxu0 0
    %7682 = vmatpush1.bf16.msra.mxu0 %v5631
    %7683 = vmatprep.subr.bf16.mxu0 0
    %7684 = vmatpush1.bf16.msra.mxu0 %v5632
    %7685 = vmatprep.subr.bf16.mxu0 0
    %7686 = vmatpush1.bf16.msra.mxu0 %v5633
    %7687 = vmatprep.subr.bf16.mxu0 0
    %7688 = vmatpush1.bf16.msra.mxu0 %v5634
    %7689 = vmatprep.subr.bf16.mxu0 0
    %7690 = vmatpush1.bf16.msra.mxu0 %v5635
    %7691 = vmatprep.subr.bf16.mxu0 0
    %7692 = vmatpush1.bf16.msra.mxu0 %v5636
    %7693 = vmatprep.mubr.bf16.mxu0 %v617
    %7694 = vmatmul.mubr.bf16.gmra.mrb[0].mxu0 %v616
    %v7695 = vpop.f32.mrb[0].mxu0
    %v7696 = vadd.f32 %v7656, %v7695
    %v7697 = vpop.f32.mrb[0].mxu0
    %v7698 = vpop.f32.mrb[0].mxu0
    %v7699 = vpop.f32.mrb[0].mxu0
    %7700 = vdwg.mxu0
    %7701 = vmatprep.subr.bf16.mxu0 0
    %7702 = vmatpush1.bf16.msra.mxu0 %v5637
    %7703 = vmatprep.subr.bf16.mxu0 0
    %7704 = vmatpush1.bf16.msra.mxu0 %v5638
    %7705 = vmatprep.subr.bf16.mxu0 0
    %7706 = vmatpush1.bf16.msra.mxu0 %v5639
    %7707 = vmatprep.subr.bf16.mxu0 0
    %7708 = vmatpush1.bf16.msra.mxu0 %v5640
    %7709 = vmatprep.subr.bf16.mxu0 0
    %7710 = vmatpush1.bf16.msra.mxu0 %v5641
    %7711 = vmatprep.subr.bf16.mxu0 0
    %7712 = vmatpush1.bf16.msra.mxu0 %v5642
    %7713 = vmatprep.subr.bf16.mxu0 0
    %7714 = vmatpush1.bf16.msra.mxu0 %v5643
    %7715 = vmatprep.subr.bf16.mxu0 0
    %7716 = vmatpush1.bf16.msra.mxu0 %v5644
    %7717 = vmatprep.subr.bf16.mxu0 0
    %7718 = vmatpush1.bf16.msra.mxu0 %v5645
    %7719 = vmatprep.subr.bf16.mxu0 0
    %7720 = vmatpush1.bf16.msra.mxu0 %v5646
    %7721 = vmatprep.subr.bf16.mxu0 0
    %7722 = vmatpush1.bf16.msra.mxu0 %v5647
    %7723 = vmatprep.subr.bf16.mxu0 0
    %7724 = vmatpush1.bf16.msra.mxu0 %v5648
    %7725 = vmatprep.subr.bf16.mxu0 0
    %7726 = vmatpush1.bf16.msra.mxu0 %v5649
    %7727 = vmatprep.subr.bf16.mxu0 0
    %7728 = vmatpush1.bf16.msra.mxu0 %v5650
    %7729 = vmatprep.subr.bf16.mxu0 0
    %7730 = vmatpush1.bf16.msra.mxu0 %v5651
    %7731 = vmatprep.subr.bf16.mxu0 0
    %7732 = vmatpush1.bf16.msra.mxu0 %v5652
    %7733 = vmatprep.mubr.bf16.mxu0 %v619
    %7734 = vmatmul.mubr.bf16.gmra.mrb[0].mxu0 %v618
    %v7735 = vpop.f32.mrb[0].mxu0
    %v7736 = vadd.f32 %v7696, %v7735
    %v7737 = vpop.f32.mrb[0].mxu0
    %v7738 = vpop.f32.mrb[0].mxu0
    %v7739 = vpop.f32.mrb[0].mxu0
    %7740 = vdwg.mxu0
    %7741 = vmatprep.subr.bf16.mxu0 0
    %7742 = vmatpush1.bf16.msra.mxu0 %v5653
    %7743 = vmatprep.subr.bf16.mxu0 0
    %7744 = vmatpush1.bf16.msra.mxu0 %v5654
    %7745 = vmatprep.subr.bf16.mxu0 0
    %7746 = vmatpush1.bf16.msra.mxu0 %v5655
    %7747 = vmatprep.subr.bf16.mxu0 0
    %7748 = vmatpush1.bf16.msra.mxu0 %v5656
    %7749 = vmatprep.subr.bf16.mxu0 0
    %7750 = vmatpush1.bf16.msra.mxu0 %v5657
    %7751 = vmatprep.subr.bf16.mxu0 0
    %7752 = vmatpush1.bf16.msra.mxu0 %v5658
    %7753 = vmatprep.subr.bf16.mxu0 0
    %7754 = vmatpush1.bf16.msra.mxu0 %v5659
    %7755 = vmatprep.subr.bf16.mxu0 0
    %7756 = vmatpush1.bf16.msra.mxu0 %v5660
    %7757 = vmatprep.subr.bf16.mxu0 0
    %7758 = vmatpush1.bf16.msra.mxu0 %v5661
    %7759 = vmatprep.subr.bf16.mxu0 0
    %7760 = vmatpush1.bf16.msra.mxu0 %v5662
    %7761 = vmatprep.subr.bf16.mxu0 0
    %7762 = vmatpush1.bf16.msra.mxu0 %v5663
    %7763 = vmatprep.subr.bf16.mxu0 0
    %7764 = vmatpush1.bf16.msra.mxu0 %v5664
    %7765 = vmatprep.subr.bf16.mxu0 0
    %7766 = vmatpush1.bf16.msra.mxu0 %v5665
    %7767 = vmatprep.subr.bf16.mxu0 0
    %7768 = vmatpush1.bf16.msra.mxu0 %v5666
    %7769 = vmatprep.subr.bf16.mxu0 0
    %7770 = vmatpush1.bf16.msra.mxu0 %v5667
    %7771 = vmatprep.subr.bf16.mxu0 0
    %7772 = vmatpush1.bf16.msra.mxu0 %v5668
    %7773 = vmatprep.mubr.bf16.mxu0 %v621
    %7774 = vmatmul.mubr.bf16.gmra.mrb[0].mxu0 %v620
    %v7775 = vpop.f32.mrb[0].mxu0
    %v7776 = vadd.f32 %v7736, %v7775
    %v7777 = vpop.f32.mrb[0].mxu0
    %v7778 = vpop.f32.mrb[0].mxu0
    %v7779 = vpop.f32.mrb[0].mxu0
    %7780 = vdwg.mxu0
    %7781 = vmatprep.subr.bf16.mxu0 0
    %7782 = vmatpush1.bf16.msra.mxu0 %v5669
    %7783 = vmatprep.subr.bf16.mxu0 0
    %7784 = vmatpush1.bf16.msra.mxu0 %v5670
    %7785 = vmatprep.subr.bf16.mxu0 0
    %7786 = vmatpush1.bf16.msra.mxu0 %v5671
    %7787 = vmatprep.subr.bf16.mxu0 0
    %7788 = vmatpush1.bf16.msra.mxu0 %v5672
    %7789 = vmatprep.subr.bf16.mxu0 0
    %7790 = vmatpush1.bf16.msra.mxu0 %v5673
    %7791 = vmatprep.subr.bf16.mxu0 0
    %7792 = vmatpush1.bf16.msra.mxu0 %v5674
    %7793 = vmatprep.subr.bf16.mxu0 0
    %7794 = vmatpush1.bf16.msra.mxu0 %v5675
    %7795 = vmatprep.subr.bf16.mxu0 0
    %7796 = vmatpush1.bf16.msra.mxu0 %v5676
    %7797 = vmatprep.subr.bf16.mxu0 0
    %7798 = vmatpush1.bf16.msra.mxu0 %v5677
    %7799 = vmatprep.subr.bf16.mxu0 0
    %7800 = vmatpush1.bf16.msra.mxu0 %v5678
    %7801 = vmatprep.subr.bf16.mxu0 0
    %7802 = vmatpush1.bf16.msra.mxu0 %v5679
    %7803 = vmatprep.subr.bf16.mxu0 0
    %7804 = vmatpush1.bf16.msra.mxu0 %v5680
    %7805 = vmatprep.subr.bf16.mxu0 0
    %7806 = vmatpush1.bf16.msra.mxu0 %v5681
    %7807 = vmatprep.subr.bf16.mxu0 0
    %7808 = vmatpush1.bf16.msra.mxu0 %v5682
    %7809 = vmatprep.subr.bf16.mxu0 0
    %7810 = vmatpush1.bf16.msra.mxu0 %v5683
    %7811 = vmatprep.subr.bf16.mxu0 0
    %7812 = vmatpush1.bf16.msra.mxu0 %v5684
    %7813 = vmatprep.mubr.bf16.mxu0 %v623
    %7814 = vmatmul.mubr.bf16.gmra.mrb[0].mxu0 %v622
    %v7815 = vpop.f32.mrb[0].mxu0
    %v7816 = vadd.f32 %v7776, %v7815
    %v7817 = vpop.f32.mrb[0].mxu0
    %v7818 = vpop.f32.mrb[0].mxu0
    %v7819 = vpop.f32.mrb[0].mxu0
    %7820 = vdwg.mxu0
    %7821 = vmatprep.subr.bf16.mxu0 0
    %7822 = vmatpush1.bf16.msra.mxu0 %v5685
    %7823 = vmatprep.subr.bf16.mxu0 0
    %7824 = vmatpush1.bf16.msra.mxu0 %v5686
    %7825 = vmatprep.subr.bf16.mxu0 0
    %7826 = vmatpush1.bf16.msra.mxu0 %v5687
    %7827 = vmatprep.subr.bf16.mxu0 0
    %7828 = vmatpush1.bf16.msra.mxu0 %v5688
    %7829 = vmatprep.subr.bf16.mxu0 0
    %7830 = vmatpush1.bf16.msra.mxu0 %v5689
    %7831 = vmatprep.subr.bf16.mxu0 0
    %7832 = vmatpush1.bf16.msra.mxu0 %v5690
    %7833 = vmatprep.subr.bf16.mxu0 0
    %7834 = vmatpush1.bf16.msra.mxu0 %v5691
    %7835 = vmatprep.subr.bf16.mxu0 0
    %7836 = vmatpush1.bf16.msra.mxu0 %v5692
    %7837 = vmatprep.subr.bf16.mxu0 0
    %7838 = vmatpush1.bf16.msra.mxu0 %v5693
    %7839 = vmatprep.subr.bf16.mxu0 0
    %7840 = vmatpush1.bf16.msra.mxu0 %v5694
    %7841 = vmatprep.subr.bf16.mxu0 0
    %7842 = vmatpush1.bf16.msra.mxu0 %v5695
    %7843 = vmatprep.subr.bf16.mxu0 0
    %7844 = vmatpush1.bf16.msra.mxu0 %v5696
    %7845 = vmatprep.subr.bf16.mxu0 0
    %7846 = vmatpush1.bf16.msra.mxu0 %v5697
    %7847 = vmatprep.subr.bf16.mxu0 0
    %7848 = vmatpush1.bf16.msra.mxu0 %v5698
    %7849 = vmatprep.subr.bf16.mxu0 0
    %7850 = vmatpush1.bf16.msra.mxu0 %v5699
    %7851 = vmatprep.subr.bf16.mxu0 0
    %7852 = vmatpush1.bf16.msra.mxu0 %v5700
    %7853 = vmatprep.mubr.bf16.mxu0 %v625
    %7854 = vmatmul.mubr.bf16.gmra.mrb[0].mxu0 %v624
    %v7855 = vpop.f32.mrb[0].mxu0
    %v7856 = vadd.f32 %v7816, %v7855
    %v7857 = vpop.f32.mrb[0].mxu0
    %v7858 = vpop.f32.mrb[0].mxu0
    %v7859 = vpop.f32.mrb[0].mxu0
    %7860 = vdwg.mxu0
    %7861 = vmatprep.subr.bf16.mxu0 0
    %7862 = vmatpush1.bf16.msra.mxu0 %v5701
    %7863 = vmatprep.subr.bf16.mxu0 0
    %7864 = vmatpush1.bf16.msra.mxu0 %v5702
    %7865 = vmatprep.subr.bf16.mxu0 0
    %7866 = vmatpush1.bf16.msra.mxu0 %v5703
    %7867 = vmatprep.subr.bf16.mxu0 0
    %7868 = vmatpush1.bf16.msra.mxu0 %v5704
    %7869 = vmatprep.subr.bf16.mxu0 0
    %7870 = vmatpush1.bf16.msra.mxu0 %v5705
    %7871 = vmatprep.subr.bf16.mxu0 0
    %7872 = vmatpush1.bf16.msra.mxu0 %v5706
    %7873 = vmatprep.subr.bf16.mxu0 0
    %7874 = vmatpush1.bf16.msra.mxu0 %v5707
    %7875 = vmatprep.subr.bf16.mxu0 0
    %7876 = vmatpush1.bf16.msra.mxu0 %v5708
    %7877 = vmatprep.subr.bf16.mxu0 0
    %7878 = vmatpush1.bf16.msra.mxu0 %v5709
    %7879 = vmatprep.subr.bf16.mxu0 0
    %7880 = vmatpush1.bf16.msra.mxu0 %v5710
    %7881 = vmatprep.subr.bf16.mxu0 0
    %7882 = vmatpush1.bf16.msra.mxu0 %v5711
    %7883 = vmatprep.subr.bf16.mxu0 0
    %7884 = vmatpush1.bf16.msra.mxu0 %v5712
    %7885 = vmatprep.subr.bf16.mxu0 0
    %7886 = vmatpush1.bf16.msra.mxu0 %v5713
    %7887 = vmatprep.subr.bf16.mxu0 0
    %7888 = vmatpush1.bf16.msra.mxu0 %v5714
    %7889 = vmatprep.subr.bf16.mxu0 0
    %7890 = vmatpush1.bf16.msra.mxu0 %v5715
    %7891 = vmatprep.subr.bf16.mxu0 0
    %7892 = vmatpush1.bf16.msra.mxu0 %v5716
    %7893 = vmatprep.mubr.bf16.mxu0 %v627
    %7894 = vmatmul.mubr.bf16.gmra.mrb[0].mxu0 %v626
    %v7895 = vpop.f32.mrb[0].mxu0
    %v7896 = vadd.f32 %v7856, %v7895
    %v7897 = vpop.f32.mrb[0].mxu0
    %v7898 = vpop.f32.mrb[0].mxu0
    %v7899 = vpop.f32.mrb[0].mxu0
    %7900 = vdwg.mxu0
    %7901 = vmatprep.subr.bf16.mxu0 0
    %7902 = vmatpush1.bf16.msra.mxu0 %v5717
    %7903 = vmatprep.subr.bf16.mxu0 0
    %7904 = vmatpush1.bf16.msra.mxu0 %v5718
    %7905 = vmatprep.subr.bf16.mxu0 0
    %7906 = vmatpush1.bf16.msra.mxu0 %v5719
    %7907 = vmatprep.subr.bf16.mxu0 0
    %7908 = vmatpush1.bf16.msra.mxu0 %v5720
    %7909 = vmatprep.subr.bf16.mxu0 0
    %7910 = vmatpush1.bf16.msra.mxu0 %v5721
    %7911 = vmatprep.subr.bf16.mxu0 0
    %7912 = vmatpush1.bf16.msra.mxu0 %v5722
    %7913 = vmatprep.subr.bf16.mxu0 0
    %7914 = vmatpush1.bf16.msra.mxu0 %v5723
    %7915 = vmatprep.subr.bf16.mxu0 0
    %7916 = vmatpush1.bf16.msra.mxu0 %v5724
    %7917 = vmatprep.subr.bf16.mxu0 0
    %7918 = vmatpush1.bf16.msra.mxu0 %v5725
    %7919 = vmatprep.subr.bf16.mxu0 0
    %7920 = vmatpush1.bf16.msra.mxu0 %v5726
    %7921 = vmatprep.subr.bf16.mxu0 0
    %7922 = vmatpush1.bf16.msra.mxu0 %v5727
    %7923 = vmatprep.subr.bf16.mxu0 0
    %7924 = vmatpush1.bf16.msra.mxu0 %v5728
    %7925 = vmatprep.subr.bf16.mxu0 0
    %7926 = vmatpush1.bf16.msra.mxu0 %v5729
    %7927 = vmatprep.subr.bf16.mxu0 0
    %7928 = vmatpush1.bf16.msra.mxu0 %v5730
    %7929 = vmatprep.subr.bf16.mxu0 0
    %7930 = vmatpush1.bf16.msra.mxu0 %v5731
    %7931 = vmatprep.subr.bf16.mxu0 0
    %7932 = vmatpush1.bf16.msra.mxu0 %v5732
    %7933 = vmatprep.mubr.bf16.mxu0 %v629
    %7934 = vmatmul.mubr.bf16.gmra.mrb[0].mxu0 %v628
    %v7935 = vpop.f32.mrb[0].mxu0
    %v7936 = vadd.f32 %v7896, %v7935
    %v7937 = vpop.f32.mrb[0].mxu0
    %v7938 = vpop.f32.mrb[0].mxu0
    %v7939 = vpop.f32.mrb[0].mxu0
    %7940 = vdwg.mxu0
    %7941 = vmatprep.subr.bf16.mxu0 0
    %7942 = vmatpush1.bf16.msra.mxu0 %v5733
    %7943 = vmatprep.subr.bf16.mxu0 0
    %7944 = vmatpush1.bf16.msra.mxu0 %v5734
    %7945 = vmatprep.subr.bf16.mxu0 0
    %7946 = vmatpush1.bf16.msra.mxu0 %v5735
    %7947 = vmatprep.subr.bf16.mxu0 0
    %7948 = vmatpush1.bf16.msra.mxu0 %v5736
    %7949 = vmatprep.subr.bf16.mxu0 0
    %7950 = vmatpush1.bf16.msra.mxu0 %v5737
    %7951 = vmatprep.subr.bf16.mxu0 0
    %7952 = vmatpush1.bf16.msra.mxu0 %v5738
    %7953 = vmatprep.subr.bf16.mxu0 0
    %7954 = vmatpush1.bf16.msra.mxu0 %v5739
    %7955 = vmatprep.subr.bf16.mxu0 0
    %7956 = vmatpush1.bf16.msra.mxu0 %v5740
    %7957 = vmatprep.subr.bf16.mxu0 0
    %7958 = vmatpush1.bf16.msra.mxu0 %v5741
    %7959 = vmatprep.subr.bf16.mxu0 0
    %7960 = vmatpush1.bf16.msra.mxu0 %v5742
    %7961 = vmatprep.subr.bf16.mxu0 0
    %7962 = vmatpush1.bf16.msra.mxu0 %v5743
    %7963 = vmatprep.subr.bf16.mxu0 0
    %7964 = vmatpush1.bf16.msra.mxu0 %v5744
    %7965 = vmatprep.subr.bf16.mxu0 0
    %7966 = vmatpush1.bf16.msra.mxu0 %v5745
    %7967 = vmatprep.subr.bf16.mxu0 0
    %7968 = vmatpush1.bf16.msra.mxu0 %v5746
    %7969 = vmatprep.subr.bf16.mxu0 0
    %7970 = vmatpush1.bf16.msra.mxu0 %v5747
    %7971 = vmatprep.subr.bf16.mxu0 0
    %7972 = vmatpush1.bf16.msra.mxu0 %v5748
    %7973 = vmatprep.mubr.bf16.mxu0 %v631
    %7974 = vmatmul.mubr.bf16.gmra.mrb[0].mxu0 %v630
    %v7975 = vpop.f32.mrb[0].mxu0
    %v7976 = vadd.f32 %v7936, %v7975
    %v7977 = vpop.f32.mrb[0].mxu0
    %v7978 = vpop.f32.mrb[0].mxu0
    %v7979 = vpop.f32.mrb[0].mxu0
    %7980 = vdwg.mxu0
    %7981 = vmatprep.subr.bf16.mxu0 0
    %7982 = vmatpush1.bf16.msra.mxu0 %v5749
    %7983 = vmatprep.subr.bf16.mxu0 0
    %7984 = vmatpush1.bf16.msra.mxu0 %v5750
    %7985 = vmatprep.subr.bf16.mxu0 0
    %7986 = vmatpush1.bf16.msra.mxu0 %v5751
    %7987 = vmatprep.subr.bf16.mxu0 0
    %7988 = vmatpush1.bf16.msra.mxu0 %v5752
    %7989 = vmatprep.subr.bf16.mxu0 0
    %7990 = vmatpush1.bf16.msra.mxu0 %v5753
    %7991 = vmatprep.subr.bf16.mxu0 0
    %7992 = vmatpush1.bf16.msra.mxu0 %v5754
    %7993 = vmatprep.subr.bf16.mxu0 0
    %7994 = vmatpush1.bf16.msra.mxu0 %v5755
    %7995 = vmatprep.subr.bf16.mxu0 0
    %7996 = vmatpush1.bf16.msra.mxu0 %v5756
    %7997 = vmatprep.subr.bf16.mxu0 0
    %7998 = vmatpush1.bf16.msra.mxu0 %v5757
    %7999 = vmatprep.subr.bf16.mxu0 0
    %8000 = vmatpush1.bf16.msra.mxu0 %v5758
    %8001 = vmatprep.subr.bf16.mxu0 0
    %8002 = vmatpush1.bf16.msra.mxu0 %v5759
    %8003 = vmatprep.subr.bf16.mxu0 0
    %8004 = vmatpush1.bf16.msra.mxu0 %v5760
    %8005 = vmatprep.subr.bf16.mxu0 0
    %8006 = vmatpush1.bf16.msra.mxu0 %v5761
    %8007 = vmatprep.subr.bf16.mxu0 0
    %8008 = vmatpush1.bf16.msra.mxu0 %v5762
    %8009 = vmatprep.subr.bf16.mxu0 0
    %8010 = vmatpush1.bf16.msra.mxu0 %v5763
    %8011 = vmatprep.subr.bf16.mxu0 0
    %8012 = vmatpush1.bf16.msra.mxu0 %v5764
    %8013 = vmatprep.mubr.bf16.mxu0 %v633
    %8014 = vmatmul.mubr.bf16.gmra.mrb[0].mxu0 %v632
    %v8015 = vpop.f32.mrb[0].mxu0
    %v8016 = vadd.f32 %v7976, %v8015
    %v8017 = vpop.f32.mrb[0].mxu0
    %v8018 = vpop.f32.mrb[0].mxu0
    %v8019 = vpop.f32.mrb[0].mxu0
    %8020 = vdwg.mxu0
    %8021 = vmatprep.subr.bf16.mxu0 0
    %8022 = vmatpush1.bf16.msra.mxu0 %v5765
    %8023 = vmatprep.subr.bf16.mxu0 0
    %8024 = vmatpush1.bf16.msra.mxu0 %v5766
    %8025 = vmatprep.subr.bf16.mxu0 0
    %8026 = vmatpush1.bf16.msra.mxu0 %v5767
    %8027 = vmatprep.subr.bf16.mxu0 0
    %8028 = vmatpush1.bf16.msra.mxu0 %v5768
    %8029 = vmatprep.subr.bf16.mxu0 0
    %8030 = vmatpush1.bf16.msra.mxu0 %v5769
    %8031 = vmatprep.subr.bf16.mxu0 0
    %8032 = vmatpush1.bf16.msra.mxu0 %v5770
    %8033 = vmatprep.subr.bf16.mxu0 0
    %8034 = vmatpush1.bf16.msra.mxu0 %v5771
    %8035 = vmatprep.subr.bf16.mxu0 0
    %8036 = vmatpush1.bf16.msra.mxu0 %v5772
    %8037 = vmatprep.subr.bf16.mxu0 0
    %8038 = vmatpush1.bf16.msra.mxu0 %v5773
    %8039 = vmatprep.subr.bf16.mxu0 0
    %8040 = vmatpush1.bf16.msra.mxu0 %v5774
    %8041 = vmatprep.subr.bf16.mxu0 0
    %8042 = vmatpush1.bf16.msra.mxu0 %v5775
    %8043 = vmatprep.subr.bf16.mxu0 0
    %8044 = vmatpush1.bf16.msra.mxu0 %v5776
    %8045 = vmatprep.subr.bf16.mxu0 0
    %8046 = vmatpush1.bf16.msra.mxu0 %v5777
    %8047 = vmatprep.subr.bf16.mxu0 0
    %8048 = vmatpush1.bf16.msra.mxu0 %v5778
    %8049 = vmatprep.subr.bf16.mxu0 0
    %8050 = vmatpush1.bf16.msra.mxu0 %v5779
    %8051 = vmatprep.subr.bf16.mxu0 0
    %8052 = vmatpush1.bf16.msra.mxu0 %v5780
    %8053 = vmatprep.mubr.bf16.mxu0 %v635
    %8054 = vmatmul.mubr.bf16.gmra.mrb[0].mxu0 %v634
    %v8055 = vpop.f32.mrb[0].mxu0
    %v8056 = vadd.f32 %v8016, %v8055
    %v8057 = vpop.f32.mrb[0].mxu0
    %v8058 = vpop.f32.mrb[0].mxu0
    %v8059 = vpop.f32.mrb[0].mxu0
    %8060 = vdwg.mxu0
    %8061 = vmatprep.subr.bf16.mxu0 0
    %8062 = vmatpush1.bf16.msra.mxu0 %v5781
    %8063 = vmatprep.subr.bf16.mxu0 0
    %8064 = vmatpush1.bf16.msra.mxu0 %v5782
    %8065 = vmatprep.subr.bf16.mxu0 0
    %8066 = vmatpush1.bf16.msra.mxu0 %v5783
    %8067 = vmatprep.subr.bf16.mxu0 0
    %8068 = vmatpush1.bf16.msra.mxu0 %v5784
    %8069 = vmatprep.subr.bf16.mxu0 0
    %8070 = vmatpush1.bf16.msra.mxu0 %v5785
    %8071 = vmatprep.subr.bf16.mxu0 0
    %8072 = vmatpush1.bf16.msra.mxu0 %v5786
    %8073 = vmatprep.subr.bf16.mxu0 0
    %8074 = vmatpush1.bf16.msra.mxu0 %v5787
    %8075 = vmatprep.subr.bf16.mxu0 0
    %8076 = vmatpush1.bf16.msra.mxu0 %v5788
    %8077 = vmatprep.subr.bf16.mxu0 0
    %8078 = vmatpush1.bf16.msra.mxu0 %v5789
    %8079 = vmatprep.subr.bf16.mxu0 0
    %8080 = vmatpush1.bf16.msra.mxu0 %v5790
    %8081 = vmatprep.subr.bf16.mxu0 0
    %8082 = vmatpush1.bf16.msra.mxu0 %v5791
    %8083 = vmatprep.subr.bf16.mxu0 0
    %8084 = vmatpush1.bf16.msra.mxu0 %v5792
    %8085 = vmatprep.subr.bf16.mxu0 0
    %8086 = vmatpush1.bf16.msra.mxu0 %v5793
    %8087 = vmatprep.subr.bf16.mxu0 0
    %8088 = vmatpush1.bf16.msra.mxu0 %v5794
    %8089 = vmatprep.subr.bf16.mxu0 0
    %8090 = vmatpush1.bf16.msra.mxu0 %v5795
    %8091 = vmatprep.subr.bf16.mxu0 0
    %8092 = vmatpush1.bf16.msra.mxu0 %v5796
    %8093 = vmatprep.mubr.bf16.mxu0 %v637
    %8094 = vmatmul.mubr.bf16.gmra.mrb[0].mxu0 %v636
    %v8095 = vpop.f32.mrb[0].mxu0
    %v8096 = vadd.f32 %v8056, %v8095
    %v8097 = vpop.f32.mrb[0].mxu0
    %v8098 = vpop.f32.mrb[0].mxu0
    %v8099 = vpop.f32.mrb[0].mxu0
    %8100 = vdwg.mxu0
    %8101 = vmatprep.subr.bf16.mxu0 0
    %8102 = vmatpush1.bf16.msra.mxu0 %v5797
    %8103 = vmatprep.subr.bf16.mxu0 0
    %8104 = vmatpush1.bf16.msra.mxu0 %v5798
    %8105 = vmatprep.subr.bf16.mxu0 0
    %8106 = vmatpush1.bf16.msra.mxu0 %v5799
    %8107 = vmatprep.subr.bf16.mxu0 0
    %8108 = vmatpush1.bf16.msra.mxu0 %v5800
    %8109 = vmatprep.subr.bf16.mxu0 0
    %8110 = vmatpush1.bf16.msra.mxu0 %v5801
    %8111 = vmatprep.subr.bf16.mxu0 0
    %8112 = vmatpush1.bf16.msra.mxu0 %v5802
    %8113 = vmatprep.subr.bf16.mxu0 0
    %8114 = vmatpush1.bf16.msra.mxu0 %v5803
    %8115 = vmatprep.subr.bf16.mxu0 0
    %8116 = vmatpush1.bf16.msra.mxu0 %v5804
    %8117 = vmatprep.subr.bf16.mxu0 0
    %8118 = vmatpush1.bf16.msra.mxu0 %v5805
    %8119 = vmatprep.subr.bf16.mxu0 0
    %8120 = vmatpush1.bf16.msra.mxu0 %v5806
    %8121 = vmatprep.subr.bf16.mxu0 0
    %8122 = vmatpush1.bf16.msra.mxu0 %v5807
    %8123 = vmatprep.subr.bf16.mxu0 0
    %8124 = vmatpush1.bf16.msra.mxu0 %v5808
    %8125 = vmatprep.subr.bf16.mxu0 0
    %8126 = vmatpush1.bf16.msra.mxu0 %v5809
    %8127 = vmatprep.subr.bf16.mxu0 0
    %8128 = vmatpush1.bf16.msra.mxu0 %v5810
    %8129 = vmatprep.subr.bf16.mxu0 0
    %8130 = vmatpush1.bf16.msra.mxu0 %v5811
    %8131 = vmatprep.subr.bf16.mxu0 0
    %8132 = vmatpush1.bf16.msra.mxu0 %v5812
    %8133 = vmatprep.mubr.bf16.mxu0 %v639
    %8134 = vmatmul.mubr.bf16.gmra.mrb[0].mxu0 %v638
    %v8135 = vpop.f32.mrb[0].mxu0
    %v8136 = vadd.f32 %v8096, %v8135
    %v8137 = vpop.f32.mrb[0].mxu0
    %v8138 = vpop.f32.mrb[0].mxu0
    %v8139 = vpop.f32.mrb[0].mxu0
    %8140 = vdwg.mxu0
    %8141 = vmatprep.subr.bf16.mxu0 0
    %8142 = vmatpush1.bf16.msra.mxu0 %v5813
    %8143 = vmatprep.subr.bf16.mxu0 0
    %8144 = vmatpush1.bf16.msra.mxu0 %v5814
    %8145 = vmatprep.subr.bf16.mxu0 0
    %8146 = vmatpush1.bf16.msra.mxu0 %v5815
    %8147 = vmatprep.subr.bf16.mxu0 0
    %8148 = vmatpush1.bf16.msra.mxu0 %v5816
    %8149 = vmatprep.subr.bf16.mxu0 0
    %8150 = vmatpush1.bf16.msra.mxu0 %v5817
    %8151 = vmatprep.subr.bf16.mxu0 0
    %8152 = vmatpush1.bf16.msra.mxu0 %v5818
    %8153 = vmatprep.subr.bf16.mxu0 0
    %8154 = vmatpush1.bf16.msra.mxu0 %v5819
    %8155 = vmatprep.subr.bf16.mxu0 0
    %8156 = vmatpush1.bf16.msra.mxu0 %v5820
    %8157 = vmatprep.subr.bf16.mxu0 0
    %8158 = vmatpush1.bf16.msra.mxu0 %v5821
    %8159 = vmatprep.subr.bf16.mxu0 0
    %8160 = vmatpush1.bf16.msra.mxu0 %v5822
    %8161 = vmatprep.subr.bf16.mxu0 0
    %8162 = vmatpush1.bf16.msra.mxu0 %v5823
    %8163 = vmatprep.subr.bf16.mxu0 0
    %8164 = vmatpush1.bf16.msra.mxu0 %v5824
    %8165 = vmatprep.subr.bf16.mxu0 0
    %8166 = vmatpush1.bf16.msra.mxu0 %v5825
    %8167 = vmatprep.subr.bf16.mxu0 0
    %8168 = vmatpush1.bf16.msra.mxu0 %v5826
    %8169 = vmatprep.subr.bf16.mxu0 0
    %8170 = vmatpush1.bf16.msra.mxu0 %v5827
    %8171 = vmatprep.subr.bf16.mxu0 0
    %8172 = vmatpush1.bf16.msra.mxu0 %v5828
    %8173 = vmatprep.mubr.bf16.mxu0 %v641
    %8174 = vmatmul.mubr.bf16.gmra.mrb[0].mxu0 %v640
    %v8175 = vpop.f32.mrb[0].mxu0
    %v8176 = vadd.f32 %v8136, %v8175
    %v8177 = vpop.f32.mrb[0].mxu0
    %v8178 = vpop.f32.mrb[0].mxu0
    %v8179 = vpop.f32.mrb[0].mxu0
    %8180 = vdwg.mxu0
    %8181 = vmatprep.subr.bf16.mxu0 0
    %8182 = vmatpush1.bf16.msra.mxu0 %v5829
    %8183 = vmatprep.subr.bf16.mxu0 0
    %8184 = vmatpush1.bf16.msra.mxu0 %v5830
    %8185 = vmatprep.subr.bf16.mxu0 0
    %8186 = vmatpush1.bf16.msra.mxu0 %v5831
    %8187 = vmatprep.subr.bf16.mxu0 0
    %8188 = vmatpush1.bf16.msra.mxu0 %v5832
    %8189 = vmatprep.subr.bf16.mxu0 0
    %8190 = vmatpush1.bf16.msra.mxu0 %v5833
    %8191 = vmatprep.subr.bf16.mxu0 0
    %8192 = vmatpush1.bf16.msra.mxu0 %v5834
    %8193 = vmatprep.subr.bf16.mxu0 0
    %8194 = vmatpush1.bf16.msra.mxu0 %v5835
    %8195 = vmatprep.subr.bf16.mxu0 0
    %8196 = vmatpush1.bf16.msra.mxu0 %v5836
    %8197 = vmatprep.subr.bf16.mxu0 0
    %8198 = vmatpush1.bf16.msra.mxu0 %v5837
    %8199 = vmatprep.subr.bf16.mxu0 0
    %8200 = vmatpush1.bf16.msra.mxu0 %v5838
    %8201 = vmatprep.subr.bf16.mxu0 0
    %8202 = vmatpush1.bf16.msra.mxu0 %v5839
    %8203 = vmatprep.subr.bf16.mxu0 0
    %8204 = vmatpush1.bf16.msra.mxu0 %v5840
    %8205 = vmatprep.subr.bf16.mxu0 0
    %8206 = vmatpush1.bf16.msra.mxu0 %v5841
    %8207 = vmatprep.subr.bf16.mxu0 0
    %8208 = vmatpush1.bf16.msra.mxu0 %v5842
    %8209 = vmatprep.subr.bf16.mxu0 0
    %8210 = vmatpush1.bf16.msra.mxu0 %v5843
    %8211 = vmatprep.subr.bf16.mxu0 0
    %8212 = vmatpush1.bf16.msra.mxu0 %v5844
    %8213 = vmatprep.mubr.bf16.mxu0 %v643
    %8214 = vmatmul.mubr.bf16.gmra.mrb[0].mxu0 %v642
    %v8215 = vpop.f32.mrb[0].mxu0
    %v8216 = vadd.f32 %v8176, %v8215
    %v8217 = vpop.f32.mrb[0].mxu0
    %v8218 = vpop.f32.mrb[0].mxu0
    %v8219 = vpop.f32.mrb[0].mxu0
    %8220 = vdwg.mxu0
    %8221 = vmatprep.subr.bf16.mxu0 0
    %8222 = vmatpush1.bf16.msra.mxu0 %v5845
    %8223 = vmatprep.subr.bf16.mxu0 0
    %8224 = vmatpush1.bf16.msra.mxu0 %v5846
    %8225 = vmatprep.subr.bf16.mxu0 0
    %8226 = vmatpush1.bf16.msra.mxu0 %v5847
    %8227 = vmatprep.subr.bf16.mxu0 0
    %8228 = vmatpush1.bf16.msra.mxu0 %v5848
    %8229 = vmatprep.subr.bf16.mxu0 0
    %8230 = vmatpush1.bf16.msra.mxu0 %v5849
    %8231 = vmatprep.subr.bf16.mxu0 0
    %8232 = vmatpush1.bf16.msra.mxu0 %v5850
    %8233 = vmatprep.subr.bf16.mxu0 0
    %8234 = vmatpush1.bf16.msra.mxu0 %v5851
    %8235 = vmatprep.subr.bf16.mxu0 0
    %8236 = vmatpush1.bf16.msra.mxu0 %v5852
    %8237 = vmatprep.subr.bf16.mxu0 0
    %8238 = vmatpush1.bf16.msra.mxu0 %v5853
    %8239 = vmatprep.subr.bf16.mxu0 0
    %8240 = vmatpush1.bf16.msra.mxu0 %v5854
    %8241 = vmatprep.subr.bf16.mxu0 0
    %8242 = vmatpush1.bf16.msra.mxu0 %v5855
    %8243 = vmatprep.subr.bf16.mxu0 0
    %8244 = vmatpush1.bf16.msra.mxu0 %v5856
    %8245 = vmatprep.subr.bf16.mxu0 0
    %8246 = vmatpush1.bf16.msra.mxu0 %v5857
    %8247 = vmatprep.subr.bf16.mxu0 0
    %8248 = vmatpush1.bf16.msra.mxu0 %v5858
    %8249 = vmatprep.subr.bf16.mxu0 0
    %8250 = vmatpush1.bf16.msra.mxu0 %v5859
    %8251 = vmatprep.subr.bf16.mxu0 0
    %8252 = vmatpush1.bf16.msra.mxu0 %v5860
    %8253 = vmatprep.mubr.bf16.mxu0 %v645
    %8254 = vmatmul.mubr.bf16.gmra.mrb[0].mxu0 %v644
    %v8255 = vpop.f32.mrb[0].mxu0
    %v8256 = vadd.f32 %v8216, %v8255
    %v8257 = vpop.f32.mrb[0].mxu0
    %v8258 = vpop.f32.mrb[0].mxu0
    %v8259 = vpop.f32.mrb[0].mxu0
    %8260 = vdwg.mxu0
    %8261 = vmatprep.subr.bf16.mxu0 0
    %8262 = vmatpush1.bf16.msra.mxu0 %v5861
    %8263 = vmatprep.subr.bf16.mxu0 0
    %8264 = vmatpush1.bf16.msra.mxu0 %v5862
    %8265 = vmatprep.subr.bf16.mxu0 0
    %8266 = vmatpush1.bf16.msra.mxu0 %v5863
    %8267 = vmatprep.subr.bf16.mxu0 0
    %8268 = vmatpush1.bf16.msra.mxu0 %v5864
    %8269 = vmatprep.subr.bf16.mxu0 0
    %8270 = vmatpush1.bf16.msra.mxu0 %v5865
    %8271 = vmatprep.subr.bf16.mxu0 0
    %8272 = vmatpush1.bf16.msra.mxu0 %v5866
    %8273 = vmatprep.subr.bf16.mxu0 0
    %8274 = vmatpush1.bf16.msra.mxu0 %v5867
    %8275 = vmatprep.subr.bf16.mxu0 0
    %8276 = vmatpush1.bf16.msra.mxu0 %v5868
    %8277 = vmatprep.subr.bf16.mxu0 0
    %8278 = vmatpush1.bf16.msra.mxu0 %v5869
    %8279 = vmatprep.subr.bf16.mxu0 0
    %8280 = vmatpush1.bf16.msra.mxu0 %v5870
    %8281 = vmatprep.subr.bf16.mxu0 0
    %8282 = vmatpush1.bf16.msra.mxu0 %v5871
    %8283 = vmatprep.subr.bf16.mxu0 0
    %8284 = vmatpush1.bf16.msra.mxu0 %v5872
    %8285 = vmatprep.subr.bf16.mxu0 0
    %8286 = vmatpush1.bf16.msra.mxu0 %v5873
    %8287 = vmatprep.subr.bf16.mxu0 0
    %8288 = vmatpush1.bf16.msra.mxu0 %v5874
    %8289 = vmatprep.subr.bf16.mxu0 0
    %8290 = vmatpush1.bf16.msra.mxu0 %v5875
    %8291 = vmatprep.subr.bf16.mxu0 0
    %8292 = vmatpush1.bf16.msra.mxu0 %v5876
    %8293 = vmatprep.mubr.bf16.mxu0 %v647
    %8294 = vmatmul.mubr.bf16.gmra.mrb[0].mxu0 %v646
    %v8295 = vpop.f32.mrb[0].mxu0
    %v8296 = vadd.f32 %v8256, %v8295
    %v8297 = vpop.f32.mrb[0].mxu0
    %v8298 = vpop.f32.mrb[0].mxu0
    %v8299 = vpop.f32.mrb[0].mxu0
    %8300 = vdwg.mxu0
    %8301 = vmatprep.subr.bf16.mxu0 0
    %8302 = vmatpush1.bf16.msra.mxu0 %v5877
    %8303 = vmatprep.subr.bf16.mxu0 0
    %8304 = vmatpush1.bf16.msra.mxu0 %v5878
    %8305 = vmatprep.subr.bf16.mxu0 0
    %8306 = vmatpush1.bf16.msra.mxu0 %v5879
    %8307 = vmatprep.subr.bf16.mxu0 0
    %8308 = vmatpush1.bf16.msra.mxu0 %v5880
    %8309 = vmatprep.subr.bf16.mxu0 0
    %8310 = vmatpush1.bf16.msra.mxu0 %v5881
    %8311 = vmatprep.subr.bf16.mxu0 0
    %8312 = vmatpush1.bf16.msra.mxu0 %v5882
    %8313 = vmatprep.subr.bf16.mxu0 0
    %8314 = vmatpush1.bf16.msra.mxu0 %v5883
    %8315 = vmatprep.subr.bf16.mxu0 0
    %8316 = vmatpush1.bf16.msra.mxu0 %v5884
    %8317 = vmatprep.subr.bf16.mxu0 0
    %8318 = vmatpush1.bf16.msra.mxu0 %v5885
    %8319 = vmatprep.subr.bf16.mxu0 0
    %8320 = vmatpush1.bf16.msra.mxu0 %v5886
    %8321 = vmatprep.subr.bf16.mxu0 0
    %8322 = vmatpush1.bf16.msra.mxu0 %v5887
    %8323 = vmatprep.subr.bf16.mxu0 0
    %8324 = vmatpush1.bf16.msra.mxu0 %v5888
    %8325 = vmatprep.subr.bf16.mxu0 0
    %8326 = vmatpush1.bf16.msra.mxu0 %v5889
    %8327 = vmatprep.subr.bf16.mxu0 0
    %8328 = vmatpush1.bf16.msra.mxu0 %v5890
    %8329 = vmatprep.subr.bf16.mxu0 0
    %8330 = vmatpush1.bf16.msra.mxu0 %v5891
    %8331 = vmatprep.subr.bf16.mxu0 0
    %8332 = vmatpush1.bf16.msra.mxu0 %v5892
    %8333 = vmatprep.mubr.bf16.mxu0 %v649
    %8334 = vmatmul.mubr.bf16.gmra.mrb[0].mxu0 %v648
    %v8335 = vpop.f32.mrb[0].mxu0
    %v8336 = vadd.f32 %v8296, %v8335
    %v8337 = vpop.f32.mrb[0].mxu0
    %v8338 = vpop.f32.mrb[0].mxu0
    %v8339 = vpop.f32.mrb[0].mxu0
    %8340 = vdwg.mxu0
    %8341 = vmatprep.subr.bf16.mxu0 0
    %8342 = vmatpush1.bf16.msra.mxu0 %v5893
    %8343 = vmatprep.subr.bf16.mxu0 0
    %8344 = vmatpush1.bf16.msra.mxu0 %v5894
    %8345 = vmatprep.subr.bf16.mxu0 0
    %8346 = vmatpush1.bf16.msra.mxu0 %v5895
    %8347 = vmatprep.subr.bf16.mxu0 0
    %8348 = vmatpush1.bf16.msra.mxu0 %v5896
    %8349 = vmatprep.subr.bf16.mxu0 0
    %8350 = vmatpush1.bf16.msra.mxu0 %v5897
    %8351 = vmatprep.subr.bf16.mxu0 0
    %8352 = vmatpush1.bf16.msra.mxu0 %v5898
    %8353 = vmatprep.subr.bf16.mxu0 0
    %8354 = vmatpush1.bf16.msra.mxu0 %v5899
    %8355 = vmatprep.subr.bf16.mxu0 0
    %8356 = vmatpush1.bf16.msra.mxu0 %v5900
    %8357 = vmatprep.subr.bf16.mxu0 0
    %8358 = vmatpush1.bf16.msra.mxu0 %v5901
    %8359 = vmatprep.subr.bf16.mxu0 0
    %8360 = vmatpush1.bf16.msra.mxu0 %v5902
    %8361 = vmatprep.subr.bf16.mxu0 0
    %8362 = vmatpush1.bf16.msra.mxu0 %v5903
    %8363 = vmatprep.subr.bf16.mxu0 0
    %8364 = vmatpush1.bf16.msra.mxu0 %v5904
    %8365 = vmatprep.subr.bf16.mxu0 0
    %8366 = vmatpush1.bf16.msra.mxu0 %v5905
    %8367 = vmatprep.subr.bf16.mxu0 0
    %8368 = vmatpush1.bf16.msra.mxu0 %v5906
    %8369 = vmatprep.subr.bf16.mxu0 0
    %8370 = vmatpush1.bf16.msra.mxu0 %v5907
    %8371 = vmatprep.subr.bf16.mxu0 0
    %8372 = vmatpush1.bf16.msra.mxu0 %v5908
    %8373 = vmatprep.mubr.bf16.mxu0 %v651
    %8374 = vmatmul.mubr.bf16.gmra.mrb[0].mxu0 %v650
    %v8375 = vpop.f32.mrb[0].mxu0
    %v8376 = vadd.f32 %v8336, %v8375
    %v8377 = vpop.f32.mrb[0].mxu0
    %v8378 = vpop.f32.mrb[0].mxu0
    %v8379 = vpop.f32.mrb[0].mxu0
    %8380 = vdwg.mxu0
    %8381 = vmatprep.subr.bf16.mxu0 0
    %8382 = vmatpush1.bf16.msra.mxu0 %v5909
    %8383 = vmatprep.subr.bf16.mxu0 0
    %8384 = vmatpush1.bf16.msra.mxu0 %v5910
    %8385 = vmatprep.subr.bf16.mxu0 0
    %8386 = vmatpush1.bf16.msra.mxu0 %v5911
    %8387 = vmatprep.subr.bf16.mxu0 0
    %8388 = vmatpush1.bf16.msra.mxu0 %v5912
    %8389 = vmatprep.subr.bf16.mxu0 0
    %8390 = vmatpush1.bf16.msra.mxu0 %v5913
    %8391 = vmatprep.subr.bf16.mxu0 0
    %8392 = vmatpush1.bf16.msra.mxu0 %v5914
    %8393 = vmatprep.subr.bf16.mxu0 0
    %8394 = vmatpush1.bf16.msra.mxu0 %v5915
    %8395 = vmatprep.subr.bf16.mxu0 0
    %8396 = vmatpush1.bf16.msra.mxu0 %v5916
    %8397 = vmatprep.subr.bf16.mxu0 0
    %8398 = vmatpush1.bf16.msra.mxu0 %v5917
    %8399 = vmatprep.subr.bf16.mxu0 0
    %8400 = vmatpush1.bf16.msra.mxu0 %v5918
    %8401 = vmatprep.subr.bf16.mxu0 0
    %8402 = vmatpush1.bf16.msra.mxu0 %v5919
    %8403 = vmatprep.subr.bf16.mxu0 0
    %8404 = vmatpush1.bf16.msra.mxu0 %v5920
    %8405 = vmatprep.subr.bf16.mxu0 0
    %8406 = vmatpush1.bf16.msra.mxu0 %v5921
    %8407 = vmatprep.subr.bf16.mxu0 0
    %8408 = vmatpush1.bf16.msra.mxu0 %v5922
    %8409 = vmatprep.subr.bf16.mxu0 0
    %8410 = vmatpush1.bf16.msra.mxu0 %v5923
    %8411 = vmatprep.subr.bf16.mxu0 0
    %8412 = vmatpush1.bf16.msra.mxu0 %v5924
    %8413 = vmatprep.mubr.bf16.mxu0 %v653
    %8414 = vmatmul.mubr.bf16.gmra.mrb[0].mxu0 %v652
    %v8415 = vpop.f32.mrb[0].mxu0
    %v8416 = vadd.f32 %v8376, %v8415
    %v8417 = vpop.f32.mrb[0].mxu0
    %v8418 = vpop.f32.mrb[0].mxu0
    %v8419 = vpop.f32.mrb[0].mxu0
    %8420 = vdwg.mxu0
    %8421 = vmatprep.subr.bf16.mxu0 0
    %8422 = vmatpush1.bf16.msra.mxu0 %v5925
    %8423 = vmatprep.subr.bf16.mxu0 0
    %8424 = vmatpush1.bf16.msra.mxu0 %v5926
    %8425 = vmatprep.subr.bf16.mxu0 0
    %8426 = vmatpush1.bf16.msra.mxu0 %v5927
    %8427 = vmatprep.subr.bf16.mxu0 0
    %8428 = vmatpush1.bf16.msra.mxu0 %v5928
    %8429 = vmatprep.subr.bf16.mxu0 0
    %8430 = vmatpush1.bf16.msra.mxu0 %v5929
    %8431 = vmatprep.subr.bf16.mxu0 0
    %8432 = vmatpush1.bf16.msra.mxu0 %v5930
    %8433 = vmatprep.subr.bf16.mxu0 0
    %8434 = vmatpush1.bf16.msra.mxu0 %v5931
    %8435 = vmatprep.subr.bf16.mxu0 0
    %8436 = vmatpush1.bf16.msra.mxu0 %v5932
    %8437 = vmatprep.subr.bf16.mxu0 0
    %8438 = vmatpush1.bf16.msra.mxu0 %v5933
    %8439 = vmatprep.subr.bf16.mxu0 0
    %8440 = vmatpush1.bf16.msra.mxu0 %v5934
    %8441 = vmatprep.subr.bf16.mxu0 0
    %8442 = vmatpush1.bf16.msra.mxu0 %v5935
    %8443 = vmatprep.subr.bf16.mxu0 0
    %8444 = vmatpush1.bf16.msra.mxu0 %v5936
    %8445 = vmatprep.subr.bf16.mxu0 0
    %8446 = vmatpush1.bf16.msra.mxu0 %v5937
    %8447 = vmatprep.subr.bf16.mxu0 0
    %8448 = vmatpush1.bf16.msra.mxu0 %v5938
    %8449 = vmatprep.subr.bf16.mxu0 0
    %8450 = vmatpush1.bf16.msra.mxu0 %v5939
    %8451 = vmatprep.subr.bf16.mxu0 0
    %8452 = vmatpush1.bf16.msra.mxu0 %v5940
    %8453 = vmatprep.mubr.bf16.mxu0 %v655
    %8454 = vmatmul.mubr.bf16.gmra.mrb[0].mxu0 %v654
    %v8455 = vpop.f32.mrb[0].mxu0
    %v8456 = vadd.f32 %v8416, %v8455
    %v8457 = vpop.f32.mrb[0].mxu0
    %v8458 = vpop.f32.mrb[0].mxu0
    %v8459 = vpop.f32.mrb[0].mxu0
    %8460 = vdwg.mxu0
    %8461 = vmatprep.subr.bf16.mxu0 0
    %8462 = vmatpush1.bf16.msra.mxu0 %v5941
    %8463 = vmatprep.subr.bf16.mxu0 0
    %8464 = vmatpush1.bf16.msra.mxu0 %v5942
    %8465 = vmatprep.subr.bf16.mxu0 0
    %8466 = vmatpush1.bf16.msra.mxu0 %v5943
    %8467 = vmatprep.subr.bf16.mxu0 0
    %8468 = vmatpush1.bf16.msra.mxu0 %v5944
    %8469 = vmatprep.subr.bf16.mxu0 0
    %8470 = vmatpush1.bf16.msra.mxu0 %v5945
    %8471 = vmatprep.subr.bf16.mxu0 0
    %8472 = vmatpush1.bf16.msra.mxu0 %v5946
    %8473 = vmatprep.subr.bf16.mxu0 0
    %8474 = vmatpush1.bf16.msra.mxu0 %v5947
    %8475 = vmatprep.subr.bf16.mxu0 0
    %8476 = vmatpush1.bf16.msra.mxu0 %v5948
    %8477 = vmatprep.subr.bf16.mxu0 0
    %8478 = vmatpush1.bf16.msra.mxu0 %v5949
    %8479 = vmatprep.subr.bf16.mxu0 0
    %8480 = vmatpush1.bf16.msra.mxu0 %v5950
    %8481 = vmatprep.subr.bf16.mxu0 0
    %8482 = vmatpush1.bf16.msra.mxu0 %v5951
    %8483 = vmatprep.subr.bf16.mxu0 0
    %8484 = vmatpush1.bf16.msra.mxu0 %v5952
    %8485 = vmatprep.subr.bf16.mxu0 0
    %8486 = vmatpush1.bf16.msra.mxu0 %v5953
    %8487 = vmatprep.subr.bf16.mxu0 0
    %8488 = vmatpush1.bf16.msra.mxu0 %v5954
    %8489 = vmatprep.subr.bf16.mxu0 0
    %8490 = vmatpush1.bf16.msra.mxu0 %v5955
    %8491 = vmatprep.subr.bf16.mxu0 0
    %8492 = vmatpush1.bf16.msra.mxu0 %v5956
    %8493 = vmatprep.mubr.bf16.mxu0 %v657
    %8494 = vmatmul.mubr.bf16.gmra.mrb[0].mxu0 %v656
    %v8495 = vpop.f32.mrb[0].mxu0
    %v8496 = vadd.f32 %v8456, %v8495
    %v8497 = vpop.f32.mrb[0].mxu0
    %v8498 = vpop.f32.mrb[0].mxu0
    %v8499 = vpop.f32.mrb[0].mxu0
    %8500 = vdwg.mxu0
    %8501 = vmatprep.subr.bf16.mxu0 0
    %8502 = vmatpush1.bf16.msra.mxu0 %v5957
    %8503 = vmatprep.subr.bf16.mxu0 0
    %8504 = vmatpush1.bf16.msra.mxu0 %v5958
    %8505 = vmatprep.subr.bf16.mxu0 0
    %8506 = vmatpush1.bf16.msra.mxu0 %v5959
    %8507 = vmatprep.subr.bf16.mxu0 0
    %8508 = vmatpush1.bf16.msra.mxu0 %v5960
    %8509 = vmatprep.subr.bf16.mxu0 0
    %8510 = vmatpush1.bf16.msra.mxu0 %v5961
    %8511 = vmatprep.subr.bf16.mxu0 0
    %8512 = vmatpush1.bf16.msra.mxu0 %v5962
    %8513 = vmatprep.subr.bf16.mxu0 0
    %8514 = vmatpush1.bf16.msra.mxu0 %v5963
    %8515 = vmatprep.subr.bf16.mxu0 0
    %8516 = vmatpush1.bf16.msra.mxu0 %v5964
    %8517 = vmatprep.subr.bf16.mxu0 0
    %8518 = vmatpush1.bf16.msra.mxu0 %v5965
    %8519 = vmatprep.subr.bf16.mxu0 0
    %8520 = vmatpush1.bf16.msra.mxu0 %v5966
    %8521 = vmatprep.subr.bf16.mxu0 0
    %8522 = vmatpush1.bf16.msra.mxu0 %v5967
    %8523 = vmatprep.subr.bf16.mxu0 0
    %8524 = vmatpush1.bf16.msra.mxu0 %v5968
    %8525 = vmatprep.subr.bf16.mxu0 0
    %8526 = vmatpush1.bf16.msra.mxu0 %v5969
    %8527 = vmatprep.subr.bf16.mxu0 0
    %8528 = vmatpush1.bf16.msra.mxu0 %v5970
    %8529 = vmatprep.subr.bf16.mxu0 0
    %8530 = vmatpush1.bf16.msra.mxu0 %v5971
    %8531 = vmatprep.subr.bf16.mxu0 0
    %8532 = vmatpush1.bf16.msra.mxu0 %v5972
    %8533 = vmatprep.mubr.bf16.mxu0 %v659
    %8534 = vmatmul.mubr.bf16.gmra.mrb[0].mxu0 %v658
    %v8535 = vpop.f32.mrb[0].mxu0
    %v8536 = vadd.f32 %v8496, %v8535
    %v8537 = vpop.f32.mrb[0].mxu0
    %v8538 = vpop.f32.mrb[0].mxu0
    %v8539 = vpop.f32.mrb[0].mxu0
    %8540 = vdwg.mxu0
    %8541 = vmatprep.subr.bf16.mxu0 0
    %8542 = vmatpush1.bf16.msra.mxu0 %v5973
    %8543 = vmatprep.subr.bf16.mxu0 0
    %8544 = vmatpush1.bf16.msra.mxu0 %v5974
    %8545 = vmatprep.subr.bf16.mxu0 0
    %8546 = vmatpush1.bf16.msra.mxu0 %v5975
    %8547 = vmatprep.subr.bf16.mxu0 0
    %8548 = vmatpush1.bf16.msra.mxu0 %v5976
    %8549 = vmatprep.subr.bf16.mxu0 0
    %8550 = vmatpush1.bf16.msra.mxu0 %v5977
    %8551 = vmatprep.subr.bf16.mxu0 0
    %8552 = vmatpush1.bf16.msra.mxu0 %v5978
    %8553 = vmatprep.subr.bf16.mxu0 0
    %8554 = vmatpush1.bf16.msra.mxu0 %v5979
    %8555 = vmatprep.subr.bf16.mxu0 0
    %8556 = vmatpush1.bf16.msra.mxu0 %v5980
    %8557 = vmatprep.subr.bf16.mxu0 0
    %8558 = vmatpush1.bf16.msra.mxu0 %v5981
    %8559 = vmatprep.subr.bf16.mxu0 0
    %8560 = vmatpush1.bf16.msra.mxu0 %v5982
    %8561 = vmatprep.subr.bf16.mxu0 0
    %8562 = vmatpush1.bf16.msra.mxu0 %v5983
    %8563 = vmatprep.subr.bf16.mxu0 0
    %8564 = vmatpush1.bf16.msra.mxu0 %v5984
    %8565 = vmatprep.subr.bf16.mxu0 0
    %8566 = vmatpush1.bf16.msra.mxu0 %v5985
    %8567 = vmatprep.subr.bf16.mxu0 0
    %8568 = vmatpush1.bf16.msra.mxu0 %v5986
    %8569 = vmatprep.subr.bf16.mxu0 0
    %8570 = vmatpush1.bf16.msra.mxu0 %v5987
    %8571 = vmatprep.subr.bf16.mxu0 0
    %8572 = vmatpush1.bf16.msra.mxu0 %v5988
    %8573 = vmatprep.mubr.bf16.mxu0 %v661
    %8574 = vmatmul.mubr.bf16.gmra.mrb[0].mxu0 %v660
    %v8575 = vpop.f32.mrb[0].mxu0
    %v8576 = vadd.f32 %v8536, %v8575
    %v8577 = vpop.f32.mrb[0].mxu0
    %v8578 = vpop.f32.mrb[0].mxu0
    %v8579 = vpop.f32.mrb[0].mxu0
    %8580 = vdwg.mxu0
    %8581 = vmatprep.subr.bf16.mxu0 0
    %8582 = vmatpush1.bf16.msra.mxu0 %v5989
    %8583 = vmatprep.subr.bf16.mxu0 0
    %8584 = vmatpush1.bf16.msra.mxu0 %v5990
    %8585 = vmatprep.subr.bf16.mxu0 0
    %8586 = vmatpush1.bf16.msra.mxu0 %v5991
    %8587 = vmatprep.subr.bf16.mxu0 0
    %8588 = vmatpush1.bf16.msra.mxu0 %v5992
    %8589 = vmatprep.subr.bf16.mxu0 0
    %8590 = vmatpush1.bf16.msra.mxu0 %v5993
    %8591 = vmatprep.subr.bf16.mxu0 0
    %8592 = vmatpush1.bf16.msra.mxu0 %v5994
    %8593 = vmatprep.subr.bf16.mxu0 0
    %8594 = vmatpush1.bf16.msra.mxu0 %v5995
    %8595 = vmatprep.subr.bf16.mxu0 0
    %8596 = vmatpush1.bf16.msra.mxu0 %v5996
    %8597 = vmatprep.subr.bf16.mxu0 0
    %8598 = vmatpush1.bf16.msra.mxu0 %v5997
    %8599 = vmatprep.subr.bf16.mxu0 0
    %8600 = vmatpush1.bf16.msra.mxu0 %v5998
    %8601 = vmatprep.subr.bf16.mxu0 0
    %8602 = vmatpush1.bf16.msra.mxu0 %v5999
    %8603 = vmatprep.subr.bf16.mxu0 0
    %8604 = vmatpush1.bf16.msra.mxu0 %v6000
    %8605 = vmatprep.subr.bf16.mxu0 0
    %8606 = vmatpush1.bf16.msra.mxu0 %v6001
    %8607 = vmatprep.subr.bf16.mxu0 0
    %8608 = vmatpush1.bf16.msra.mxu0 %v6002
    %8609 = vmatprep.subr.bf16.mxu0 0
    %8610 = vmatpush1.bf16.msra.mxu0 %v6003
    %8611 = vmatprep.subr.bf16.mxu0 0
    %8612 = vmatpush1.bf16.msra.mxu0 %v6004
    %8613 = vmatprep.mubr.bf16.mxu0 %v663
    %8614 = vmatmul.mubr.bf16.gmra.mrb[0].mxu0 %v662
    %v8615 = vpop.f32.mrb[0].mxu0
    %v8616 = vadd.f32 %v8576, %v8615
    %v8617 = vpop.f32.mrb[0].mxu0
    %v8618 = vpop.f32.mrb[0].mxu0
    %v8619 = vpop.f32.mrb[0].mxu0
    %8620 = vdwg.mxu0
    %8621 = vmatprep.subr.bf16.mxu0 0
    %8622 = vmatpush1.bf16.msra.mxu0 %v6005
    %8623 = vmatprep.subr.bf16.mxu0 0
    %8624 = vmatpush1.bf16.msra.mxu0 %v6006
    %8625 = vmatprep.subr.bf16.mxu0 0
    %8626 = vmatpush1.bf16.msra.mxu0 %v6007
    %8627 = vmatprep.subr.bf16.mxu0 0
    %8628 = vmatpush1.bf16.msra.mxu0 %v6008
    %8629 = vmatprep.subr.bf16.mxu0 0
    %8630 = vmatpush1.bf16.msra.mxu0 %v6009
    %8631 = vmatprep.subr.bf16.mxu0 0
    %8632 = vmatpush1.bf16.msra.mxu0 %v6010
    %8633 = vmatprep.subr.bf16.mxu0 0
    %8634 = vmatpush1.bf16.msra.mxu0 %v6011
    %8635 = vmatprep.subr.bf16.mxu0 0
    %8636 = vmatpush1.bf16.msra.mxu0 %v6012
    %8637 = vmatprep.subr.bf16.mxu0 0
    %8638 = vmatpush1.bf16.msra.mxu0 %v6013
    %8639 = vmatprep.subr.bf16.mxu0 0
    %8640 = vmatpush1.bf16.msra.mxu0 %v6014
    %8641 = vmatprep.subr.bf16.mxu0 0
    %8642 = vmatpush1.bf16.msra.mxu0 %v6015
    %8643 = vmatprep.subr.bf16.mxu0 0
    %8644 = vmatpush1.bf16.msra.mxu0 %v6016
    %8645 = vmatprep.subr.bf16.mxu0 0
    %8646 = vmatpush1.bf16.msra.mxu0 %v6017
    %8647 = vmatprep.subr.bf16.mxu0 0
    %8648 = vmatpush1.bf16.msra.mxu0 %v6018
    %8649 = vmatprep.subr.bf16.mxu0 0
    %8650 = vmatpush1.bf16.msra.mxu0 %v6019
    %8651 = vmatprep.subr.bf16.mxu0 0
    %8652 = vmatpush1.bf16.msra.mxu0 %v6020
    %8653 = vmatprep.mubr.bf16.mxu0 %v665
    %8654 = vmatmul.mubr.bf16.gmra.mrb[0].mxu0 %v664
    %v8655 = vpop.f32.mrb[0].mxu0
    %v8656 = vadd.f32 %v8616, %v8655
    %v8657 = vpop.f32.mrb[0].mxu0
    %v8658 = vpop.f32.mrb[0].mxu0
    %v8659 = vpop.f32.mrb[0].mxu0
    %8660 = vdwg.mxu0
    %8661 = vmatprep.subr.bf16.mxu0 0
    %8662 = vmatpush1.bf16.msra.mxu0 %v6021
    %8663 = vmatprep.subr.bf16.mxu0 0
    %8664 = vmatpush1.bf16.msra.mxu0 %v6022
    %8665 = vmatprep.subr.bf16.mxu0 0
    %8666 = vmatpush1.bf16.msra.mxu0 %v6023
    %8667 = vmatprep.subr.bf16.mxu0 0
    %8668 = vmatpush1.bf16.msra.mxu0 %v6024
    %8669 = vmatprep.subr.bf16.mxu0 0
    %8670 = vmatpush1.bf16.msra.mxu0 %v6025
    %8671 = vmatprep.subr.bf16.mxu0 0
    %8672 = vmatpush1.bf16.msra.mxu0 %v6026
    %8673 = vmatprep.subr.bf16.mxu0 0
    %8674 = vmatpush1.bf16.msra.mxu0 %v6027
    %8675 = vmatprep.subr.bf16.mxu0 0
    %8676 = vmatpush1.bf16.msra.mxu0 %v6028
    %8677 = vmatprep.subr.bf16.mxu0 0
    %8678 = vmatpush1.bf16.msra.mxu0 %v6029
    %8679 = vmatprep.subr.bf16.mxu0 0
    %8680 = vmatpush1.bf16.msra.mxu0 %v6030
    %8681 = vmatprep.subr.bf16.mxu0 0
    %8682 = vmatpush1.bf16.msra.mxu0 %v6031
    %8683 = vmatprep.subr.bf16.mxu0 0
    %8684 = vmatpush1.bf16.msra.mxu0 %v6032
    %8685 = vmatprep.subr.bf16.mxu0 0
    %8686 = vmatpush1.bf16.msra.mxu0 %v6033
    %8687 = vmatprep.subr.bf16.mxu0 0
    %8688 = vmatpush1.bf16.msra.mxu0 %v6034
    %8689 = vmatprep.subr.bf16.mxu0 0
    %8690 = vmatpush1.bf16.msra.mxu0 %v6035
    %8691 = vmatprep.subr.bf16.mxu0 0
    %8692 = vmatpush1.bf16.msra.mxu0 %v6036
    %8693 = vmatprep.mubr.bf16.mxu0 %v667
    %8694 = vmatmul.mubr.bf16.gmra.mrb[0].mxu0 %v666
    %v8695 = vpop.f32.mrb[0].mxu0
    %v8696 = vadd.f32 %v8656, %v8695
    %v8697 = vpop.f32.mrb[0].mxu0
    %v8698 = vpop.f32.mrb[0].mxu0
    %v8699 = vpop.f32.mrb[0].mxu0
    %8700 = vdwg.mxu0
    %8701 = vmatprep.subr.bf16.mxu0 0
    %8702 = vmatpush1.bf16.msra.mxu0 %v6037
    %8703 = vmatprep.subr.bf16.mxu0 0
    %8704 = vmatpush1.bf16.msra.mxu0 %v6038
    %8705 = vmatprep.subr.bf16.mxu0 0
    %8706 = vmatpush1.bf16.msra.mxu0 %v6039
    %8707 = vmatprep.subr.bf16.mxu0 0
    %8708 = vmatpush1.bf16.msra.mxu0 %v6040
    %8709 = vmatprep.subr.bf16.mxu0 0
    %8710 = vmatpush1.bf16.msra.mxu0 %v6041
    %8711 = vmatprep.subr.bf16.mxu0 0
    %8712 = vmatpush1.bf16.msra.mxu0 %v6042
    %8713 = vmatprep.subr.bf16.mxu0 0
    %8714 = vmatpush1.bf16.msra.mxu0 %v6043
    %8715 = vmatprep.subr.bf16.mxu0 0
    %8716 = vmatpush1.bf16.msra.mxu0 %v6044
    %8717 = vmatprep.subr.bf16.mxu0 0
    %8718 = vmatpush1.bf16.msra.mxu0 %v6045
    %8719 = vmatprep.subr.bf16.mxu0 0
    %8720 = vmatpush1.bf16.msra.mxu0 %v6046
    %8721 = vmatprep.subr.bf16.mxu0 0
    %8722 = vmatpush1.bf16.msra.mxu0 %v6047
    %8723 = vmatprep.subr.bf16.mxu0 0
    %8724 = vmatpush1.bf16.msra.mxu0 %v6048
    %8725 = vmatprep.subr.bf16.mxu0 0
    %8726 = vmatpush1.bf16.msra.mxu0 %v6049
    %8727 = vmatprep.subr.bf16.mxu0 0
    %8728 = vmatpush1.bf16.msra.mxu0 %v6050
    %8729 = vmatprep.subr.bf16.mxu0 0
    %8730 = vmatpush1.bf16.msra.mxu0 %v6051
    %8731 = vmatprep.subr.bf16.mxu0 0
    %8732 = vmatpush1.bf16.msra.mxu0 %v6052
    %8733 = vmatprep.mubr.bf16.mxu0 %v669
    %8734 = vmatmul.mubr.bf16.gmra.mrb[0].mxu0 %v668
    %v8735 = vpop.f32.mrb[0].mxu0
    %v8736 = vadd.f32 %v8696, %v8735
    %v8737 = vpop.f32.mrb[0].mxu0
    %v8738 = vpop.f32.mrb[0].mxu0
    %v8739 = vpop.f32.mrb[0].mxu0
    %8740 = vdwg.mxu0
    %v8741 = vmax.f32 %v8736, 0.0
    %v8742 = vld [vmem:[%s3] sm:$0xff]
    %v8743 = vld [vmem:[%s3 + $0x8] sm:$0x3]
    %v8744 = vld [vmem:[%s4] sm:$0x1]
    %v8746 = vlaneseq
    %v8747 = vshrl.u32 %v8746, 7
    %v8748 = vsub.s32 0, %v8747
    %v8749 = vrot.slane %v8744, %v8748
    %vm8751 = vcmask 80896
    %v8753 = vsel %vm8751, %v8741, 0
    %vm8755 = vcmask 1041408
    %v8757 = vsel %vm8755, %v8743, 0
    %8759 = vmatprep.subr.mxu0 0.0
    %8760 = vmatpush1.msra.mxu0 %v8742
    %8761 = vmatprep.subr.mxu0 0.0
    %8762 = vmatpush1.msra.mxu0 %v8757
    %8763 = vmatprep.subr.mxu0 0.0
    %8764 = vmatpush1.msra.mxu0 0.0
    %8765 = vmatprep.subr.mxu0 0.0
    %8766 = vmatpush1.msra.mxu0 0.0
    %8767 = vmatprep.subr.mxu0 0.0
    %8768 = vmatpush1.msra.mxu0 0.0
    %8769 = vmatprep.subr.mxu0 0.0
    %8770 = vmatpush1.msra.mxu0 0.0
    %8771 = vmatprep.subr.mxu0 0.0
    %8772 = vmatpush1.msra.mxu0 0.0
    %8773 = vmatprep.subr.mxu0 0.0
    %8774 = vmatpush1.msra.mxu0 0.0
    %8775 = vmatprep.subr.mxu0 0.0
    %8776 = vmatpush1.msra.mxu0 0.0
    %8777 = vmatprep.subr.mxu0 0.0
    %8778 = vmatpush1.msra.mxu0 0.0
    %8779 = vmatprep.subr.mxu0 0.0
    %8780 = vmatpush1.msra.mxu0 0.0
    %8781 = vmatprep.subr.mxu0 0.0
    %8782 = vmatpush1.msra.mxu0 0.0
    %8783 = vmatprep.subr.mxu0 0.0
    %8784 = vmatpush1.msra.mxu0 0.0
    %8785 = vmatprep.subr.mxu0 0.0
    %8786 = vmatpush1.msra.mxu0 0.0
    %8787 = vmatprep.subr.mxu0 0.0
    %8788 = vmatpush1.msra.mxu0 0.0
    %8789 = vmatprep.subr.mxu0 0.0
    %8790 = vmatpush1.msra.mxu0 0.0
    %8791 = vmatprep.subr.mxu0 0.0
    %8792 = vmatpush1.msra.mxu0 0.0
    %8793 = vmatprep.subr.mxu0 0.0
    %8794 = vmatpush1.msra.mxu0 0.0
    %8795 = vmatprep.subr.mxu0 0.0
    %8796 = vmatpush1.msra.mxu0 0.0
    %8797 = vmatprep.subr.mxu0 0.0
    %8798 = vmatpush1.msra.mxu0 0.0
    %8799 = vmatprep.subr.mxu0 0.0
    %8800 = vmatpush1.msra.mxu0 0.0
    %8801 = vmatprep.subr.mxu0 0.0
    %8802 = vmatpush1.msra.mxu0 0.0
    %8803 = vmatprep.subr.mxu0 0.0
    %8804 = vmatpush1.msra.mxu0 0.0
    %8805 = vmatprep.subr.mxu0 0.0
    %8806 = vmatpush1.msra.mxu0 0.0
    %8807 = vmatprep.subr.mxu0 0.0
    %8808 = vmatpush1.msra.mxu0 0.0
    %8809 = vmatprep.subr.mxu0 0.0
    %8810 = vmatpush1.msra.mxu0 0.0
    %8811 = vmatprep.subr.mxu0 0.0
    %8812 = vmatpush1.msra.mxu0 0.0
    %8813 = vmatprep.subr.mxu0 0.0
    %8814 = vmatpush1.msra.mxu0 0.0
    %8815 = vmatprep.subr.mxu0 0.0
    %8816 = vmatpush1.msra.mxu0 0.0
    %8817 = vmatprep.subr.mxu0 0.0
    %8818 = vmatpush1.msra.mxu0 0.0
    %8819 = vmatprep.subr.mxu0 0.0
    %8820 = vmatpush1.msra.mxu0 0.0
    %8821 = vmatprep.subr.mxu0 0.0
    %8822 = vmatpush1.msra.mxu0 0.0
    %8823 = vmatprep.mubr.f32.mxu0 0.0
    %8824 = vmatmul.mubr.f32.gmra.mrb[0].mxu0 %v8753
    %v8825 = vpop.f32.mrb[0].mxu0
    %v8826 = vadd.f32 %v8749, %v8825
    %v8827 = vpop.f32.mrb[0].mxu0
    %8828 = vdwg.mxu0
    %v8829 = vmax.f32 %v8826, 0.0
    %vm8830 = vcmask 41984
    %8831 = vst.msk [vmem:[#allocation2] sm:$0x3] %vm8830, %v8829
    // Predicated region
    $region22: #{tpu_custom_call.1} parent=1 // pred_check
      _
    $region23: #{tpu_custom_call.1} parent=1 // pred_check_branch
      %8833 = sbr.rel (0) target = $region25
    $region24: #{tpu_custom_call.1} parent=1 // pred_region
      %s8835 = ssub.s32 32, 32
      %8836 = vsyncadd [#allocation3], %s8835
      %s8838 = sshll.u32 [#allocation2], 4
      %s8839 = int_to_ptr.vmem [resolvable:$true] %s8838
      %8841 = dma.vmem_to_hbm [thread:$0]  %s8839, 32, %s5, [#allocation3]
    $region25: #{tpu_custom_call.1} parent=1 // pred_fallthru
      _
    // Predicated region
    $region26: #{tpu_custom_call.1} parent=1 // pred_check
      _
    $region27: #{tpu_custom_call.1} parent=1 // pred_check_branch
      %8843 = sbr.rel (0) target = $region29
    $region28: #{tpu_custom_call.1} parent=1 // pred_region
      %8844 = dma.done [#allocation3], 32
    $region29: #{tpu_custom_call.1} parent=1 // pred_fallthru
      _
    %8845 = vsyncpa [#allocation3], 1

</llo_original>
